<compile_context>
chip_gen: v5e
topology: v5e:2x2
jax: 0.10.0
libtpu: 0.0.40
codegen_flags: <defaults>
</compile_context>

<pallas_src>
import functools

import jax
import jax.numpy as jnp
from jax.experimental import pallas as pl
from jax.experimental.pallas import tpu as pltpu


_LANE = 128
_TM_CAP = 512                       # head rows per tile at large batch
_VMEM_LIMIT = 32 * 1024 * 1024      # explicit; v5e default scoped limit is 16 MiB


def _round_up(x, m):
    return (x + m - 1) // m * m


# ------------------------------ Pallas kernels ----------------------------- #

def _conv_kernel(x_ref, w_ref, b_ref, o_ref, *, offsets, rout):
    """Implicit-GEMM conv for one image.

    x_ref: (1, R_in, Kc)  phase-decomposed, row-flattened input (bf16)
    w_ref: (G, Kc, Cop)   per-offset weight groups (bf16, resident)
    b_ref: (1, Cop)       bias (f32)
    o_ref: (1, Rout, Cop) relu(conv) output (bf16), rows = a*B + b
    """
    acc = None
    for g, off in enumerate(offsets):          # static, fully unrolled (<= 9)
        lhs = x_ref[0, pl.ds(off, rout), :]    # shifted contiguous row window
        part = jnp.dot(lhs, w_ref[g], preferred_element_type=jnp.float32)
        acc = part if acc is None else acc + part
    o_ref[0] = jnp.maximum(acc + b_ref[...], 0.0).astype(o_ref.dtype)


def _head_kernel(x_ref, w1_ref, b1_ref, w2_ref, b2_ref, o_ref):
    """Fused head: out = relu(x @ W1 + b1) @ W2 + b2.  Single full-K block."""
    h = jnp.dot(x_ref[...], w1_ref[...], preferred_element_type=jnp.float32)
    h = jnp.maximum(h + b1_ref[...], 0.0)
    y = jnp.dot(h.astype(w2_ref.dtype), w2_ref[...],
                preferred_element_type=jnp.float32)
    o_ref[...] = (y + b2_ref[...]).astype(o_ref.dtype)


# ------------------------------ kernel wrappers ---------------------------- #

def conv_layer(x, w, b, *, geo):
    """x: (N, R_in, Kc) bf16; w: (G, Kc, 128) bf16; b: (1, 128) f32."""
    n, rin, kc = x.shape
    g_cnt, kc_w, cop = w.shape
    assert kc == kc_w == geo["kc"] and rin == geo["rin"]
    rout = geo["rout"]

    kernel = functools.partial(_conv_kernel, offsets=geo["offsets"], rout=rout)
    return pl.pallas_call(
        kernel,
        out_shape=jax.ShapeDtypeStruct((n, rout, cop), jnp.bfloat16),
        grid_spec=pltpu.PrefetchScalarGridSpec(
            num_scalar_prefetch=0,
            grid=(n,),
            in_specs=[
                pl.BlockSpec((1, rin, kc), lambda i: (i, 0, 0)),
                pl.BlockSpec((g_cnt, kc, cop), lambda i: (0, 0, 0)),   # resident
                pl.BlockSpec((1, cop), lambda i: (0, 0)),              # resident
            ],
            out_specs=pl.BlockSpec((1, rout, cop), lambda i: (i, 0, 0)),
        ),
        compiler_params=pltpu.CompilerParams(
            dimension_semantics=("parallel",),
            vmem_limit_bytes=_VMEM_LIMIT,
        ),
    )(x, w, b)


def fused_head(x, w1, b1, w2, b2, *, n_out):
    """out = relu(x @ W1 + b1) @ W2 + b2; x: (M, 3136) bf16."""
    m, k = x.shape
    hidden = w1.shape[1]
    np2 = w2.shape[1]

    if m <= 8:
        tm = m                                    # single full block
    elif m <= _TM_CAP:
        tm = _round_up(pl.cdiv(m, 2), 8)          # >=2 tiles for v7x megacore
    else:
        tm = _TM_CAP
    grid_m = pl.cdiv(m, tm)

    out = pl.pallas_call(
        _head_kernel,
        out_shape=jax.ShapeDtypeStruct((m, np2), jnp.float32),
        grid_spec=pltpu.PrefetchScalarGridSpec(
            num_scalar_prefetch=0,
            grid=(grid_m,),
            in_specs=[
                pl.BlockSpec((tm, k), lambda i: (i, 0)),
                pl.BlockSpec((k, hidden), lambda i: (0, 0)),   # resident
                pl.BlockSpec((1, hidden), lambda i: (0, 0)),
                pl.BlockSpec((hidden, np2), lambda i: (0, 0)),
                pl.BlockSpec((1, np2), lambda i: (0, 0)),
            ],
            out_specs=pl.BlockSpec((tm, np2), lambda i: (i, 0)),
        ),
        compiler_params=pltpu.CompilerParams(
            dimension_semantics=("parallel",),
            vmem_limit_bytes=_VMEM_LIMIT,
        ),
    )(x, w1, b1, w2, b2)
    return out[:, :n_out]


# ----------------------------- params & geometry ---------------------------- #

def init_params(key, action_no, how_many_frames):
    """PyTorch-layout parameters (Conv2d: (C_out, C_in, KH, KW); Linear: (out, in))."""
    ks = jax.random.split(key, 10)

    def conv_w(k, shape):
        fan_in = shape[1] * shape[2] * shape[3]
        return jax.random.normal(k, shape, jnp.float32) * (1.0 / jnp.sqrt(fan_in))

    def lin_w(k, out_f, in_f):
        return jax.random.normal(k, (out_f, in_f), jnp.float32) * (1.0 / jnp.sqrt(in_f))

    return {
        "conv1_w": conv_w(ks[0], (32, how_many_frames, 8, 8)),
        "conv1_b": jax.random.normal(ks[1], (32,), jnp.float32) * 0.01,
        "conv2_w": conv_w(ks[2], (64, 32, 4, 4)),
        "conv2_b": jax.random.normal(ks[3], (64,), jnp.float32) * 0.01,
        "conv3_w": conv_w(ks[4], (64, 64, 3, 3)),
        "conv3_b": jax.random.normal(ks[5], (64,), jnp.float32) * 0.01,
        "fc1_w": lin_w(ks[6], 512, 7 * 7 * 64),
        "fc1_b": jax.random.normal(ks[7], (512,), jnp.float32) * 0.01,
        "fc2_w": lin_w(ks[8], action_no, 512),
        "fc2_b": jax.random.normal(ks[9], (action_no,), jnp.float32) * 0.01,
    }


def _conv_geometry(h, w, kh, kw, s, cin):
    a, b = h // s, w // s                 # phase-grid extents
    gh, gw = kh // s, kw // s             # offset groups per dim
    oh, ow = a - gh + 1, b - gw + 1       # valid conv output extents
    rout = _round_up(a * b, 8)            # kernel output rows (incl. junk edge rows)
    rin = rout + (gh - 1) * b + (gw - 1)  # input rows incl. zero tail padding
    offsets = tuple(q * b + p for q in range(gh) for p in range(gw))
    return dict(s=s, A=a, B=b, oh=oh, ow=ow, rout=rout, rin=rin,
                offsets=offsets, kc=s * s * cin)


def _prep_conv_weight(w, b, *, stride, cin_pad):
    """(C_out, C_in, KH, KW) torch weight -> (G, s*s*cin_pad, 128) bf16 groups."""
    c_out, c_in, kh, kw = w.shape
    s = stride
    gh, gw = kh // s, kw // s
    wr = w.reshape(c_out, c_in, gh, s, gw, s)          # (o, c, q, r, p, t)
    wr = jnp.transpose(wr, (2, 4, 3, 5, 1, 0))         # (q, p, r, t, c, o)
    if cin_pad > c_in:
        wr = jnp.pad(wr, ((0, 0),) * 4 + ((0, cin_pad - c_in), (0, 0)))
    wr = wr.reshape(gh * gw, s * s * cin_pad, c_out)
    cop = _round_up(c_out, _LANE)
    w_pad = jnp.zeros((gh * gw, s * s * cin_pad, cop), jnp.bfloat16)
    w_pad = w_pad.at[:, :, :c_out].set(wr.astype(jnp.bfloat16))
    b_pad = jnp.zeros((1, cop), jnp.float32).at[0, :c_out].set(b.astype(jnp.float32))
    return w_pad, b_pad


def prepare_params(params, *, input_hw=84):
    """One-time weight prep.  Returns (weights_pytree, static_cfg)."""
    strides = (4, 2, 1)
    names = ("conv1", "conv2", "conv3")
    conv_weights, geos = [], []
    h = w = input_hw
    cin_pad = params["conv1_w"].shape[1]            # conv1 consumes raw frames
    for name, s in zip(names, strides):
        wt, bt = params[f"{name}_w"], params[f"{name}_b"]
        c_out, c_in, kh, kw = wt.shape
        assert h % s == 0 and w % s == 0 and kh % s == 0 and kw % s == 0
        geos.append(_conv_geometry(h, w, kh, kw, s, cin_pad))
        conv_weights.append(_prep_conv_weight(wt, bt, stride=s, cin_pad=cin_pad))
        h, w = geos[-1]["oh"], geos[-1]["ow"]
        cin_pad = _round_up(c_out, _LANE)           # next layer keeps 128 channels

    # fc1: permute the torch CHW flatten columns to the HWC flatten produced by
    # the conv pipeline; keep K = 7*7*64 exactly (no padding needed).
    hidden = params["fc1_w"].shape[0]
    c3 = params["conv3_w"].shape[0]
    k1 = h * w * c3
    assert params["fc1_w"].shape[1] == k1
    fw = params["fc1_w"].reshape(hidden, c3, h, w)
    fw = jnp.transpose(fw, (0, 2, 3, 1)).reshape(hidden, k1)
    w1 = jnp.asarray(fw.T, jnp.bfloat16)                       # (3136, 512)
    b1 = params["fc1_b"].astype(jnp.float32).reshape(1, hidden)

    action_no = params["fc2_w"].shape[0]
    np2 = _round_up(action_no, _LANE)
    w2 = jnp.zeros((hidden, np2), jnp.bfloat16).at[:, :action_no].set(
        params["fc2_w"].T.astype(jnp.bfloat16))
    b2 = jnp.zeros((1, np2), jnp.float32).at[0, :action_no].set(
        params["fc2_b"].astype(jnp.float32))

    weights = {"conv": conv_weights, "head": (w1, b1, w2, b2)}
    cfg = {"conv": tuple(geos), "head_cin": c3, "head_hw": (h, w),
           "action_no": action_no}
    return weights, cfg


# --------------------------------- forward ---------------------------------- #

def dqn_forward(weights, observation, *, cfg):
    """observation: (N, frames, 84, 84) NCHW float.  Returns (N, A) f32."""
    n = observation.shape[0]
    geos = cfg["conv"]
    conv_w = weights["conv"]

    # conv1: phase-decompose the NCHW observation directly (one XLA relayout).
    g = geos[0]
    s, a, b = g["s"], g["A"], g["B"]
    c = observation.shape[1]
    x = observation.astype(jnp.bfloat16).reshape(n, c, a, s, b, s)
    x = jnp.transpose(x, (0, 2, 4, 3, 5, 1)).reshape(n, a * b, s * s * c)
    x = jnp.pad(x, ((0, 0), (0, g["rin"] - a * b), (0, 0)))
    y = conv_layer(x, *conv_w[0], geo=g)

    # conv2 / conv3: carry the lane-dense 128-channel Pallas output; each layer
    # boundary is one small slice + phase relayout (no im2col, no channel slice).
    for li in (1, 2):
        g, gp = geos[li], geos[li - 1]
        s, a, b = g["s"], g["A"], g["B"]
        v = y[:, :gp["A"] * gp["B"], :].reshape(n, gp["A"], gp["B"], -1)
        v = v[:, :gp["oh"], :gp["ow"], :]
        cp = v.shape[-1]
        v = v.reshape(n, a, s, b, s, cp)
        v = jnp.transpose(v, (0, 1, 3, 2, 4, 5)).reshape(n, a * b, s * s * cp)
        v = jnp.pad(v, ((0, 0), (0, g["rin"] - a * b), (0, 0)))
        y = conv_layer(v, *conv_w[li], geo=g)

    # head: slice the valid 7x7x64 block (HWC flatten; fc1 columns were
    # permuted to match) and run fused fc1+fc2 in a single Pallas call.
    g3 = geos[2]
    oh3, ow3 = cfg["head_hw"]
    cin = cfg["head_cin"]
    v = y[:, :g3["A"] * g3["B"], :].reshape(n, g3["A"], g3["B"], -1)
    v = v[:, :oh3, :ow3, :cin].reshape(n, oh3 * ow3 * cin)
    w1, b1, w2, b2 = weights["head"]
    return fused_head(v, w1, b1, w2, b2, n_out=cfg["action_no"])


# --------------------------------- reference -------------------------------- #

def dqn_reference(params, observation):
    """Pure-JAX f32 reference matching the PyTorch module exactly (NCHW)."""
    def conv(x, w, b, stride):
        y = jax.lax.conv_general_dilated(
            x, w, window_strides=(stride, stride), padding="VALID",
            dimension_numbers=("NCHW", "OIHW", "NCHW"))
        return jax.nn.relu(y + b[None, :, None, None])

    x = conv(observation, params["conv1_w"], params["conv1_b"], 4)
    x = conv(x, params["conv2_w"], params["conv2_b"], 2)
    x = conv(x, params["conv3_w"], params["conv3_b"], 1)
    n = x.shape[0]
    x = x.reshape(n, 7 * 7 * 64)                       # NCHW flatten, like torch .view
    x = jax.nn.relu(x @ params["fc1_w"].T + params["fc1_b"])
    return x @ params["fc2_w"].T + params["fc2_b"]


# ----------------------------------- main ----------------------------------- #

if __name__ == "__main__":
    # fc1 hard-codes 7*7*64, which forces 84x84 spatial input (standard Atari DQN).
    batch = 2
    how_many_frames = 4
    action_no = 6

    key = jax.random.PRNGKey(0)
    k_obs, k_params = jax.random.split(key)

    obs = jax.random.normal(k_obs, (batch, how_many_frames, 84, 84), jnp.float32)
    params = init_params(k_params, action_no, how_many_frames)

    weights, cfg = prepare_params(params)
    fwd = jax.jit(functools.partial(dqn_forward, cfg=cfg))

    out = jax.block_until_ready(fwd(weights, obs))
    assert out.shape == (batch, action_no), out.shape

    # Loose check vs f32 reference (kernel path uses bf16 x/w with f32 accumulate).
    ref = jax.block_until_ready(dqn_reference(params, obs))
    rel_err = float(jnp.max(jnp.abs(out - ref)) / (jnp.max(jnp.abs(ref)) + 1e-6))
    assert rel_err < 0.08, f"mismatch vs reference: rel-to-max err = {rel_err}"

    print("KERNEL_OK")
</pallas_src>

<mosaic_0001>
module attributes {stable_mosaic.version = 11 : i64} {
  func.func @_conv_kernel(%arg0: i32, %arg1: memref<1x470x64xbf16, #tpu.memory_space<vmem>>, %arg2: memref<4x64x128xbf16, #tpu.memory_space<vmem>>, %arg3: memref<1x128xf32, #tpu.memory_space<vmem>>, %arg4: memref<1x448x128xbf16, #tpu.memory_space<vmem>>) attributes {dimension_semantics = [#tpu.dimension_semantics<parallel>], iteration_bounds = array<i64: 2>, scalar_prefetch = 0 : i64, scratch_operands = 0 : i64, tpu.core_type = #tpu.core_type<tc>, window_params = [{transform_indices = @transform_0, window_bounds = array<i64: 1, 470, 64>}, {pipeline_mode = #tpu.pipeline_mode<synchronous>, transform_indices = @transform_1, window_bounds = array<i64: 4, 64, 128>}, {pipeline_mode = #tpu.pipeline_mode<synchronous>, transform_indices = @transform_2, window_bounds = array<i64: 1, 128>}, {transform_indices = @transform_3, window_bounds = array<i64: 1, 448, 128>}]} {
    %c0 = arith.constant 0 : index
    %c0_0 = arith.constant 0 : index
    %c0_1 = arith.constant 0 : index
    %0 = vector.load %arg1[%c0, %c0_0, %c0_1] : memref<1x470x64xbf16, #tpu.memory_space<vmem>>, vector<1x448x64xbf16>
    %1 = vector.shape_cast %0 : vector<1x448x64xbf16> to vector<448x64xbf16>
    %c0_2 = arith.constant 0 : index
    %c0_3 = arith.constant 0 : index
    %c0_4 = arith.constant 0 : index
    %2 = vector.load %arg2[%c0_2, %c0_3, %c0_4] : memref<4x64x128xbf16, #tpu.memory_space<vmem>>, vector<1x64x128xbf16>
    %3 = vector.shape_cast %2 : vector<1x64x128xbf16> to vector<64x128xbf16>
    %cst = arith.constant dense<0.000000e+00> : vector<448x128xf32>
    %4 = tpu.matmul %1, %3, %cst {dimension_numbers = #tpu.dot_dimension_numbers<[1], [0], [0], [1], [0, 0, 1, 1], [], []>} : vector<448x64xbf16>, vector<64x128xbf16>, vector<448x128xf32> -> vector<448x128xf32>
    %c0_5 = arith.constant 0 : index
    %c1 = arith.constant 1 : index
    %c0_6 = arith.constant 0 : index
    %5 = vector.load %arg1[%c0_5, %c1, %c0_6] : memref<1x470x64xbf16, #tpu.memory_space<vmem>>, vector<1x448x64xbf16>
    %6 = vector.shape_cast %5 : vector<1x448x64xbf16> to vector<448x64xbf16>
    %c1_7 = arith.constant 1 : index
    %c0_8 = arith.constant 0 : index
    %c0_9 = arith.constant 0 : index
    %7 = vector.load %arg2[%c1_7, %c0_8, %c0_9] : memref<4x64x128xbf16, #tpu.memory_space<vmem>>, vector<1x64x128xbf16>
    %8 = vector.shape_cast %7 : vector<1x64x128xbf16> to vector<64x128xbf16>
    %cst_10 = arith.constant dense<0.000000e+00> : vector<448x128xf32>
    %9 = tpu.matmul %6, %8, %cst_10 {dimension_numbers = #tpu.dot_dimension_numbers<[1], [0], [0], [1], [0, 0, 1, 1], [], []>} : vector<448x64xbf16>, vector<64x128xbf16>, vector<448x128xf32> -> vector<448x128xf32>
    %10 = arith.addf %4, %9 : vector<448x128xf32>
    %c0_11 = arith.constant 0 : index
    %c21 = arith.constant 21 : index
    %c0_12 = arith.constant 0 : index
    %11 = vector.load %arg1[%c0_11, %c21, %c0_12] : memref<1x470x64xbf16, #tpu.memory_space<vmem>>, vector<1x448x64xbf16>
    %12 = vector.shape_cast %11 : vector<1x448x64xbf16> to vector<448x64xbf16>
    %c2 = arith.constant 2 : index
    %c0_13 = arith.constant 0 : index
    %c0_14 = arith.constant 0 : index
    %13 = vector.load %arg2[%c2, %c0_13, %c0_14] : memref<4x64x128xbf16, #tpu.memory_space<vmem>>, vector<1x64x128xbf16>
    %14 = vector.shape_cast %13 : vector<1x64x128xbf16> to vector<64x128xbf16>
    %cst_15 = arith.constant dense<0.000000e+00> : vector<448x128xf32>
    %15 = tpu.matmul %12, %14, %cst_15 {dimension_numbers = #tpu.dot_dimension_numbers<[1], [0], [0], [1], [0, 0, 1, 1], [], []>} : vector<448x64xbf16>, vector<64x128xbf16>, vector<448x128xf32> -> vector<448x128xf32>
    %16 = arith.addf %10, %15 : vector<448x128xf32>
    %c0_16 = arith.constant 0 : index
    %c22 = arith.constant 22 : index
    %c0_17 = arith.constant 0 : index
    %17 = vector.load %arg1[%c0_16, %c22, %c0_17] : memref<1x470x64xbf16, #tpu.memory_space<vmem>>, vector<1x448x64xbf16>
    %18 = vector.shape_cast %17 : vector<1x448x64xbf16> to vector<448x64xbf16>
    %c3 = arith.constant 3 : index
    %c0_18 = arith.constant 0 : index
    %c0_19 = arith.constant 0 : index
    %19 = vector.load %arg2[%c3, %c0_18, %c0_19] : memref<4x64x128xbf16, #tpu.memory_space<vmem>>, vector<1x64x128xbf16>
    %20 = vector.shape_cast %19 : vector<1x64x128xbf16> to vector<64x128xbf16>
    %cst_20 = arith.constant dense<0.000000e+00> : vector<448x128xf32>
    %21 = tpu.matmul %18, %20, %cst_20 {dimension_numbers = #tpu.dot_dimension_numbers<[1], [0], [0], [1], [0, 0, 1, 1], [], []>} : vector<448x64xbf16>, vector<64x128xbf16>, vector<448x128xf32> -> vector<448x128xf32>
    %22 = arith.addf %16, %21 : vector<448x128xf32>
    %c0_21 = arith.constant 0 : index
    %c0_22 = arith.constant 0 : index
    %23 = vector.load %arg3[%c0_21, %c0_22] : memref<1x128xf32, #tpu.memory_space<vmem>>, vector<1x128xf32>
    %24 = vector.broadcast %23 : vector<1x128xf32> to vector<448x128xf32>
    %25 = arith.addf %22, %24 : vector<448x128xf32>
    %cst_23 = arith.constant 0.000000e+00 : f32
    %26 = vector.broadcast %cst_23 : f32 to vector<448x128xf32>
    %27 = arith.maximumf %25, %26 : vector<448x128xf32>
    %28 = arith.truncf %27 : vector<448x128xf32> to vector<448x128xbf16>
    %c0_24 = arith.constant 0 : index
    %c0_25 = arith.constant 0 : index
    %c0_26 = arith.constant 0 : index
    %29 = vector.load %arg4[%c0_24, %c0_25, %c0_26] : memref<1x448x128xbf16, #tpu.memory_space<vmem>>, vector<1x448x128xbf16>
    %30 = vector.shape_cast %29 : vector<1x448x128xbf16> to vector<448x128xbf16>
    %31 = vector.shape_cast %28 : vector<448x128xbf16> to vector<1x448x128xbf16>
    tpu.vector_store %arg4[%c0_24, %c0_25, %c0_26], %31 {strides = array<i32>} : memref<1x448x128xbf16, #tpu.memory_space<vmem>>, vector<1x448x128xbf16>,
    return
  }
  func.func @transform_0(%arg0: i32) -> (i32, i32, i32) {
    %c0_i32 = arith.constant 0 : i32
    %c0_i32_0 = arith.constant 0 : i32
    %c0_i32_1 = arith.constant 0 : i32
    return %arg0, %c0_i32, %c0_i32_0 : i32, i32, i32
  }
  func.func @transform_1(%arg0: i32) -> (i32, i32, i32) {
    %c0_i32 = arith.constant 0 : i32
    %c0_i32_0 = arith.constant 0 : i32
    %c0_i32_1 = arith.constant 0 : i32
    %c0_i32_2 = arith.constant 0 : i32
    return %c0_i32, %c0_i32_0, %c0_i32_1 : i32, i32, i32
  }
  func.func @transform_2(%arg0: i32) -> (i32, i32) {
    %c0_i32 = arith.constant 0 : i32
    %c0_i32_0 = arith.constant 0 : i32
    %c0_i32_1 = arith.constant 0 : i32
    return %c0_i32, %c0_i32_0 : i32, i32
  }
  func.func @transform_3(%arg0: i32) -> (i32, i32, i32) {
    %c0_i32 = arith.constant 0 : i32
    %c0_i32_0 = arith.constant 0 : i32
    %c0_i32_1 = arith.constant 0 : i32
    return %arg0, %c0_i32, %c0_i32_0 : i32, i32, i32
  }
}

module attributes {stable_mosaic.version = 11 : i64} {
  func.func @_conv_kernel(%arg0: i32, %arg1: memref<1x115x512xbf16, #tpu.memory_space<vmem>>, %arg2: memref<4x512x128xbf16, #tpu.memory_space<vmem>>, %arg3: memref<1x128xf32, #tpu.memory_space<vmem>>, %arg4: memref<1x104x128xbf16, #tpu.memory_space<vmem>>) attributes {dimension_semantics = [#tpu.dimension_semantics<parallel>], iteration_bounds = array<i64: 2>, scalar_prefetch = 0 : i64, scratch_operands = 0 : i64, tpu.core_type = #tpu.core_type<tc>, window_params = [{transform_indices = @transform_0, window_bounds = array<i64: 1, 115, 512>}, {pipeline_mode = #tpu.pipeline_mode<synchronous>, transform_indices = @transform_1, window_bounds = array<i64: 4, 512, 128>}, {pipeline_mode = #tpu.pipeline_mode<synchronous>, transform_indices = @transform_2, window_bounds = array<i64: 1, 128>}, {transform_indices = @transform_3, window_bounds = array<i64: 1, 104, 128>}]} {
    %c0 = arith.constant 0 : index
    %c0_0 = arith.constant 0 : index
    %c0_1 = arith.constant 0 : index
    %0 = vector.load %arg1[%c0, %c0_0, %c0_1] : memref<1x115x512xbf16, #tpu.memory_space<vmem>>, vector<1x104x512xbf16>
    %1 = vector.shape_cast %0 : vector<1x104x512xbf16> to vector<104x512xbf16>
    %c0_2 = arith.constant 0 : index
    %c0_3 = arith.constant 0 : index
    %c0_4 = arith.constant 0 : index
    %2 = vector.load %arg2[%c0_2, %c0_3, %c0_4] : memref<4x512x128xbf16, #tpu.memory_space<vmem>>, vector<1x512x128xbf16>
    %3 = vector.shape_cast %2 : vector<1x512x128xbf16> to vector<512x128xbf16>
    %cst = arith.constant dense<0.000000e+00> : vector<104x128xf32>
    %4 = tpu.matmul %1, %3, %cst {dimension_numbers = #tpu.dot_dimension_numbers<[1], [0], [0], [1], [0, 0, 1, 1], [], []>} : vector<104x512xbf16>, vector<512x128xbf16>, vector<104x128xf32> -> vector<104x128xf32>
    %c0_5 = arith.constant 0 : index
    %c1 = arith.constant 1 : index
    %c0_6 = arith.constant 0 : index
    %5 = vector.load %arg1[%c0_5, %c1, %c0_6] : memref<1x115x512xbf16, #tpu.memory_space<vmem>>, vector<1x104x512xbf16>
    %6 = vector.shape_cast %5 : vector<1x104x512xbf16> to vector<104x512xbf16>
    %c1_7 = arith.constant 1 : index
    %c0_8 = arith.constant 0 : index
    %c0_9 = arith.constant 0 : index
    %7 = vector.load %arg2[%c1_7, %c0_8, %c0_9] : memref<4x512x128xbf16, #tpu.memory_space<vmem>>, vector<1x512x128xbf16>
    %8 = vector.shape_cast %7 : vector<1x512x128xbf16> to vector<512x128xbf16>
    %cst_10 = arith.constant dense<0.000000e+00> : vector<104x128xf32>
    %9 = tpu.matmul %6, %8, %cst_10 {dimension_numbers = #tpu.dot_dimension_numbers<[1], [0], [0], [1], [0, 0, 1, 1], [], []>} : vector<104x512xbf16>, vector<512x128xbf16>, vector<104x128xf32> -> vector<104x128xf32>
    %10 = arith.addf %4, %9 : vector<104x128xf32>
    %c0_11 = arith.constant 0 : index
    %c10 = arith.constant 10 : index
    %c0_12 = arith.constant 0 : index
    %11 = vector.load %arg1[%c0_11, %c10, %c0_12] : memref<1x115x512xbf16, #tpu.memory_space<vmem>>, vector<1x104x512xbf16>
    %12 = vector.shape_cast %11 : vector<1x104x512xbf16> to vector<104x512xbf16>
    %c2 = arith.constant 2 : index
    %c0_13 = arith.constant 0 : index
    %c0_14 = arith.constant 0 : index
    %13 = vector.load %arg2[%c2, %c0_13, %c0_14] : memref<4x512x128xbf16, #tpu.memory_space<vmem>>, vector<1x512x128xbf16>
    %14 = vector.shape_cast %13 : vector<1x512x128xbf16> to vector<512x128xbf16>
    %cst_15 = arith.constant dense<0.000000e+00> : vector<104x128xf32>
    %15 = tpu.matmul %12, %14, %cst_15 {dimension_numbers = #tpu.dot_dimension_numbers<[1], [0], [0], [1], [0, 0, 1, 1], [], []>} : vector<104x512xbf16>, vector<512x128xbf16>, vector<104x128xf32> -> vector<104x128xf32>
    %16 = arith.addf %10, %15 : vector<104x128xf32>
    %c0_16 = arith.constant 0 : index
    %c11 = arith.constant 11 : index
    %c0_17 = arith.constant 0 : index
    %17 = vector.load %arg1[%c0_16, %c11, %c0_17] : memref<1x115x512xbf16, #tpu.memory_space<vmem>>, vector<1x104x512xbf16>
    %18 = vector.shape_cast %17 : vector<1x104x512xbf16> to vector<104x512xbf16>
    %c3 = arith.constant 3 : index
    %c0_18 = arith.constant 0 : index
    %c0_19 = arith.constant 0 : index
    %19 = vector.load %arg2[%c3, %c0_18, %c0_19] : memref<4x512x128xbf16, #tpu.memory_space<vmem>>, vector<1x512x128xbf16>
    %20 = vector.shape_cast %19 : vector<1x512x128xbf16> to vector<512x128xbf16>
    %cst_20 = arith.constant dense<0.000000e+00> : vector<104x128xf32>
    %21 = tpu.matmul %18, %20, %cst_20 {dimension_numbers = #tpu.dot_dimension_numbers<[1], [0], [0], [1], [0, 0, 1, 1], [], []>} : vector<104x512xbf16>, vector<512x128xbf16>, vector<104x128xf32> -> vector<104x128xf32>
    %22 = arith.addf %16, %21 : vector<104x128xf32>
    %c0_21 = arith.constant 0 : index
    %c0_22 = arith.constant 0 : index
    %23 = vector.load %arg3[%c0_21, %c0_22] : memref<1x128xf32, #tpu.memory_space<vmem>>, vector<1x128xf32>
    %24 = vector.broadcast %23 : vector<1x128xf32> to vector<104x128xf32>
    %25 = arith.addf %22, %24 : vector<104x128xf32>
    %cst_23 = arith.constant 0.000000e+00 : f32
    %26 = vector.broadcast %cst_23 : f32 to vector<104x128xf32>
    %27 = arith.maximumf %25, %26 : vector<104x128xf32>
    %28 = arith.truncf %27 : vector<104x128xf32> to vector<104x128xbf16>
    %c0_24 = arith.constant 0 : index
    %c0_25 = arith.constant 0 : index
    %c0_26 = arith.constant 0 : index
    %29 = vector.load %arg4[%c0_24, %c0_25, %c0_26] : memref<1x104x128xbf16, #tpu.memory_space<vmem>>, vector<1x104x128xbf16>
    %30 = vector.shape_cast %29 : vector<1x104x128xbf16> to vector<104x128xbf16>
    %31 = vector.shape_cast %28 : vector<104x128xbf16> to vector<1x104x128xbf16>
    tpu.vector_store %arg4[%c0_24, %c0_25, %c0_26], %31 {strides = array<i32>} : memref<1x104x128xbf16, #tpu.memory_space<vmem>>, vector<1x104x128xbf16>,
    return
  }
  func.func @transform_0(%arg0: i32) -> (i32, i32, i32) {
    %c0_i32 = arith.constant 0 : i32
    %c0_i32_0 = arith.constant 0 : i32
    %c0_i32_1 = arith.constant 0 : i32
    return %arg0, %c0_i32, %c0_i32_0 : i32, i32, i32
  }
  func.func @transform_1(%arg0: i32) -> (i32, i32, i32) {
    %c0_i32 = arith.constant 0 : i32
    %c0_i32_0 = arith.constant 0 : i32
    %c0_i32_1 = arith.constant 0 : i32
    %c0_i32_2 = arith.constant 0 : i32
    return %c0_i32, %c0_i32_0, %c0_i32_1 : i32, i32, i32
  }
  func.func @transform_2(%arg0: i32) -> (i32, i32) {
    %c0_i32 = arith.constant 0 : i32
    %c0_i32_0 = arith.constant 0 : i32
    %c0_i32_1 = arith.constant 0 : i32
    return %c0_i32, %c0_i32_0 : i32, i32
  }
  func.func @transform_3(%arg0: i32) -> (i32, i32, i32) {
    %c0_i32 = arith.constant 0 : i32
    %c0_i32_0 = arith.constant 0 : i32
    %c0_i32_1 = arith.constant 0 : i32
    return %arg0, %c0_i32, %c0_i32_0 : i32, i32, i32
  }
}

module attributes {stable_mosaic.version = 11 : i64} {
  func.func @_conv_kernel(%arg0: i32, %arg1: memref<1x108x128xbf16, #tpu.memory_space<vmem>>, %arg2: memref<9x128x128xbf16, #tpu.memory_space<vmem>>, %arg3: memref<1x128xf32, #tpu.memory_space<vmem>>, %arg4: memref<1x88x128xbf16, #tpu.memory_space<vmem>>) attributes {dimension_semantics = [#tpu.dimension_semantics<parallel>], iteration_bounds = array<i64: 2>, scalar_prefetch = 0 : i64, scratch_operands = 0 : i64, tpu.core_type = #tpu.core_type<tc>, window_params = [{transform_indices = @transform_0, window_bounds = array<i64: 1, 108, 128>}, {pipeline_mode = #tpu.pipeline_mode<synchronous>, transform_indices = @transform_1, window_bounds = array<i64: 9, 128, 128>}, {pipeline_mode = #tpu.pipeline_mode<synchronous>, transform_indices = @transform_2, window_bounds = array<i64: 1, 128>}, {transform_indices = @transform_3, window_bounds = array<i64: 1, 88, 128>}]} {
    %c0 = arith.constant 0 : index
    %c0_0 = arith.constant 0 : index
    %c0_1 = arith.constant 0 : index
    %0 = vector.load %arg1[%c0, %c0_0, %c0_1] : memref<1x108x128xbf16, #tpu.memory_space<vmem>>, vector<1x88x128xbf16>
    %1 = vector.shape_cast %0 : vector<1x88x128xbf16> to vector<88x128xbf16>
    %c0_2 = arith.constant 0 : index
    %c0_3 = arith.constant 0 : index
    %c0_4 = arith.constant 0 : index
    %2 = vector.load %arg2[%c0_2, %c0_3, %c0_4] : memref<9x128x128xbf16, #tpu.memory_space<vmem>>, vector<1x128x128xbf16>
    %3 = vector.shape_cast %2 : vector<1x128x128xbf16> to vector<128x128xbf16>
    %cst = arith.constant dense<0.000000e+00> : vector<88x128xf32>
    %4 = tpu.matmul %1, %3, %cst {dimension_numbers = #tpu.dot_dimension_numbers<[1], [0], [0], [1], [0, 0, 1, 1], [], []>} : vector<88x128xbf16>, vector<128x128xbf16>, vector<88x128xf32> -> vector<88x128xf32>
    %c0_5 = arith.constant 0 : index
    %c1 = arith.constant 1 : index
    %c0_6 = arith.constant 0 : index
    %5 = vector.load %arg1[%c0_5, %c1, %c0_6] : memref<1x108x128xbf16, #tpu.memory_space<vmem>>, vector<1x88x128xbf16>
    %6 = vector.shape_cast %5 : vector<1x88x128xbf16> to vector<88x128xbf16>
    %c1_7 = arith.constant 1 : index
    %c0_8 = arith.constant 0 : index
    %c0_9 = arith.constant 0 : index
    %7 = vector.load %arg2[%c1_7, %c0_8, %c0_9] : memref<9x128x128xbf16, #tpu.memory_space<vmem>>, vector<1x128x128xbf16>
    %8 = vector.shape_cast %7 : vector<1x128x128xbf16> to vector<128x128xbf16>
    %cst_10 = arith.constant dense<0.000000e+00> : vector<88x128xf32>
    %9 = tpu.matmul %6, %8, %cst_10 {dimension_numbers = #tpu.dot_dimension_numbers<[1], [0], [0], [1], [0, 0, 1, 1], [], []>} : vector<88x128xbf16>, vector<128x128xbf16>, vector<88x128xf32> -> vector<88x128xf32>
    %10 = arith.addf %4, %9 : vector<88x128xf32>
    %c0_11 = arith.constant 0 : index
    %c2 = arith.constant 2 : index
    %c0_12 = arith.constant 0 : index
    %11 = vector.load %arg1[%c0_11, %c2, %c0_12] : memref<1x108x128xbf16, #tpu.memory_space<vmem>>, vector<1x88x128xbf16>
    %12 = vector.shape_cast %11 : vector<1x88x128xbf16> to vector<88x128xbf16>
    %c2_13 = arith.constant 2 : index
    %c0_14 = arith.constant 0 : index
    %c0_15 = arith.constant 0 : index
    %13 = vector.load %arg2[%c2_13, %c0_14, %c0_15] : memref<9x128x128xbf16, #tpu.memory_space<vmem>>, vector<1x128x128xbf16>
    %14 = vector.shape_cast %13 : vector<1x128x128xbf16> to vector<128x128xbf16>
    %cst_16 = arith.constant dense<0.000000e+00> : vector<88x128xf32>
    %15 = tpu.matmul %12, %14, %cst_16 {dimension_numbers = #tpu.dot_dimension_numbers<[1], [0], [0], [1], [0, 0, 1, 1], [], []>} : vector<88x128xbf16>, vector<128x128xbf16>, vector<88x128xf32> -> vector<88x128xf32>
    %16 = arith.addf %10, %15 : vector<88x128xf32>
    %c0_17 = arith.constant 0 : index
    %c9 = arith.constant 9 : index
    %c0_18 = arith.constant 0 : index
    %17 = vector.load %arg1[%c0_17, %c9, %c0_18] : memref<1x108x128xbf16, #tpu.memory_space<vmem>>, vector<1x88x128xbf16>
    %18 = vector.shape_cast %17 : vector<1x88x128xbf16> to vector<88x128xbf16>
    %c3 = arith.constant 3 : index
    %c0_19 = arith.constant 0 : index
    %c0_20 = arith.constant 0 : index
    %19 = vector.load %arg2[%c3, %c0_19, %c0_20] : memref<9x128x128xbf16, #tpu.memory_space<vmem>>, vector<1x128x128xbf16>
    %20 = vector.shape_cast %19 : vector<1x128x128xbf16> to vector<128x128xbf16>
    %cst_21 = arith.constant dense<0.000000e+00> : vector<88x128xf32>
    %21 = tpu.matmul %18, %20, %cst_21 {dimension_numbers = #tpu.dot_dimension_numbers<[1], [0], [0], [1], [0, 0, 1, 1], [], []>} : vector<88x128xbf16>, vector<128x128xbf16>, vector<88x128xf32> -> vector<88x128xf32>
    %22 = arith.addf %16, %21 : vector<88x128xf32>
    %c0_22 = arith.constant 0 : index
    %c10 = arith.constant 10 : index
    %c0_23 = arith.constant 0 : index
    %23 = vector.load %arg1[%c0_22, %c10, %c0_23] : memref<1x108x128xbf16, #tpu.memory_space<vmem>>, vector<1x88x128xbf16>
    %24 = vector.shape_cast %23 : vector<1x88x128xbf16> to vector<88x128xbf16>
    %c4 = arith.constant 4 : index
    %c0_24 = arith.constant 0 : index
    %c0_25 = arith.constant 0 : index
    %25 = vector.load %arg2[%c4, %c0_24, %c0_25] : memref<9x128x128xbf16, #tpu.memory_space<vmem>>, vector<1x128x128xbf16>
    %26 = vector.shape_cast %25 : vector<1x128x128xbf16> to vector<128x128xbf16>
    %cst_26 = arith.constant dense<0.000000e+00> : vector<88x128xf32>
    %27 = tpu.matmul %24, %26, %cst_26 {dimension_numbers = #tpu.dot_dimension_numbers<[1], [0], [0], [1], [0, 0, 1, 1], [], []>} : vector<88x128xbf16>, vector<128x128xbf16>, vector<88x128xf32> -> vector<88x128xf32>
    %28 = arith.addf %22, %27 : vector<88x128xf32>
    %c0_27 = arith.constant 0 : index
    %c11 = arith.constant 11 : index
    %c0_28 = arith.constant 0 : index
    %29 = vector.load %arg1[%c0_27, %c11, %c0_28] : memref<1x108x128xbf16, #tpu.memory_space<vmem>>, vector<1x88x128xbf16>
    %30 = vector.shape_cast %29 : vector<1x88x128xbf16> to vector<88x128xbf16>
    %c5 = arith.constant 5 : index
    %c0_29 = arith.constant 0 : index
    %c0_30 = arith.constant 0 : index
    %31 = vector.load %arg2[%c5, %c0_29, %c0_30] : memref<9x128x128xbf16, #tpu.memory_space<vmem>>, vector<1x128x128xbf16>
    %32 = vector.shape_cast %31 : vector<1x128x128xbf16> to vector<128x128xbf16>
    %cst_31 = arith.constant dense<0.000000e+00> : vector<88x128xf32>
    %33 = tpu.matmul %30, %32, %cst_31 {dimension_numbers = #tpu.dot_dimension_numbers<[1], [0], [0], [1], [0, 0, 1, 1], [], []>} : vector<88x128xbf16>, vector<128x128xbf16>, vector<88x128xf32> -> vector<88x128xf32>
    %34 = arith.addf %28, %33 : vector<88x128xf32>
    %c0_32 = arith.constant 0 : index
    %c18 = arith.constant 18 : index
    %c0_33 = arith.constant 0 : index
    %35 = vector.load %arg1[%c0_32, %c18, %c0_33] : memref<1x108x128xbf16, #tpu.memory_space<vmem>>, vector<1x88x128xbf16>
    %36 = vector.shape_cast %35 : vector<1x88x128xbf16> to vector<88x128xbf16>
    %c6 = arith.constant 6 : index
    %c0_34 = arith.constant 0 : index
    %c0_35 = arith.constant 0 : index
    %37 = vector.load %arg2[%c6, %c0_34, %c0_35] : memref<9x128x128xbf16, #tpu.memory_space<vmem>>, vector<1x128x128xbf16>
    %38 = vector.shape_cast %37 : vector<1x128x128xbf16> to vector<128x128xbf16>
    %cst_36 = arith.constant dense<0.000000e+00> : vector<88x128xf32>
    %39 = tpu.matmul %36, %38, %cst_36 {dimension_numbers = #tpu.dot_dimension_numbers<[1], [0], [0], [1], [0, 0, 1, 1], [], []>} : vector<88x128xbf16>, vector<128x128xbf16>, vector<88x128xf32> -> vector<88x128xf32>
    %40 = arith.addf %34, %39 : vector<88x128xf32>
    %c0_37 = arith.constant 0 : index
    %c19 = arith.constant 19 : index
    %c0_38 = arith.constant 0 : index
    %41 = vector.load %arg1[%c0_37, %c19, %c0_38] : memref<1x108x128xbf16, #tpu.memory_space<vmem>>, vector<1x88x128xbf16>
    %42 = vector.shape_cast %41 : vector<1x88x128xbf16> to vector<88x128xbf16>
    %c7 = arith.constant 7 : index
    %c0_39 = arith.constant 0 : index
    %c0_40 = arith.constant 0 : index
    %43 = vector.load %arg2[%c7, %c0_39, %c0_40] : memref<9x128x128xbf16, #tpu.memory_space<vmem>>, vector<1x128x128xbf16>
    %44 = vector.shape_cast %43 : vector<1x128x128xbf16> to vector<128x128xbf16>
    %cst_41 = arith.constant dense<0.000000e+00> : vector<88x128xf32>
    %45 = tpu.matmul %42, %44, %cst_41 {dimension_numbers = #tpu.dot_dimension_numbers<[1], [0], [0], [1], [0, 0, 1, 1], [], []>} : vector<88x128xbf16>, vector<128x128xbf16>, vector<88x128xf32> -> vector<88x128xf32>
    %46 = arith.addf %40, %45 : vector<88x128xf32>
    %c0_42 = arith.constant 0 : index
    %c20 = arith.constant 20 : index
    %c0_43 = arith.constant 0 : index
    %47 = vector.load %arg1[%c0_42, %c20, %c0_43] : memref<1x108x128xbf16, #tpu.memory_space<vmem>>, vector<1x88x128xbf16>
    %48 = vector.shape_cast %47 : vector<1x88x128xbf16> to vector<88x128xbf16>
    %c8 = arith.constant 8 : index
    %c0_44 = arith.constant 0 : index
    %c0_45 = arith.constant 0 : index
    %49 = vector.load %arg2[%c8, %c0_44, %c0_45] : memref<9x128x128xbf16, #tpu.memory_space<vmem>>, vector<1x128x128xbf16>
    %50 = vector.shape_cast %49 : vector<1x128x128xbf16> to vector<128x128xbf16>
    %cst_46 = arith.constant dense<0.000000e+00> : vector<88x128xf32>
    %51 = tpu.matmul %48, %50, %cst_46 {dimension_numbers = #tpu.dot_dimension_numbers<[1], [0], [0], [1], [0, 0, 1, 1], [], []>} : vector<88x128xbf16>, vector<128x128xbf16>, vector<88x128xf32> -> vector<88x128xf32>
    %52 = arith.addf %46, %51 : vector<88x128xf32>
    %c0_47 = arith.constant 0 : index
    %c0_48 = arith.constant 0 : index
    %53 = vector.load %arg3[%c0_47, %c0_48] : memref<1x128xf32, #tpu.memory_space<vmem>>, vector<1x128xf32>
    %54 = vector.broadcast %53 : vector<1x128xf32> to vector<88x128xf32>
    %55 = arith.addf %52, %54 : vector<88x128xf32>
    %cst_49 = arith.constant 0.000000e+00 : f32
    %56 = vector.broadcast %cst_49 : f32 to vector<88x128xf32>
    %57 = arith.maximumf %55, %56 : vector<88x128xf32>
    %58 = arith.truncf %57 : vector<88x128xf32> to vector<88x128xbf16>
    %c0_50 = arith.constant 0 : index
    %c0_51 = arith.constant 0 : index
    %c0_52 = arith.constant 0 : index
    %59 = vector.load %arg4[%c0_50, %c0_51, %c0_52] : memref<1x88x128xbf16, #tpu.memory_space<vmem>>, vector<1x88x128xbf16>
    %60 = vector.shape_cast %59 : vector<1x88x128xbf16> to vector<88x128xbf16>
    %61 = vector.shape_cast %58 : vector<88x128xbf16> to vector<1x88x128xbf16>
    tpu.vector_store %arg4[%c0_50, %c0_51, %c0_52], %61 {strides = array<i32>} : memref<1x88x128xbf16, #tpu.memory_space<vmem>>, vector<1x88x128xbf16>,
    return
  }
  func.func @transform_0(%arg0: i32) -> (i32, i32, i32) {
    %c0_i32 = arith.constant 0 : i32
    %c0_i32_0 = arith.constant 0 : i32
    %c0_i32_1 = arith.constant 0 : i32
    return %arg0, %c0_i32, %c0_i32_0 : i32, i32, i32
  }
  func.func @transform_1(%arg0: i32) -> (i32, i32, i32) {
    %c0_i32 = arith.constant 0 : i32
    %c0_i32_0 = arith.constant 0 : i32
    %c0_i32_1 = arith.constant 0 : i32
    %c0_i32_2 = arith.constant 0 : i32
    return %c0_i32, %c0_i32_0, %c0_i32_1 : i32, i32, i32
  }
  func.func @transform_2(%arg0: i32) -> (i32, i32) {
    %c0_i32 = arith.constant 0 : i32
    %c0_i32_0 = arith.constant 0 : i32
    %c0_i32_1 = arith.constant 0 : i32
    return %c0_i32, %c0_i32_0 : i32, i32
  }
  func.func @transform_3(%arg0: i32) -> (i32, i32, i32) {
    %c0_i32 = arith.constant 0 : i32
    %c0_i32_0 = arith.constant 0 : i32
    %c0_i32_1 = arith.constant 0 : i32
    return %arg0, %c0_i32, %c0_i32_0 : i32, i32, i32
  }
}

module attributes {stable_mosaic.version = 11 : i64} {
  func.func @_head_kernel(%arg0: i32, %arg1: memref<2x3136xbf16, #tpu.memory_space<vmem>>, %arg2: memref<3136x512xbf16, #tpu.memory_space<vmem>>, %arg3: memref<1x512xf32, #tpu.memory_space<vmem>>, %arg4: memref<512x128xbf16, #tpu.memory_space<vmem>>, %arg5: memref<1x128xf32, #tpu.memory_space<vmem>>, %arg6: memref<2x128xf32, #tpu.memory_space<vmem>>) attributes {dimension_semantics = [#tpu.dimension_semantics<parallel>], iteration_bounds = array<i64: 1>, scalar_prefetch = 0 : i64, scratch_operands = 0 : i64, tpu.core_type = #tpu.core_type<tc>, window_params = [{transform_indices = @transform_0, window_bounds = array<i64: 2, 3136>}, {pipeline_mode = #tpu.pipeline_mode<synchronous>, transform_indices = @transform_1, window_bounds = array<i64: 3136, 512>}, {pipeline_mode = #tpu.pipeline_mode<synchronous>, transform_indices = @transform_2, window_bounds = array<i64: 1, 512>}, {pipeline_mode = #tpu.pipeline_mode<synchronous>, transform_indices = @transform_3, window_bounds = array<i64: 512, 128>}, {pipeline_mode = #tpu.pipeline_mode<synchronous>, transform_indices = @transform_4, window_bounds = array<i64: 1, 128>}, {transform_indices = @transform_5, window_bounds = array<i64: 2, 128>}]} {
    %c0 = arith.constant 0 : index
    %c0_0 = arith.constant 0 : index
    %0 = vector.load %arg1[%c0, %c0_0] : memref<2x3136xbf16, #tpu.memory_space<vmem>>, vector<2x3136xbf16>
    %c0_1 = arith.constant 0 : index
    %c0_2 = arith.constant 0 : index
    %1 = vector.load %arg2[%c0_1, %c0_2] : memref<3136x512xbf16, #tpu.memory_space<vmem>>, vector<3136x512xbf16>
    %cst = arith.constant dense<0.000000e+00> : vector<2x512xf32>
    %2 = tpu.matmul %0, %1, %cst {dimension_numbers = #tpu.dot_dimension_numbers<[1], [0], [0], [1], [0, 0, 1, 1], [], []>} : vector<2x3136xbf16>, vector<3136x512xbf16>, vector<2x512xf32> -> vector<2x512xf32>
    %c0_3 = arith.constant 0 : index
    %c0_4 = arith.constant 0 : index
    %3 = vector.load %arg3[%c0_3, %c0_4] : memref<1x512xf32, #tpu.memory_space<vmem>>, vector<1x512xf32>
    %4 = vector.broadcast %3 : vector<1x512xf32> to vector<2x512xf32>
    %5 = arith.addf %2, %4 : vector<2x512xf32>
    %cst_5 = arith.constant 0.000000e+00 : f32
    %6 = vector.broadcast %cst_5 : f32 to vector<2x512xf32>
    %7 = arith.maximumf %5, %6 : vector<2x512xf32>
    %8 = arith.truncf %7 : vector<2x512xf32> to vector<2x512xbf16>
    %c0_6 = arith.constant 0 : index
    %c0_7 = arith.constant 0 : index
    %9 = vector.load %arg4[%c0_6, %c0_7] : memref<512x128xbf16, #tpu.memory_space<vmem>>, vector<512x128xbf16>
    %cst_8 = arith.constant dense<0.000000e+00> : vector<2x128xf32>
    %10 = tpu.matmul %8, %9, %cst_8 {dimension_numbers = #tpu.dot_dimension_numbers<[1], [0], [0], [1], [0, 0, 1, 1], [], []>} : vector<2x512xbf16>, vector<512x128xbf16>, vector<2x128xf32> -> vector<2x128xf32>
    %c0_9 = arith.constant 0 : index
    %c0_10 = arith.constant 0 : index
    %11 = vector.load %arg5[%c0_9, %c0_10] : memref<1x128xf32, #tpu.memory_space<vmem>>, vector<1x128xf32>
    %12 = vector.broadcast %11 : vector<1x128xf32> to vector<2x128xf32>
    %13 = arith.addf %10, %12 : vector<2x128xf32>
    %c0_11 = arith.constant 0 : index
    %c0_12 = arith.constant 0 : index
    %14 = vector.load %arg6[%c0_11, %c0_12] : memref<2x128xf32, #tpu.memory_space<vmem>>, vector<2x128xf32>
    tpu.vector_store %arg6[%c0_11, %c0_12], %13 {strides = array<i32>} : memref<2x128xf32, #tpu.memory_space<vmem>>, vector<2x128xf32>,
    return
  }
  func.func @transform_0(%arg0: i32) -> (i32, i32) {
    %c0_i32 = arith.constant 0 : i32
    %c0_i32_0 = arith.constant 0 : i32
    return %arg0, %c0_i32 : i32, i32
  }
  func.func @transform_1(%arg0: i32) -> (i32, i32) {
    %c0_i32 = arith.constant 0 : i32
    %c0_i32_0 = arith.constant 0 : i32
    %c0_i32_1 = arith.constant 0 : i32
    return %c0_i32, %c0_i32_0 : i32, i32
  }
  func.func @transform_2(%arg0: i32) -> (i32, i32) {
    %c0_i32 = arith.constant 0 : i32
    %c0_i32_0 = arith.constant 0 : i32
    %c0_i32_1 = arith.constant 0 : i32
    return %c0_i32, %c0_i32_0 : i32, i32
  }
  func.func @transform_3(%arg0: i32) -> (i32, i32) {
    %c0_i32 = arith.constant 0 : i32
    %c0_i32_0 = arith.constant 0 : i32
    %c0_i32_1 = arith.constant 0 : i32
    return %c0_i32, %c0_i32_0 : i32, i32
  }
  func.func @transform_4(%arg0: i32) -> (i32, i32) {
    %c0_i32 = arith.constant 0 : i32
    %c0_i32_0 = arith.constant 0 : i32
    %c0_i32_1 = arith.constant 0 : i32
    return %c0_i32, %c0_i32_0 : i32, i32
  }
  func.func @transform_5(%arg0: i32) -> (i32, i32) {
    %c0_i32 = arith.constant 0 : i32
    %c0_i32_0 = arith.constant 0 : i32
    return %arg0, %c0_i32 : i32, i32
  }
}

</mosaic_0001>

<llo_original>
// kernel: dqn_forward.4
$region0: #{dqn_forward.4}
  #allocation0 [shape = 'u32[]', space=smem, size = 0x4, offset = 0x4, fixed_abs, tag = 'smem constant byte address 0x4 - core index']
  #allocation1 [shape = 'u32[72,128]{1,0:T(1,128)}', space=vmem, size = 0x9000, scoped, tag = 'internal scratch']
  %s0 = inlined_call_operand.vmem [shape: bf16[2,470,64], index: 0, kind: input, shape index: {}]
  %s1 = inlined_call_operand.vmem [shape: bf16[4,64,128], index: 1, kind: input, shape index: {}]
  %s2 = inlined_call_operand.vmem [shape: f32[1,128], index: 2, kind: input, shape index: {}]
  %s3 = inlined_call_operand.vmem [shape: bf16[2,448,128], index: 3, kind: output, shape index: {}]
  %s4 = sld [smem:[#allocation0]]
  $region45: #{dqn_forward.4} parent=0
    _
  %s6 = ssub.s32 1, %s4
  %s7 = scalar_select 0, %s6, %s4
  loop: start=0, step=1, limit=4
  $region2: #{dqn_forward.4} parent=0 // loop_pre_header
    _
  $region3: #{dqn_forward.4} parent=0 // loop_header
    %s9 = sphi 0, %s13
    %p10 = scmp.ge.s32.totalorder %s9, 4
    %s19 = sphi 0, %s21
    %s22 = sphi 0, %s19
    %s23 = sphi 0, %s22
    %s39 = sphi 0, %s23
    %s43 = sphi 0, %s43
    %s45 = sphi 0, %s43
    %s46 = sphi 0, %s45
    %s60 = sphi 0, %s46
    %s64 = sphi 0, %s64
    %s66 = sphi 0, %s64
    %s67 = sphi 0, %s66
    %s81 = sphi 0, %s67
    %s87 = sphi 0, %s89
    %s90 = sphi 0, %s87
    %s91 = sphi 0, %s90
    %s107 = sphi 0, %s91
  $region4: #{dqn_forward.4} parent=0 // loop_header_branch
    %12 = sbr.rel (%p10) target = $region8
  $region5: #{dqn_forward.4} parent=0 // loop_body
    %s14 = ssub.s32 %s9, 1
    %s15 = ssub.s32 %s9, 2
    %s16 = sadd.s32 %s9, 1
    %s17 = ssub.s32 %s9, %s16
    %p18 = scmp.eq.s32.totalorder %s17, 0
    %s20 = sadd.s32 %s19, 1
    %s21 = scalar_select %p18, %s19, %s20
    %p24 = pneg %p18
    %p25 = scmp.eq.s32.totalorder %s9, 1
    %p26 = por %p24, %p25
    %p27 = scmp.ne.s32.totalorder %s19, %s22
    %p28 = scmp.eq.s32.totalorder %s9, 0
    %p29 = por %p27, %p28
    %p30 = scmp.ne.s32.totalorder %s19, %s22
    %p31 = scmp.eq.s32.totalorder %s14, 1
    %p32 = por %p30, %p31
    %p33 = scmp.ne.s32.totalorder %s22, %s23
    %p34 = scmp.eq.s32.totalorder %s14, 0
    %p35 = por %p33, %p34
    %p36 = scmp.ne.s32.totalorder %s22, %s23
    %p37 = scmp.eq.s32.totalorder %s15, 1
    %p38 = por %p36, %p37
    %p40 = scmp.ne.s32.totalorder %s23, %s39
    %p41 = scmp.eq.s32.totalorder %s15, 0
    %p42 = por %p40, %p41
    %s44 = sadd.s32 %s43, 1
    %p47 = scmp.eq.s32.totalorder %s9, 1
    %p48 = scmp.ne.s32.totalorder %s43, %s45
    %p49 = scmp.eq.s32.totalorder %s9, 0
    %p50 = por %p48, %p49
    %p51 = scmp.ne.s32.totalorder %s43, %s45
    %p52 = scmp.eq.s32.totalorder %s14, 1
    %p53 = por %p51, %p52
    %p54 = scmp.ne.s32.totalorder %s45, %s46
    %p55 = scmp.eq.s32.totalorder %s14, 0
    %p56 = por %p54, %p55
    %p57 = scmp.ne.s32.totalorder %s45, %s46
    %p58 = scmp.eq.s32.totalorder %s15, 1
    %p59 = por %p57, %p58
    %p61 = scmp.ne.s32.totalorder %s46, %s60
    %p62 = scmp.eq.s32.totalorder %s15, 0
    %p63 = por %p61, %p62
    %s65 = sadd.s32 %s64, 1
    %p68 = scmp.eq.s32.totalorder %s9, 1
    %p69 = scmp.ne.s32.totalorder %s64, %s66
    %p70 = scmp.eq.s32.totalorder %s9, 0
    %p71 = por %p69, %p70
    %p72 = scmp.ne.s32.totalorder %s64, %s66
    %p73 = scmp.eq.s32.totalorder %s14, 1
    %p74 = por %p72, %p73
    %p75 = scmp.ne.s32.totalorder %s66, %s67
    %p76 = scmp.eq.s32.totalorder %s14, 0
    %p77 = por %p75, %p76
    %p78 = scmp.ne.s32.totalorder %s66, %s67
    %p79 = scmp.eq.s32.totalorder %s15, 1
    %p80 = por %p78, %p79
    %p82 = scmp.ne.s32.totalorder %s67, %s81
    %p83 = scmp.eq.s32.totalorder %s15, 0
    %p84 = por %p82, %p83
    %s85 = ssub.s32 %s9, %s16
    %p86 = scmp.eq.s32.totalorder %s85, 0
    %s88 = sadd.s32 %s87, 1
    %s89 = scalar_select %p86, %s87, %s88
    %p92 = pneg %p86
    %p93 = scmp.eq.s32.totalorder %s9, 1
    %p94 = por %p92, %p93
    %p95 = scmp.ne.s32.totalorder %s87, %s90
    %p96 = scmp.eq.s32.totalorder %s9, 0
    %p97 = por %p95, %p96
    %p98 = scmp.ne.s32.totalorder %s87, %s90
    %p99 = scmp.eq.s32.totalorder %s14, 1
    %p100 = por %p98, %p99
    %p101 = scmp.ne.s32.totalorder %s90, %s91
    %p102 = scmp.eq.s32.totalorder %s14, 0
    %p103 = por %p101, %p102
    %p104 = scmp.ne.s32.totalorder %s90, %s91
    %p105 = scmp.eq.s32.totalorder %s15, 1
    %p106 = por %p104, %p105
    %p108 = scmp.ne.s32.totalorder %s91, %s107
    %p109 = scmp.eq.s32.totalorder %s15, 0
    %p110 = por %p108, %p109
    %p111 = scmp.le.s32.totalorder 1, %s9
    %p112 = scmp.lt.s32.totalorder %s9, 3
    %p113 = pnand %p111, %p112
    %p114 = pneg %p113
    // Predicated region
    $region9: #{dqn_forward.4} parent=5 // pred_check
      _
    $region10: #{dqn_forward.4} parent=5 // pred_check_branch
      %116 = sbr.rel (%p113) target = $region12
    $region11: #{dqn_forward.4} parent=5 // pred_region
      %s117 = ssub.s32 %s9, 1
      // Predicated region
      $region13: #{dqn_forward.4} parent=11 // pred_check
        %p118 = pneg %p56
      $region14: #{dqn_forward.4} parent=11 // pred_check_branch
        %120 = sbr.rel (%p118) target = $region16
      $region15: #{dqn_forward.4} parent=11 // pred_region
        _
      $region16: #{dqn_forward.4} parent=11 // pred_fallthru
        _
      // Predicated region
      $region17: #{dqn_forward.4} parent=11 // pred_check
        %p121 = pneg %p77
      $region18: #{dqn_forward.4} parent=11 // pred_check_branch
        %123 = sbr.rel (%p121) target = $region20
      $region19: #{dqn_forward.4} parent=11 // pred_region
        _
      $region20: #{dqn_forward.4} parent=11 // pred_fallthru
        _
    $region12: #{dqn_forward.4} parent=5 // pred_fallthru
      _
    %p124 = scmp.lt.s32.totalorder %s9, 2
    // Predicated region
    $region21: #{dqn_forward.4} parent=5 // pred_check
      %p125 = pneg %p124
    $region22: #{dqn_forward.4} parent=5 // pred_check_branch
      %127 = sbr.rel (%p125) target = $region24
    $region23: #{dqn_forward.4} parent=5 // pred_region
      // Predicated region
      $region25: #{dqn_forward.4} parent=23 // pred_check
        %p128 = pneg %p29
      $region26: #{dqn_forward.4} parent=23 // pred_check_branch
        %130 = sbr.rel (%p128) target = $region28
      $region27: #{dqn_forward.4} parent=23 // pred_region
        %p131 = scmp.lt.s32.totalorder %s9, 1
        %s132 = scalar_select %p131, %s9, 1
        %s133 = smul.addr %s132, 59
        %s134 = smul.addr %s133, 4
        %s135 = scalar_lea.vmem %s0, %s134
      $region28: #{dqn_forward.4} parent=23 // pred_fallthru
        _
    $region24: #{dqn_forward.4} parent=5 // pred_fallthru
      _
    %p136 = scmp.le.s32.totalorder 1, %s9
    %p137 = scmp.lt.s32.totalorder %s9, 3
    %p138 = pnand %p136, %p137
    %p139 = pneg %p138
    // Predicated region
    $region29: #{dqn_forward.4} parent=5 // pred_check
      _
    $region30: #{dqn_forward.4} parent=5 // pred_check_branch
      %141 = sbr.rel (%p138) target = $region32
    $region31: #{dqn_forward.4} parent=5 // pred_region
      %s142 = ssub.s32 %s9, 1
      %p143 = scmp.lt.s32.totalorder %s14, 1
      %s144 = scalar_select %p143, %s14, 1
      %s145 = smul.addr %s144, 59
      %s146 = smul.addr %s145, 4
      %s147 = scalar_lea.vmem %s0, %s146
      %p148 = pneg %p35
      %p149 = pneg %p32
      %p150 = pneg %p56
      %p151 = pneg %p53
      %p152 = pneg %p77
      %p153 = pneg %p74
      %p154 = pneg %p103
      %p155 = pneg %p100
      %p156 = scmp.lt.s32.totalorder %s14, 1
      %s157 = scalar_select %p156, %s14, 1
      %s158 = smul.addr %s157, 56
      %s159 = smul.addr %s158, 4
      %s160 = scalar_lea.vmem %s3, %s159
      %p161 = scmp.lt.s32.totalorder %s14, 1
      %s162 = scalar_select %p161, %s14, 1
      %s163 = smul.addr %s162, 59
      %s164 = smul.addr %s163, 4
      %s165 = scalar_lea.vmem %s0, %s164
      %p166 = scmp.lt.s32.totalorder %s14, 1
      %s167 = scalar_select %p166, %s14, 1
      %s168 = smul.addr %s167, 56
      %s169 = smul.addr %s168, 4
      %s170 = scalar_lea.vmem %s3, %s169
      %v172 = vld [vmem:[%s165] sm:$0xf]
      %v173 = vld [vmem:[%s165 + $0x4] sm:$0xf]
      %v174 = vld [vmem:[%s165 + $0x8] sm:$0xf]
      %v175 = vld [vmem:[%s165 + $0xc] sm:$0xf]
      %v176 = vld [vmem:[%s165 + $0x10] sm:$0xf]
      %v177 = vld [vmem:[%s165 + $0x14] sm:$0xf]
      %v178 = vld [vmem:[%s165 + $0x18] sm:$0xf]
      %v179 = vld [vmem:[%s165 + $0x1c] sm:$0xf]
      %v180 = vld [vmem:[%s165 + $0x20] sm:$0xf]
      %v181 = vld [vmem:[%s165 + $0x24] sm:$0xf]
      %v182 = vld [vmem:[%s165 + $0x28] sm:$0xf]
      %v183 = vld [vmem:[%s165 + $0x2c] sm:$0xf]
      %v184 = vld [vmem:[%s165 + $0x30] sm:$0xf]
      %v185 = vld [vmem:[%s165 + $0x34] sm:$0xf]
      %v186 = vld [vmem:[%s165 + $0x38] sm:$0xf]
      %v187 = vld [vmem:[%s165 + $0x3c] sm:$0xf]
      %v188 = vld [vmem:[%s165 + $0x40] sm:$0xf]
      %v189 = vld [vmem:[%s165 + $0x44] sm:$0xf]
      %v190 = vld [vmem:[%s165 + $0x48] sm:$0xf]
      %v191 = vld [vmem:[%s165 + $0x4c] sm:$0xf]
      %v192 = vld [vmem:[%s165 + $0x50] sm:$0xf]
      %v193 = vld [vmem:[%s165 + $0x54] sm:$0xf]
      %v194 = vld [vmem:[%s165 + $0x58] sm:$0xf]
      %v195 = vld [vmem:[%s165 + $0x5c] sm:$0xf]
      %v196 = vld [vmem:[%s165 + $0x60] sm:$0xf]
      %v197 = vld [vmem:[%s165 + $0x64] sm:$0xf]
      %v198 = vld [vmem:[%s165 + $0x68] sm:$0xf]
      %v199 = vld [vmem:[%s165 + $0x6c] sm:$0xf]
      %v200 = vld [vmem:[%s165 + $0x70] sm:$0xf]
      %v201 = vld [vmem:[%s165 + $0x74] sm:$0xf]
      %v202 = vld [vmem:[%s165 + $0x78] sm:$0xf]
      %v203 = vld [vmem:[%s165 + $0x7c] sm:$0xf]
      %v204 = vld [vmem:[%s165 + $0x80] sm:$0xf]
      %v205 = vld [vmem:[%s165 + $0x84] sm:$0xf]
      %v206 = vld [vmem:[%s165 + $0x88] sm:$0xf]
      %v207 = vld [vmem:[%s165 + $0x8c] sm:$0xf]
      %v208 = vld [vmem:[%s165 + $0x90] sm:$0xf]
      %v209 = vld [vmem:[%s165 + $0x94] sm:$0xf]
      %v210 = vld [vmem:[%s165 + $0x98] sm:$0xf]
      %v211 = vld [vmem:[%s165 + $0x9c] sm:$0xf]
      %v212 = vld [vmem:[%s165 + $0xa0] sm:$0xf]
      %v213 = vld [vmem:[%s165 + $0xa4] sm:$0xf]
      %v214 = vld [vmem:[%s165 + $0xa8] sm:$0xf]
      %v215 = vld [vmem:[%s165 + $0xac] sm:$0xf]
      %v216 = vld [vmem:[%s165 + $0xb0] sm:$0xf]
      %v217 = vld [vmem:[%s165 + $0xb4] sm:$0xf]
      %v218 = vld [vmem:[%s165 + $0xb8] sm:$0xf]
      %v219 = vld [vmem:[%s165 + $0xbc] sm:$0xf]
      %v220 = vld [vmem:[%s165 + $0xc0] sm:$0xf]
      %v221 = vld [vmem:[%s165 + $0xc4] sm:$0xf]
      %v222 = vld [vmem:[%s165 + $0xc8] sm:$0xf]
      %v223 = vld [vmem:[%s165 + $0xcc] sm:$0xf]
      %v224 = vld [vmem:[%s165 + $0xd0] sm:$0xf]
      %v225 = vld [vmem:[%s165 + $0xd4] sm:$0xf]
      %v226 = vld [vmem:[%s165 + $0xd8] sm:$0xf]
      %v227 = vld [vmem:[%s165 + $0xdc] sm:$0xf]
      %v228 = vld [vmem:[%s1] sm:$0xf]
      %v229 = vld [vmem:[%s1 + $0x4] sm:$0xf]
      %v230 = vld [vmem:[%s1 + $0x8] sm:$0xf]
      %v231 = vld [vmem:[%s1 + $0xc] sm:$0xf]
      %v232 = vld [vmem:[%s1 + $0x10] sm:$0xf]
      %v233 = vld [vmem:[%s1 + $0x14] sm:$0xf]
      %v234 = vld [vmem:[%s1 + $0x18] sm:$0xf]
      %v235 = vld [vmem:[%s1 + $0x1c] sm:$0xf]
      %v236 = vld [vmem:[%s165 + $0xe0] sm:$0x1]
      %s237 = scalar_lea.vmem %s1, 32
      %v238 = vld [vmem:[%s237] sm:$0xf]
      %v239 = vld [vmem:[%s237 + $0x4] sm:$0xf]
      %v240 = vld [vmem:[%s237 + $0x8] sm:$0xf]
      %v241 = vld [vmem:[%s237 + $0xc] sm:$0xf]
      %v242 = vld [vmem:[%s237 + $0x10] sm:$0xf]
      %v243 = vld [vmem:[%s237 + $0x14] sm:$0xf]
      %v244 = vld [vmem:[%s237 + $0x18] sm:$0xf]
      %v245 = vld [vmem:[%s237 + $0x1c] sm:$0xf]
      %v303 = vunpack.c.l.b16 %v172
      %v304 = vunpack.c.l.b16 %v173
      %v305 = vunpack.c.l.b16 %v174
      %v306 = vunpack.c.l.b16 %v175
      %v307 = vunpack.c.l.b16 %v176
      %v308 = vunpack.c.l.b16 %v177
      %v309 = vunpack.c.l.b16 %v178
      %v310 = vunpack.c.l.b16 %v179
      %v311 = vunpack.c.l.b16 %v180
      %v312 = vunpack.c.l.b16 %v181
      %v313 = vunpack.c.l.b16 %v182
      %v314 = vunpack.c.l.b16 %v183
      %v315 = vunpack.c.l.b16 %v184
      %v316 = vunpack.c.l.b16 %v185
      %v317 = vunpack.c.l.b16 %v186
      %v318 = vunpack.c.l.b16 %v187
      %v319 = vunpack.c.l.b16 %v188
      %v320 = vunpack.c.l.b16 %v189
      %v321 = vunpack.c.l.b16 %v190
      %v322 = vunpack.c.l.b16 %v191
      %v323 = vunpack.c.l.b16 %v192
      %v324 = vunpack.c.l.b16 %v193
      %v325 = vunpack.c.l.b16 %v194
      %v326 = vunpack.c.l.b16 %v195
      %v327 = vunpack.c.l.b16 %v196
      %v328 = vunpack.c.l.b16 %v197
      %v329 = vunpack.c.l.b16 %v198
      %v330 = vunpack.c.l.b16 %v199
      %v331 = vunpack.c.l.b16 %v200
      %v332 = vunpack.c.l.b16 %v201
      %v333 = vunpack.c.l.b16 %v202
      %v334 = vunpack.c.l.b16 %v203
      %v335 = vunpack.c.l.b16 %v204
      %v336 = vunpack.c.l.b16 %v205
      %v337 = vunpack.c.l.b16 %v206
      %v338 = vunpack.c.l.b16 %v207
      %v339 = vunpack.c.l.b16 %v208
      %v340 = vunpack.c.l.b16 %v209
      %v341 = vunpack.c.l.b16 %v210
      %v342 = vunpack.c.l.b16 %v211
      %v343 = vunpack.c.l.b16 %v212
      %v344 = vunpack.c.l.b16 %v213
      %v345 = vunpack.c.l.b16 %v214
      %v346 = vunpack.c.l.b16 %v215
      %v347 = vunpack.c.l.b16 %v216
      %v348 = vunpack.c.l.b16 %v217
      %v349 = vunpack.c.l.b16 %v218
      %v350 = vunpack.c.l.b16 %v219
      %v351 = vunpack.c.l.b16 %v220
      %v352 = vunpack.c.l.b16 %v221
      %v353 = vunpack.c.l.b16 %v222
      %v354 = vunpack.c.l.b16 %v223
      %v355 = vunpack.c.l.b16 %v224
      %v356 = vunpack.c.l.b16 %v225
      %v357 = vunpack.c.l.b16 %v226
      %v358 = vunpack.c.l.b16 %v227
      %v359 = vunpack.c.l.b16 %v236
      %v360 = vpack.c.b16 %v304, %v303
      %v361 = vpack.c.b16 %v306, %v305
      %v362 = vpack.c.b16 %v308, %v307
      %v363 = vpack.c.b16 %v310, %v309
      %v364 = vpack.c.b16 %v312, %v311
      %v365 = vpack.c.b16 %v314, %v313
      %v366 = vpack.c.b16 %v316, %v315
      %v367 = vpack.c.b16 %v318, %v317
      %v368 = vpack.c.b16 %v320, %v319
      %v369 = vpack.c.b16 %v322, %v321
      %v370 = vpack.c.b16 %v324, %v323
      %v371 = vpack.c.b16 %v326, %v325
      %v372 = vpack.c.b16 %v328, %v327
      %v373 = vpack.c.b16 %v330, %v329
      %v374 = vpack.c.b16 %v332, %v331
      %v375 = vpack.c.b16 %v334, %v333
      %v376 = vpack.c.b16 %v336, %v335
      %v377 = vpack.c.b16 %v338, %v337
      %v378 = vpack.c.b16 %v340, %v339
      %v379 = vpack.c.b16 %v342, %v341
      %v380 = vpack.c.b16 %v344, %v343
      %v381 = vpack.c.b16 %v346, %v345
      %v382 = vpack.c.b16 %v348, %v347
      %v383 = vpack.c.b16 %v350, %v349
      %v384 = vpack.c.b16 %v352, %v351
      %v385 = vpack.c.b16 %v354, %v353
      %v386 = vpack.c.b16 %v356, %v355
      %v387 = vpack.c.b16 %v358, %v357
      %v388 = vpack.c.b16 %v359, %v359
      %vm389 = vsmask.f32 7424
      %v391 = vshrl.u32 %v360, 16
      %v393 = vshll.u32 %v360, 16
      %v395 = vrot.slane %v393, 1
      %v396 = vor.u32 %v391, %v395
      %v398 = vshll.u32 %v361, 16
      %v400 = vrot.slane %v398, 1
      %v401 = vsel %vm389, %v396, %v400
      %v402 = vshrl.u32 %v361, 16
      %v404 = vor.u32 %v402, %v400
      %v406 = vshll.u32 %v362, 16
      %v408 = vrot.slane %v406, 1
      %v409 = vsel %vm389, %v404, %v408
      %v410 = vshrl.u32 %v362, 16
      %v412 = vor.u32 %v410, %v408
      %v414 = vshll.u32 %v363, 16
      %v416 = vrot.slane %v414, 1
      %v417 = vsel %vm389, %v412, %v416
      %v418 = vshrl.u32 %v363, 16
      %v420 = vor.u32 %v418, %v416
      %v422 = vshll.u32 %v364, 16
      %v424 = vrot.slane %v422, 1
      %v425 = vsel %vm389, %v420, %v424
      %v426 = vshrl.u32 %v364, 16
      %v428 = vor.u32 %v426, %v424
      %v430 = vshll.u32 %v365, 16
      %v432 = vrot.slane %v430, 1
      %v433 = vsel %vm389, %v428, %v432
      %v434 = vshrl.u32 %v365, 16
      %v436 = vor.u32 %v434, %v432
      %v438 = vshll.u32 %v366, 16
      %v440 = vrot.slane %v438, 1
      %v441 = vsel %vm389, %v436, %v440
      %v442 = vshrl.u32 %v366, 16
      %v444 = vor.u32 %v442, %v440
      %v446 = vshll.u32 %v367, 16
      %v448 = vrot.slane %v446, 1
      %v449 = vsel %vm389, %v444, %v448
      %v450 = vshrl.u32 %v367, 16
      %v452 = vor.u32 %v450, %v448
      %v454 = vshll.u32 %v368, 16
      %v456 = vrot.slane %v454, 1
      %v457 = vsel %vm389, %v452, %v456
      %v458 = vshrl.u32 %v368, 16
      %v460 = vor.u32 %v458, %v456
      %v462 = vshll.u32 %v369, 16
      %v464 = vrot.slane %v462, 1
      %v465 = vsel %vm389, %v460, %v464
      %v466 = vshrl.u32 %v369, 16
      %v468 = vor.u32 %v466, %v464
      %v470 = vshll.u32 %v370, 16
      %v472 = vrot.slane %v470, 1
      %v473 = vsel %vm389, %v468, %v472
      %v474 = vshrl.u32 %v370, 16
      %v476 = vor.u32 %v474, %v472
      %v478 = vshll.u32 %v371, 16
      %v480 = vrot.slane %v478, 1
      %v481 = vsel %vm389, %v476, %v480
      %v482 = vshrl.u32 %v371, 16
      %v484 = vor.u32 %v482, %v480
      %v486 = vshll.u32 %v372, 16
      %v488 = vrot.slane %v486, 1
      %v489 = vsel %vm389, %v484, %v488
      %v490 = vshrl.u32 %v372, 16
      %v492 = vor.u32 %v490, %v488
      %v494 = vshll.u32 %v373, 16
      %v496 = vrot.slane %v494, 1
      %v497 = vsel %vm389, %v492, %v496
      %v498 = vshrl.u32 %v373, 16
      %v500 = vor.u32 %v498, %v496
      %v502 = vshll.u32 %v374, 16
      %v504 = vrot.slane %v502, 1
      %v505 = vsel %vm389, %v500, %v504
      %v506 = vshrl.u32 %v374, 16
      %v508 = vor.u32 %v506, %v504
      %v510 = vshll.u32 %v375, 16
      %v512 = vrot.slane %v510, 1
      %v513 = vsel %vm389, %v508, %v512
      %v514 = vshrl.u32 %v375, 16
      %v516 = vor.u32 %v514, %v512
      %v518 = vshll.u32 %v376, 16
      %v520 = vrot.slane %v518, 1
      %v521 = vsel %vm389, %v516, %v520
      %v522 = vshrl.u32 %v376, 16
      %v524 = vor.u32 %v522, %v520
      %v526 = vshll.u32 %v377, 16
      %v528 = vrot.slane %v526, 1
      %v529 = vsel %vm389, %v524, %v528
      %v530 = vshrl.u32 %v377, 16
      %v532 = vor.u32 %v530, %v528
      %v534 = vshll.u32 %v378, 16
      %v536 = vrot.slane %v534, 1
      %v537 = vsel %vm389, %v532, %v536
      %v538 = vshrl.u32 %v378, 16
      %v540 = vor.u32 %v538, %v536
      %v542 = vshll.u32 %v379, 16
      %v544 = vrot.slane %v542, 1
      %v545 = vsel %vm389, %v540, %v544
      %v546 = vshrl.u32 %v379, 16
      %v548 = vor.u32 %v546, %v544
      %v550 = vshll.u32 %v380, 16
      %v552 = vrot.slane %v550, 1
      %v553 = vsel %vm389, %v548, %v552
      %v554 = vshrl.u32 %v380, 16
      %v556 = vor.u32 %v554, %v552
      %v558 = vshll.u32 %v381, 16
      %v560 = vrot.slane %v558, 1
      %v561 = vsel %vm389, %v556, %v560
      %v562 = vshrl.u32 %v381, 16
      %v564 = vor.u32 %v562, %v560
      %v566 = vshll.u32 %v382, 16
      %v568 = vrot.slane %v566, 1
      %v569 = vsel %vm389, %v564, %v568
      %v570 = vshrl.u32 %v382, 16
      %v572 = vor.u32 %v570, %v568
      %v574 = vshll.u32 %v383, 16
      %v576 = vrot.slane %v574, 1
      %v577 = vsel %vm389, %v572, %v576
      %v578 = vshrl.u32 %v383, 16
      %v580 = vor.u32 %v578, %v576
      %v582 = vshll.u32 %v384, 16
      %v584 = vrot.slane %v582, 1
      %v585 = vsel %vm389, %v580, %v584
      %v586 = vshrl.u32 %v384, 16
      %v588 = vor.u32 %v586, %v584
      %v590 = vshll.u32 %v385, 16
      %v592 = vrot.slane %v590, 1
      %v593 = vsel %vm389, %v588, %v592
      %v594 = vshrl.u32 %v385, 16
      %v596 = vor.u32 %v594, %v592
      %v598 = vshll.u32 %v386, 16
      %v600 = vrot.slane %v598, 1
      %v601 = vsel %vm389, %v596, %v600
      %v602 = vshrl.u32 %v386, 16
      %v604 = vor.u32 %v602, %v600
      %v606 = vshll.u32 %v387, 16
      %v608 = vrot.slane %v606, 1
      %v609 = vsel %vm389, %v604, %v608
      %v610 = vshrl.u32 %v387, 16
      %v612 = vor.u32 %v610, %v608
      %v614 = vshll.u32 %v388, 16
      %v616 = vrot.slane %v614, 1
      %v617 = vsel %vm389, %v612, %v616
      %v626 = vunpack.c.l.b16 %v238
      %v627 = vunpack.c.l.b16 %v239
      %v628 = vunpack.c.l.b16 %v240
      %v629 = vunpack.c.l.b16 %v241
      %v630 = vunpack.c.l.b16 %v242
      %v631 = vunpack.c.l.b16 %v243
      %v632 = vunpack.c.l.b16 %v244
      %v633 = vunpack.c.l.b16 %v245
      %v634 = vpack.c.b16 %v627, %v626
      %v635 = vpack.c.b16 %v629, %v628
      %v636 = vpack.c.b16 %v631, %v630
      %v637 = vpack.c.b16 %v633, %v632
      %vm642 = vcmask 523264
      %v644 = vsel %vm642, %v401, 0
      %v647 = vsel %vm642, %v409, 0
      %v650 = vsel %vm642, %v417, 0
      %v653 = vsel %vm642, %v425, 0
      %v656 = vsel %vm642, %v433, 0
      %v659 = vsel %vm642, %v441, 0
      %v662 = vsel %vm642, %v449, 0
      %v665 = vsel %vm642, %v457, 0
      %v668 = vsel %vm642, %v465, 0
      %v671 = vsel %vm642, %v473, 0
      %v674 = vsel %vm642, %v481, 0
      %v677 = vsel %vm642, %v489, 0
      %v680 = vsel %vm642, %v497, 0
      %v683 = vsel %vm642, %v505, 0
      %v686 = vsel %vm642, %v513, 0
      %v689 = vsel %vm642, %v521, 0
      %v692 = vsel %vm642, %v529, 0
      %v695 = vsel %vm642, %v537, 0
      %v698 = vsel %vm642, %v545, 0
      %v701 = vsel %vm642, %v553, 0
      %v704 = vsel %vm642, %v561, 0
      %v707 = vsel %vm642, %v569, 0
      %v710 = vsel %vm642, %v577, 0
      %v713 = vsel %vm642, %v585, 0
      %v716 = vsel %vm642, %v593, 0
      %v719 = vsel %vm642, %v601, 0
      %v722 = vsel %vm642, %v609, 0
      %v725 = vsel %vm642, %v617, 0
      %727 = vmatpush.bf16.msra.mxu0 0
      %728 = vmatpush.bf16.msra.mxu0 0
      %729 = vmatpush.bf16.msra.mxu0 0
      %730 = vmatpush.bf16.msra.mxu0 0
      %731 = vmatpush.bf16.msra.mxu0 %v637
      %732 = vmatpush.bf16.msra.mxu0 %v636
      %733 = vmatpush.bf16.msra.mxu0 %v635
      %734 = vmatpush.bf16.msra.mxu0 %v634
      %735 = vmatmul.bf16.gmra.mxu0 %v644
      %v736 = vpop.f32.mrf.mxu0
      %v737 = vadd.f32 0.0, %v736
      %v738 = vpop.f32.mrf.mxu0
      %v739 = vadd.f32 0.0, %v738
      %740 = vmatmul.bf16.gmra.mxu0 %v647
      %v741 = vpop.f32.mrf.mxu0
      %v742 = vadd.f32 0.0, %v741
      %v743 = vpop.f32.mrf.mxu0
      %v744 = vadd.f32 0.0, %v743
      %745 = vmatmul.bf16.gmra.mxu0 %v650
      %v746 = vpop.f32.mrf.mxu0
      %v747 = vadd.f32 0.0, %v746
      %v748 = vpop.f32.mrf.mxu0
      %v749 = vadd.f32 0.0, %v748
      %750 = vmatmul.bf16.gmra.mxu0 %v653
      %v751 = vpop.f32.mrf.mxu0
      %v752 = vadd.f32 0.0, %v751
      %v753 = vpop.f32.mrf.mxu0
      %v754 = vadd.f32 0.0, %v753
      %755 = vmatmul.bf16.gmra.mxu0 %v656
      %v756 = vpop.f32.mrf.mxu0
      %v757 = vadd.f32 0.0, %v756
      %v758 = vpop.f32.mrf.mxu0
      %v759 = vadd.f32 0.0, %v758
      %760 = vmatmul.bf16.gmra.mxu0 %v659
      %v761 = vpop.f32.mrf.mxu0
      %v762 = vadd.f32 0.0, %v761
      %v763 = vpop.f32.mrf.mxu0
      %v764 = vadd.f32 0.0, %v763
      %765 = vmatmul.bf16.gmra.mxu0 %v662
      %v766 = vpop.f32.mrf.mxu0
      %v767 = vadd.f32 0.0, %v766
      %v768 = vpop.f32.mrf.mxu0
      %v769 = vadd.f32 0.0, %v768
      %770 = vmatmul.bf16.gmra.mxu0 %v665
      %v771 = vpop.f32.mrf.mxu0
      %v772 = vadd.f32 0.0, %v771
      %v773 = vpop.f32.mrf.mxu0
      %v774 = vadd.f32 0.0, %v773
      %775 = vmatmul.bf16.gmra.mxu0 %v668
      %v776 = vpop.f32.mrf.mxu0
      %v777 = vadd.f32 0.0, %v776
      %v778 = vpop.f32.mrf.mxu0
      %v779 = vadd.f32 0.0, %v778
      %780 = vmatmul.bf16.gmra.mxu0 %v671
      %v781 = vpop.f32.mrf.mxu0
      %v782 = vadd.f32 0.0, %v781
      %v783 = vpop.f32.mrf.mxu0
      %v784 = vadd.f32 0.0, %v783
      %785 = vmatmul.bf16.gmra.mxu0 %v674
      %v786 = vpop.f32.mrf.mxu0
      %v787 = vadd.f32 0.0, %v786
      %v788 = vpop.f32.mrf.mxu0
      %v789 = vadd.f32 0.0, %v788
      %790 = vmatmul.bf16.gmra.mxu0 %v677
      %v791 = vpop.f32.mrf.mxu0
      %v792 = vadd.f32 0.0, %v791
      %v793 = vpop.f32.mrf.mxu0
      %v794 = vadd.f32 0.0, %v793
      %795 = vmatmul.bf16.gmra.mxu0 %v680
      %v796 = vpop.f32.mrf.mxu0
      %v797 = vadd.f32 0.0, %v796
      %v798 = vpop.f32.mrf.mxu0
      %v799 = vadd.f32 0.0, %v798
      %800 = vmatmul.bf16.gmra.mxu0 %v683
      %v801 = vpop.f32.mrf.mxu0
      %v802 = vadd.f32 0.0, %v801
      %v803 = vpop.f32.mrf.mxu0
      %v804 = vadd.f32 0.0, %v803
      %805 = vmatmul.bf16.gmra.mxu0 %v686
      %v806 = vpop.f32.mrf.mxu0
      %v807 = vadd.f32 0.0, %v806
      %v808 = vpop.f32.mrf.mxu0
      %v809 = vadd.f32 0.0, %v808
      %810 = vmatmul.bf16.gmra.mxu0 %v689
      %v811 = vpop.f32.mrf.mxu0
      %v812 = vadd.f32 0.0, %v811
      %v813 = vpop.f32.mrf.mxu0
      %v814 = vadd.f32 0.0, %v813
      %815 = vmatmul.bf16.gmra.mxu0 %v692
      %v816 = vpop.f32.mrf.mxu0
      %v817 = vadd.f32 0.0, %v816
      %v818 = vpop.f32.mrf.mxu0
      %v819 = vadd.f32 0.0, %v818
      %820 = vmatmul.bf16.gmra.mxu0 %v695
      %v821 = vpop.f32.mrf.mxu0
      %v822 = vadd.f32 0.0, %v821
      %v823 = vpop.f32.mrf.mxu0
      %v824 = vadd.f32 0.0, %v823
      %825 = vmatmul.bf16.gmra.mxu0 %v698
      %v826 = vpop.f32.mrf.mxu0
      %v827 = vadd.f32 0.0, %v826
      %v828 = vpop.f32.mrf.mxu0
      %v829 = vadd.f32 0.0, %v828
      %830 = vmatmul.bf16.gmra.mxu0 %v701
      %v831 = vpop.f32.mrf.mxu0
      %v832 = vadd.f32 0.0, %v831
      %v833 = vpop.f32.mrf.mxu0
      %v834 = vadd.f32 0.0, %v833
      %835 = vmatmul.bf16.gmra.mxu0 %v704
      %v836 = vpop.f32.mrf.mxu0
      %v837 = vadd.f32 0.0, %v836
      %v838 = vpop.f32.mrf.mxu0
      %v839 = vadd.f32 0.0, %v838
      %840 = vmatmul.bf16.gmra.mxu0 %v707
      %v841 = vpop.f32.mrf.mxu0
      %v842 = vadd.f32 0.0, %v841
      %v843 = vpop.f32.mrf.mxu0
      %v844 = vadd.f32 0.0, %v843
      %845 = vmatmul.bf16.gmra.mxu0 %v710
      %v846 = vpop.f32.mrf.mxu0
      %v847 = vadd.f32 0.0, %v846
      %v848 = vpop.f32.mrf.mxu0
      %v849 = vadd.f32 0.0, %v848
      %850 = vmatmul.bf16.gmra.mxu0 %v713
      %v851 = vpop.f32.mrf.mxu0
      %v852 = vadd.f32 0.0, %v851
      %v853 = vpop.f32.mrf.mxu0
      %v854 = vadd.f32 0.0, %v853
      %855 = vmatmul.bf16.gmra.mxu0 %v716
      %v856 = vpop.f32.mrf.mxu0
      %v857 = vadd.f32 0.0, %v856
      %v858 = vpop.f32.mrf.mxu0
      %v859 = vadd.f32 0.0, %v858
      %860 = vmatmul.bf16.gmra.mxu0 %v719
      %v861 = vpop.f32.mrf.mxu0
      %v862 = vadd.f32 0.0, %v861
      %v863 = vpop.f32.mrf.mxu0
      %v864 = vadd.f32 0.0, %v863
      %865 = vmatmul.bf16.gmra.mxu0 %v722
      %v866 = vpop.f32.mrf.mxu0
      %v867 = vadd.f32 0.0, %v866
      %v868 = vpop.f32.mrf.mxu0
      %v869 = vadd.f32 0.0, %v868
      %870 = vmatmul.bf16.gmra.mxu0 %v725
      %v871 = vpop.f32.mrf.mxu0
      %v872 = vadd.f32 0.0, %v871
      %v873 = vpop.f32.mrf.mxu0
      %v874 = vadd.f32 0.0, %v873
      %875 = vdwg.mxu0
      %v884 = vunpack.c.l.b16 %v228
      %v885 = vunpack.c.l.b16 %v229
      %v886 = vunpack.c.l.b16 %v230
      %v887 = vunpack.c.l.b16 %v231
      %v888 = vunpack.c.l.b16 %v232
      %v889 = vunpack.c.l.b16 %v233
      %v890 = vunpack.c.l.b16 %v234
      %v891 = vunpack.c.l.b16 %v235
      %v892 = vpack.c.b16 %v885, %v884
      %v893 = vpack.c.b16 %v887, %v886
      %v894 = vpack.c.b16 %v889, %v888
      %v895 = vpack.c.b16 %v891, %v890
      %v900 = vsel %vm642, %v360, 0
      %v902 = vsel %vm642, %v361, 0
      %v904 = vsel %vm642, %v362, 0
      %v906 = vsel %vm642, %v363, 0
      %v908 = vsel %vm642, %v364, 0
      %v910 = vsel %vm642, %v365, 0
      %v912 = vsel %vm642, %v366, 0
      %v914 = vsel %vm642, %v367, 0
      %v916 = vsel %vm642, %v368, 0
      %v918 = vsel %vm642, %v369, 0
      %v920 = vsel %vm642, %v370, 0
      %v922 = vsel %vm642, %v371, 0
      %v924 = vsel %vm642, %v372, 0
      %v926 = vsel %vm642, %v373, 0
      %v928 = vsel %vm642, %v374, 0
      %v930 = vsel %vm642, %v375, 0
      %v932 = vsel %vm642, %v376, 0
      %v934 = vsel %vm642, %v377, 0
      %v936 = vsel %vm642, %v378, 0
      %v938 = vsel %vm642, %v379, 0
      %v940 = vsel %vm642, %v380, 0
      %v942 = vsel %vm642, %v381, 0
      %v944 = vsel %vm642, %v382, 0
      %v946 = vsel %vm642, %v383, 0
      %v948 = vsel %vm642, %v384, 0
      %v950 = vsel %vm642, %v385, 0
      %v952 = vsel %vm642, %v386, 0
      %v954 = vsel %vm642, %v387, 0
      %956 = vmatpush.bf16.msra.mxu0 0
      %957 = vmatpush.bf16.msra.mxu0 0
      %958 = vmatpush.bf16.msra.mxu0 0
      %959 = vmatpush.bf16.msra.mxu0 0
      %960 = vmatpush.bf16.msra.mxu0 %v895
      %961 = vmatpush.bf16.msra.mxu0 %v894
      %962 = vmatpush.bf16.msra.mxu0 %v893
      %963 = vmatpush.bf16.msra.mxu0 %v892
      %964 = vmatmul.bf16.gmra.mxu0 %v900
      %v965 = vpop.f32.mrf.mxu0
      %v966 = vadd.f32 %v737, %v965
      %v967 = vpop.f32.mrf.mxu0
      %v968 = vadd.f32 %v739, %v967
      %969 = vmatmul.bf16.gmra.mxu0 %v902
      %v970 = vpop.f32.mrf.mxu0
      %v971 = vadd.f32 %v742, %v970
      %v972 = vpop.f32.mrf.mxu0
      %v973 = vadd.f32 %v744, %v972
      %974 = vmatmul.bf16.gmra.mxu0 %v904
      %v975 = vpop.f32.mrf.mxu0
      %v976 = vadd.f32 %v747, %v975
      %v977 = vpop.f32.mrf.mxu0
      %v978 = vadd.f32 %v749, %v977
      %979 = vmatmul.bf16.gmra.mxu0 %v906
      %v980 = vpop.f32.mrf.mxu0
      %v981 = vadd.f32 %v752, %v980
      %v982 = vpop.f32.mrf.mxu0
      %v983 = vadd.f32 %v754, %v982
      %984 = vmatmul.bf16.gmra.mxu0 %v908
      %v985 = vpop.f32.mrf.mxu0
      %v986 = vadd.f32 %v757, %v985
      %v987 = vpop.f32.mrf.mxu0
      %v988 = vadd.f32 %v759, %v987
      %989 = vmatmul.bf16.gmra.mxu0 %v910
      %v990 = vpop.f32.mrf.mxu0
      %v991 = vadd.f32 %v762, %v990
      %v992 = vpop.f32.mrf.mxu0
      %v993 = vadd.f32 %v764, %v992
      %994 = vmatmul.bf16.gmra.mxu0 %v912
      %v995 = vpop.f32.mrf.mxu0
      %v996 = vadd.f32 %v767, %v995
      %v997 = vpop.f32.mrf.mxu0
      %v998 = vadd.f32 %v769, %v997
      %999 = vmatmul.bf16.gmra.mxu0 %v914
      %v1000 = vpop.f32.mrf.mxu0
      %v1001 = vadd.f32 %v772, %v1000
      %v1002 = vpop.f32.mrf.mxu0
      %v1003 = vadd.f32 %v774, %v1002
      %1004 = vmatmul.bf16.gmra.mxu0 %v916
      %v1005 = vpop.f32.mrf.mxu0
      %v1006 = vadd.f32 %v777, %v1005
      %v1007 = vpop.f32.mrf.mxu0
      %v1008 = vadd.f32 %v779, %v1007
      %1009 = vmatmul.bf16.gmra.mxu0 %v918
      %v1010 = vpop.f32.mrf.mxu0
      %v1011 = vadd.f32 %v782, %v1010
      %v1012 = vpop.f32.mrf.mxu0
      %v1013 = vadd.f32 %v784, %v1012
      %1014 = vmatmul.bf16.gmra.mxu0 %v920
      %v1015 = vpop.f32.mrf.mxu0
      %v1016 = vadd.f32 %v787, %v1015
      %v1017 = vpop.f32.mrf.mxu0
      %v1018 = vadd.f32 %v789, %v1017
      %1019 = vmatmul.bf16.gmra.mxu0 %v922
      %v1020 = vpop.f32.mrf.mxu0
      %v1021 = vadd.f32 %v792, %v1020
      %v1022 = vpop.f32.mrf.mxu0
      %v1023 = vadd.f32 %v794, %v1022
      %1024 = vmatmul.bf16.gmra.mxu0 %v924
      %v1025 = vpop.f32.mrf.mxu0
      %v1026 = vadd.f32 %v797, %v1025
      %v1027 = vpop.f32.mrf.mxu0
      %v1028 = vadd.f32 %v799, %v1027
      %1029 = vmatmul.bf16.gmra.mxu0 %v926
      %v1030 = vpop.f32.mrf.mxu0
      %v1031 = vadd.f32 %v802, %v1030
      %v1032 = vpop.f32.mrf.mxu0
      %v1033 = vadd.f32 %v804, %v1032
      %1034 = vmatmul.bf16.gmra.mxu0 %v928
      %v1035 = vpop.f32.mrf.mxu0
      %v1036 = vadd.f32 %v807, %v1035
      %v1037 = vpop.f32.mrf.mxu0
      %v1038 = vadd.f32 %v809, %v1037
      %1039 = vmatmul.bf16.gmra.mxu0 %v930
      %v1040 = vpop.f32.mrf.mxu0
      %v1041 = vadd.f32 %v812, %v1040
      %v1042 = vpop.f32.mrf.mxu0
      %v1043 = vadd.f32 %v814, %v1042
      %1044 = vmatmul.bf16.gmra.mxu0 %v932
      %v1045 = vpop.f32.mrf.mxu0
      %v1046 = vadd.f32 %v817, %v1045
      %v1047 = vpop.f32.mrf.mxu0
      %v1048 = vadd.f32 %v819, %v1047
      %1049 = vmatmul.bf16.gmra.mxu0 %v934
      %v1050 = vpop.f32.mrf.mxu0
      %v1051 = vadd.f32 %v822, %v1050
      %v1052 = vpop.f32.mrf.mxu0
      %v1053 = vadd.f32 %v824, %v1052
      %1054 = vmatmul.bf16.gmra.mxu0 %v936
      %v1055 = vpop.f32.mrf.mxu0
      %v1056 = vadd.f32 %v827, %v1055
      %v1057 = vpop.f32.mrf.mxu0
      %v1058 = vadd.f32 %v829, %v1057
      %1059 = vmatmul.bf16.gmra.mxu0 %v938
      %v1060 = vpop.f32.mrf.mxu0
      %v1061 = vadd.f32 %v832, %v1060
      %v1062 = vpop.f32.mrf.mxu0
      %v1063 = vadd.f32 %v834, %v1062
      %1064 = vmatmul.bf16.gmra.mxu0 %v940
      %v1065 = vpop.f32.mrf.mxu0
      %v1066 = vadd.f32 %v837, %v1065
      %v1067 = vpop.f32.mrf.mxu0
      %v1068 = vadd.f32 %v839, %v1067
      %1069 = vmatmul.bf16.gmra.mxu0 %v942
      %v1070 = vpop.f32.mrf.mxu0
      %v1071 = vadd.f32 %v842, %v1070
      %v1072 = vpop.f32.mrf.mxu0
      %v1073 = vadd.f32 %v844, %v1072
      %1074 = vmatmul.bf16.gmra.mxu0 %v944
      %v1075 = vpop.f32.mrf.mxu0
      %v1076 = vadd.f32 %v847, %v1075
      %v1077 = vpop.f32.mrf.mxu0
      %v1078 = vadd.f32 %v849, %v1077
      %1079 = vmatmul.bf16.gmra.mxu0 %v946
      %v1080 = vpop.f32.mrf.mxu0
      %v1081 = vadd.f32 %v852, %v1080
      %v1082 = vpop.f32.mrf.mxu0
      %v1083 = vadd.f32 %v854, %v1082
      %1084 = vmatmul.bf16.gmra.mxu0 %v948
      %v1085 = vpop.f32.mrf.mxu0
      %v1086 = vadd.f32 %v857, %v1085
      %v1087 = vpop.f32.mrf.mxu0
      %v1088 = vadd.f32 %v859, %v1087
      %1089 = vmatmul.bf16.gmra.mxu0 %v950
      %v1090 = vpop.f32.mrf.mxu0
      %v1091 = vadd.f32 %v862, %v1090
      %v1092 = vpop.f32.mrf.mxu0
      %v1093 = vadd.f32 %v864, %v1092
      %1094 = vmatmul.bf16.gmra.mxu0 %v952
      %v1095 = vpop.f32.mrf.mxu0
      %v1096 = vadd.f32 %v867, %v1095
      %v1097 = vpop.f32.mrf.mxu0
      %v1098 = vadd.f32 %v869, %v1097
      %1099 = vmatmul.bf16.gmra.mxu0 %v954
      %v1100 = vpop.f32.mrf.mxu0
      %v1101 = vadd.f32 %v872, %v1100
      %v1102 = vpop.f32.mrf.mxu0
      %v1103 = vadd.f32 %v874, %v1102
      %1104 = vdwg.mxu0
      %v1105 = vld [vmem:[%s165 + $0x8] sm:$0xc]
      %v1106 = vld [vmem:[%s165 + $0xc] sm:$0xf]
      %v1107 = vld [vmem:[%s165 + $0x10] sm:$0xf]
      %v1108 = vld [vmem:[%s165 + $0x14] sm:$0xf]
      %v1109 = vld [vmem:[%s165 + $0x18] sm:$0xf]
      %v1110 = vld [vmem:[%s165 + $0x1c] sm:$0xf]
      %v1111 = vld [vmem:[%s165 + $0x20] sm:$0xf]
      %v1112 = vld [vmem:[%s165 + $0x24] sm:$0xf]
      %v1113 = vld [vmem:[%s165 + $0x28] sm:$0xf]
      %v1114 = vld [vmem:[%s165 + $0x2c] sm:$0xf]
      %v1115 = vld [vmem:[%s165 + $0x30] sm:$0xf]
      %v1116 = vld [vmem:[%s165 + $0x34] sm:$0xf]
      %v1117 = vld [vmem:[%s165 + $0x38] sm:$0xf]
      %v1118 = vld [vmem:[%s165 + $0x3c] sm:$0xf]
      %v1119 = vld [vmem:[%s165 + $0x40] sm:$0xf]
      %v1120 = vld [vmem:[%s165 + $0x44] sm:$0xf]
      %v1121 = vld [vmem:[%s165 + $0x48] sm:$0xf]
      %v1122 = vld [vmem:[%s165 + $0x4c] sm:$0xf]
      %v1123 = vld [vmem:[%s165 + $0x50] sm:$0xf]
      %v1124 = vld [vmem:[%s165 + $0x54] sm:$0xf]
      %v1125 = vld [vmem:[%s165 + $0x58] sm:$0xf]
      %v1126 = vld [vmem:[%s165 + $0x5c] sm:$0xf]
      %v1127 = vld [vmem:[%s165 + $0x60] sm:$0xf]
      %v1128 = vld [vmem:[%s165 + $0x64] sm:$0xf]
      %v1129 = vld [vmem:[%s165 + $0x68] sm:$0xf]
      %v1130 = vld [vmem:[%s165 + $0x6c] sm:$0xf]
      %v1131 = vld [vmem:[%s165 + $0x70] sm:$0xf]
      %v1132 = vld [vmem:[%s165 + $0x74] sm:$0xf]
      %v1133 = vld [vmem:[%s165 + $0x78] sm:$0xf]
      %v1134 = vld [vmem:[%s165 + $0x7c] sm:$0xf]
      %v1135 = vld [vmem:[%s165 + $0x80] sm:$0xf]
      %v1136 = vld [vmem:[%s165 + $0x84] sm:$0xf]
      %v1137 = vld [vmem:[%s165 + $0x88] sm:$0xf]
      %v1138 = vld [vmem:[%s165 + $0x8c] sm:$0xf]
      %v1139 = vld [vmem:[%s165 + $0x90] sm:$0xf]
      %v1140 = vld [vmem:[%s165 + $0x94] sm:$0xf]
      %v1141 = vld [vmem:[%s165 + $0x98] sm:$0xf]
      %v1142 = vld [vmem:[%s165 + $0x9c] sm:$0xf]
      %v1143 = vld [vmem:[%s165 + $0xa0] sm:$0xf]
      %v1144 = vld [vmem:[%s165 + $0xa4] sm:$0xf]
      %v1145 = vld [vmem:[%s165 + $0xa8] sm:$0xf]
      %v1146 = vld [vmem:[%s165 + $0xac] sm:$0xf]
      %v1147 = vld [vmem:[%s165 + $0xb0] sm:$0xf]
      %v1148 = vld [vmem:[%s165 + $0xb4] sm:$0xf]
      %v1149 = vld [vmem:[%s165 + $0xb8] sm:$0xf]
      %v1150 = vld [vmem:[%s165 + $0xbc] sm:$0xf]
      %v1151 = vld [vmem:[%s165 + $0xc0] sm:$0xf]
      %v1152 = vld [vmem:[%s165 + $0xc4] sm:$0xf]
      %v1153 = vld [vmem:[%s165 + $0xc8] sm:$0xf]
      %v1154 = vld [vmem:[%s165 + $0xcc] sm:$0xf]
      %v1155 = vld [vmem:[%s165 + $0xd0] sm:$0xf]
      %v1156 = vld [vmem:[%s165 + $0xd4] sm:$0xf]
      %v1157 = vld [vmem:[%s165 + $0xd8] sm:$0xf]
      %v1158 = vld [vmem:[%s165 + $0xdc] sm:$0xf]
      %v1159 = vld [vmem:[%s165 + $0xe0] sm:$0xf]
      %v1160 = vld [vmem:[%s165 + $0xe4] sm:$0xf]
      %v1161 = vld [vmem:[%s165 + $0xe8] sm:$0x7]
      %s1162 = scalar_lea.vmem %s1, 64
      %v1163 = vld [vmem:[%s1162] sm:$0xf]
      %v1164 = vld [vmem:[%s1162 + $0x4] sm:$0xf]
      %v1165 = vld [vmem:[%s1162 + $0x8] sm:$0xf]
      %v1166 = vld [vmem:[%s1162 + $0xc] sm:$0xf]
      %v1167 = vld [vmem:[%s1162 + $0x10] sm:$0xf]
      %v1168 = vld [vmem:[%s1162 + $0x14] sm:$0xf]
      %v1169 = vld [vmem:[%s1162 + $0x18] sm:$0xf]
      %v1170 = vld [vmem:[%s1162 + $0x1c] sm:$0xf]
      %v1228 = vunpack.c.l.b16 %v1105
      %v1229 = vunpack.c.l.b16 %v1106
      %v1230 = vunpack.c.l.b16 %v1107
      %v1231 = vunpack.c.l.b16 %v1108
      %v1232 = vunpack.c.l.b16 %v1109
      %v1233 = vunpack.c.l.b16 %v1110
      %v1234 = vunpack.c.l.b16 %v1111
      %v1235 = vunpack.c.l.b16 %v1112
      %v1236 = vunpack.c.l.b16 %v1113
      %v1237 = vunpack.c.l.b16 %v1114
      %v1238 = vunpack.c.l.b16 %v1115
      %v1239 = vunpack.c.l.b16 %v1116
      %v1240 = vunpack.c.l.b16 %v1117
      %v1241 = vunpack.c.l.b16 %v1118
      %v1242 = vunpack.c.l.b16 %v1119
      %v1243 = vunpack.c.l.b16 %v1120
      %v1244 = vunpack.c.l.b16 %v1121
      %v1245 = vunpack.c.l.b16 %v1122
      %v1246 = vunpack.c.l.b16 %v1123
      %v1247 = vunpack.c.l.b16 %v1124
      %v1248 = vunpack.c.l.b16 %v1125
      %v1249 = vunpack.c.l.b16 %v1126
      %v1250 = vunpack.c.l.b16 %v1127
      %v1251 = vunpack.c.l.b16 %v1128
      %v1252 = vunpack.c.l.b16 %v1129
      %v1253 = vunpack.c.l.b16 %v1130
      %v1254 = vunpack.c.l.b16 %v1131
      %v1255 = vunpack.c.l.b16 %v1132
      %v1256 = vunpack.c.l.b16 %v1133
      %v1257 = vunpack.c.l.b16 %v1134
      %v1258 = vunpack.c.l.b16 %v1135
      %v1259 = vunpack.c.l.b16 %v1136
      %v1260 = vunpack.c.l.b16 %v1137
      %v1261 = vunpack.c.l.b16 %v1138
      %v1262 = vunpack.c.l.b16 %v1139
      %v1263 = vunpack.c.l.b16 %v1140
      %v1264 = vunpack.c.l.b16 %v1141
      %v1265 = vunpack.c.l.b16 %v1142
      %v1266 = vunpack.c.l.b16 %v1143
      %v1267 = vunpack.c.l.b16 %v1144
      %v1268 = vunpack.c.l.b16 %v1145
      %v1269 = vunpack.c.l.b16 %v1146
      %v1270 = vunpack.c.l.b16 %v1147
      %v1271 = vunpack.c.l.b16 %v1148
      %v1272 = vunpack.c.l.b16 %v1149
      %v1273 = vunpack.c.l.b16 %v1150
      %v1274 = vunpack.c.l.b16 %v1151
      %v1275 = vunpack.c.l.b16 %v1152
      %v1276 = vunpack.c.l.b16 %v1153
      %v1277 = vunpack.c.l.b16 %v1154
      %v1278 = vunpack.c.l.b16 %v1155
      %v1279 = vunpack.c.l.b16 %v1156
      %v1280 = vunpack.c.l.b16 %v1157
      %v1281 = vunpack.c.l.b16 %v1158
      %v1282 = vunpack.c.l.b16 %v1159
      %v1283 = vunpack.c.l.b16 %v1160
      %v1284 = vunpack.c.l.b16 %v1161
      %v1285 = vpack.c.b16 %v1229, %v1228
      %v1286 = vpack.c.b16 %v1231, %v1230
      %v1287 = vpack.c.b16 %v1233, %v1232
      %v1288 = vpack.c.b16 %v1235, %v1234
      %v1289 = vpack.c.b16 %v1237, %v1236
      %v1290 = vpack.c.b16 %v1239, %v1238
      %v1291 = vpack.c.b16 %v1241, %v1240
      %v1292 = vpack.c.b16 %v1243, %v1242
      %v1293 = vpack.c.b16 %v1245, %v1244
      %v1294 = vpack.c.b16 %v1247, %v1246
      %v1295 = vpack.c.b16 %v1249, %v1248
      %v1296 = vpack.c.b16 %v1251, %v1250
      %v1297 = vpack.c.b16 %v1253, %v1252
      %v1298 = vpack.c.b16 %v1255, %v1254
      %v1299 = vpack.c.b16 %v1257, %v1256
      %v1300 = vpack.c.b16 %v1259, %v1258
      %v1301 = vpack.c.b16 %v1261, %v1260
      %v1302 = vpack.c.b16 %v1263, %v1262
      %v1303 = vpack.c.b16 %v1265, %v1264
      %v1304 = vpack.c.b16 %v1267, %v1266
      %v1305 = vpack.c.b16 %v1269, %v1268
      %v1306 = vpack.c.b16 %v1271, %v1270
      %v1307 = vpack.c.b16 %v1273, %v1272
      %v1308 = vpack.c.b16 %v1275, %v1274
      %v1309 = vpack.c.b16 %v1277, %v1276
      %v1310 = vpack.c.b16 %v1279, %v1278
      %v1311 = vpack.c.b16 %v1281, %v1280
      %v1312 = vpack.c.b16 %v1283, %v1282
      %v1313 = vpack.c.b16 %v1284, %v1284
      %vm1314 = vsmask.f32 5376
      %v1316 = vshrl.u32 %v1285, 16
      %v1318 = vrot.slane %v1316, 2
      %v1319 = vshll.u32 %v1285, 16
      %v1321 = vrot.slane %v1319, 3
      %v1322 = vor.u32 %v1318, %v1321
      %v1324 = vshrl.u32 %v1286, 16
      %v1326 = vrot.slane %v1324, 2
      %v1327 = vshll.u32 %v1286, 16
      %v1329 = vrot.slane %v1327, 3
      %v1330 = vor.u32 %v1326, %v1329
      %v1331 = vsel %vm1314, %v1322, %v1330
      %v1333 = vshrl.u32 %v1287, 16
      %v1335 = vrot.slane %v1333, 2
      %v1336 = vshll.u32 %v1287, 16
      %v1338 = vrot.slane %v1336, 3
      %v1339 = vor.u32 %v1335, %v1338
      %v1340 = vsel %vm1314, %v1330, %v1339
      %v1342 = vshrl.u32 %v1288, 16
      %v1344 = vrot.slane %v1342, 2
      %v1345 = vshll.u32 %v1288, 16
      %v1347 = vrot.slane %v1345, 3
      %v1348 = vor.u32 %v1344, %v1347
      %v1349 = vsel %vm1314, %v1339, %v1348
      %v1351 = vshrl.u32 %v1289, 16
      %v1353 = vrot.slane %v1351, 2
      %v1354 = vshll.u32 %v1289, 16
      %v1356 = vrot.slane %v1354, 3
      %v1357 = vor.u32 %v1353, %v1356
      %v1358 = vsel %vm1314, %v1348, %v1357
      %v1360 = vshrl.u32 %v1290, 16
      %v1362 = vrot.slane %v1360, 2
      %v1363 = vshll.u32 %v1290, 16
      %v1365 = vrot.slane %v1363, 3
      %v1366 = vor.u32 %v1362, %v1365
      %v1367 = vsel %vm1314, %v1357, %v1366
      %v1369 = vshrl.u32 %v1291, 16
      %v1371 = vrot.slane %v1369, 2
      %v1372 = vshll.u32 %v1291, 16
      %v1374 = vrot.slane %v1372, 3
      %v1375 = vor.u32 %v1371, %v1374
      %v1376 = vsel %vm1314, %v1366, %v1375
      %v1378 = vshrl.u32 %v1292, 16
      %v1380 = vrot.slane %v1378, 2
      %v1381 = vshll.u32 %v1292, 16
      %v1383 = vrot.slane %v1381, 3
      %v1384 = vor.u32 %v1380, %v1383
      %v1385 = vsel %vm1314, %v1375, %v1384
      %v1387 = vshrl.u32 %v1293, 16
      %v1389 = vrot.slane %v1387, 2
      %v1390 = vshll.u32 %v1293, 16
      %v1392 = vrot.slane %v1390, 3
      %v1393 = vor.u32 %v1389, %v1392
      %v1394 = vsel %vm1314, %v1384, %v1393
      %v1396 = vshrl.u32 %v1294, 16
      %v1398 = vrot.slane %v1396, 2
      %v1399 = vshll.u32 %v1294, 16
      %v1401 = vrot.slane %v1399, 3
      %v1402 = vor.u32 %v1398, %v1401
      %v1403 = vsel %vm1314, %v1393, %v1402
      %v1405 = vshrl.u32 %v1295, 16
      %v1407 = vrot.slane %v1405, 2
      %v1408 = vshll.u32 %v1295, 16
      %v1410 = vrot.slane %v1408, 3
      %v1411 = vor.u32 %v1407, %v1410
      %v1412 = vsel %vm1314, %v1402, %v1411
      %v1414 = vshrl.u32 %v1296, 16
      %v1416 = vrot.slane %v1414, 2
      %v1417 = vshll.u32 %v1296, 16
      %v1419 = vrot.slane %v1417, 3
      %v1420 = vor.u32 %v1416, %v1419
      %v1421 = vsel %vm1314, %v1411, %v1420
      %v1423 = vshrl.u32 %v1297, 16
      %v1425 = vrot.slane %v1423, 2
      %v1426 = vshll.u32 %v1297, 16
      %v1428 = vrot.slane %v1426, 3
      %v1429 = vor.u32 %v1425, %v1428
      %v1430 = vsel %vm1314, %v1420, %v1429
      %v1432 = vshrl.u32 %v1298, 16
      %v1434 = vrot.slane %v1432, 2
      %v1435 = vshll.u32 %v1298, 16
      %v1437 = vrot.slane %v1435, 3
      %v1438 = vor.u32 %v1434, %v1437
      %v1439 = vsel %vm1314, %v1429, %v1438
      %v1441 = vshrl.u32 %v1299, 16
      %v1443 = vrot.slane %v1441, 2
      %v1444 = vshll.u32 %v1299, 16
      %v1446 = vrot.slane %v1444, 3
      %v1447 = vor.u32 %v1443, %v1446
      %v1448 = vsel %vm1314, %v1438, %v1447
      %v1450 = vshrl.u32 %v1300, 16
      %v1452 = vrot.slane %v1450, 2
      %v1453 = vshll.u32 %v1300, 16
      %v1455 = vrot.slane %v1453, 3
      %v1456 = vor.u32 %v1452, %v1455
      %v1457 = vsel %vm1314, %v1447, %v1456
      %v1459 = vshrl.u32 %v1301, 16
      %v1461 = vrot.slane %v1459, 2
      %v1462 = vshll.u32 %v1301, 16
      %v1464 = vrot.slane %v1462, 3
      %v1465 = vor.u32 %v1461, %v1464
      %v1466 = vsel %vm1314, %v1456, %v1465
      %v1468 = vshrl.u32 %v1302, 16
      %v1470 = vrot.slane %v1468, 2
      %v1471 = vshll.u32 %v1302, 16
      %v1473 = vrot.slane %v1471, 3
      %v1474 = vor.u32 %v1470, %v1473
      %v1475 = vsel %vm1314, %v1465, %v1474
      %v1477 = vshrl.u32 %v1303, 16
      %v1479 = vrot.slane %v1477, 2
      %v1480 = vshll.u32 %v1303, 16
      %v1482 = vrot.slane %v1480, 3
      %v1483 = vor.u32 %v1479, %v1482
      %v1484 = vsel %vm1314, %v1474, %v1483
      %v1486 = vshrl.u32 %v1304, 16
      %v1488 = vrot.slane %v1486, 2
      %v1489 = vshll.u32 %v1304, 16
      %v1491 = vrot.slane %v1489, 3
      %v1492 = vor.u32 %v1488, %v1491
      %v1493 = vsel %vm1314, %v1483, %v1492
      %v1495 = vshrl.u32 %v1305, 16
      %v1497 = vrot.slane %v1495, 2
      %v1498 = vshll.u32 %v1305, 16
      %v1500 = vrot.slane %v1498, 3
      %v1501 = vor.u32 %v1497, %v1500
      %v1502 = vsel %vm1314, %v1492, %v1501
      %v1504 = vshrl.u32 %v1306, 16
      %v1506 = vrot.slane %v1504, 2
      %v1507 = vshll.u32 %v1306, 16
      %v1509 = vrot.slane %v1507, 3
      %v1510 = vor.u32 %v1506, %v1509
      %v1511 = vsel %vm1314, %v1501, %v1510
      %v1513 = vshrl.u32 %v1307, 16
      %v1515 = vrot.slane %v1513, 2
      %v1516 = vshll.u32 %v1307, 16
      %v1518 = vrot.slane %v1516, 3
      %v1519 = vor.u32 %v1515, %v1518
      %v1520 = vsel %vm1314, %v1510, %v1519
      %v1522 = vshrl.u32 %v1308, 16
      %v1524 = vrot.slane %v1522, 2
      %v1525 = vshll.u32 %v1308, 16
      %v1527 = vrot.slane %v1525, 3
      %v1528 = vor.u32 %v1524, %v1527
      %v1529 = vsel %vm1314, %v1519, %v1528
      %v1531 = vshrl.u32 %v1309, 16
      %v1533 = vrot.slane %v1531, 2
      %v1534 = vshll.u32 %v1309, 16
      %v1536 = vrot.slane %v1534, 3
      %v1537 = vor.u32 %v1533, %v1536
      %v1538 = vsel %vm1314, %v1528, %v1537
      %v1540 = vshrl.u32 %v1310, 16
      %v1542 = vrot.slane %v1540, 2
      %v1543 = vshll.u32 %v1310, 16
      %v1545 = vrot.slane %v1543, 3
      %v1546 = vor.u32 %v1542, %v1545
      %v1547 = vsel %vm1314, %v1537, %v1546
      %v1549 = vshrl.u32 %v1311, 16
      %v1551 = vrot.slane %v1549, 2
      %v1552 = vshll.u32 %v1311, 16
      %v1554 = vrot.slane %v1552, 3
      %v1555 = vor.u32 %v1551, %v1554
      %v1556 = vsel %vm1314, %v1546, %v1555
      %v1558 = vshrl.u32 %v1312, 16
      %v1560 = vrot.slane %v1558, 2
      %v1561 = vshll.u32 %v1312, 16
      %v1563 = vrot.slane %v1561, 3
      %v1564 = vor.u32 %v1560, %v1563
      %v1565 = vsel %vm1314, %v1555, %v1564
      %v1567 = vshrl.u32 %v1313, 16
      %v1569 = vrot.slane %v1567, 2
      %v1570 = vshll.u32 %v1313, 16
      %v1572 = vrot.slane %v1570, 3
      %v1573 = vor.u32 %v1569, %v1572
      %v1574 = vsel %vm1314, %v1564, %v1573
      %v1583 = vunpack.c.l.b16 %v1163
      %v1584 = vunpack.c.l.b16 %v1164
      %v1585 = vunpack.c.l.b16 %v1165
      %v1586 = vunpack.c.l.b16 %v1166
      %v1587 = vunpack.c.l.b16 %v1167
      %v1588 = vunpack.c.l.b16 %v1168
      %v1589 = vunpack.c.l.b16 %v1169
      %v1590 = vunpack.c.l.b16 %v1170
      %v1591 = vpack.c.b16 %v1584, %v1583
      %v1592 = vpack.c.b16 %v1586, %v1585
      %v1593 = vpack.c.b16 %v1588, %v1587
      %v1594 = vpack.c.b16 %v1590, %v1589
      %v1600 = vsel %vm642, %v1331, 0
      %v1603 = vsel %vm642, %v1340, 0
      %v1606 = vsel %vm642, %v1349, 0
      %v1609 = vsel %vm642, %v1358, 0
      %v1612 = vsel %vm642, %v1367, 0
      %v1615 = vsel %vm642, %v1376, 0
      %v1618 = vsel %vm642, %v1385, 0
      %v1621 = vsel %vm642, %v1394, 0
      %v1624 = vsel %vm642, %v1403, 0
      %v1627 = vsel %vm642, %v1412, 0
      %v1630 = vsel %vm642, %v1421, 0
      %v1633 = vsel %vm642, %v1430, 0
      %v1636 = vsel %vm642, %v1439, 0
      %v1639 = vsel %vm642, %v1448, 0
      %v1642 = vsel %vm642, %v1457, 0
      %v1645 = vsel %vm642, %v1466, 0
      %v1648 = vsel %vm642, %v1475, 0
      %v1651 = vsel %vm642, %v1484, 0
      %v1654 = vsel %vm642, %v1493, 0
      %v1657 = vsel %vm642, %v1502, 0
      %v1660 = vsel %vm642, %v1511, 0
      %v1663 = vsel %vm642, %v1520, 0
      %v1666 = vsel %vm642, %v1529, 0
      %v1669 = vsel %vm642, %v1538, 0
      %v1672 = vsel %vm642, %v1547, 0
      %v1675 = vsel %vm642, %v1556, 0
      %v1678 = vsel %vm642, %v1565, 0
      %v1681 = vsel %vm642, %v1574, 0
      %1683 = vmatpush.bf16.msra.mxu0 0
      %1684 = vmatpush.bf16.msra.mxu0 0
      %1685 = vmatpush.bf16.msra.mxu0 0
      %1686 = vmatpush.bf16.msra.mxu0 0
      %1687 = vmatpush.bf16.msra.mxu0 %v1594
      %1688 = vmatpush.bf16.msra.mxu0 %v1593
      %1689 = vmatpush.bf16.msra.mxu0 %v1592
      %1690 = vmatpush.bf16.msra.mxu0 %v1591
      %1691 = vmatmul.bf16.gmra.mxu0 %v1600
      %v1692 = vpop.f32.mrf.mxu0
      %v1693 = vadd.f32 0.0, %v1692
      %v1694 = vpop.f32.mrf.mxu0
      %v1695 = vadd.f32 0.0, %v1694
      %1696 = vmatmul.bf16.gmra.mxu0 %v1603
      %v1697 = vpop.f32.mrf.mxu0
      %v1698 = vadd.f32 0.0, %v1697
      %v1699 = vpop.f32.mrf.mxu0
      %v1700 = vadd.f32 0.0, %v1699
      %1701 = vmatmul.bf16.gmra.mxu0 %v1606
      %v1702 = vpop.f32.mrf.mxu0
      %v1703 = vadd.f32 0.0, %v1702
      %v1704 = vpop.f32.mrf.mxu0
      %v1705 = vadd.f32 0.0, %v1704
      %1706 = vmatmul.bf16.gmra.mxu0 %v1609
      %v1707 = vpop.f32.mrf.mxu0
      %v1708 = vadd.f32 0.0, %v1707
      %v1709 = vpop.f32.mrf.mxu0
      %v1710 = vadd.f32 0.0, %v1709
      %1711 = vmatmul.bf16.gmra.mxu0 %v1612
      %v1712 = vpop.f32.mrf.mxu0
      %v1713 = vadd.f32 0.0, %v1712
      %v1714 = vpop.f32.mrf.mxu0
      %v1715 = vadd.f32 0.0, %v1714
      %1716 = vmatmul.bf16.gmra.mxu0 %v1615
      %v1717 = vpop.f32.mrf.mxu0
      %v1718 = vadd.f32 0.0, %v1717
      %v1719 = vpop.f32.mrf.mxu0
      %v1720 = vadd.f32 0.0, %v1719
      %1721 = vmatmul.bf16.gmra.mxu0 %v1618
      %v1722 = vpop.f32.mrf.mxu0
      %v1723 = vadd.f32 0.0, %v1722
      %v1724 = vpop.f32.mrf.mxu0
      %v1725 = vadd.f32 0.0, %v1724
      %1726 = vmatmul.bf16.gmra.mxu0 %v1621
      %v1727 = vpop.f32.mrf.mxu0
      %v1728 = vadd.f32 0.0, %v1727
      %v1729 = vpop.f32.mrf.mxu0
      %v1730 = vadd.f32 0.0, %v1729
      %1731 = vmatmul.bf16.gmra.mxu0 %v1624
      %v1732 = vpop.f32.mrf.mxu0
      %v1733 = vadd.f32 0.0, %v1732
      %v1734 = vpop.f32.mrf.mxu0
      %v1735 = vadd.f32 0.0, %v1734
      %1736 = vmatmul.bf16.gmra.mxu0 %v1627
      %v1737 = vpop.f32.mrf.mxu0
      %v1738 = vadd.f32 0.0, %v1737
      %v1739 = vpop.f32.mrf.mxu0
      %v1740 = vadd.f32 0.0, %v1739
      %1741 = vmatmul.bf16.gmra.mxu0 %v1630
      %v1742 = vpop.f32.mrf.mxu0
      %v1743 = vadd.f32 0.0, %v1742
      %v1744 = vpop.f32.mrf.mxu0
      %v1745 = vadd.f32 0.0, %v1744
      %1746 = vmatmul.bf16.gmra.mxu0 %v1633
      %v1747 = vpop.f32.mrf.mxu0
      %v1748 = vadd.f32 0.0, %v1747
      %v1749 = vpop.f32.mrf.mxu0
      %v1750 = vadd.f32 0.0, %v1749
      %1751 = vmatmul.bf16.gmra.mxu0 %v1636
      %v1752 = vpop.f32.mrf.mxu0
      %v1753 = vadd.f32 0.0, %v1752
      %v1754 = vpop.f32.mrf.mxu0
      %v1755 = vadd.f32 0.0, %v1754
      %1756 = vmatmul.bf16.gmra.mxu0 %v1639
      %v1757 = vpop.f32.mrf.mxu0
      %v1758 = vadd.f32 0.0, %v1757
      %v1759 = vpop.f32.mrf.mxu0
      %v1760 = vadd.f32 0.0, %v1759
      %1761 = vmatmul.bf16.gmra.mxu0 %v1642
      %v1762 = vpop.f32.mrf.mxu0
      %v1763 = vadd.f32 0.0, %v1762
      %v1764 = vpop.f32.mrf.mxu0
      %v1765 = vadd.f32 0.0, %v1764
      %1766 = vmatmul.bf16.gmra.mxu0 %v1645
      %v1767 = vpop.f32.mrf.mxu0
      %v1768 = vadd.f32 0.0, %v1767
      %v1769 = vpop.f32.mrf.mxu0
      %v1770 = vadd.f32 0.0, %v1769
      %1771 = vmatmul.bf16.gmra.mxu0 %v1648
      %v1772 = vpop.f32.mrf.mxu0
      %v1773 = vadd.f32 0.0, %v1772
      %v1774 = vpop.f32.mrf.mxu0
      %v1775 = vadd.f32 0.0, %v1774
      %1776 = vmatmul.bf16.gmra.mxu0 %v1651
      %v1777 = vpop.f32.mrf.mxu0
      %v1778 = vadd.f32 0.0, %v1777
      %v1779 = vpop.f32.mrf.mxu0
      %v1780 = vadd.f32 0.0, %v1779
      %1781 = vmatmul.bf16.gmra.mxu0 %v1654
      %v1782 = vpop.f32.mrf.mxu0
      %v1783 = vadd.f32 0.0, %v1782
      %v1784 = vpop.f32.mrf.mxu0
      %v1785 = vadd.f32 0.0, %v1784
      %1786 = vmatmul.bf16.gmra.mxu0 %v1657
      %v1787 = vpop.f32.mrf.mxu0
      %v1788 = vadd.f32 0.0, %v1787
      %v1789 = vpop.f32.mrf.mxu0
      %v1790 = vadd.f32 0.0, %v1789
      %1791 = vmatmul.bf16.gmra.mxu0 %v1660
      %v1792 = vpop.f32.mrf.mxu0
      %v1793 = vadd.f32 0.0, %v1792
      %v1794 = vpop.f32.mrf.mxu0
      %v1795 = vadd.f32 0.0, %v1794
      %1796 = vmatmul.bf16.gmra.mxu0 %v1663
      %v1797 = vpop.f32.mrf.mxu0
      %v1798 = vadd.f32 0.0, %v1797
      %v1799 = vpop.f32.mrf.mxu0
      %v1800 = vadd.f32 0.0, %v1799
      %1801 = vmatmul.bf16.gmra.mxu0 %v1666
      %v1802 = vpop.f32.mrf.mxu0
      %v1803 = vadd.f32 0.0, %v1802
      %v1804 = vpop.f32.mrf.mxu0
      %v1805 = vadd.f32 0.0, %v1804
      %1806 = vmatmul.bf16.gmra.mxu0 %v1669
      %v1807 = vpop.f32.mrf.mxu0
      %v1808 = vadd.f32 0.0, %v1807
      %v1809 = vpop.f32.mrf.mxu0
      %v1810 = vadd.f32 0.0, %v1809
      %1811 = vmatmul.bf16.gmra.mxu0 %v1672
      %v1812 = vpop.f32.mrf.mxu0
      %v1813 = vadd.f32 0.0, %v1812
      %v1814 = vpop.f32.mrf.mxu0
      %v1815 = vadd.f32 0.0, %v1814
      %1816 = vmatmul.bf16.gmra.mxu0 %v1675
      %v1817 = vpop.f32.mrf.mxu0
      %v1818 = vadd.f32 0.0, %v1817
      %v1819 = vpop.f32.mrf.mxu0
      %v1820 = vadd.f32 0.0, %v1819
      %1821 = vmatmul.bf16.gmra.mxu0 %v1678
      %v1822 = vpop.f32.mrf.mxu0
      %v1823 = vadd.f32 0.0, %v1822
      %v1824 = vpop.f32.mrf.mxu0
      %v1825 = vadd.f32 0.0, %v1824
      %1826 = vmatmul.bf16.gmra.mxu0 %v1681
      %v1827 = vpop.f32.mrf.mxu0
      %v1828 = vadd.f32 0.0, %v1827
      %v1829 = vpop.f32.mrf.mxu0
      %v1830 = vadd.f32 0.0, %v1829
      %1831 = vdwg.mxu0
      %v1832 = vadd.f32 %v966, %v1693
      %v1833 = vadd.f32 %v968, %v1695
      %v1834 = vadd.f32 %v971, %v1698
      %v1835 = vadd.f32 %v973, %v1700
      %v1836 = vadd.f32 %v976, %v1703
      %v1837 = vadd.f32 %v978, %v1705
      %v1838 = vadd.f32 %v981, %v1708
      %v1839 = vadd.f32 %v983, %v1710
      %v1840 = vadd.f32 %v986, %v1713
      %v1841 = vadd.f32 %v988, %v1715
      %v1842 = vadd.f32 %v991, %v1718
      %v1843 = vadd.f32 %v993, %v1720
      %v1844 = vadd.f32 %v996, %v1723
      %v1845 = vadd.f32 %v998, %v1725
      %v1846 = vadd.f32 %v1001, %v1728
      %v1847 = vadd.f32 %v1003, %v1730
      %v1848 = vadd.f32 %v1006, %v1733
      %v1849 = vadd.f32 %v1008, %v1735
      %v1850 = vadd.f32 %v1011, %v1738
      %v1851 = vadd.f32 %v1013, %v1740
      %v1852 = vadd.f32 %v1016, %v1743
      %v1853 = vadd.f32 %v1018, %v1745
      %v1854 = vadd.f32 %v1021, %v1748
      %v1855 = vadd.f32 %v1023, %v1750
      %v1856 = vadd.f32 %v1026, %v1753
      %v1857 = vadd.f32 %v1028, %v1755
      %v1858 = vadd.f32 %v1031, %v1758
      %v1859 = vadd.f32 %v1033, %v1760
      %v1860 = vadd.f32 %v1036, %v1763
      %v1861 = vadd.f32 %v1038, %v1765
      %v1862 = vadd.f32 %v1041, %v1768
      %v1863 = vadd.f32 %v1043, %v1770
      %v1864 = vadd.f32 %v1046, %v1773
      %v1865 = vadd.f32 %v1048, %v1775
      %v1866 = vadd.f32 %v1051, %v1778
      %v1867 = vadd.f32 %v1053, %v1780
      %v1868 = vadd.f32 %v1056, %v1783
      %v1869 = vadd.f32 %v1058, %v1785
      %v1870 = vadd.f32 %v1061, %v1788
      %v1871 = vadd.f32 %v1063, %v1790
      %v1872 = vadd.f32 %v1066, %v1793
      %v1873 = vadd.f32 %v1068, %v1795
      %v1874 = vadd.f32 %v1071, %v1798
      %v1875 = vadd.f32 %v1073, %v1800
      %v1876 = vadd.f32 %v1076, %v1803
      %v1877 = vadd.f32 %v1078, %v1805
      %v1878 = vadd.f32 %v1081, %v1808
      %v1879 = vadd.f32 %v1083, %v1810
      %v1880 = vadd.f32 %v1086, %v1813
      %v1881 = vadd.f32 %v1088, %v1815
      %v1882 = vadd.f32 %v1091, %v1818
      %v1883 = vadd.f32 %v1093, %v1820
      %v1884 = vadd.f32 %v1096, %v1823
      %v1885 = vadd.f32 %v1098, %v1825
      %v1886 = vadd.f32 %v1101, %v1828
      %v1887 = vadd.f32 %v1103, %v1830
      %v1888 = vld [vmem:[%s165 + $0x8] sm:$0x8]
      %s1889 = scalar_lea.vmem %s1, 96
      %v1890 = vld [vmem:[%s1889] sm:$0xf]
      %v1891 = vld [vmem:[%s1889 + $0x4] sm:$0xf]
      %v1892 = vld [vmem:[%s1889 + $0x8] sm:$0xf]
      %v1893 = vld [vmem:[%s1889 + $0xc] sm:$0xf]
      %v1894 = vld [vmem:[%s1889 + $0x10] sm:$0xf]
      %v1895 = vld [vmem:[%s1889 + $0x14] sm:$0xf]
      %v1896 = vld [vmem:[%s1889 + $0x18] sm:$0xf]
      %v1897 = vld [vmem:[%s1889 + $0x1c] sm:$0xf]
      %v1899 = vunpack.c.l.b16 %v1888
      %v1900 = vpack.c.b16 %v1229, %v1899
      %vm1901 = vcmask 1044480
      %v1902 = vrot.slane %v1900, 3
      %v1903 = vrot.slane %v1286, 3
      %v1904 = vsel %vm1901, %v1902, %v1903
      %v1905 = vrot.slane %v1287, 3
      %v1906 = vsel %vm1901, %v1903, %v1905
      %v1907 = vrot.slane %v1288, 3
      %v1908 = vsel %vm1901, %v1905, %v1907
      %v1909 = vrot.slane %v1289, 3
      %v1910 = vsel %vm1901, %v1907, %v1909
      %v1911 = vrot.slane %v1290, 3
      %v1912 = vsel %vm1901, %v1909, %v1911
      %v1913 = vrot.slane %v1291, 3
      %v1914 = vsel %vm1901, %v1911, %v1913
      %v1915 = vrot.slane %v1292, 3
      %v1916 = vsel %vm1901, %v1913, %v1915
      %v1917 = vrot.slane %v1293, 3
      %v1918 = vsel %vm1901, %v1915, %v1917
      %v1919 = vrot.slane %v1294, 3
      %v1920 = vsel %vm1901, %v1917, %v1919
      %v1921 = vrot.slane %v1295, 3
      %v1922 = vsel %vm1901, %v1919, %v1921
      %v1923 = vrot.slane %v1296, 3
      %v1924 = vsel %vm1901, %v1921, %v1923
      %v1925 = vrot.slane %v1297, 3
      %v1926 = vsel %vm1901, %v1923, %v1925
      %v1927 = vrot.slane %v1298, 3
      %v1928 = vsel %vm1901, %v1925, %v1927
      %v1929 = vrot.slane %v1299, 3
      %v1930 = vsel %vm1901, %v1927, %v1929
      %v1931 = vrot.slane %v1300, 3
      %v1932 = vsel %vm1901, %v1929, %v1931
      %v1933 = vrot.slane %v1301, 3
      %v1934 = vsel %vm1901, %v1931, %v1933
      %v1935 = vrot.slane %v1302, 3
      %v1936 = vsel %vm1901, %v1933, %v1935
      %v1937 = vrot.slane %v1303, 3
      %v1938 = vsel %vm1901, %v1935, %v1937
      %v1939 = vrot.slane %v1304, 3
      %v1940 = vsel %vm1901, %v1937, %v1939
      %v1941 = vrot.slane %v1305, 3
      %v1942 = vsel %vm1901, %v1939, %v1941
      %v1943 = vrot.slane %v1306, 3
      %v1944 = vsel %vm1901, %v1941, %v1943
      %v1945 = vrot.slane %v1307, 3
      %v1946 = vsel %vm1901, %v1943, %v1945
      %v1947 = vrot.slane %v1308, 3
      %v1948 = vsel %vm1901, %v1945, %v1947
      %v1949 = vrot.slane %v1309, 3
      %v1950 = vsel %vm1901, %v1947, %v1949
      %v1951 = vrot.slane %v1310, 3
      %v1952 = vsel %vm1901, %v1949, %v1951
      %v1953 = vrot.slane %v1311, 3
      %v1954 = vsel %vm1901, %v1951, %v1953
      %v1955 = vrot.slane %v1312, 3
      %v1956 = vsel %vm1901, %v1953, %v1955
      %v1957 = vrot.slane %v1313, 3
      %v1958 = vsel %vm1901, %v1955, %v1957
      %v1967 = vunpack.c.l.b16 %v1890
      %v1968 = vunpack.c.l.b16 %v1891
      %v1969 = vunpack.c.l.b16 %v1892
      %v1970 = vunpack.c.l.b16 %v1893
      %v1971 = vunpack.c.l.b16 %v1894
      %v1972 = vunpack.c.l.b16 %v1895
      %v1973 = vunpack.c.l.b16 %v1896
      %v1974 = vunpack.c.l.b16 %v1897
      %v1975 = vpack.c.b16 %v1968, %v1967
      %v1976 = vpack.c.b16 %v1970, %v1969
      %v1977 = vpack.c.b16 %v1972, %v1971
      %v1978 = vpack.c.b16 %v1974, %v1973
      %v1984 = vsel %vm642, %v1904, 0
      %v1987 = vsel %vm642, %v1906, 0
      %v1990 = vsel %vm642, %v1908, 0
      %v1993 = vsel %vm642, %v1910, 0
      %v1996 = vsel %vm642, %v1912, 0
      %v1999 = vsel %vm642, %v1914, 0
      %v2002 = vsel %vm642, %v1916, 0
      %v2005 = vsel %vm642, %v1918, 0
      %v2008 = vsel %vm642, %v1920, 0
      %v2011 = vsel %vm642, %v1922, 0
      %v2014 = vsel %vm642, %v1924, 0
      %v2017 = vsel %vm642, %v1926, 0
      %v2020 = vsel %vm642, %v1928, 0
      %v2023 = vsel %vm642, %v1930, 0
      %v2026 = vsel %vm642, %v1932, 0
      %v2029 = vsel %vm642, %v1934, 0
      %v2032 = vsel %vm642, %v1936, 0
      %v2035 = vsel %vm642, %v1938, 0
      %v2038 = vsel %vm642, %v1940, 0
      %v2041 = vsel %vm642, %v1942, 0
      %v2044 = vsel %vm642, %v1944, 0
      %v2047 = vsel %vm642, %v1946, 0
      %v2050 = vsel %vm642, %v1948, 0
      %v2053 = vsel %vm642, %v1950, 0
      %v2056 = vsel %vm642, %v1952, 0
      %v2059 = vsel %vm642, %v1954, 0
      %v2062 = vsel %vm642, %v1956, 0
      %v2065 = vsel %vm642, %v1958, 0
      %2067 = vmatpush.bf16.msra.mxu0 0
      %2068 = vmatpush.bf16.msra.mxu0 0
      %2069 = vmatpush.bf16.msra.mxu0 0
      %2070 = vmatpush.bf16.msra.mxu0 0
      %2071 = vmatpush.bf16.msra.mxu0 %v1978
      %2072 = vmatpush.bf16.msra.mxu0 %v1977
      %2073 = vmatpush.bf16.msra.mxu0 %v1976
      %2074 = vmatpush.bf16.msra.mxu0 %v1975
      %2075 = vmatmul.bf16.gmra.mxu0 %v1984
      %v2076 = vpop.f32.mrf.mxu0
      %v2077 = vadd.f32 0.0, %v2076
      %v2078 = vpop.f32.mrf.mxu0
      %v2079 = vadd.f32 0.0, %v2078
      %2080 = vmatmul.bf16.gmra.mxu0 %v1987
      %v2081 = vpop.f32.mrf.mxu0
      %v2082 = vadd.f32 0.0, %v2081
      %v2083 = vpop.f32.mrf.mxu0
      %v2084 = vadd.f32 0.0, %v2083
      %2085 = vmatmul.bf16.gmra.mxu0 %v1990
      %v2086 = vpop.f32.mrf.mxu0
      %v2087 = vadd.f32 0.0, %v2086
      %v2088 = vpop.f32.mrf.mxu0
      %v2089 = vadd.f32 0.0, %v2088
      %2090 = vmatmul.bf16.gmra.mxu0 %v1993
      %v2091 = vpop.f32.mrf.mxu0
      %v2092 = vadd.f32 0.0, %v2091
      %v2093 = vpop.f32.mrf.mxu0
      %v2094 = vadd.f32 0.0, %v2093
      %2095 = vmatmul.bf16.gmra.mxu0 %v1996
      %v2096 = vpop.f32.mrf.mxu0
      %v2097 = vadd.f32 0.0, %v2096
      %v2098 = vpop.f32.mrf.mxu0
      %v2099 = vadd.f32 0.0, %v2098
      %2100 = vmatmul.bf16.gmra.mxu0 %v1999
      %v2101 = vpop.f32.mrf.mxu0
      %v2102 = vadd.f32 0.0, %v2101
      %v2103 = vpop.f32.mrf.mxu0
      %v2104 = vadd.f32 0.0, %v2103
      %2105 = vmatmul.bf16.gmra.mxu0 %v2002
      %v2106 = vpop.f32.mrf.mxu0
      %v2107 = vadd.f32 0.0, %v2106
      %v2108 = vpop.f32.mrf.mxu0
      %v2109 = vadd.f32 0.0, %v2108
      %2110 = vmatmul.bf16.gmra.mxu0 %v2005
      %v2111 = vpop.f32.mrf.mxu0
      %v2112 = vadd.f32 0.0, %v2111
      %v2113 = vpop.f32.mrf.mxu0
      %v2114 = vadd.f32 0.0, %v2113
      %2115 = vmatmul.bf16.gmra.mxu0 %v2008
      %v2116 = vpop.f32.mrf.mxu0
      %v2117 = vadd.f32 0.0, %v2116
      %v2118 = vpop.f32.mrf.mxu0
      %v2119 = vadd.f32 0.0, %v2118
      %2120 = vmatmul.bf16.gmra.mxu0 %v2011
      %v2121 = vpop.f32.mrf.mxu0
      %v2122 = vadd.f32 0.0, %v2121
      %v2123 = vpop.f32.mrf.mxu0
      %v2124 = vadd.f32 0.0, %v2123
      %2125 = vmatmul.bf16.gmra.mxu0 %v2014
      %v2126 = vpop.f32.mrf.mxu0
      %v2127 = vadd.f32 0.0, %v2126
      %v2128 = vpop.f32.mrf.mxu0
      %v2129 = vadd.f32 0.0, %v2128
      %2130 = vmatmul.bf16.gmra.mxu0 %v2017
      %v2131 = vpop.f32.mrf.mxu0
      %v2132 = vadd.f32 0.0, %v2131
      %v2133 = vpop.f32.mrf.mxu0
      %v2134 = vadd.f32 0.0, %v2133
      %2135 = vmatmul.bf16.gmra.mxu0 %v2020
      %v2136 = vpop.f32.mrf.mxu0
      %v2137 = vadd.f32 0.0, %v2136
      %v2138 = vpop.f32.mrf.mxu0
      %v2139 = vadd.f32 0.0, %v2138
      %2140 = vmatmul.bf16.gmra.mxu0 %v2023
      %v2141 = vpop.f32.mrf.mxu0
      %v2142 = vadd.f32 0.0, %v2141
      %v2143 = vpop.f32.mrf.mxu0
      %v2144 = vadd.f32 0.0, %v2143
      %2145 = vmatmul.bf16.gmra.mxu0 %v2026
      %v2146 = vpop.f32.mrf.mxu0
      %v2147 = vadd.f32 0.0, %v2146
      %v2148 = vpop.f32.mrf.mxu0
      %v2149 = vadd.f32 0.0, %v2148
      %2150 = vmatmul.bf16.gmra.mxu0 %v2029
      %v2151 = vpop.f32.mrf.mxu0
      %v2152 = vadd.f32 0.0, %v2151
      %v2153 = vpop.f32.mrf.mxu0
      %v2154 = vadd.f32 0.0, %v2153
      %2155 = vmatmul.bf16.gmra.mxu0 %v2032
      %v2156 = vpop.f32.mrf.mxu0
      %v2157 = vadd.f32 0.0, %v2156
      %v2158 = vpop.f32.mrf.mxu0
      %v2159 = vadd.f32 0.0, %v2158
      %2160 = vmatmul.bf16.gmra.mxu0 %v2035
      %v2161 = vpop.f32.mrf.mxu0
      %v2162 = vadd.f32 0.0, %v2161
      %v2163 = vpop.f32.mrf.mxu0
      %v2164 = vadd.f32 0.0, %v2163
      %2165 = vmatmul.bf16.gmra.mxu0 %v2038
      %v2166 = vpop.f32.mrf.mxu0
      %v2167 = vadd.f32 0.0, %v2166
      %v2168 = vpop.f32.mrf.mxu0
      %v2169 = vadd.f32 0.0, %v2168
      %2170 = vmatmul.bf16.gmra.mxu0 %v2041
      %v2171 = vpop.f32.mrf.mxu0
      %v2172 = vadd.f32 0.0, %v2171
      %v2173 = vpop.f32.mrf.mxu0
      %v2174 = vadd.f32 0.0, %v2173
      %2175 = vmatmul.bf16.gmra.mxu0 %v2044
      %v2176 = vpop.f32.mrf.mxu0
      %v2177 = vadd.f32 0.0, %v2176
      %v2178 = vpop.f32.mrf.mxu0
      %v2179 = vadd.f32 0.0, %v2178
      %2180 = vmatmul.bf16.gmra.mxu0 %v2047
      %v2181 = vpop.f32.mrf.mxu0
      %v2182 = vadd.f32 0.0, %v2181
      %v2183 = vpop.f32.mrf.mxu0
      %v2184 = vadd.f32 0.0, %v2183
      %2185 = vmatmul.bf16.gmra.mxu0 %v2050
      %v2186 = vpop.f32.mrf.mxu0
      %v2187 = vadd.f32 0.0, %v2186
      %v2188 = vpop.f32.mrf.mxu0
      %v2189 = vadd.f32 0.0, %v2188
      %2190 = vmatmul.bf16.gmra.mxu0 %v2053
      %v2191 = vpop.f32.mrf.mxu0
      %v2192 = vadd.f32 0.0, %v2191
      %v2193 = vpop.f32.mrf.mxu0
      %v2194 = vadd.f32 0.0, %v2193
      %2195 = vmatmul.bf16.gmra.mxu0 %v2056
      %v2196 = vpop.f32.mrf.mxu0
      %v2197 = vadd.f32 0.0, %v2196
      %v2198 = vpop.f32.mrf.mxu0
      %v2199 = vadd.f32 0.0, %v2198
      %2200 = vmatmul.bf16.gmra.mxu0 %v2059
      %v2201 = vpop.f32.mrf.mxu0
      %v2202 = vadd.f32 0.0, %v2201
      %v2203 = vpop.f32.mrf.mxu0
      %v2204 = vadd.f32 0.0, %v2203
      %2205 = vmatmul.bf16.gmra.mxu0 %v2062
      %v2206 = vpop.f32.mrf.mxu0
      %v2207 = vadd.f32 0.0, %v2206
      %v2208 = vpop.f32.mrf.mxu0
      %v2209 = vadd.f32 0.0, %v2208
      %2210 = vmatmul.bf16.gmra.mxu0 %v2065
      %v2211 = vpop.f32.mrf.mxu0
      %v2212 = vadd.f32 0.0, %v2211
      %v2213 = vpop.f32.mrf.mxu0
      %v2214 = vadd.f32 0.0, %v2213
      %2215 = vdwg.mxu0
      %v2216 = vadd.f32 %v1832, %v2077
      %v2217 = vadd.f32 %v1833, %v2079
      %v2218 = vadd.f32 %v1834, %v2082
      %v2219 = vadd.f32 %v1835, %v2084
      %v2220 = vadd.f32 %v1836, %v2087
      %v2221 = vadd.f32 %v1837, %v2089
      %v2222 = vadd.f32 %v1838, %v2092
      %v2223 = vadd.f32 %v1839, %v2094
      %v2224 = vadd.f32 %v1840, %v2097
      %v2225 = vadd.f32 %v1841, %v2099
      %v2226 = vadd.f32 %v1842, %v2102
      %v2227 = vadd.f32 %v1843, %v2104
      %v2228 = vadd.f32 %v1844, %v2107
      %v2229 = vadd.f32 %v1845, %v2109
      %v2230 = vadd.f32 %v1846, %v2112
      %v2231 = vadd.f32 %v1847, %v2114
      %v2232 = vadd.f32 %v1848, %v2117
      %v2233 = vadd.f32 %v1849, %v2119
      %v2234 = vadd.f32 %v1850, %v2122
      %v2235 = vadd.f32 %v1851, %v2124
      %v2236 = vadd.f32 %v1852, %v2127
      %v2237 = vadd.f32 %v1853, %v2129
      %v2238 = vadd.f32 %v1854, %v2132
      %v2239 = vadd.f32 %v1855, %v2134
      %v2240 = vadd.f32 %v1856, %v2137
      %v2241 = vadd.f32 %v1857, %v2139
      %v2242 = vadd.f32 %v1858, %v2142
      %v2243 = vadd.f32 %v1859, %v2144
      %v2244 = vadd.f32 %v1860, %v2147
      %v2245 = vadd.f32 %v1861, %v2149
      %v2246 = vadd.f32 %v1862, %v2152
      %v2247 = vadd.f32 %v1863, %v2154
      %v2248 = vadd.f32 %v1864, %v2157
      %v2249 = vadd.f32 %v1865, %v2159
      %v2250 = vadd.f32 %v1866, %v2162
      %v2251 = vadd.f32 %v1867, %v2164
      %v2252 = vadd.f32 %v1868, %v2167
      %v2253 = vadd.f32 %v1869, %v2169
      %v2254 = vadd.f32 %v1870, %v2172
      %v2255 = vadd.f32 %v1871, %v2174
      %v2256 = vadd.f32 %v1872, %v2177
      %v2257 = vadd.f32 %v1873, %v2179
      %v2258 = vadd.f32 %v1874, %v2182
      %v2259 = vadd.f32 %v1875, %v2184
      %v2260 = vadd.f32 %v1876, %v2187
      %v2261 = vadd.f32 %v1877, %v2189
      %v2262 = vadd.f32 %v1878, %v2192
      %v2263 = vadd.f32 %v1879, %v2194
      %v2264 = vadd.f32 %v1880, %v2197
      %v2265 = vadd.f32 %v1881, %v2199
      %v2266 = vadd.f32 %v1882, %v2202
      %v2267 = vadd.f32 %v1883, %v2204
      %v2268 = vadd.f32 %v1884, %v2207
      %v2269 = vadd.f32 %v1885, %v2209
      %v2270 = vadd.f32 %v1886, %v2212
      %v2271 = vadd.f32 %v1887, %v2214
      %v2272 = vld [vmem:[%s2] sm:$0x1]
      %v2274 = vperm.slane %v2272, 0
      %v2276 = vadd.f32 %v2216, %v2274
      %v2277 = vadd.f32 %v2217, %v2274
      %v2278 = vadd.f32 %v2218, %v2274
      %v2279 = vadd.f32 %v2219, %v2274
      %v2280 = vadd.f32 %v2220, %v2274
      %v2281 = vadd.f32 %v2221, %v2274
      %v2282 = vadd.f32 %v2222, %v2274
      %v2283 = vadd.f32 %v2223, %v2274
      %v2284 = vadd.f32 %v2224, %v2274
      %v2285 = vadd.f32 %v2225, %v2274
      %v2286 = vadd.f32 %v2226, %v2274
      %v2287 = vadd.f32 %v2227, %v2274
      %v2288 = vadd.f32 %v2228, %v2274
      %v2289 = vadd.f32 %v2229, %v2274
      %v2290 = vadd.f32 %v2230, %v2274
      %v2291 = vadd.f32 %v2231, %v2274
      %v2292 = vadd.f32 %v2232, %v2274
      %v2293 = vadd.f32 %v2233, %v2274
      %v2294 = vadd.f32 %v2234, %v2274
      %v2295 = vadd.f32 %v2235, %v2274
      %v2296 = vadd.f32 %v2236, %v2274
      %v2297 = vadd.f32 %v2237, %v2274
      %v2298 = vadd.f32 %v2238, %v2274
      %v2299 = vadd.f32 %v2239, %v2274
      %v2300 = vadd.f32 %v2240, %v2274
      %v2301 = vadd.f32 %v2241, %v2274
      %v2302 = vadd.f32 %v2242, %v2274
      %v2303 = vadd.f32 %v2243, %v2274
      %v2304 = vadd.f32 %v2244, %v2274
      %v2305 = vadd.f32 %v2245, %v2274
      %v2306 = vadd.f32 %v2246, %v2274
      %v2307 = vadd.f32 %v2247, %v2274
      %v2308 = vadd.f32 %v2248, %v2274
      %v2309 = vadd.f32 %v2249, %v2274
      %v2310 = vadd.f32 %v2250, %v2274
      %v2311 = vadd.f32 %v2251, %v2274
      %v2312 = vadd.f32 %v2252, %v2274
      %v2313 = vadd.f32 %v2253, %v2274
      %v2314 = vadd.f32 %v2254, %v2274
      %v2315 = vadd.f32 %v2255, %v2274
      %v2316 = vadd.f32 %v2256, %v2274
      %v2317 = vadd.f32 %v2257, %v2274
      %v2318 = vadd.f32 %v2258, %v2274
      %v2319 = vadd.f32 %v2259, %v2274
      %v2320 = vadd.f32 %v2260, %v2274
      %v2321 = vadd.f32 %v2261, %v2274
      %v2322 = vadd.f32 %v2262, %v2274
      %v2323 = vadd.f32 %v2263, %v2274
      %v2324 = vadd.f32 %v2264, %v2274
      %v2325 = vadd.f32 %v2265, %v2274
      %v2326 = vadd.f32 %v2266, %v2274
      %v2327 = vadd.f32 %v2267, %v2274
      %v2328 = vadd.f32 %v2268, %v2274
      %v2329 = vadd.f32 %v2269, %v2274
      %v2330 = vadd.f32 %v2270, %v2274
      %v2331 = vadd.f32 %v2271, %v2274
      %v2332 = vmax.f32 %v2276, 0.0
      %v2333 = vmax.f32 %v2277, 0.0
      %v2334 = vmax.f32 %v2278, 0.0
      %v2335 = vmax.f32 %v2279, 0.0
      %v2336 = vmax.f32 %v2280, 0.0
      %v2337 = vmax.f32 %v2281, 0.0
      %v2338 = vmax.f32 %v2282, 0.0
      %v2339 = vmax.f32 %v2283, 0.0
      %v2340 = vmax.f32 %v2284, 0.0
      %v2341 = vmax.f32 %v2285, 0.0
      %v2342 = vmax.f32 %v2286, 0.0
      %v2343 = vmax.f32 %v2287, 0.0
      %v2344 = vmax.f32 %v2288, 0.0
      %v2345 = vmax.f32 %v2289, 0.0
      %v2346 = vmax.f32 %v2290, 0.0
      %v2347 = vmax.f32 %v2291, 0.0
      %v2348 = vmax.f32 %v2292, 0.0
      %v2349 = vmax.f32 %v2293, 0.0
      %v2350 = vmax.f32 %v2294, 0.0
      %v2351 = vmax.f32 %v2295, 0.0
      %v2352 = vmax.f32 %v2296, 0.0
      %v2353 = vmax.f32 %v2297, 0.0
      %v2354 = vmax.f32 %v2298, 0.0
      %v2355 = vmax.f32 %v2299, 0.0
      %v2356 = vmax.f32 %v2300, 0.0
      %v2357 = vmax.f32 %v2301, 0.0
      %v2358 = vmax.f32 %v2302, 0.0
      %v2359 = vmax.f32 %v2303, 0.0
      %v2360 = vmax.f32 %v2304, 0.0
      %v2361 = vmax.f32 %v2305, 0.0
      %v2362 = vmax.f32 %v2306, 0.0
      %v2363 = vmax.f32 %v2307, 0.0
      %v2364 = vmax.f32 %v2308, 0.0
      %v2365 = vmax.f32 %v2309, 0.0
      %v2366 = vmax.f32 %v2310, 0.0
      %v2367 = vmax.f32 %v2311, 0.0
      %v2368 = vmax.f32 %v2312, 0.0
      %v2369 = vmax.f32 %v2313, 0.0
      %v2370 = vmax.f32 %v2314, 0.0
      %v2371 = vmax.f32 %v2315, 0.0
      %v2372 = vmax.f32 %v2316, 0.0
      %v2373 = vmax.f32 %v2317, 0.0
      %v2374 = vmax.f32 %v2318, 0.0
      %v2375 = vmax.f32 %v2319, 0.0
      %v2376 = vmax.f32 %v2320, 0.0
      %v2377 = vmax.f32 %v2321, 0.0
      %v2378 = vmax.f32 %v2322, 0.0
      %v2379 = vmax.f32 %v2323, 0.0
      %v2380 = vmax.f32 %v2324, 0.0
      %v2381 = vmax.f32 %v2325, 0.0
      %v2382 = vmax.f32 %v2326, 0.0
      %v2383 = vmax.f32 %v2327, 0.0
      %v2384 = vmax.f32 %v2328, 0.0
      %v2385 = vmax.f32 %v2329, 0.0
      %v2386 = vmax.f32 %v2330, 0.0
      %v2387 = vmax.f32 %v2331, 0.0
      %v2388 = vpack.c.bf16 %v2332, %v2332
      %v2389 = vpack.c.bf16 %v2333, %v2333
      %v2390 = vpack.c.bf16 %v2334, %v2334
      %v2391 = vpack.c.bf16 %v2335, %v2335
      %v2392 = vpack.c.bf16 %v2336, %v2336
      %v2393 = vpack.c.bf16 %v2337, %v2337
      %v2394 = vpack.c.bf16 %v2338, %v2338
      %v2395 = vpack.c.bf16 %v2339, %v2339
      %v2396 = vpack.c.bf16 %v2340, %v2340
      %v2397 = vpack.c.bf16 %v2341, %v2341
      %v2398 = vpack.c.bf16 %v2342, %v2342
      %v2399 = vpack.c.bf16 %v2343, %v2343
      %v2400 = vpack.c.bf16 %v2344, %v2344
      %v2401 = vpack.c.bf16 %v2345, %v2345
      %v2402 = vpack.c.bf16 %v2346, %v2346
      %v2403 = vpack.c.bf16 %v2347, %v2347
      %v2404 = vpack.c.bf16 %v2348, %v2348
      %v2405 = vpack.c.bf16 %v2349, %v2349
      %v2406 = vpack.c.bf16 %v2350, %v2350
      %v2407 = vpack.c.bf16 %v2351, %v2351
      %v2408 = vpack.c.bf16 %v2352, %v2352
      %v2409 = vpack.c.bf16 %v2353, %v2353
      %v2410 = vpack.c.bf16 %v2354, %v2354
      %v2411 = vpack.c.bf16 %v2355, %v2355
      %v2412 = vpack.c.bf16 %v2356, %v2356
      %v2413 = vpack.c.bf16 %v2357, %v2357
      %v2414 = vpack.c.bf16 %v2358, %v2358
      %v2415 = vpack.c.bf16 %v2359, %v2359
      %v2416 = vpack.c.bf16 %v2360, %v2360
      %v2417 = vpack.c.bf16 %v2361, %v2361
      %v2418 = vpack.c.bf16 %v2362, %v2362
      %v2419 = vpack.c.bf16 %v2363, %v2363
      %v2420 = vpack.c.bf16 %v2364, %v2364
      %v2421 = vpack.c.bf16 %v2365, %v2365
      %v2422 = vpack.c.bf16 %v2366, %v2366
      %v2423 = vpack.c.bf16 %v2367, %v2367
      %v2424 = vpack.c.bf16 %v2368, %v2368
      %v2425 = vpack.c.bf16 %v2369, %v2369
      %v2426 = vpack.c.bf16 %v2370, %v2370
      %v2427 = vpack.c.bf16 %v2371, %v2371
      %v2428 = vpack.c.bf16 %v2372, %v2372
      %v2429 = vpack.c.bf16 %v2373, %v2373
      %v2430 = vpack.c.bf16 %v2374, %v2374
      %v2431 = vpack.c.bf16 %v2375, %v2375
      %v2432 = vpack.c.bf16 %v2376, %v2376
      %v2433 = vpack.c.bf16 %v2377, %v2377
      %v2434 = vpack.c.bf16 %v2378, %v2378
      %v2435 = vpack.c.bf16 %v2379, %v2379
      %v2436 = vpack.c.bf16 %v2380, %v2380
      %v2437 = vpack.c.bf16 %v2381, %v2381
      %v2438 = vpack.c.bf16 %v2382, %v2382
      %v2439 = vpack.c.bf16 %v2383, %v2383
      %v2440 = vpack.c.bf16 %v2384, %v2384
      %v2441 = vpack.c.bf16 %v2385, %v2385
      %v2442 = vpack.c.bf16 %v2386, %v2386
      %v2443 = vpack.c.bf16 %v2387, %v2387
      %2444 = vst [vmem:[%s170] sm:$0xf] %v2388
      %2445 = vst [vmem:[%s170 + $0x4] sm:$0xf] %v2389
      %2446 = vst [vmem:[%s170 + $0x8] sm:$0xf] %v2390
      %2447 = vst [vmem:[%s170 + $0xc] sm:$0xf] %v2391
      %2448 = vst [vmem:[%s170 + $0x10] sm:$0xf] %v2392
      %2449 = vst [vmem:[%s170 + $0x14] sm:$0xf] %v2393
      %2450 = vst [vmem:[%s170 + $0x18] sm:$0xf] %v2394
      %2451 = vst [vmem:[%s170 + $0x1c] sm:$0xf] %v2395
      %2452 = vst [vmem:[%s170 + $0x20] sm:$0xf] %v2396
      %2453 = vst [vmem:[%s170 + $0x24] sm:$0xf] %v2397
      %2454 = vst [vmem:[%s170 + $0x28] sm:$0xf] %v2398
      %2455 = vst [vmem:[%s170 + $0x2c] sm:$0xf] %v2399
      %2456 = vst [vmem:[%s170 + $0x30] sm:$0xf] %v2400
      %2457 = vst [vmem:[%s170 + $0x34] sm:$0xf] %v2401
      %2458 = vst [vmem:[%s170 + $0x38] sm:$0xf] %v2402
      %2459 = vst [vmem:[%s170 + $0x3c] sm:$0xf] %v2403
      %2460 = vst [vmem:[%s170 + $0x40] sm:$0xf] %v2404
      %2461 = vst [vmem:[%s170 + $0x44] sm:$0xf] %v2405
      %2462 = vst [vmem:[%s170 + $0x48] sm:$0xf] %v2406
      %2463 = vst [vmem:[%s170 + $0x4c] sm:$0xf] %v2407
      %2464 = vst [vmem:[%s170 + $0x50] sm:$0xf] %v2408
      %2465 = vst [vmem:[%s170 + $0x54] sm:$0xf] %v2409
      %2466 = vst [vmem:[%s170 + $0x58] sm:$0xf] %v2410
      %2467 = vst [vmem:[%s170 + $0x5c] sm:$0xf] %v2411
      %2468 = vst [vmem:[%s170 + $0x60] sm:$0xf] %v2412
      %2469 = vst [vmem:[%s170 + $0x64] sm:$0xf] %v2413
      %2470 = vst [vmem:[%s170 + $0x68] sm:$0xf] %v2414
      %2471 = vst [vmem:[%s170 + $0x6c] sm:$0xf] %v2415
      %2472 = vst [vmem:[%s170 + $0x70] sm:$0xf] %v2416
      %2473 = vst [vmem:[%s170 + $0x74] sm:$0xf] %v2417
      %2474 = vst [vmem:[%s170 + $0x78] sm:$0xf] %v2418
      %2475 = vst [vmem:[%s170 + $0x7c] sm:$0xf] %v2419
      %2476 = vst [vmem:[%s170 + $0x80] sm:$0xf] %v2420
      %2477 = vst [vmem:[%s170 + $0x84] sm:$0xf] %v2421
      %2478 = vst [vmem:[%s170 + $0x88] sm:$0xf] %v2422
      %2479 = vst [vmem:[%s170 + $0x8c] sm:$0xf] %v2423
      %2480 = vst [vmem:[%s170 + $0x90] sm:$0xf] %v2424
      %2481 = vst [vmem:[%s170 + $0x94] sm:$0xf] %v2425
      %2482 = vst [vmem:[%s170 + $0x98] sm:$0xf] %v2426
      %2483 = vst [vmem:[%s170 + $0x9c] sm:$0xf] %v2427
      %2484 = vst [vmem:[%s170 + $0xa0] sm:$0xf] %v2428
      %2485 = vst [vmem:[%s170 + $0xa4] sm:$0xf] %v2429
      %2486 = vst [vmem:[%s170 + $0xa8] sm:$0xf] %v2430
      %2487 = vst [vmem:[%s170 + $0xac] sm:$0xf] %v2431
      %2488 = vst [vmem:[%s170 + $0xb0] sm:$0xf] %v2432
      %2489 = vst [vmem:[%s170 + $0xb4] sm:$0xf] %v2433
      %2490 = vst [vmem:[%s170 + $0xb8] sm:$0xf] %v2434
      %2491 = vst [vmem:[%s170 + $0xbc] sm:$0xf] %v2435
      %2492 = vst [vmem:[%s170 + $0xc0] sm:$0xf] %v2436
      %2493 = vst [vmem:[%s170 + $0xc4] sm:$0xf] %v2437
      %2494 = vst [vmem:[%s170 + $0xc8] sm:$0xf] %v2438
      %2495 = vst [vmem:[%s170 + $0xcc] sm:$0xf] %v2439
      %2496 = vst [vmem:[%s170 + $0xd0] sm:$0xf] %v2440
      %2497 = vst [vmem:[%s170 + $0xd4] sm:$0xf] %v2441
      %2498 = vst [vmem:[%s170 + $0xd8] sm:$0xf] %v2442
      %2499 = vst [vmem:[%s170 + $0xdc] sm:$0xf] %v2443
      %p2500 = scmp.lt.s32.totalorder %s14, 1
      %s2501 = scalar_select %p2500, %s14, 1
      %s2502 = smul.addr %s2501, 56
      %s2503 = smul.addr %s2502, 4
      %s2504 = scalar_lea.vmem %s3, %s2503
      // Predicated region
      $region33: #{dqn_forward.4} parent=31 // pred_check
        %p2505 = pneg %p100
      $region34: #{dqn_forward.4} parent=31 // pred_check_branch
        %2507 = sbr.rel (%p2505) target = $region36
      $region35: #{dqn_forward.4} parent=31 // pred_region
        _
      $region36: #{dqn_forward.4} parent=31 // pred_fallthru
        _
    $region32: #{dqn_forward.4} parent=5 // pred_fallthru
      _
    %p2508 = scmp.le.s32.totalorder 2, %s9
    // Predicated region
    $region37: #{dqn_forward.4} parent=5 // pred_check
      %p2509 = pneg %p2508
    $region38: #{dqn_forward.4} parent=5 // pred_check_branch
      %2511 = sbr.rel (%p2509) target = $region40
    $region39: #{dqn_forward.4} parent=5 // pred_region
      %s2512 = ssub.s32 %s9, 2
      // Predicated region
      $region41: #{dqn_forward.4} parent=39 // pred_check
        %p2513 = pneg %p106
      $region42: #{dqn_forward.4} parent=39 // pred_check_branch
        %2515 = sbr.rel (%p2513) target = $region44
      $region43: #{dqn_forward.4} parent=39 // pred_region
        %p2516 = scmp.lt.s32.totalorder %s15, 1
        %s2517 = scalar_select %p2516, %s15, 1
        %s2518 = smul.addr %s2517, 56
        %s2519 = smul.addr %s2518, 4
        %s2520 = scalar_lea.vmem %s3, %s2519
      $region44: #{dqn_forward.4} parent=39 // pred_fallthru
        _
    $region40: #{dqn_forward.4} parent=5 // pred_fallthru
      _
  $region6: #{dqn_forward.4} parent=0 // loop_footer
    %s13 = sadd.s32 1, %s9
  $region7: #{dqn_forward.4} parent=0 // loop_footer_branch
    %8 = sbr.rel target = $region3
  $region8: #{dqn_forward.4} parent=0 // loop_exit
    _

// kernel: dqn_forward.5
$region0: #{dqn_forward.5}
  #allocation0 [shape = 'u32[]', space=smem, size = 0x4, offset = 0x4, fixed_abs, tag = 'smem constant byte address 0x4 - core index']
  #allocation1 [shape = 'u32[72,128]{1,0:T(1,128)}', space=vmem, size = 0x9000, scoped, tag = 'internal scratch']
  %s0 = inlined_call_operand.vmem [shape: bf16[2,115,512], index: 0, kind: input, shape index: {}]
  %s1 = inlined_call_operand.vmem [shape: bf16[4,512,128], index: 1, kind: input, shape index: {}]
  %s2 = inlined_call_operand.vmem [shape: f32[1,128], index: 2, kind: input, shape index: {}]
  %s3 = inlined_call_operand.vmem [shape: bf16[2,104,128], index: 3, kind: output, shape index: {}]
  %s4 = sld [smem:[#allocation0]]
  $region45: #{dqn_forward.5} parent=0
    _
  %s6 = ssub.s32 1, %s4
  %s7 = scalar_select 0, %s6, %s4
  loop: start=0, step=1, limit=4
  $region2: #{dqn_forward.5} parent=0 // loop_pre_header
    _
  $region3: #{dqn_forward.5} parent=0 // loop_header
    %s9 = sphi 0, %s13
    %p10 = scmp.ge.s32.totalorder %s9, 4
    %s19 = sphi 0, %s21
    %s22 = sphi 0, %s19
    %s23 = sphi 0, %s22
    %s39 = sphi 0, %s23
    %s43 = sphi 0, %s43
    %s45 = sphi 0, %s43
    %s46 = sphi 0, %s45
    %s60 = sphi 0, %s46
    %s64 = sphi 0, %s64
    %s66 = sphi 0, %s64
    %s67 = sphi 0, %s66
    %s81 = sphi 0, %s67
    %s87 = sphi 0, %s89
    %s90 = sphi 0, %s87
    %s91 = sphi 0, %s90
    %s107 = sphi 0, %s91
  $region4: #{dqn_forward.5} parent=0 // loop_header_branch
    %12 = sbr.rel (%p10) target = $region8
  $region5: #{dqn_forward.5} parent=0 // loop_body
    %s14 = ssub.s32 %s9, 1
    %s15 = ssub.s32 %s9, 2
    %s16 = sadd.s32 %s9, 1
    %s17 = ssub.s32 %s9, %s16
    %p18 = scmp.eq.s32.totalorder %s17, 0
    %s20 = sadd.s32 %s19, 1
    %s21 = scalar_select %p18, %s19, %s20
    %p24 = pneg %p18
    %p25 = scmp.eq.s32.totalorder %s9, 1
    %p26 = por %p24, %p25
    %p27 = scmp.ne.s32.totalorder %s19, %s22
    %p28 = scmp.eq.s32.totalorder %s9, 0
    %p29 = por %p27, %p28
    %p30 = scmp.ne.s32.totalorder %s19, %s22
    %p31 = scmp.eq.s32.totalorder %s14, 1
    %p32 = por %p30, %p31
    %p33 = scmp.ne.s32.totalorder %s22, %s23
    %p34 = scmp.eq.s32.totalorder %s14, 0
    %p35 = por %p33, %p34
    %p36 = scmp.ne.s32.totalorder %s22, %s23
    %p37 = scmp.eq.s32.totalorder %s15, 1
    %p38 = por %p36, %p37
    %p40 = scmp.ne.s32.totalorder %s23, %s39
    %p41 = scmp.eq.s32.totalorder %s15, 0
    %p42 = por %p40, %p41
    %s44 = sadd.s32 %s43, 1
    %p47 = scmp.eq.s32.totalorder %s9, 1
    %p48 = scmp.ne.s32.totalorder %s43, %s45
    %p49 = scmp.eq.s32.totalorder %s9, 0
    %p50 = por %p48, %p49
    %p51 = scmp.ne.s32.totalorder %s43, %s45
    %p52 = scmp.eq.s32.totalorder %s14, 1
    %p53 = por %p51, %p52
    %p54 = scmp.ne.s32.totalorder %s45, %s46
    %p55 = scmp.eq.s32.totalorder %s14, 0
    %p56 = por %p54, %p55
    %p57 = scmp.ne.s32.totalorder %s45, %s46
    %p58 = scmp.eq.s32.totalorder %s15, 1
    %p59 = por %p57, %p58
    %p61 = scmp.ne.s32.totalorder %s46, %s60
    %p62 = scmp.eq.s32.totalorder %s15, 0
    %p63 = por %p61, %p62
    %s65 = sadd.s32 %s64, 1
    %p68 = scmp.eq.s32.totalorder %s9, 1
    %p69 = scmp.ne.s32.totalorder %s64, %s66
    %p70 = scmp.eq.s32.totalorder %s9, 0
    %p71 = por %p69, %p70
    %p72 = scmp.ne.s32.totalorder %s64, %s66
    %p73 = scmp.eq.s32.totalorder %s14, 1
    %p74 = por %p72, %p73
    %p75 = scmp.ne.s32.totalorder %s66, %s67
    %p76 = scmp.eq.s32.totalorder %s14, 0
    %p77 = por %p75, %p76
    %p78 = scmp.ne.s32.totalorder %s66, %s67
    %p79 = scmp.eq.s32.totalorder %s15, 1
    %p80 = por %p78, %p79
    %p82 = scmp.ne.s32.totalorder %s67, %s81
    %p83 = scmp.eq.s32.totalorder %s15, 0
    %p84 = por %p82, %p83
    %s85 = ssub.s32 %s9, %s16
    %p86 = scmp.eq.s32.totalorder %s85, 0
    %s88 = sadd.s32 %s87, 1
    %s89 = scalar_select %p86, %s87, %s88
    %p92 = pneg %p86
    %p93 = scmp.eq.s32.totalorder %s9, 1
    %p94 = por %p92, %p93
    %p95 = scmp.ne.s32.totalorder %s87, %s90
    %p96 = scmp.eq.s32.totalorder %s9, 0
    %p97 = por %p95, %p96
    %p98 = scmp.ne.s32.totalorder %s87, %s90
    %p99 = scmp.eq.s32.totalorder %s14, 1
    %p100 = por %p98, %p99
    %p101 = scmp.ne.s32.totalorder %s90, %s91
    %p102 = scmp.eq.s32.totalorder %s14, 0
    %p103 = por %p101, %p102
    %p104 = scmp.ne.s32.totalorder %s90, %s91
    %p105 = scmp.eq.s32.totalorder %s15, 1
    %p106 = por %p104, %p105
    %p108 = scmp.ne.s32.totalorder %s91, %s107
    %p109 = scmp.eq.s32.totalorder %s15, 0
    %p110 = por %p108, %p109
    %p111 = scmp.le.s32.totalorder 1, %s9
    %p112 = scmp.lt.s32.totalorder %s9, 3
    %p113 = pnand %p111, %p112
    %p114 = pneg %p113
    // Predicated region
    $region9: #{dqn_forward.5} parent=5 // pred_check
      _
    $region10: #{dqn_forward.5} parent=5 // pred_check_branch
      %116 = sbr.rel (%p113) target = $region12
    $region11: #{dqn_forward.5} parent=5 // pred_region
      %s117 = ssub.s32 %s9, 1
      // Predicated region
      $region13: #{dqn_forward.5} parent=11 // pred_check
        %p118 = pneg %p56
      $region14: #{dqn_forward.5} parent=11 // pred_check_branch
        %120 = sbr.rel (%p118) target = $region16
      $region15: #{dqn_forward.5} parent=11 // pred_region
        _
      $region16: #{dqn_forward.5} parent=11 // pred_fallthru
        _
      // Predicated region
      $region17: #{dqn_forward.5} parent=11 // pred_check
        %p121 = pneg %p77
      $region18: #{dqn_forward.5} parent=11 // pred_check_branch
        %123 = sbr.rel (%p121) target = $region20
      $region19: #{dqn_forward.5} parent=11 // pred_region
        _
      $region20: #{dqn_forward.5} parent=11 // pred_fallthru
        _
    $region12: #{dqn_forward.5} parent=5 // pred_fallthru
      _
    %p124 = scmp.lt.s32.totalorder %s9, 2
    // Predicated region
    $region21: #{dqn_forward.5} parent=5 // pred_check
      %p125 = pneg %p124
    $region22: #{dqn_forward.5} parent=5 // pred_check_branch
      %127 = sbr.rel (%p125) target = $region24
    $region23: #{dqn_forward.5} parent=5 // pred_region
      // Predicated region
      $region25: #{dqn_forward.5} parent=23 // pred_check
        %p128 = pneg %p29
      $region26: #{dqn_forward.5} parent=23 // pred_check_branch
        %130 = sbr.rel (%p128) target = $region28
      $region27: #{dqn_forward.5} parent=23 // pred_region
        %p131 = scmp.lt.s32.totalorder %s9, 1
        %s132 = scalar_select %p131, %s9, 1
        %s133 = smul.addr %s132, 60
        %s134 = smul.addr %s133, 4
        %s135 = scalar_lea.vmem %s0, %s134
      $region28: #{dqn_forward.5} parent=23 // pred_fallthru
        _
    $region24: #{dqn_forward.5} parent=5 // pred_fallthru
      _
    %p136 = scmp.le.s32.totalorder 1, %s9
    %p137 = scmp.lt.s32.totalorder %s9, 3
    %p138 = pnand %p136, %p137
    %p139 = pneg %p138
    // Predicated region
    $region29: #{dqn_forward.5} parent=5 // pred_check
      _
    $region30: #{dqn_forward.5} parent=5 // pred_check_branch
      %141 = sbr.rel (%p138) target = $region32
    $region31: #{dqn_forward.5} parent=5 // pred_region
      %s142 = ssub.s32 %s9, 1
      %p143 = scmp.lt.s32.totalorder %s14, 1
      %s144 = scalar_select %p143, %s14, 1
      %s145 = smul.addr %s144, 60
      %s146 = smul.addr %s145, 4
      %s147 = scalar_lea.vmem %s0, %s146
      %p148 = pneg %p35
      %p149 = pneg %p32
      %p150 = pneg %p56
      %p151 = pneg %p53
      %p152 = pneg %p77
      %p153 = pneg %p74
      %p154 = pneg %p103
      %p155 = pneg %p100
      %p156 = scmp.lt.s32.totalorder %s14, 1
      %s157 = scalar_select %p156, %s14, 1
      %s158 = smul.addr %s157, 13
      %s159 = smul.addr %s158, 4
      %s160 = scalar_lea.vmem %s3, %s159
      %p161 = scmp.lt.s32.totalorder %s14, 1
      %s162 = scalar_select %p161, %s14, 1
      %s163 = smul.addr %s162, 60
      %s164 = smul.addr %s163, 4
      %s165 = scalar_lea.vmem %s0, %s164
      %p166 = scmp.lt.s32.totalorder %s14, 1
      %s167 = scalar_select %p166, %s14, 1
      %s168 = smul.addr %s167, 13
      %s169 = smul.addr %s168, 4
      %s170 = scalar_lea.vmem %s3, %s169
      %v171 = vld [vmem:[%s165] sm:$0xff]
      %v172 = vld [vmem:[%s165 + $0x8] sm:$0xff]
      %v173 = vld [vmem:[%s165 + $0x10] sm:$0xff]
      %v174 = vld [vmem:[%s165 + $0x18] sm:$0xff]
      %v175 = vld [vmem:[%s165 + $0x20] sm:$0xff]
      %v176 = vld [vmem:[%s165 + $0x28] sm:$0xff]
      %v177 = vld [vmem:[%s165 + $0x30] sm:$0xff]
      %v178 = vld [vmem:[%s165 + $0x38] sm:$0xff]
      %v179 = vld [vmem:[%s165 + $0x40] sm:$0xff]
      %v180 = vld [vmem:[%s165 + $0x48] sm:$0xff]
      %v181 = vld [vmem:[%s165 + $0x50] sm:$0xff]
      %v182 = vld [vmem:[%s165 + $0x58] sm:$0xff]
      %v183 = vld [vmem:[%s165 + $0x60] sm:$0xff]
      %v184 = vld [vmem:[%s165 + $0x68] sm:$0xff]
      %v185 = vld [vmem:[%s165 + $0x70] sm:$0xff]
      %v186 = vld [vmem:[%s165 + $0x78] sm:$0xff]
      %v187 = vld [vmem:[%s165 + $0x80] sm:$0xff]
      %v188 = vld [vmem:[%s165 + $0x88] sm:$0xff]
      %v189 = vld [vmem:[%s165 + $0x90] sm:$0xff]
      %v190 = vld [vmem:[%s165 + $0x98] sm:$0xff]
      %v191 = vld [vmem:[%s165 + $0xa0] sm:$0xff]
      %v192 = vld [vmem:[%s165 + $0xa8] sm:$0xff]
      %v193 = vld [vmem:[%s165 + $0xb0] sm:$0xff]
      %v194 = vld [vmem:[%s165 + $0xb8] sm:$0xff]
      %v195 = vld [vmem:[%s165 + $0xc0] sm:$0xff]
      %v196 = vld [vmem:[%s165 + $0xc8] sm:$0xff]
      %v197 = vld [vmem:[%s1] sm:$0xf]
      %v198 = vld [vmem:[%s1 + $0x4] sm:$0xf]
      %v199 = vld [vmem:[%s1 + $0x8] sm:$0xf]
      %v200 = vld [vmem:[%s1 + $0xc] sm:$0xf]
      %v201 = vld [vmem:[%s1 + $0x10] sm:$0xf]
      %v202 = vld [vmem:[%s1 + $0x14] sm:$0xf]
      %v203 = vld [vmem:[%s1 + $0x18] sm:$0xf]
      %v204 = vld [vmem:[%s1 + $0x1c] sm:$0xf]
      %v205 = vld [vmem:[%s1 + $0x20] sm:$0xf]
      %v206 = vld [vmem:[%s1 + $0x24] sm:$0xf]
      %v207 = vld [vmem:[%s1 + $0x28] sm:$0xf]
      %v208 = vld [vmem:[%s1 + $0x2c] sm:$0xf]
      %v209 = vld [vmem:[%s1 + $0x30] sm:$0xf]
      %v210 = vld [vmem:[%s1 + $0x34] sm:$0xf]
      %v211 = vld [vmem:[%s1 + $0x38] sm:$0xf]
      %v212 = vld [vmem:[%s1 + $0x3c] sm:$0xf]
      %v213 = vld [vmem:[%s1 + $0x40] sm:$0xf]
      %v214 = vld [vmem:[%s1 + $0x44] sm:$0xf]
      %v215 = vld [vmem:[%s1 + $0x48] sm:$0xf]
      %v216 = vld [vmem:[%s1 + $0x4c] sm:$0xf]
      %v217 = vld [vmem:[%s1 + $0x50] sm:$0xf]
      %v218 = vld [vmem:[%s1 + $0x54] sm:$0xf]
      %v219 = vld [vmem:[%s1 + $0x58] sm:$0xf]
      %v220 = vld [vmem:[%s1 + $0x5c] sm:$0xf]
      %v221 = vld [vmem:[%s1 + $0x60] sm:$0xf]
      %v222 = vld [vmem:[%s1 + $0x64] sm:$0xf]
      %v223 = vld [vmem:[%s1 + $0x68] sm:$0xf]
      %v224 = vld [vmem:[%s1 + $0x6c] sm:$0xf]
      %v225 = vld [vmem:[%s1 + $0x70] sm:$0xf]
      %v226 = vld [vmem:[%s1 + $0x74] sm:$0xf]
      %v227 = vld [vmem:[%s1 + $0x78] sm:$0xf]
      %v228 = vld [vmem:[%s1 + $0x7c] sm:$0xf]
      %v229 = vld [vmem:[%s1 + $0x80] sm:$0xf]
      %v230 = vld [vmem:[%s1 + $0x84] sm:$0xf]
      %v231 = vld [vmem:[%s1 + $0x88] sm:$0xf]
      %v232 = vld [vmem:[%s1 + $0x8c] sm:$0xf]
      %v233 = vld [vmem:[%s1 + $0x90] sm:$0xf]
      %v234 = vld [vmem:[%s1 + $0x94] sm:$0xf]
      %v235 = vld [vmem:[%s1 + $0x98] sm:$0xf]
      %v236 = vld [vmem:[%s1 + $0x9c] sm:$0xf]
      %v237 = vld [vmem:[%s1 + $0xa0] sm:$0xf]
      %v238 = vld [vmem:[%s1 + $0xa4] sm:$0xf]
      %v239 = vld [vmem:[%s1 + $0xa8] sm:$0xf]
      %v240 = vld [vmem:[%s1 + $0xac] sm:$0xf]
      %v241 = vld [vmem:[%s1 + $0xb0] sm:$0xf]
      %v242 = vld [vmem:[%s1 + $0xb4] sm:$0xf]
      %v243 = vld [vmem:[%s1 + $0xb8] sm:$0xf]
      %v244 = vld [vmem:[%s1 + $0xbc] sm:$0xf]
      %v245 = vld [vmem:[%s1 + $0xc0] sm:$0xf]
      %v246 = vld [vmem:[%s1 + $0xc4] sm:$0xf]
      %v247 = vld [vmem:[%s1 + $0xc8] sm:$0xf]
      %v248 = vld [vmem:[%s1 + $0xcc] sm:$0xf]
      %v249 = vld [vmem:[%s1 + $0xd0] sm:$0xf]
      %v250 = vld [vmem:[%s1 + $0xd4] sm:$0xf]
      %v251 = vld [vmem:[%s1 + $0xd8] sm:$0xf]
      %v252 = vld [vmem:[%s1 + $0xdc] sm:$0xf]
      %v253 = vld [vmem:[%s1 + $0xe0] sm:$0xf]
      %v254 = vld [vmem:[%s1 + $0xe4] sm:$0xf]
      %v255 = vld [vmem:[%s1 + $0xe8] sm:$0xf]
      %v256 = vld [vmem:[%s1 + $0xec] sm:$0xf]
      %v257 = vld [vmem:[%s1 + $0xf0] sm:$0xf]
      %v258 = vld [vmem:[%s1 + $0xf4] sm:$0xf]
      %v259 = vld [vmem:[%s1 + $0xf8] sm:$0xf]
      %v260 = vld [vmem:[%s1 + $0xfc] sm:$0xf]
      %v261 = vld [vmem:[%s165 + $0xd0] sm:$0x11]
      %v262 = vld [vmem:[%s165 + $0xd8] sm:$0x11]
      %s263 = scalar_lea.vmem %s1, 256
      %v264 = vld [vmem:[%s263] sm:$0xf]
      %v265 = vld [vmem:[%s263 + $0x4] sm:$0xf]
      %v266 = vld [vmem:[%s263 + $0x8] sm:$0xf]
      %v267 = vld [vmem:[%s263 + $0xc] sm:$0xf]
      %v268 = vld [vmem:[%s263 + $0x10] sm:$0xf]
      %v269 = vld [vmem:[%s263 + $0x14] sm:$0xf]
      %v270 = vld [vmem:[%s263 + $0x18] sm:$0xf]
      %v271 = vld [vmem:[%s263 + $0x1c] sm:$0xf]
      %v272 = vld [vmem:[%s263 + $0x20] sm:$0xf]
      %v273 = vld [vmem:[%s263 + $0x24] sm:$0xf]
      %v274 = vld [vmem:[%s263 + $0x28] sm:$0xf]
      %v275 = vld [vmem:[%s263 + $0x2c] sm:$0xf]
      %v276 = vld [vmem:[%s263 + $0x30] sm:$0xf]
      %v277 = vld [vmem:[%s263 + $0x34] sm:$0xf]
      %v278 = vld [vmem:[%s263 + $0x38] sm:$0xf]
      %v279 = vld [vmem:[%s263 + $0x3c] sm:$0xf]
      %v280 = vld [vmem:[%s263 + $0x40] sm:$0xf]
      %v281 = vld [vmem:[%s263 + $0x44] sm:$0xf]
      %v282 = vld [vmem:[%s263 + $0x48] sm:$0xf]
      %v283 = vld [vmem:[%s263 + $0x4c] sm:$0xf]
      %v284 = vld [vmem:[%s263 + $0x50] sm:$0xf]
      %v285 = vld [vmem:[%s263 + $0x54] sm:$0xf]
      %v286 = vld [vmem:[%s263 + $0x58] sm:$0xf]
      %v287 = vld [vmem:[%s263 + $0x5c] sm:$0xf]
      %v288 = vld [vmem:[%s263 + $0x60] sm:$0xf]
      %v289 = vld [vmem:[%s263 + $0x64] sm:$0xf]
      %v290 = vld [vmem:[%s263 + $0x68] sm:$0xf]
      %v291 = vld [vmem:[%s263 + $0x6c] sm:$0xf]
      %v292 = vld [vmem:[%s263 + $0x70] sm:$0xf]
      %v293 = vld [vmem:[%s263 + $0x74] sm:$0xf]
      %v294 = vld [vmem:[%s263 + $0x78] sm:$0xf]
      %v295 = vld [vmem:[%s263 + $0x7c] sm:$0xf]
      %v296 = vld [vmem:[%s263 + $0x80] sm:$0xf]
      %v297 = vld [vmem:[%s263 + $0x84] sm:$0xf]
      %v298 = vld [vmem:[%s263 + $0x88] sm:$0xf]
      %v299 = vld [vmem:[%s263 + $0x8c] sm:$0xf]
      %v300 = vld [vmem:[%s263 + $0x90] sm:$0xf]
      %v301 = vld [vmem:[%s263 + $0x94] sm:$0xf]
      %v302 = vld [vmem:[%s263 + $0x98] sm:$0xf]
      %v303 = vld [vmem:[%s263 + $0x9c] sm:$0xf]
      %v304 = vld [vmem:[%s263 + $0xa0] sm:$0xf]
      %v305 = vld [vmem:[%s263 + $0xa4] sm:$0xf]
      %v306 = vld [vmem:[%s263 + $0xa8] sm:$0xf]
      %v307 = vld [vmem:[%s263 + $0xac] sm:$0xf]
      %v308 = vld [vmem:[%s263 + $0xb0] sm:$0xf]
      %v309 = vld [vmem:[%s263 + $0xb4] sm:$0xf]
      %v310 = vld [vmem:[%s263 + $0xb8] sm:$0xf]
      %v311 = vld [vmem:[%s263 + $0xbc] sm:$0xf]
      %v312 = vld [vmem:[%s263 + $0xc0] sm:$0xf]
      %v313 = vld [vmem:[%s263 + $0xc4] sm:$0xf]
      %v314 = vld [vmem:[%s263 + $0xc8] sm:$0xf]
      %v315 = vld [vmem:[%s263 + $0xcc] sm:$0xf]
      %v316 = vld [vmem:[%s263 + $0xd0] sm:$0xf]
      %v317 = vld [vmem:[%s263 + $0xd4] sm:$0xf]
      %v318 = vld [vmem:[%s263 + $0xd8] sm:$0xf]
      %v319 = vld [vmem:[%s263 + $0xdc] sm:$0xf]
      %v320 = vld [vmem:[%s263 + $0xe0] sm:$0xf]
      %v321 = vld [vmem:[%s263 + $0xe4] sm:$0xf]
      %v322 = vld [vmem:[%s263 + $0xe8] sm:$0xf]
      %v323 = vld [vmem:[%s263 + $0xec] sm:$0xf]
      %v324 = vld [vmem:[%s263 + $0xf0] sm:$0xf]
      %v325 = vld [vmem:[%s263 + $0xf4] sm:$0xf]
      %v326 = vld [vmem:[%s263 + $0xf8] sm:$0xf]
      %v327 = vld [vmem:[%s263 + $0xfc] sm:$0xf]
      %v356 = vunpack.c.l.b16 %v171
      %v357 = vunpack.c.h.b16 %v171
      %v358 = vunpack.c.l.b16 %v172
      %v359 = vunpack.c.h.b16 %v172
      %v360 = vunpack.c.l.b16 %v173
      %v361 = vunpack.c.h.b16 %v173
      %v362 = vunpack.c.l.b16 %v174
      %v363 = vunpack.c.h.b16 %v174
      %v364 = vunpack.c.l.b16 %v175
      %v365 = vunpack.c.h.b16 %v175
      %v366 = vunpack.c.l.b16 %v176
      %v367 = vunpack.c.h.b16 %v176
      %v368 = vunpack.c.l.b16 %v177
      %v369 = vunpack.c.h.b16 %v177
      %v370 = vunpack.c.l.b16 %v178
      %v371 = vunpack.c.h.b16 %v178
      %v372 = vunpack.c.l.b16 %v179
      %v373 = vunpack.c.h.b16 %v179
      %v374 = vunpack.c.l.b16 %v180
      %v375 = vunpack.c.h.b16 %v180
      %v376 = vunpack.c.l.b16 %v181
      %v377 = vunpack.c.h.b16 %v181
      %v378 = vunpack.c.l.b16 %v182
      %v379 = vunpack.c.h.b16 %v182
      %v380 = vunpack.c.l.b16 %v183
      %v381 = vunpack.c.h.b16 %v183
      %v382 = vunpack.c.l.b16 %v184
      %v383 = vunpack.c.h.b16 %v184
      %v384 = vunpack.c.l.b16 %v185
      %v385 = vunpack.c.h.b16 %v185
      %v386 = vunpack.c.l.b16 %v186
      %v387 = vunpack.c.h.b16 %v186
      %v388 = vunpack.c.l.b16 %v187
      %v389 = vunpack.c.h.b16 %v187
      %v390 = vunpack.c.l.b16 %v188
      %v391 = vunpack.c.h.b16 %v188
      %v392 = vunpack.c.l.b16 %v189
      %v393 = vunpack.c.h.b16 %v189
      %v394 = vunpack.c.l.b16 %v190
      %v395 = vunpack.c.h.b16 %v190
      %v396 = vunpack.c.l.b16 %v191
      %v397 = vunpack.c.h.b16 %v191
      %v398 = vunpack.c.l.b16 %v192
      %v399 = vunpack.c.h.b16 %v192
      %v400 = vunpack.c.l.b16 %v193
      %v401 = vunpack.c.h.b16 %v193
      %v402 = vunpack.c.l.b16 %v194
      %v403 = vunpack.c.h.b16 %v194
      %v404 = vunpack.c.l.b16 %v195
      %v405 = vunpack.c.h.b16 %v195
      %v406 = vunpack.c.l.b16 %v196
      %v407 = vunpack.c.h.b16 %v196
      %v408 = vunpack.c.l.b16 %v261
      %v409 = vunpack.c.h.b16 %v261
      %v410 = vunpack.c.l.b16 %v262
      %v411 = vunpack.c.h.b16 %v262
      %v412 = vpack.c.b16 %v360, %v356
      %v413 = vpack.c.b16 %v361, %v357
      %v414 = vpack.c.b16 %v362, %v358
      %v415 = vpack.c.b16 %v363, %v359
      %v416 = vpack.c.b16 %v368, %v364
      %v417 = vpack.c.b16 %v369, %v365
      %v418 = vpack.c.b16 %v370, %v366
      %v419 = vpack.c.b16 %v371, %v367
      %v420 = vpack.c.b16 %v376, %v372
      %v421 = vpack.c.b16 %v377, %v373
      %v422 = vpack.c.b16 %v378, %v374
      %v423 = vpack.c.b16 %v379, %v375
      %v424 = vpack.c.b16 %v384, %v380
      %v425 = vpack.c.b16 %v385, %v381
      %v426 = vpack.c.b16 %v386, %v382
      %v427 = vpack.c.b16 %v387, %v383
      %v428 = vpack.c.b16 %v392, %v388
      %v429 = vpack.c.b16 %v393, %v389
      %v430 = vpack.c.b16 %v394, %v390
      %v431 = vpack.c.b16 %v395, %v391
      %v432 = vpack.c.b16 %v400, %v396
      %v433 = vpack.c.b16 %v401, %v397
      %v434 = vpack.c.b16 %v402, %v398
      %v435 = vpack.c.b16 %v403, %v399
      %v436 = vpack.c.b16 %v408, %v404
      %v437 = vpack.c.b16 %v409, %v405
      %v438 = vpack.c.b16 %v410, %v406
      %v439 = vpack.c.b16 %v411, %v407
      %vm440 = vsmask.f32 7424
      %v442 = vshrl.u32 %v412, 16
      %v444 = vshll.u32 %v412, 16
      %v446 = vrot.slane %v444, 1
      %v447 = vor.u32 %v442, %v446
      %v449 = vshll.u32 %v416, 16
      %v451 = vrot.slane %v449, 1
      %v452 = vsel %vm440, %v447, %v451
      %v454 = vshrl.u32 %v413, 16
      %v456 = vshll.u32 %v413, 16
      %v458 = vrot.slane %v456, 1
      %v459 = vor.u32 %v454, %v458
      %v461 = vshll.u32 %v417, 16
      %v463 = vrot.slane %v461, 1
      %v464 = vsel %vm440, %v459, %v463
      %v466 = vshrl.u32 %v414, 16
      %v468 = vshll.u32 %v414, 16
      %v470 = vrot.slane %v468, 1
      %v471 = vor.u32 %v466, %v470
      %v473 = vshll.u32 %v418, 16
      %v475 = vrot.slane %v473, 1
      %v476 = vsel %vm440, %v471, %v475
      %v478 = vshrl.u32 %v415, 16
      %v480 = vshll.u32 %v415, 16
      %v482 = vrot.slane %v480, 1
      %v483 = vor.u32 %v478, %v482
      %v485 = vshll.u32 %v419, 16
      %v487 = vrot.slane %v485, 1
      %v488 = vsel %vm440, %v483, %v487
      %v489 = vshrl.u32 %v416, 16
      %v491 = vor.u32 %v489, %v451
      %v493 = vshll.u32 %v420, 16
      %v495 = vrot.slane %v493, 1
      %v496 = vsel %vm440, %v491, %v495
      %v497 = vshrl.u32 %v417, 16
      %v499 = vor.u32 %v497, %v463
      %v501 = vshll.u32 %v421, 16
      %v503 = vrot.slane %v501, 1
      %v504 = vsel %vm440, %v499, %v503
      %v505 = vshrl.u32 %v418, 16
      %v507 = vor.u32 %v505, %v475
      %v509 = vshll.u32 %v422, 16
      %v511 = vrot.slane %v509, 1
      %v512 = vsel %vm440, %v507, %v511
      %v513 = vshrl.u32 %v419, 16
      %v515 = vor.u32 %v513, %v487
      %v517 = vshll.u32 %v423, 16
      %v519 = vrot.slane %v517, 1
      %v520 = vsel %vm440, %v515, %v519
      %v521 = vshrl.u32 %v420, 16
      %v523 = vor.u32 %v521, %v495
      %v525 = vshll.u32 %v424, 16
      %v527 = vrot.slane %v525, 1
      %v528 = vsel %vm440, %v523, %v527
      %v529 = vshrl.u32 %v421, 16
      %v531 = vor.u32 %v529, %v503
      %v533 = vshll.u32 %v425, 16
      %v535 = vrot.slane %v533, 1
      %v536 = vsel %vm440, %v531, %v535
      %v537 = vshrl.u32 %v422, 16
      %v539 = vor.u32 %v537, %v511
      %v541 = vshll.u32 %v426, 16
      %v543 = vrot.slane %v541, 1
      %v544 = vsel %vm440, %v539, %v543
      %v545 = vshrl.u32 %v423, 16
      %v547 = vor.u32 %v545, %v519
      %v549 = vshll.u32 %v427, 16
      %v551 = vrot.slane %v549, 1
      %v552 = vsel %vm440, %v547, %v551
      %v553 = vshrl.u32 %v424, 16
      %v555 = vor.u32 %v553, %v527
      %v557 = vshll.u32 %v428, 16
      %v559 = vrot.slane %v557, 1
      %v560 = vsel %vm440, %v555, %v559
      %v561 = vshrl.u32 %v425, 16
      %v563 = vor.u32 %v561, %v535
      %v565 = vshll.u32 %v429, 16
      %v567 = vrot.slane %v565, 1
      %v568 = vsel %vm440, %v563, %v567
      %v569 = vshrl.u32 %v426, 16
      %v571 = vor.u32 %v569, %v543
      %v573 = vshll.u32 %v430, 16
      %v575 = vrot.slane %v573, 1
      %v576 = vsel %vm440, %v571, %v575
      %v577 = vshrl.u32 %v427, 16
      %v579 = vor.u32 %v577, %v551
      %v581 = vshll.u32 %v431, 16
      %v583 = vrot.slane %v581, 1
      %v584 = vsel %vm440, %v579, %v583
      %v585 = vshrl.u32 %v428, 16
      %v587 = vor.u32 %v585, %v559
      %v589 = vshll.u32 %v432, 16
      %v591 = vrot.slane %v589, 1
      %v592 = vsel %vm440, %v587, %v591
      %v593 = vshrl.u32 %v429, 16
      %v595 = vor.u32 %v593, %v567
      %v597 = vshll.u32 %v433, 16
      %v599 = vrot.slane %v597, 1
      %v600 = vsel %vm440, %v595, %v599
      %v601 = vshrl.u32 %v430, 16
      %v603 = vor.u32 %v601, %v575
      %v605 = vshll.u32 %v434, 16
      %v607 = vrot.slane %v605, 1
      %v608 = vsel %vm440, %v603, %v607
      %v609 = vshrl.u32 %v431, 16
      %v611 = vor.u32 %v609, %v583
      %v613 = vshll.u32 %v435, 16
      %v615 = vrot.slane %v613, 1
      %v616 = vsel %vm440, %v611, %v615
      %v617 = vshrl.u32 %v432, 16
      %v619 = vor.u32 %v617, %v591
      %v621 = vshll.u32 %v436, 16
      %v623 = vrot.slane %v621, 1
      %v624 = vsel %vm440, %v619, %v623
      %v625 = vshrl.u32 %v433, 16
      %v627 = vor.u32 %v625, %v599
      %v629 = vshll.u32 %v437, 16
      %v631 = vrot.slane %v629, 1
      %v632 = vsel %vm440, %v627, %v631
      %v633 = vshrl.u32 %v434, 16
      %v635 = vor.u32 %v633, %v607
      %v637 = vshll.u32 %v438, 16
      %v639 = vrot.slane %v637, 1
      %v640 = vsel %vm440, %v635, %v639
      %v641 = vshrl.u32 %v435, 16
      %v643 = vor.u32 %v641, %v615
      %v645 = vshll.u32 %v439, 16
      %v647 = vrot.slane %v645, 1
      %v648 = vsel %vm440, %v643, %v647
      %v649 = vshrl.u32 %v436, 16
      %v651 = vor.u32 %v649, %v623
      %v652 = vshrl.u32 %v437, 16
      %v654 = vor.u32 %v652, %v631
      %v655 = vshrl.u32 %v438, 16
      %v657 = vor.u32 %v655, %v639
      %v658 = vshrl.u32 %v439, 16
      %v660 = vor.u32 %v658, %v647
      %v753 = vunpack.c.l.b16 %v264
      %v754 = vunpack.c.l.b16 %v265
      %v755 = vunpack.c.l.b16 %v266
      %v756 = vunpack.c.l.b16 %v267
      %v757 = vunpack.c.l.b16 %v268
      %v758 = vunpack.c.l.b16 %v269
      %v759 = vunpack.c.l.b16 %v270
      %v760 = vunpack.c.l.b16 %v271
      %v761 = vunpack.c.l.b16 %v272
      %v762 = vunpack.c.l.b16 %v273
      %v763 = vunpack.c.l.b16 %v274
      %v764 = vunpack.c.l.b16 %v275
      %v765 = vunpack.c.l.b16 %v276
      %v766 = vunpack.c.l.b16 %v277
      %v767 = vunpack.c.l.b16 %v278
      %v768 = vunpack.c.l.b16 %v279
      %v769 = vunpack.c.l.b16 %v280
      %v770 = vunpack.c.l.b16 %v281
      %v771 = vunpack.c.l.b16 %v282
      %v772 = vunpack.c.l.b16 %v283
      %v773 = vunpack.c.l.b16 %v284
      %v774 = vunpack.c.l.b16 %v285
      %v775 = vunpack.c.l.b16 %v286
      %v776 = vunpack.c.l.b16 %v287
      %v777 = vunpack.c.l.b16 %v288
      %v778 = vunpack.c.l.b16 %v289
      %v779 = vunpack.c.l.b16 %v290
      %v780 = vunpack.c.l.b16 %v291
      %v781 = vunpack.c.l.b16 %v292
      %v782 = vunpack.c.l.b16 %v293
      %v783 = vunpack.c.l.b16 %v294
      %v784 = vunpack.c.l.b16 %v295
      %v785 = vunpack.c.l.b16 %v296
      %v786 = vunpack.c.l.b16 %v297
      %v787 = vunpack.c.l.b16 %v298
      %v788 = vunpack.c.l.b16 %v299
      %v789 = vunpack.c.l.b16 %v300
      %v790 = vunpack.c.l.b16 %v301
      %v791 = vunpack.c.l.b16 %v302
      %v792 = vunpack.c.l.b16 %v303
      %v793 = vunpack.c.l.b16 %v304
      %v794 = vunpack.c.l.b16 %v305
      %v795 = vunpack.c.l.b16 %v306
      %v796 = vunpack.c.l.b16 %v307
      %v797 = vunpack.c.l.b16 %v308
      %v798 = vunpack.c.l.b16 %v309
      %v799 = vunpack.c.l.b16 %v310
      %v800 = vunpack.c.l.b16 %v311
      %v801 = vunpack.c.l.b16 %v312
      %v802 = vunpack.c.l.b16 %v313
      %v803 = vunpack.c.l.b16 %v314
      %v804 = vunpack.c.l.b16 %v315
      %v805 = vunpack.c.l.b16 %v316
      %v806 = vunpack.c.l.b16 %v317
      %v807 = vunpack.c.l.b16 %v318
      %v808 = vunpack.c.l.b16 %v319
      %v809 = vunpack.c.l.b16 %v320
      %v810 = vunpack.c.l.b16 %v321
      %v811 = vunpack.c.l.b16 %v322
      %v812 = vunpack.c.l.b16 %v323
      %v813 = vunpack.c.l.b16 %v324
      %v814 = vunpack.c.l.b16 %v325
      %v815 = vunpack.c.l.b16 %v326
      %v816 = vunpack.c.l.b16 %v327
      %v817 = vpack.c.b16 %v754, %v753
      %v818 = vpack.c.b16 %v756, %v755
      %v819 = vpack.c.b16 %v758, %v757
      %v820 = vpack.c.b16 %v760, %v759
      %v821 = vpack.c.b16 %v762, %v761
      %v822 = vpack.c.b16 %v764, %v763
      %v823 = vpack.c.b16 %v766, %v765
      %v824 = vpack.c.b16 %v768, %v767
      %v825 = vpack.c.b16 %v770, %v769
      %v826 = vpack.c.b16 %v772, %v771
      %v827 = vpack.c.b16 %v774, %v773
      %v828 = vpack.c.b16 %v776, %v775
      %v829 = vpack.c.b16 %v778, %v777
      %v830 = vpack.c.b16 %v780, %v779
      %v831 = vpack.c.b16 %v782, %v781
      %v832 = vpack.c.b16 %v784, %v783
      %v833 = vpack.c.b16 %v786, %v785
      %v834 = vpack.c.b16 %v788, %v787
      %v835 = vpack.c.b16 %v790, %v789
      %v836 = vpack.c.b16 %v792, %v791
      %v837 = vpack.c.b16 %v794, %v793
      %v838 = vpack.c.b16 %v796, %v795
      %v839 = vpack.c.b16 %v798, %v797
      %v840 = vpack.c.b16 %v800, %v799
      %v841 = vpack.c.b16 %v802, %v801
      %v842 = vpack.c.b16 %v804, %v803
      %v843 = vpack.c.b16 %v806, %v805
      %v844 = vpack.c.b16 %v808, %v807
      %v845 = vpack.c.b16 %v810, %v809
      %v846 = vpack.c.b16 %v812, %v811
      %v847 = vpack.c.b16 %v814, %v813
      %v848 = vpack.c.b16 %v816, %v815
      %881 = vmatpush.bf16.msra.mxu0 %v824
      %882 = vmatpush.bf16.msra.mxu0 %v823
      %883 = vmatpush.bf16.msra.mxu0 %v822
      %884 = vmatpush.bf16.msra.mxu0 %v821
      %885 = vmatpush.bf16.msra.mxu0 %v820
      %886 = vmatpush.bf16.msra.mxu0 %v819
      %887 = vmatpush.bf16.msra.mxu0 %v818
      %888 = vmatpush.bf16.msra.mxu0 %v817
      %889 = vmatmul.bf16.gmra.mxu0 %v452
      %v890 = vpop.f32.mrf.mxu0
      %v891 = vadd.f32 0.0, %v890
      %v892 = vpop.f32.mrf.mxu0
      %v893 = vadd.f32 0.0, %v892
      %894 = vmatmul.bf16.gmra.mxu0 %v496
      %v895 = vpop.f32.mrf.mxu0
      %v896 = vadd.f32 0.0, %v895
      %v897 = vpop.f32.mrf.mxu0
      %v898 = vadd.f32 0.0, %v897
      %899 = vmatmul.bf16.gmra.mxu0 %v528
      %v900 = vpop.f32.mrf.mxu0
      %v901 = vadd.f32 0.0, %v900
      %v902 = vpop.f32.mrf.mxu0
      %v903 = vadd.f32 0.0, %v902
      %904 = vmatmul.bf16.gmra.mxu0 %v560
      %v905 = vpop.f32.mrf.mxu0
      %v906 = vadd.f32 0.0, %v905
      %v907 = vpop.f32.mrf.mxu0
      %v908 = vadd.f32 0.0, %v907
      %909 = vmatmul.bf16.gmra.mxu0 %v592
      %v910 = vpop.f32.mrf.mxu0
      %v911 = vadd.f32 0.0, %v910
      %v912 = vpop.f32.mrf.mxu0
      %v913 = vadd.f32 0.0, %v912
      %914 = vmatmul.bf16.gmra.mxu0 %v624
      %v915 = vpop.f32.mrf.mxu0
      %v916 = vadd.f32 0.0, %v915
      %v917 = vpop.f32.mrf.mxu0
      %v918 = vadd.f32 0.0, %v917
      %919 = vmatmul.bf16.gmra.mxu0 %v651
      %v920 = vpop.f32.mrf.mxu0
      %v921 = vadd.f32 0.0, %v920
      %v922 = vpop.f32.mrf.mxu0
      %923 = vdwg.mxu0
      %924 = vmatpush.bf16.msra.mxu0 %v832
      %925 = vmatpush.bf16.msra.mxu0 %v831
      %926 = vmatpush.bf16.msra.mxu0 %v830
      %927 = vmatpush.bf16.msra.mxu0 %v829
      %928 = vmatpush.bf16.msra.mxu0 %v828
      %929 = vmatpush.bf16.msra.mxu0 %v827
      %930 = vmatpush.bf16.msra.mxu0 %v826
      %931 = vmatpush.bf16.msra.mxu0 %v825
      %932 = vmatmul.bf16.gmra.mxu0 %v464
      %v933 = vpop.f32.mrf.mxu0
      %v934 = vadd.f32 %v891, %v933
      %v935 = vpop.f32.mrf.mxu0
      %v936 = vadd.f32 %v893, %v935
      %937 = vmatmul.bf16.gmra.mxu0 %v504
      %v938 = vpop.f32.mrf.mxu0
      %v939 = vadd.f32 %v896, %v938
      %v940 = vpop.f32.mrf.mxu0
      %v941 = vadd.f32 %v898, %v940
      %942 = vmatmul.bf16.gmra.mxu0 %v536
      %v943 = vpop.f32.mrf.mxu0
      %v944 = vadd.f32 %v901, %v943
      %v945 = vpop.f32.mrf.mxu0
      %v946 = vadd.f32 %v903, %v945
      %947 = vmatmul.bf16.gmra.mxu0 %v568
      %v948 = vpop.f32.mrf.mxu0
      %v949 = vadd.f32 %v906, %v948
      %v950 = vpop.f32.mrf.mxu0
      %v951 = vadd.f32 %v908, %v950
      %952 = vmatmul.bf16.gmra.mxu0 %v600
      %v953 = vpop.f32.mrf.mxu0
      %v954 = vadd.f32 %v911, %v953
      %v955 = vpop.f32.mrf.mxu0
      %v956 = vadd.f32 %v913, %v955
      %957 = vmatmul.bf16.gmra.mxu0 %v632
      %v958 = vpop.f32.mrf.mxu0
      %v959 = vadd.f32 %v916, %v958
      %v960 = vpop.f32.mrf.mxu0
      %v961 = vadd.f32 %v918, %v960
      %962 = vmatmul.bf16.gmra.mxu0 %v654
      %v963 = vpop.f32.mrf.mxu0
      %v964 = vadd.f32 %v921, %v963
      %v965 = vpop.f32.mrf.mxu0
      %966 = vdwg.mxu0
      %967 = vmatpush.bf16.msra.mxu0 %v840
      %968 = vmatpush.bf16.msra.mxu0 %v839
      %969 = vmatpush.bf16.msra.mxu0 %v838
      %970 = vmatpush.bf16.msra.mxu0 %v837
      %971 = vmatpush.bf16.msra.mxu0 %v836
      %972 = vmatpush.bf16.msra.mxu0 %v835
      %973 = vmatpush.bf16.msra.mxu0 %v834
      %974 = vmatpush.bf16.msra.mxu0 %v833
      %975 = vmatmul.bf16.gmra.mxu0 %v476
      %v976 = vpop.f32.mrf.mxu0
      %v977 = vadd.f32 %v934, %v976
      %v978 = vpop.f32.mrf.mxu0
      %v979 = vadd.f32 %v936, %v978
      %980 = vmatmul.bf16.gmra.mxu0 %v512
      %v981 = vpop.f32.mrf.mxu0
      %v982 = vadd.f32 %v939, %v981
      %v983 = vpop.f32.mrf.mxu0
      %v984 = vadd.f32 %v941, %v983
      %985 = vmatmul.bf16.gmra.mxu0 %v544
      %v986 = vpop.f32.mrf.mxu0
      %v987 = vadd.f32 %v944, %v986
      %v988 = vpop.f32.mrf.mxu0
      %v989 = vadd.f32 %v946, %v988
      %990 = vmatmul.bf16.gmra.mxu0 %v576
      %v991 = vpop.f32.mrf.mxu0
      %v992 = vadd.f32 %v949, %v991
      %v993 = vpop.f32.mrf.mxu0
      %v994 = vadd.f32 %v951, %v993
      %995 = vmatmul.bf16.gmra.mxu0 %v608
      %v996 = vpop.f32.mrf.mxu0
      %v997 = vadd.f32 %v954, %v996
      %v998 = vpop.f32.mrf.mxu0
      %v999 = vadd.f32 %v956, %v998
      %1000 = vmatmul.bf16.gmra.mxu0 %v640
      %v1001 = vpop.f32.mrf.mxu0
      %v1002 = vadd.f32 %v959, %v1001
      %v1003 = vpop.f32.mrf.mxu0
      %v1004 = vadd.f32 %v961, %v1003
      %1005 = vmatmul.bf16.gmra.mxu0 %v657
      %v1006 = vpop.f32.mrf.mxu0
      %v1007 = vadd.f32 %v964, %v1006
      %v1008 = vpop.f32.mrf.mxu0
      %1009 = vdwg.mxu0
      %1010 = vmatpush.bf16.msra.mxu0 %v848
      %1011 = vmatpush.bf16.msra.mxu0 %v847
      %1012 = vmatpush.bf16.msra.mxu0 %v846
      %1013 = vmatpush.bf16.msra.mxu0 %v845
      %1014 = vmatpush.bf16.msra.mxu0 %v844
      %1015 = vmatpush.bf16.msra.mxu0 %v843
      %1016 = vmatpush.bf16.msra.mxu0 %v842
      %1017 = vmatpush.bf16.msra.mxu0 %v841
      %1018 = vmatmul.bf16.gmra.mxu0 %v488
      %v1019 = vpop.f32.mrf.mxu0
      %v1020 = vadd.f32 %v977, %v1019
      %v1021 = vpop.f32.mrf.mxu0
      %v1022 = vadd.f32 %v979, %v1021
      %1023 = vmatmul.bf16.gmra.mxu0 %v520
      %v1024 = vpop.f32.mrf.mxu0
      %v1025 = vadd.f32 %v982, %v1024
      %v1026 = vpop.f32.mrf.mxu0
      %v1027 = vadd.f32 %v984, %v1026
      %1028 = vmatmul.bf16.gmra.mxu0 %v552
      %v1029 = vpop.f32.mrf.mxu0
      %v1030 = vadd.f32 %v987, %v1029
      %v1031 = vpop.f32.mrf.mxu0
      %v1032 = vadd.f32 %v989, %v1031
      %1033 = vmatmul.bf16.gmra.mxu0 %v584
      %v1034 = vpop.f32.mrf.mxu0
      %v1035 = vadd.f32 %v992, %v1034
      %v1036 = vpop.f32.mrf.mxu0
      %v1037 = vadd.f32 %v994, %v1036
      %1038 = vmatmul.bf16.gmra.mxu0 %v616
      %v1039 = vpop.f32.mrf.mxu0
      %v1040 = vadd.f32 %v997, %v1039
      %v1041 = vpop.f32.mrf.mxu0
      %v1042 = vadd.f32 %v999, %v1041
      %1043 = vmatmul.bf16.gmra.mxu0 %v648
      %v1044 = vpop.f32.mrf.mxu0
      %v1045 = vadd.f32 %v1002, %v1044
      %v1046 = vpop.f32.mrf.mxu0
      %v1047 = vadd.f32 %v1004, %v1046
      %1048 = vmatmul.bf16.gmra.mxu0 %v660
      %v1049 = vpop.f32.mrf.mxu0
      %v1050 = vadd.f32 %v1007, %v1049
      %v1051 = vpop.f32.mrf.mxu0
      %1052 = vdwg.mxu0
      %v1053 = vpack.c.b16 %v404, %v404
      %v1054 = vpack.c.b16 %v405, %v405
      %v1055 = vpack.c.b16 %v406, %v406
      %v1056 = vpack.c.b16 %v407, %v407
      %v1149 = vunpack.c.l.b16 %v197
      %v1150 = vunpack.c.l.b16 %v198
      %v1151 = vunpack.c.l.b16 %v199
      %v1152 = vunpack.c.l.b16 %v200
      %v1153 = vunpack.c.l.b16 %v201
      %v1154 = vunpack.c.l.b16 %v202
      %v1155 = vunpack.c.l.b16 %v203
      %v1156 = vunpack.c.l.b16 %v204
      %v1157 = vunpack.c.l.b16 %v205
      %v1158 = vunpack.c.l.b16 %v206
      %v1159 = vunpack.c.l.b16 %v207
      %v1160 = vunpack.c.l.b16 %v208
      %v1161 = vunpack.c.l.b16 %v209
      %v1162 = vunpack.c.l.b16 %v210
      %v1163 = vunpack.c.l.b16 %v211
      %v1164 = vunpack.c.l.b16 %v212
      %v1165 = vunpack.c.l.b16 %v213
      %v1166 = vunpack.c.l.b16 %v214
      %v1167 = vunpack.c.l.b16 %v215
      %v1168 = vunpack.c.l.b16 %v216
      %v1169 = vunpack.c.l.b16 %v217
      %v1170 = vunpack.c.l.b16 %v218
      %v1171 = vunpack.c.l.b16 %v219
      %v1172 = vunpack.c.l.b16 %v220
      %v1173 = vunpack.c.l.b16 %v221
      %v1174 = vunpack.c.l.b16 %v222
      %v1175 = vunpack.c.l.b16 %v223
      %v1176 = vunpack.c.l.b16 %v224
      %v1177 = vunpack.c.l.b16 %v225
      %v1178 = vunpack.c.l.b16 %v226
      %v1179 = vunpack.c.l.b16 %v227
      %v1180 = vunpack.c.l.b16 %v228
      %v1181 = vunpack.c.l.b16 %v229
      %v1182 = vunpack.c.l.b16 %v230
      %v1183 = vunpack.c.l.b16 %v231
      %v1184 = vunpack.c.l.b16 %v232
      %v1185 = vunpack.c.l.b16 %v233
      %v1186 = vunpack.c.l.b16 %v234
      %v1187 = vunpack.c.l.b16 %v235
      %v1188 = vunpack.c.l.b16 %v236
      %v1189 = vunpack.c.l.b16 %v237
      %v1190 = vunpack.c.l.b16 %v238
      %v1191 = vunpack.c.l.b16 %v239
      %v1192 = vunpack.c.l.b16 %v240
      %v1193 = vunpack.c.l.b16 %v241
      %v1194 = vunpack.c.l.b16 %v242
      %v1195 = vunpack.c.l.b16 %v243
      %v1196 = vunpack.c.l.b16 %v244
      %v1197 = vunpack.c.l.b16 %v245
      %v1198 = vunpack.c.l.b16 %v246
      %v1199 = vunpack.c.l.b16 %v247
      %v1200 = vunpack.c.l.b16 %v248
      %v1201 = vunpack.c.l.b16 %v249
      %v1202 = vunpack.c.l.b16 %v250
      %v1203 = vunpack.c.l.b16 %v251
      %v1204 = vunpack.c.l.b16 %v252
      %v1205 = vunpack.c.l.b16 %v253
      %v1206 = vunpack.c.l.b16 %v254
      %v1207 = vunpack.c.l.b16 %v255
      %v1208 = vunpack.c.l.b16 %v256
      %v1209 = vunpack.c.l.b16 %v257
      %v1210 = vunpack.c.l.b16 %v258
      %v1211 = vunpack.c.l.b16 %v259
      %v1212 = vunpack.c.l.b16 %v260
      %v1213 = vpack.c.b16 %v1150, %v1149
      %v1214 = vpack.c.b16 %v1152, %v1151
      %v1215 = vpack.c.b16 %v1154, %v1153
      %v1216 = vpack.c.b16 %v1156, %v1155
      %v1217 = vpack.c.b16 %v1158, %v1157
      %v1218 = vpack.c.b16 %v1160, %v1159
      %v1219 = vpack.c.b16 %v1162, %v1161
      %v1220 = vpack.c.b16 %v1164, %v1163
      %v1221 = vpack.c.b16 %v1166, %v1165
      %v1222 = vpack.c.b16 %v1168, %v1167
      %v1223 = vpack.c.b16 %v1170, %v1169
      %v1224 = vpack.c.b16 %v1172, %v1171
      %v1225 = vpack.c.b16 %v1174, %v1173
      %v1226 = vpack.c.b16 %v1176, %v1175
      %v1227 = vpack.c.b16 %v1178, %v1177
      %v1228 = vpack.c.b16 %v1180, %v1179
      %v1229 = vpack.c.b16 %v1182, %v1181
      %v1230 = vpack.c.b16 %v1184, %v1183
      %v1231 = vpack.c.b16 %v1186, %v1185
      %v1232 = vpack.c.b16 %v1188, %v1187
      %v1233 = vpack.c.b16 %v1190, %v1189
      %v1234 = vpack.c.b16 %v1192, %v1191
      %v1235 = vpack.c.b16 %v1194, %v1193
      %v1236 = vpack.c.b16 %v1196, %v1195
      %v1237 = vpack.c.b16 %v1198, %v1197
      %v1238 = vpack.c.b16 %v1200, %v1199
      %v1239 = vpack.c.b16 %v1202, %v1201
      %v1240 = vpack.c.b16 %v1204, %v1203
      %v1241 = vpack.c.b16 %v1206, %v1205
      %v1242 = vpack.c.b16 %v1208, %v1207
      %v1243 = vpack.c.b16 %v1210, %v1209
      %v1244 = vpack.c.b16 %v1212, %v1211
      %1277 = vmatpush.bf16.msra.mxu0 %v1220
      %1278 = vmatpush.bf16.msra.mxu0 %v1219
      %1279 = vmatpush.bf16.msra.mxu0 %v1218
      %1280 = vmatpush.bf16.msra.mxu0 %v1217
      %1281 = vmatpush.bf16.msra.mxu0 %v1216
      %1282 = vmatpush.bf16.msra.mxu0 %v1215
      %1283 = vmatpush.bf16.msra.mxu0 %v1214
      %1284 = vmatpush.bf16.msra.mxu0 %v1213
      %1285 = vmatmul.bf16.gmra.mxu0 %v412
      %v1286 = vpop.f32.mrf.mxu0
      %v1287 = vadd.f32 %v1020, %v1286
      %v1288 = vpop.f32.mrf.mxu0
      %v1289 = vadd.f32 %v1022, %v1288
      %1290 = vmatmul.bf16.gmra.mxu0 %v416
      %v1291 = vpop.f32.mrf.mxu0
      %v1292 = vadd.f32 %v1025, %v1291
      %v1293 = vpop.f32.mrf.mxu0
      %v1294 = vadd.f32 %v1027, %v1293
      %1295 = vmatmul.bf16.gmra.mxu0 %v420
      %v1296 = vpop.f32.mrf.mxu0
      %v1297 = vadd.f32 %v1030, %v1296
      %v1298 = vpop.f32.mrf.mxu0
      %v1299 = vadd.f32 %v1032, %v1298
      %1300 = vmatmul.bf16.gmra.mxu0 %v424
      %v1301 = vpop.f32.mrf.mxu0
      %v1302 = vadd.f32 %v1035, %v1301
      %v1303 = vpop.f32.mrf.mxu0
      %v1304 = vadd.f32 %v1037, %v1303
      %1305 = vmatmul.bf16.gmra.mxu0 %v428
      %v1306 = vpop.f32.mrf.mxu0
      %v1307 = vadd.f32 %v1040, %v1306
      %v1308 = vpop.f32.mrf.mxu0
      %v1309 = vadd.f32 %v1042, %v1308
      %1310 = vmatmul.bf16.gmra.mxu0 %v432
      %v1311 = vpop.f32.mrf.mxu0
      %v1312 = vadd.f32 %v1045, %v1311
      %v1313 = vpop.f32.mrf.mxu0
      %v1314 = vadd.f32 %v1047, %v1313
      %1315 = vmatmul.bf16.gmra.mxu0 %v1053
      %v1316 = vpop.f32.mrf.mxu0
      %v1317 = vadd.f32 %v1050, %v1316
      %v1318 = vpop.f32.mrf.mxu0
      %1319 = vdwg.mxu0
      %1320 = vmatpush.bf16.msra.mxu0 %v1228
      %1321 = vmatpush.bf16.msra.mxu0 %v1227
      %1322 = vmatpush.bf16.msra.mxu0 %v1226
      %1323 = vmatpush.bf16.msra.mxu0 %v1225
      %1324 = vmatpush.bf16.msra.mxu0 %v1224
      %1325 = vmatpush.bf16.msra.mxu0 %v1223
      %1326 = vmatpush.bf16.msra.mxu0 %v1222
      %1327 = vmatpush.bf16.msra.mxu0 %v1221
      %1328 = vmatmul.bf16.gmra.mxu0 %v413
      %v1329 = vpop.f32.mrf.mxu0
      %v1330 = vadd.f32 %v1287, %v1329
      %v1331 = vpop.f32.mrf.mxu0
      %v1332 = vadd.f32 %v1289, %v1331
      %1333 = vmatmul.bf16.gmra.mxu0 %v417
      %v1334 = vpop.f32.mrf.mxu0
      %v1335 = vadd.f32 %v1292, %v1334
      %v1336 = vpop.f32.mrf.mxu0
      %v1337 = vadd.f32 %v1294, %v1336
      %1338 = vmatmul.bf16.gmra.mxu0 %v421
      %v1339 = vpop.f32.mrf.mxu0
      %v1340 = vadd.f32 %v1297, %v1339
      %v1341 = vpop.f32.mrf.mxu0
      %v1342 = vadd.f32 %v1299, %v1341
      %1343 = vmatmul.bf16.gmra.mxu0 %v425
      %v1344 = vpop.f32.mrf.mxu0
      %v1345 = vadd.f32 %v1302, %v1344
      %v1346 = vpop.f32.mrf.mxu0
      %v1347 = vadd.f32 %v1304, %v1346
      %1348 = vmatmul.bf16.gmra.mxu0 %v429
      %v1349 = vpop.f32.mrf.mxu0
      %v1350 = vadd.f32 %v1307, %v1349
      %v1351 = vpop.f32.mrf.mxu0
      %v1352 = vadd.f32 %v1309, %v1351
      %1353 = vmatmul.bf16.gmra.mxu0 %v433
      %v1354 = vpop.f32.mrf.mxu0
      %v1355 = vadd.f32 %v1312, %v1354
      %v1356 = vpop.f32.mrf.mxu0
      %v1357 = vadd.f32 %v1314, %v1356
      %1358 = vmatmul.bf16.gmra.mxu0 %v1054
      %v1359 = vpop.f32.mrf.mxu0
      %v1360 = vadd.f32 %v1317, %v1359
      %v1361 = vpop.f32.mrf.mxu0
      %1362 = vdwg.mxu0
      %1363 = vmatpush.bf16.msra.mxu0 %v1236
      %1364 = vmatpush.bf16.msra.mxu0 %v1235
      %1365 = vmatpush.bf16.msra.mxu0 %v1234
      %1366 = vmatpush.bf16.msra.mxu0 %v1233
      %1367 = vmatpush.bf16.msra.mxu0 %v1232
      %1368 = vmatpush.bf16.msra.mxu0 %v1231
      %1369 = vmatpush.bf16.msra.mxu0 %v1230
      %1370 = vmatpush.bf16.msra.mxu0 %v1229
      %1371 = vmatmul.bf16.gmra.mxu0 %v414
      %v1372 = vpop.f32.mrf.mxu0
      %v1373 = vadd.f32 %v1330, %v1372
      %v1374 = vpop.f32.mrf.mxu0
      %v1375 = vadd.f32 %v1332, %v1374
      %1376 = vmatmul.bf16.gmra.mxu0 %v418
      %v1377 = vpop.f32.mrf.mxu0
      %v1378 = vadd.f32 %v1335, %v1377
      %v1379 = vpop.f32.mrf.mxu0
      %v1380 = vadd.f32 %v1337, %v1379
      %1381 = vmatmul.bf16.gmra.mxu0 %v422
      %v1382 = vpop.f32.mrf.mxu0
      %v1383 = vadd.f32 %v1340, %v1382
      %v1384 = vpop.f32.mrf.mxu0
      %v1385 = vadd.f32 %v1342, %v1384
      %1386 = vmatmul.bf16.gmra.mxu0 %v426
      %v1387 = vpop.f32.mrf.mxu0
      %v1388 = vadd.f32 %v1345, %v1387
      %v1389 = vpop.f32.mrf.mxu0
      %v1390 = vadd.f32 %v1347, %v1389
      %1391 = vmatmul.bf16.gmra.mxu0 %v430
      %v1392 = vpop.f32.mrf.mxu0
      %v1393 = vadd.f32 %v1350, %v1392
      %v1394 = vpop.f32.mrf.mxu0
      %v1395 = vadd.f32 %v1352, %v1394
      %1396 = vmatmul.bf16.gmra.mxu0 %v434
      %v1397 = vpop.f32.mrf.mxu0
      %v1398 = vadd.f32 %v1355, %v1397
      %v1399 = vpop.f32.mrf.mxu0
      %v1400 = vadd.f32 %v1357, %v1399
      %1401 = vmatmul.bf16.gmra.mxu0 %v1055
      %v1402 = vpop.f32.mrf.mxu0
      %v1403 = vadd.f32 %v1360, %v1402
      %v1404 = vpop.f32.mrf.mxu0
      %1405 = vdwg.mxu0
      %1406 = vmatpush.bf16.msra.mxu0 %v1244
      %1407 = vmatpush.bf16.msra.mxu0 %v1243
      %1408 = vmatpush.bf16.msra.mxu0 %v1242
      %1409 = vmatpush.bf16.msra.mxu0 %v1241
      %1410 = vmatpush.bf16.msra.mxu0 %v1240
      %1411 = vmatpush.bf16.msra.mxu0 %v1239
      %1412 = vmatpush.bf16.msra.mxu0 %v1238
      %1413 = vmatpush.bf16.msra.mxu0 %v1237
      %1414 = vmatmul.bf16.gmra.mxu0 %v415
      %v1415 = vpop.f32.mrf.mxu0
      %v1416 = vadd.f32 %v1373, %v1415
      %v1417 = vpop.f32.mrf.mxu0
      %v1418 = vadd.f32 %v1375, %v1417
      %1419 = vmatmul.bf16.gmra.mxu0 %v419
      %v1420 = vpop.f32.mrf.mxu0
      %v1421 = vadd.f32 %v1378, %v1420
      %v1422 = vpop.f32.mrf.mxu0
      %v1423 = vadd.f32 %v1380, %v1422
      %1424 = vmatmul.bf16.gmra.mxu0 %v423
      %v1425 = vpop.f32.mrf.mxu0
      %v1426 = vadd.f32 %v1383, %v1425
      %v1427 = vpop.f32.mrf.mxu0
      %v1428 = vadd.f32 %v1385, %v1427
      %1429 = vmatmul.bf16.gmra.mxu0 %v427
      %v1430 = vpop.f32.mrf.mxu0
      %v1431 = vadd.f32 %v1388, %v1430
      %v1432 = vpop.f32.mrf.mxu0
      %v1433 = vadd.f32 %v1390, %v1432
      %1434 = vmatmul.bf16.gmra.mxu0 %v431
      %v1435 = vpop.f32.mrf.mxu0
      %v1436 = vadd.f32 %v1393, %v1435
      %v1437 = vpop.f32.mrf.mxu0
      %v1438 = vadd.f32 %v1395, %v1437
      %1439 = vmatmul.bf16.gmra.mxu0 %v435
      %v1440 = vpop.f32.mrf.mxu0
      %v1441 = vadd.f32 %v1398, %v1440
      %v1442 = vpop.f32.mrf.mxu0
      %v1443 = vadd.f32 %v1400, %v1442
      %1444 = vmatmul.bf16.gmra.mxu0 %v1056
      %v1445 = vpop.f32.mrf.mxu0
      %v1446 = vadd.f32 %v1403, %v1445
      %v1447 = vpop.f32.mrf.mxu0
      %1448 = vdwg.mxu0
      %v1449 = vld [vmem:[%s165 + $0x10] sm:$0xee]
      %v1450 = vld [vmem:[%s165 + $0x18] sm:$0xee]
      %v1451 = vld [vmem:[%s165 + $0x20] sm:$0xff]
      %v1452 = vld [vmem:[%s165 + $0x28] sm:$0xff]
      %v1453 = vld [vmem:[%s165 + $0x30] sm:$0xff]
      %v1454 = vld [vmem:[%s165 + $0x38] sm:$0xff]
      %v1455 = vld [vmem:[%s165 + $0x40] sm:$0xff]
      %v1456 = vld [vmem:[%s165 + $0x48] sm:$0xff]
      %v1457 = vld [vmem:[%s165 + $0x50] sm:$0xff]
      %v1458 = vld [vmem:[%s165 + $0x58] sm:$0xff]
      %v1459 = vld [vmem:[%s165 + $0x60] sm:$0xff]
      %v1460 = vld [vmem:[%s165 + $0x68] sm:$0xff]
      %v1461 = vld [vmem:[%s165 + $0x70] sm:$0xff]
      %v1462 = vld [vmem:[%s165 + $0x78] sm:$0xff]
      %v1463 = vld [vmem:[%s165 + $0x80] sm:$0xff]
      %v1464 = vld [vmem:[%s165 + $0x88] sm:$0xff]
      %v1465 = vld [vmem:[%s165 + $0x90] sm:$0xff]
      %v1466 = vld [vmem:[%s165 + $0x98] sm:$0xff]
      %v1467 = vld [vmem:[%s165 + $0xa0] sm:$0xff]
      %v1468 = vld [vmem:[%s165 + $0xa8] sm:$0xff]
      %v1469 = vld [vmem:[%s165 + $0xb0] sm:$0xff]
      %v1470 = vld [vmem:[%s165 + $0xb8] sm:$0xff]
      %v1471 = vld [vmem:[%s165 + $0xc0] sm:$0xff]
      %v1472 = vld [vmem:[%s165 + $0xc8] sm:$0xff]
      %v1473 = vld [vmem:[%s165 + $0xd0] sm:$0xff]
      %v1474 = vld [vmem:[%s165 + $0xd8] sm:$0xff]
      %v1475 = vld [vmem:[%s165 + $0xe0] sm:$0x11]
      %v1476 = vld [vmem:[%s165 + $0xe8] sm:$0x11]
      %s1477 = scalar_lea.vmem %s1, 512
      %v1478 = vld [vmem:[%s1477] sm:$0xf]
      %v1479 = vld [vmem:[%s1477 + $0x4] sm:$0xf]
      %v1480 = vld [vmem:[%s1477 + $0x8] sm:$0xf]
      %v1481 = vld [vmem:[%s1477 + $0xc] sm:$0xf]
      %v1482 = vld [vmem:[%s1477 + $0x10] sm:$0xf]
      %v1483 = vld [vmem:[%s1477 + $0x14] sm:$0xf]
      %v1484 = vld [vmem:[%s1477 + $0x18] sm:$0xf]
      %v1485 = vld [vmem:[%s1477 + $0x1c] sm:$0xf]
      %v1486 = vld [vmem:[%s1477 + $0x20] sm:$0xf]
      %v1487 = vld [vmem:[%s1477 + $0x24] sm:$0xf]
      %v1488 = vld [vmem:[%s1477 + $0x28] sm:$0xf]
      %v1489 = vld [vmem:[%s1477 + $0x2c] sm:$0xf]
      %v1490 = vld [vmem:[%s1477 + $0x30] sm:$0xf]
      %v1491 = vld [vmem:[%s1477 + $0x34] sm:$0xf]
      %v1492 = vld [vmem:[%s1477 + $0x38] sm:$0xf]
      %v1493 = vld [vmem:[%s1477 + $0x3c] sm:$0xf]
      %v1494 = vld [vmem:[%s1477 + $0x40] sm:$0xf]
      %v1495 = vld [vmem:[%s1477 + $0x44] sm:$0xf]
      %v1496 = vld [vmem:[%s1477 + $0x48] sm:$0xf]
      %v1497 = vld [vmem:[%s1477 + $0x4c] sm:$0xf]
      %v1498 = vld [vmem:[%s1477 + $0x50] sm:$0xf]
      %v1499 = vld [vmem:[%s1477 + $0x54] sm:$0xf]
      %v1500 = vld [vmem:[%s1477 + $0x58] sm:$0xf]
      %v1501 = vld [vmem:[%s1477 + $0x5c] sm:$0xf]
      %v1502 = vld [vmem:[%s1477 + $0x60] sm:$0xf]
      %v1503 = vld [vmem:[%s1477 + $0x64] sm:$0xf]
      %v1504 = vld [vmem:[%s1477 + $0x68] sm:$0xf]
      %v1505 = vld [vmem:[%s1477 + $0x6c] sm:$0xf]
      %v1506 = vld [vmem:[%s1477 + $0x70] sm:$0xf]
      %v1507 = vld [vmem:[%s1477 + $0x74] sm:$0xf]
      %v1508 = vld [vmem:[%s1477 + $0x78] sm:$0xf]
      %v1509 = vld [vmem:[%s1477 + $0x7c] sm:$0xf]
      %v1510 = vld [vmem:[%s1477 + $0x80] sm:$0xf]
      %v1511 = vld [vmem:[%s1477 + $0x84] sm:$0xf]
      %v1512 = vld [vmem:[%s1477 + $0x88] sm:$0xf]
      %v1513 = vld [vmem:[%s1477 + $0x8c] sm:$0xf]
      %v1514 = vld [vmem:[%s1477 + $0x90] sm:$0xf]
      %v1515 = vld [vmem:[%s1477 + $0x94] sm:$0xf]
      %v1516 = vld [vmem:[%s1477 + $0x98] sm:$0xf]
      %v1517 = vld [vmem:[%s1477 + $0x9c] sm:$0xf]
      %v1518 = vld [vmem:[%s1477 + $0xa0] sm:$0xf]
      %v1519 = vld [vmem:[%s1477 + $0xa4] sm:$0xf]
      %v1520 = vld [vmem:[%s1477 + $0xa8] sm:$0xf]
      %v1521 = vld [vmem:[%s1477 + $0xac] sm:$0xf]
      %v1522 = vld [vmem:[%s1477 + $0xb0] sm:$0xf]
      %v1523 = vld [vmem:[%s1477 + $0xb4] sm:$0xf]
      %v1524 = vld [vmem:[%s1477 + $0xb8] sm:$0xf]
      %v1525 = vld [vmem:[%s1477 + $0xbc] sm:$0xf]
      %v1526 = vld [vmem:[%s1477 + $0xc0] sm:$0xf]
      %v1527 = vld [vmem:[%s1477 + $0xc4] sm:$0xf]
      %v1528 = vld [vmem:[%s1477 + $0xc8] sm:$0xf]
      %v1529 = vld [vmem:[%s1477 + $0xcc] sm:$0xf]
      %v1530 = vld [vmem:[%s1477 + $0xd0] sm:$0xf]
      %v1531 = vld [vmem:[%s1477 + $0xd4] sm:$0xf]
      %v1532 = vld [vmem:[%s1477 + $0xd8] sm:$0xf]
      %v1533 = vld [vmem:[%s1477 + $0xdc] sm:$0xf]
      %v1534 = vld [vmem:[%s1477 + $0xe0] sm:$0xf]
      %v1535 = vld [vmem:[%s1477 + $0xe4] sm:$0xf]
      %v1536 = vld [vmem:[%s1477 + $0xe8] sm:$0xf]
      %v1537 = vld [vmem:[%s1477 + $0xec] sm:$0xf]
      %v1538 = vld [vmem:[%s1477 + $0xf0] sm:$0xf]
      %v1539 = vld [vmem:[%s1477 + $0xf4] sm:$0xf]
      %v1540 = vld [vmem:[%s1477 + $0xf8] sm:$0xf]
      %v1541 = vld [vmem:[%s1477 + $0xfc] sm:$0xf]
      %v1570 = vunpack.c.l.b16 %v1449
      %v1571 = vunpack.c.h.b16 %v1449
      %v1572 = vunpack.c.l.b16 %v1450
      %v1573 = vunpack.c.h.b16 %v1450
      %v1574 = vunpack.c.l.b16 %v1451
      %v1575 = vunpack.c.h.b16 %v1451
      %v1576 = vunpack.c.l.b16 %v1452
      %v1577 = vunpack.c.h.b16 %v1452
      %v1578 = vunpack.c.l.b16 %v1453
      %v1579 = vunpack.c.h.b16 %v1453
      %v1580 = vunpack.c.l.b16 %v1454
      %v1581 = vunpack.c.h.b16 %v1454
      %v1582 = vunpack.c.l.b16 %v1455
      %v1583 = vunpack.c.h.b16 %v1455
      %v1584 = vunpack.c.l.b16 %v1456
      %v1585 = vunpack.c.h.b16 %v1456
      %v1586 = vunpack.c.l.b16 %v1457
      %v1587 = vunpack.c.h.b16 %v1457
      %v1588 = vunpack.c.l.b16 %v1458
      %v1589 = vunpack.c.h.b16 %v1458
      %v1590 = vunpack.c.l.b16 %v1459
      %v1591 = vunpack.c.h.b16 %v1459
      %v1592 = vunpack.c.l.b16 %v1460
      %v1593 = vunpack.c.h.b16 %v1460
      %v1594 = vunpack.c.l.b16 %v1461
      %v1595 = vunpack.c.h.b16 %v1461
      %v1596 = vunpack.c.l.b16 %v1462
      %v1597 = vunpack.c.h.b16 %v1462
      %v1598 = vunpack.c.l.b16 %v1463
      %v1599 = vunpack.c.h.b16 %v1463
      %v1600 = vunpack.c.l.b16 %v1464
      %v1601 = vunpack.c.h.b16 %v1464
      %v1602 = vunpack.c.l.b16 %v1465
      %v1603 = vunpack.c.h.b16 %v1465
      %v1604 = vunpack.c.l.b16 %v1466
      %v1605 = vunpack.c.h.b16 %v1466
      %v1606 = vunpack.c.l.b16 %v1467
      %v1607 = vunpack.c.h.b16 %v1467
      %v1608 = vunpack.c.l.b16 %v1468
      %v1609 = vunpack.c.h.b16 %v1468
      %v1610 = vunpack.c.l.b16 %v1469
      %v1611 = vunpack.c.h.b16 %v1469
      %v1612 = vunpack.c.l.b16 %v1470
      %v1613 = vunpack.c.h.b16 %v1470
      %v1614 = vunpack.c.l.b16 %v1471
      %v1615 = vunpack.c.h.b16 %v1471
      %v1616 = vunpack.c.l.b16 %v1472
      %v1617 = vunpack.c.h.b16 %v1472
      %v1618 = vunpack.c.l.b16 %v1473
      %v1619 = vunpack.c.h.b16 %v1473
      %v1620 = vunpack.c.l.b16 %v1474
      %v1621 = vunpack.c.h.b16 %v1474
      %v1622 = vunpack.c.l.b16 %v1475
      %v1623 = vunpack.c.h.b16 %v1475
      %v1624 = vunpack.c.l.b16 %v1476
      %v1625 = vunpack.c.h.b16 %v1476
      %v1626 = vpack.c.b16 %v1574, %v1570
      %v1627 = vpack.c.b16 %v1575, %v1571
      %v1628 = vpack.c.b16 %v1576, %v1572
      %v1629 = vpack.c.b16 %v1577, %v1573
      %v1630 = vpack.c.b16 %v1582, %v1578
      %v1631 = vpack.c.b16 %v1583, %v1579
      %v1632 = vpack.c.b16 %v1584, %v1580
      %v1633 = vpack.c.b16 %v1585, %v1581
      %v1634 = vpack.c.b16 %v1590, %v1586
      %v1635 = vpack.c.b16 %v1591, %v1587
      %v1636 = vpack.c.b16 %v1592, %v1588
      %v1637 = vpack.c.b16 %v1593, %v1589
      %v1638 = vpack.c.b16 %v1598, %v1594
      %v1639 = vpack.c.b16 %v1599, %v1595
      %v1640 = vpack.c.b16 %v1600, %v1596
      %v1641 = vpack.c.b16 %v1601, %v1597
      %v1642 = vpack.c.b16 %v1606, %v1602
      %v1643 = vpack.c.b16 %v1607, %v1603
      %v1644 = vpack.c.b16 %v1608, %v1604
      %v1645 = vpack.c.b16 %v1609, %v1605
      %v1646 = vpack.c.b16 %v1614, %v1610
      %v1647 = vpack.c.b16 %v1615, %v1611
      %v1648 = vpack.c.b16 %v1616, %v1612
      %v1649 = vpack.c.b16 %v1617, %v1613
      %v1650 = vpack.c.b16 %v1622, %v1618
      %v1651 = vpack.c.b16 %v1623, %v1619
      %v1652 = vpack.c.b16 %v1624, %v1620
      %v1653 = vpack.c.b16 %v1625, %v1621
      %vm1654 = vcmask 1046528
      %v1655 = vrot.slane %v1626, 1
      %v1656 = vrot.slane %v1630, 1
      %v1657 = vsel %vm1654, %v1655, %v1656
      %v1658 = vrot.slane %v1627, 1
      %v1659 = vrot.slane %v1631, 1
      %v1660 = vsel %vm1654, %v1658, %v1659
      %v1661 = vrot.slane %v1628, 1
      %v1662 = vrot.slane %v1632, 1
      %v1663 = vsel %vm1654, %v1661, %v1662
      %v1664 = vrot.slane %v1629, 1
      %v1665 = vrot.slane %v1633, 1
      %v1666 = vsel %vm1654, %v1664, %v1665
      %v1667 = vrot.slane %v1634, 1
      %v1668 = vsel %vm1654, %v1656, %v1667
      %v1669 = vrot.slane %v1635, 1
      %v1670 = vsel %vm1654, %v1659, %v1669
      %v1671 = vrot.slane %v1636, 1
      %v1672 = vsel %vm1654, %v1662, %v1671
      %v1673 = vrot.slane %v1637, 1
      %v1674 = vsel %vm1654, %v1665, %v1673
      %v1675 = vrot.slane %v1638, 1
      %v1676 = vsel %vm1654, %v1667, %v1675
      %v1677 = vrot.slane %v1639, 1
      %v1678 = vsel %vm1654, %v1669, %v1677
      %v1679 = vrot.slane %v1640, 1
      %v1680 = vsel %vm1654, %v1671, %v1679
      %v1681 = vrot.slane %v1641, 1
      %v1682 = vsel %vm1654, %v1673, %v1681
      %v1683 = vrot.slane %v1642, 1
      %v1684 = vsel %vm1654, %v1675, %v1683
      %v1685 = vrot.slane %v1643, 1
      %v1686 = vsel %vm1654, %v1677, %v1685
      %v1687 = vrot.slane %v1644, 1
      %v1688 = vsel %vm1654, %v1679, %v1687
      %v1689 = vrot.slane %v1645, 1
      %v1690 = vsel %vm1654, %v1681, %v1689
      %v1691 = vrot.slane %v1646, 1
      %v1692 = vsel %vm1654, %v1683, %v1691
      %v1693 = vrot.slane %v1647, 1
      %v1694 = vsel %vm1654, %v1685, %v1693
      %v1695 = vrot.slane %v1648, 1
      %v1696 = vsel %vm1654, %v1687, %v1695
      %v1697 = vrot.slane %v1649, 1
      %v1698 = vsel %vm1654, %v1689, %v1697
      %v1699 = vrot.slane %v1650, 1
      %v1700 = vsel %vm1654, %v1691, %v1699
      %v1701 = vrot.slane %v1651, 1
      %v1702 = vsel %vm1654, %v1693, %v1701
      %v1703 = vrot.slane %v1652, 1
      %v1704 = vsel %vm1654, %v1695, %v1703
      %v1705 = vrot.slane %v1653, 1
      %v1706 = vsel %vm1654, %v1697, %v1705
      %v1799 = vunpack.c.l.b16 %v1478
      %v1800 = vunpack.c.l.b16 %v1479
      %v1801 = vunpack.c.l.b16 %v1480
      %v1802 = vunpack.c.l.b16 %v1481
      %v1803 = vunpack.c.l.b16 %v1482
      %v1804 = vunpack.c.l.b16 %v1483
      %v1805 = vunpack.c.l.b16 %v1484
      %v1806 = vunpack.c.l.b16 %v1485
      %v1807 = vunpack.c.l.b16 %v1486
      %v1808 = vunpack.c.l.b16 %v1487
      %v1809 = vunpack.c.l.b16 %v1488
      %v1810 = vunpack.c.l.b16 %v1489
      %v1811 = vunpack.c.l.b16 %v1490
      %v1812 = vunpack.c.l.b16 %v1491
      %v1813 = vunpack.c.l.b16 %v1492
      %v1814 = vunpack.c.l.b16 %v1493
      %v1815 = vunpack.c.l.b16 %v1494
      %v1816 = vunpack.c.l.b16 %v1495
      %v1817 = vunpack.c.l.b16 %v1496
      %v1818 = vunpack.c.l.b16 %v1497
      %v1819 = vunpack.c.l.b16 %v1498
      %v1820 = vunpack.c.l.b16 %v1499
      %v1821 = vunpack.c.l.b16 %v1500
      %v1822 = vunpack.c.l.b16 %v1501
      %v1823 = vunpack.c.l.b16 %v1502
      %v1824 = vunpack.c.l.b16 %v1503
      %v1825 = vunpack.c.l.b16 %v1504
      %v1826 = vunpack.c.l.b16 %v1505
      %v1827 = vunpack.c.l.b16 %v1506
      %v1828 = vunpack.c.l.b16 %v1507
      %v1829 = vunpack.c.l.b16 %v1508
      %v1830 = vunpack.c.l.b16 %v1509
      %v1831 = vunpack.c.l.b16 %v1510
      %v1832 = vunpack.c.l.b16 %v1511
      %v1833 = vunpack.c.l.b16 %v1512
      %v1834 = vunpack.c.l.b16 %v1513
      %v1835 = vunpack.c.l.b16 %v1514
      %v1836 = vunpack.c.l.b16 %v1515
      %v1837 = vunpack.c.l.b16 %v1516
      %v1838 = vunpack.c.l.b16 %v1517
      %v1839 = vunpack.c.l.b16 %v1518
      %v1840 = vunpack.c.l.b16 %v1519
      %v1841 = vunpack.c.l.b16 %v1520
      %v1842 = vunpack.c.l.b16 %v1521
      %v1843 = vunpack.c.l.b16 %v1522
      %v1844 = vunpack.c.l.b16 %v1523
      %v1845 = vunpack.c.l.b16 %v1524
      %v1846 = vunpack.c.l.b16 %v1525
      %v1847 = vunpack.c.l.b16 %v1526
      %v1848 = vunpack.c.l.b16 %v1527
      %v1849 = vunpack.c.l.b16 %v1528
      %v1850 = vunpack.c.l.b16 %v1529
      %v1851 = vunpack.c.l.b16 %v1530
      %v1852 = vunpack.c.l.b16 %v1531
      %v1853 = vunpack.c.l.b16 %v1532
      %v1854 = vunpack.c.l.b16 %v1533
      %v1855 = vunpack.c.l.b16 %v1534
      %v1856 = vunpack.c.l.b16 %v1535
      %v1857 = vunpack.c.l.b16 %v1536
      %v1858 = vunpack.c.l.b16 %v1537
      %v1859 = vunpack.c.l.b16 %v1538
      %v1860 = vunpack.c.l.b16 %v1539
      %v1861 = vunpack.c.l.b16 %v1540
      %v1862 = vunpack.c.l.b16 %v1541
      %v1863 = vpack.c.b16 %v1800, %v1799
      %v1864 = vpack.c.b16 %v1802, %v1801
      %v1865 = vpack.c.b16 %v1804, %v1803
      %v1866 = vpack.c.b16 %v1806, %v1805
      %v1867 = vpack.c.b16 %v1808, %v1807
      %v1868 = vpack.c.b16 %v1810, %v1809
      %v1869 = vpack.c.b16 %v1812, %v1811
      %v1870 = vpack.c.b16 %v1814, %v1813
      %v1871 = vpack.c.b16 %v1816, %v1815
      %v1872 = vpack.c.b16 %v1818, %v1817
      %v1873 = vpack.c.b16 %v1820, %v1819
      %v1874 = vpack.c.b16 %v1822, %v1821
      %v1875 = vpack.c.b16 %v1824, %v1823
      %v1876 = vpack.c.b16 %v1826, %v1825
      %v1877 = vpack.c.b16 %v1828, %v1827
      %v1878 = vpack.c.b16 %v1830, %v1829
      %v1879 = vpack.c.b16 %v1832, %v1831
      %v1880 = vpack.c.b16 %v1834, %v1833
      %v1881 = vpack.c.b16 %v1836, %v1835
      %v1882 = vpack.c.b16 %v1838, %v1837
      %v1883 = vpack.c.b16 %v1840, %v1839
      %v1884 = vpack.c.b16 %v1842, %v1841
      %v1885 = vpack.c.b16 %v1844, %v1843
      %v1886 = vpack.c.b16 %v1846, %v1845
      %v1887 = vpack.c.b16 %v1848, %v1847
      %v1888 = vpack.c.b16 %v1850, %v1849
      %v1889 = vpack.c.b16 %v1852, %v1851
      %v1890 = vpack.c.b16 %v1854, %v1853
      %v1891 = vpack.c.b16 %v1856, %v1855
      %v1892 = vpack.c.b16 %v1858, %v1857
      %v1893 = vpack.c.b16 %v1860, %v1859
      %v1894 = vpack.c.b16 %v1862, %v1861
      %1927 = vmatpush.bf16.msra.mxu0 %v1870
      %1928 = vmatpush.bf16.msra.mxu0 %v1869
      %1929 = vmatpush.bf16.msra.mxu0 %v1868
      %1930 = vmatpush.bf16.msra.mxu0 %v1867
      %1931 = vmatpush.bf16.msra.mxu0 %v1866
      %1932 = vmatpush.bf16.msra.mxu0 %v1865
      %1933 = vmatpush.bf16.msra.mxu0 %v1864
      %1934 = vmatpush.bf16.msra.mxu0 %v1863
      %1935 = vmatmul.bf16.gmra.mxu0 %v1657
      %v1936 = vpop.f32.mrf.mxu0
      %v1937 = vadd.f32 0.0, %v1936
      %v1938 = vpop.f32.mrf.mxu0
      %v1939 = vadd.f32 0.0, %v1938
      %1940 = vmatmul.bf16.gmra.mxu0 %v1668
      %v1941 = vpop.f32.mrf.mxu0
      %v1942 = vadd.f32 0.0, %v1941
      %v1943 = vpop.f32.mrf.mxu0
      %v1944 = vadd.f32 0.0, %v1943
      %1945 = vmatmul.bf16.gmra.mxu0 %v1676
      %v1946 = vpop.f32.mrf.mxu0
      %v1947 = vadd.f32 0.0, %v1946
      %v1948 = vpop.f32.mrf.mxu0
      %v1949 = vadd.f32 0.0, %v1948
      %1950 = vmatmul.bf16.gmra.mxu0 %v1684
      %v1951 = vpop.f32.mrf.mxu0
      %v1952 = vadd.f32 0.0, %v1951
      %v1953 = vpop.f32.mrf.mxu0
      %v1954 = vadd.f32 0.0, %v1953
      %1955 = vmatmul.bf16.gmra.mxu0 %v1692
      %v1956 = vpop.f32.mrf.mxu0
      %v1957 = vadd.f32 0.0, %v1956
      %v1958 = vpop.f32.mrf.mxu0
      %v1959 = vadd.f32 0.0, %v1958
      %1960 = vmatmul.bf16.gmra.mxu0 %v1700
      %v1961 = vpop.f32.mrf.mxu0
      %v1962 = vadd.f32 0.0, %v1961
      %v1963 = vpop.f32.mrf.mxu0
      %v1964 = vadd.f32 0.0, %v1963
      %1965 = vmatmul.bf16.gmra.mxu0 %v1699
      %v1966 = vpop.f32.mrf.mxu0
      %v1967 = vadd.f32 0.0, %v1966
      %v1968 = vpop.f32.mrf.mxu0
      %1969 = vdwg.mxu0
      %1970 = vmatpush.bf16.msra.mxu0 %v1878
      %1971 = vmatpush.bf16.msra.mxu0 %v1877
      %1972 = vmatpush.bf16.msra.mxu0 %v1876
      %1973 = vmatpush.bf16.msra.mxu0 %v1875
      %1974 = vmatpush.bf16.msra.mxu0 %v1874
      %1975 = vmatpush.bf16.msra.mxu0 %v1873
      %1976 = vmatpush.bf16.msra.mxu0 %v1872
      %1977 = vmatpush.bf16.msra.mxu0 %v1871
      %1978 = vmatmul.bf16.gmra.mxu0 %v1660
      %v1979 = vpop.f32.mrf.mxu0
      %v1980 = vadd.f32 %v1937, %v1979
      %v1981 = vpop.f32.mrf.mxu0
      %v1982 = vadd.f32 %v1939, %v1981
      %1983 = vmatmul.bf16.gmra.mxu0 %v1670
      %v1984 = vpop.f32.mrf.mxu0
      %v1985 = vadd.f32 %v1942, %v1984
      %v1986 = vpop.f32.mrf.mxu0
      %v1987 = vadd.f32 %v1944, %v1986
      %1988 = vmatmul.bf16.gmra.mxu0 %v1678
      %v1989 = vpop.f32.mrf.mxu0
      %v1990 = vadd.f32 %v1947, %v1989
      %v1991 = vpop.f32.mrf.mxu0
      %v1992 = vadd.f32 %v1949, %v1991
      %1993 = vmatmul.bf16.gmra.mxu0 %v1686
      %v1994 = vpop.f32.mrf.mxu0
      %v1995 = vadd.f32 %v1952, %v1994
      %v1996 = vpop.f32.mrf.mxu0
      %v1997 = vadd.f32 %v1954, %v1996
      %1998 = vmatmul.bf16.gmra.mxu0 %v1694
      %v1999 = vpop.f32.mrf.mxu0
      %v2000 = vadd.f32 %v1957, %v1999
      %v2001 = vpop.f32.mrf.mxu0
      %v2002 = vadd.f32 %v1959, %v2001
      %2003 = vmatmul.bf16.gmra.mxu0 %v1702
      %v2004 = vpop.f32.mrf.mxu0
      %v2005 = vadd.f32 %v1962, %v2004
      %v2006 = vpop.f32.mrf.mxu0
      %v2007 = vadd.f32 %v1964, %v2006
      %2008 = vmatmul.bf16.gmra.mxu0 %v1701
      %v2009 = vpop.f32.mrf.mxu0
      %v2010 = vadd.f32 %v1967, %v2009
      %v2011 = vpop.f32.mrf.mxu0
      %2012 = vdwg.mxu0
      %2013 = vmatpush.bf16.msra.mxu0 %v1886
      %2014 = vmatpush.bf16.msra.mxu0 %v1885
      %2015 = vmatpush.bf16.msra.mxu0 %v1884
      %2016 = vmatpush.bf16.msra.mxu0 %v1883
      %2017 = vmatpush.bf16.msra.mxu0 %v1882
      %2018 = vmatpush.bf16.msra.mxu0 %v1881
      %2019 = vmatpush.bf16.msra.mxu0 %v1880
      %2020 = vmatpush.bf16.msra.mxu0 %v1879
      %2021 = vmatmul.bf16.gmra.mxu0 %v1663
      %v2022 = vpop.f32.mrf.mxu0
      %v2023 = vadd.f32 %v1980, %v2022
      %v2024 = vpop.f32.mrf.mxu0
      %v2025 = vadd.f32 %v1982, %v2024
      %2026 = vmatmul.bf16.gmra.mxu0 %v1672
      %v2027 = vpop.f32.mrf.mxu0
      %v2028 = vadd.f32 %v1985, %v2027
      %v2029 = vpop.f32.mrf.mxu0
      %v2030 = vadd.f32 %v1987, %v2029
      %2031 = vmatmul.bf16.gmra.mxu0 %v1680
      %v2032 = vpop.f32.mrf.mxu0
      %v2033 = vadd.f32 %v1990, %v2032
      %v2034 = vpop.f32.mrf.mxu0
      %v2035 = vadd.f32 %v1992, %v2034
      %2036 = vmatmul.bf16.gmra.mxu0 %v1688
      %v2037 = vpop.f32.mrf.mxu0
      %v2038 = vadd.f32 %v1995, %v2037
      %v2039 = vpop.f32.mrf.mxu0
      %v2040 = vadd.f32 %v1997, %v2039
      %2041 = vmatmul.bf16.gmra.mxu0 %v1696
      %v2042 = vpop.f32.mrf.mxu0
      %v2043 = vadd.f32 %v2000, %v2042
      %v2044 = vpop.f32.mrf.mxu0
      %v2045 = vadd.f32 %v2002, %v2044
      %2046 = vmatmul.bf16.gmra.mxu0 %v1704
      %v2047 = vpop.f32.mrf.mxu0
      %v2048 = vadd.f32 %v2005, %v2047
      %v2049 = vpop.f32.mrf.mxu0
      %v2050 = vadd.f32 %v2007, %v2049
      %2051 = vmatmul.bf16.gmra.mxu0 %v1703
      %v2052 = vpop.f32.mrf.mxu0
      %v2053 = vadd.f32 %v2010, %v2052
      %v2054 = vpop.f32.mrf.mxu0
      %2055 = vdwg.mxu0
      %2056 = vmatpush.bf16.msra.mxu0 %v1894
      %2057 = vmatpush.bf16.msra.mxu0 %v1893
      %2058 = vmatpush.bf16.msra.mxu0 %v1892
      %2059 = vmatpush.bf16.msra.mxu0 %v1891
      %2060 = vmatpush.bf16.msra.mxu0 %v1890
      %2061 = vmatpush.bf16.msra.mxu0 %v1889
      %2062 = vmatpush.bf16.msra.mxu0 %v1888
      %2063 = vmatpush.bf16.msra.mxu0 %v1887
      %2064 = vmatmul.bf16.gmra.mxu0 %v1666
      %v2065 = vpop.f32.mrf.mxu0
      %v2066 = vadd.f32 %v2023, %v2065
      %v2067 = vpop.f32.mrf.mxu0
      %v2068 = vadd.f32 %v2025, %v2067
      %2069 = vmatmul.bf16.gmra.mxu0 %v1674
      %v2070 = vpop.f32.mrf.mxu0
      %v2071 = vadd.f32 %v2028, %v2070
      %v2072 = vpop.f32.mrf.mxu0
      %v2073 = vadd.f32 %v2030, %v2072
      %2074 = vmatmul.bf16.gmra.mxu0 %v1682
      %v2075 = vpop.f32.mrf.mxu0
      %v2076 = vadd.f32 %v2033, %v2075
      %v2077 = vpop.f32.mrf.mxu0
      %v2078 = vadd.f32 %v2035, %v2077
      %2079 = vmatmul.bf16.gmra.mxu0 %v1690
      %v2080 = vpop.f32.mrf.mxu0
      %v2081 = vadd.f32 %v2038, %v2080
      %v2082 = vpop.f32.mrf.mxu0
      %v2083 = vadd.f32 %v2040, %v2082
      %2084 = vmatmul.bf16.gmra.mxu0 %v1698
      %v2085 = vpop.f32.mrf.mxu0
      %v2086 = vadd.f32 %v2043, %v2085
      %v2087 = vpop.f32.mrf.mxu0
      %v2088 = vadd.f32 %v2045, %v2087
      %2089 = vmatmul.bf16.gmra.mxu0 %v1706
      %v2090 = vpop.f32.mrf.mxu0
      %v2091 = vadd.f32 %v2048, %v2090
      %v2092 = vpop.f32.mrf.mxu0
      %v2093 = vadd.f32 %v2050, %v2092
      %2094 = vmatmul.bf16.gmra.mxu0 %v1705
      %v2095 = vpop.f32.mrf.mxu0
      %v2096 = vadd.f32 %v2053, %v2095
      %v2097 = vpop.f32.mrf.mxu0
      %2098 = vdwg.mxu0
      %v2099 = vadd.f32 %v1416, %v2066
      %v2100 = vadd.f32 %v1418, %v2068
      %v2101 = vadd.f32 %v1421, %v2071
      %v2102 = vadd.f32 %v1423, %v2073
      %v2103 = vadd.f32 %v1426, %v2076
      %v2104 = vadd.f32 %v1428, %v2078
      %v2105 = vadd.f32 %v1431, %v2081
      %v2106 = vadd.f32 %v1433, %v2083
      %v2107 = vadd.f32 %v1436, %v2086
      %v2108 = vadd.f32 %v1438, %v2088
      %v2109 = vadd.f32 %v1441, %v2091
      %v2110 = vadd.f32 %v1443, %v2093
      %v2111 = vadd.f32 %v1446, %v2096
      %v2112 = vld [vmem:[%s165 + $0xe0] sm:$0x33]
      %v2113 = vld [vmem:[%s165 + $0xe8] sm:$0x33]
      %s2114 = scalar_lea.vmem %s1, 768
      %v2115 = vld [vmem:[%s2114] sm:$0xf]
      %v2116 = vld [vmem:[%s2114 + $0x4] sm:$0xf]
      %v2117 = vld [vmem:[%s2114 + $0x8] sm:$0xf]
      %v2118 = vld [vmem:[%s2114 + $0xc] sm:$0xf]
      %v2119 = vld [vmem:[%s2114 + $0x10] sm:$0xf]
      %v2120 = vld [vmem:[%s2114 + $0x14] sm:$0xf]
      %v2121 = vld [vmem:[%s2114 + $0x18] sm:$0xf]
      %v2122 = vld [vmem:[%s2114 + $0x1c] sm:$0xf]
      %v2123 = vld [vmem:[%s2114 + $0x20] sm:$0xf]
      %v2124 = vld [vmem:[%s2114 + $0x24] sm:$0xf]
      %v2125 = vld [vmem:[%s2114 + $0x28] sm:$0xf]
      %v2126 = vld [vmem:[%s2114 + $0x2c] sm:$0xf]
      %v2127 = vld [vmem:[%s2114 + $0x30] sm:$0xf]
      %v2128 = vld [vmem:[%s2114 + $0x34] sm:$0xf]
      %v2129 = vld [vmem:[%s2114 + $0x38] sm:$0xf]
      %v2130 = vld [vmem:[%s2114 + $0x3c] sm:$0xf]
      %v2131 = vld [vmem:[%s2114 + $0x40] sm:$0xf]
      %v2132 = vld [vmem:[%s2114 + $0x44] sm:$0xf]
      %v2133 = vld [vmem:[%s2114 + $0x48] sm:$0xf]
      %v2134 = vld [vmem:[%s2114 + $0x4c] sm:$0xf]
      %v2135 = vld [vmem:[%s2114 + $0x50] sm:$0xf]
      %v2136 = vld [vmem:[%s2114 + $0x54] sm:$0xf]
      %v2137 = vld [vmem:[%s2114 + $0x58] sm:$0xf]
      %v2138 = vld [vmem:[%s2114 + $0x5c] sm:$0xf]
      %v2139 = vld [vmem:[%s2114 + $0x60] sm:$0xf]
      %v2140 = vld [vmem:[%s2114 + $0x64] sm:$0xf]
      %v2141 = vld [vmem:[%s2114 + $0x68] sm:$0xf]
      %v2142 = vld [vmem:[%s2114 + $0x6c] sm:$0xf]
      %v2143 = vld [vmem:[%s2114 + $0x70] sm:$0xf]
      %v2144 = vld [vmem:[%s2114 + $0x74] sm:$0xf]
      %v2145 = vld [vmem:[%s2114 + $0x78] sm:$0xf]
      %v2146 = vld [vmem:[%s2114 + $0x7c] sm:$0xf]
      %v2147 = vld [vmem:[%s2114 + $0x80] sm:$0xf]
      %v2148 = vld [vmem:[%s2114 + $0x84] sm:$0xf]
      %v2149 = vld [vmem:[%s2114 + $0x88] sm:$0xf]
      %v2150 = vld [vmem:[%s2114 + $0x8c] sm:$0xf]
      %v2151 = vld [vmem:[%s2114 + $0x90] sm:$0xf]
      %v2152 = vld [vmem:[%s2114 + $0x94] sm:$0xf]
      %v2153 = vld [vmem:[%s2114 + $0x98] sm:$0xf]
      %v2154 = vld [vmem:[%s2114 + $0x9c] sm:$0xf]
      %v2155 = vld [vmem:[%s2114 + $0xa0] sm:$0xf]
      %v2156 = vld [vmem:[%s2114 + $0xa4] sm:$0xf]
      %v2157 = vld [vmem:[%s2114 + $0xa8] sm:$0xf]
      %v2158 = vld [vmem:[%s2114 + $0xac] sm:$0xf]
      %v2159 = vld [vmem:[%s2114 + $0xb0] sm:$0xf]
      %v2160 = vld [vmem:[%s2114 + $0xb4] sm:$0xf]
      %v2161 = vld [vmem:[%s2114 + $0xb8] sm:$0xf]
      %v2162 = vld [vmem:[%s2114 + $0xbc] sm:$0xf]
      %v2163 = vld [vmem:[%s2114 + $0xc0] sm:$0xf]
      %v2164 = vld [vmem:[%s2114 + $0xc4] sm:$0xf]
      %v2165 = vld [vmem:[%s2114 + $0xc8] sm:$0xf]
      %v2166 = vld [vmem:[%s2114 + $0xcc] sm:$0xf]
      %v2167 = vld [vmem:[%s2114 + $0xd0] sm:$0xf]
      %v2168 = vld [vmem:[%s2114 + $0xd4] sm:$0xf]
      %v2169 = vld [vmem:[%s2114 + $0xd8] sm:$0xf]
      %v2170 = vld [vmem:[%s2114 + $0xdc] sm:$0xf]
      %v2171 = vld [vmem:[%s2114 + $0xe0] sm:$0xf]
      %v2172 = vld [vmem:[%s2114 + $0xe4] sm:$0xf]
      %v2173 = vld [vmem:[%s2114 + $0xe8] sm:$0xf]
      %v2174 = vld [vmem:[%s2114 + $0xec] sm:$0xf]
      %v2175 = vld [vmem:[%s2114 + $0xf0] sm:$0xf]
      %v2176 = vld [vmem:[%s2114 + $0xf4] sm:$0xf]
      %v2177 = vld [vmem:[%s2114 + $0xf8] sm:$0xf]
      %v2178 = vld [vmem:[%s2114 + $0xfc] sm:$0xf]
      %v2181 = vunpack.c.l.b16 %v2112
      %v2182 = vunpack.c.h.b16 %v2112
      %v2183 = vunpack.c.l.b16 %v2113
      %v2184 = vunpack.c.h.b16 %v2113
      %v2185 = vpack.c.b16 %v2181, %v1618
      %v2186 = vpack.c.b16 %v2182, %v1619
      %v2187 = vpack.c.b16 %v2183, %v1620
      %v2188 = vpack.c.b16 %v2184, %v1621
      %vm2189 = vsmask.f32 6400
      %v2191 = vshrl.u32 %v1626, 16
      %v2193 = vrot.slane %v2191, 1
      %v2194 = vshll.u32 %v1626, 16
      %v2196 = vrot.slane %v2194, 2
      %v2197 = vor.u32 %v2193, %v2196
      %v2199 = vshrl.u32 %v1630, 16
      %v2201 = vrot.slane %v2199, 1
      %v2202 = vshll.u32 %v1630, 16
      %v2204 = vrot.slane %v2202, 2
      %v2205 = vor.u32 %v2201, %v2204
      %v2206 = vsel %vm2189, %v2197, %v2205
      %v2208 = vshrl.u32 %v1627, 16
      %v2210 = vrot.slane %v2208, 1
      %v2211 = vshll.u32 %v1627, 16
      %v2213 = vrot.slane %v2211, 2
      %v2214 = vor.u32 %v2210, %v2213
      %v2216 = vshrl.u32 %v1631, 16
      %v2218 = vrot.slane %v2216, 1
      %v2219 = vshll.u32 %v1631, 16
      %v2221 = vrot.slane %v2219, 2
      %v2222 = vor.u32 %v2218, %v2221
      %v2223 = vsel %vm2189, %v2214, %v2222
      %v2225 = vshrl.u32 %v1628, 16
      %v2227 = vrot.slane %v2225, 1
      %v2228 = vshll.u32 %v1628, 16
      %v2230 = vrot.slane %v2228, 2
      %v2231 = vor.u32 %v2227, %v2230
      %v2233 = vshrl.u32 %v1632, 16
      %v2235 = vrot.slane %v2233, 1
      %v2236 = vshll.u32 %v1632, 16
      %v2238 = vrot.slane %v2236, 2
      %v2239 = vor.u32 %v2235, %v2238
      %v2240 = vsel %vm2189, %v2231, %v2239
      %v2242 = vshrl.u32 %v1629, 16
      %v2244 = vrot.slane %v2242, 1
      %v2245 = vshll.u32 %v1629, 16
      %v2247 = vrot.slane %v2245, 2
      %v2248 = vor.u32 %v2244, %v2247
      %v2250 = vshrl.u32 %v1633, 16
      %v2252 = vrot.slane %v2250, 1
      %v2253 = vshll.u32 %v1633, 16
      %v2255 = vrot.slane %v2253, 2
      %v2256 = vor.u32 %v2252, %v2255
      %v2257 = vsel %vm2189, %v2248, %v2256
      %v2259 = vshrl.u32 %v1634, 16
      %v2261 = vrot.slane %v2259, 1
      %v2262 = vshll.u32 %v1634, 16
      %v2264 = vrot.slane %v2262, 2
      %v2265 = vor.u32 %v2261, %v2264
      %v2266 = vsel %vm2189, %v2205, %v2265
      %v2268 = vshrl.u32 %v1635, 16
      %v2270 = vrot.slane %v2268, 1
      %v2271 = vshll.u32 %v1635, 16
      %v2273 = vrot.slane %v2271, 2
      %v2274 = vor.u32 %v2270, %v2273
      %v2275 = vsel %vm2189, %v2222, %v2274
      %v2277 = vshrl.u32 %v1636, 16
      %v2279 = vrot.slane %v2277, 1
      %v2280 = vshll.u32 %v1636, 16
      %v2282 = vrot.slane %v2280, 2
      %v2283 = vor.u32 %v2279, %v2282
      %v2284 = vsel %vm2189, %v2239, %v2283
      %v2286 = vshrl.u32 %v1637, 16
      %v2288 = vrot.slane %v2286, 1
      %v2289 = vshll.u32 %v1637, 16
      %v2291 = vrot.slane %v2289, 2
      %v2292 = vor.u32 %v2288, %v2291
      %v2293 = vsel %vm2189, %v2256, %v2292
      %v2295 = vshrl.u32 %v1638, 16
      %v2297 = vrot.slane %v2295, 1
      %v2298 = vshll.u32 %v1638, 16
      %v2300 = vrot.slane %v2298, 2
      %v2301 = vor.u32 %v2297, %v2300
      %v2302 = vsel %vm2189, %v2265, %v2301
      %v2304 = vshrl.u32 %v1639, 16
      %v2306 = vrot.slane %v2304, 1
      %v2307 = vshll.u32 %v1639, 16
      %v2309 = vrot.slane %v2307, 2
      %v2310 = vor.u32 %v2306, %v2309
      %v2311 = vsel %vm2189, %v2274, %v2310
      %v2313 = vshrl.u32 %v1640, 16
      %v2315 = vrot.slane %v2313, 1
      %v2316 = vshll.u32 %v1640, 16
      %v2318 = vrot.slane %v2316, 2
      %v2319 = vor.u32 %v2315, %v2318
      %v2320 = vsel %vm2189, %v2283, %v2319
      %v2322 = vshrl.u32 %v1641, 16
      %v2324 = vrot.slane %v2322, 1
      %v2325 = vshll.u32 %v1641, 16
      %v2327 = vrot.slane %v2325, 2
      %v2328 = vor.u32 %v2324, %v2327
      %v2329 = vsel %vm2189, %v2292, %v2328
      %v2331 = vshrl.u32 %v1642, 16
      %v2333 = vrot.slane %v2331, 1
      %v2334 = vshll.u32 %v1642, 16
      %v2336 = vrot.slane %v2334, 2
      %v2337 = vor.u32 %v2333, %v2336
      %v2338 = vsel %vm2189, %v2301, %v2337
      %v2340 = vshrl.u32 %v1643, 16
      %v2342 = vrot.slane %v2340, 1
      %v2343 = vshll.u32 %v1643, 16
      %v2345 = vrot.slane %v2343, 2
      %v2346 = vor.u32 %v2342, %v2345
      %v2347 = vsel %vm2189, %v2310, %v2346
      %v2349 = vshrl.u32 %v1644, 16
      %v2351 = vrot.slane %v2349, 1
      %v2352 = vshll.u32 %v1644, 16
      %v2354 = vrot.slane %v2352, 2
      %v2355 = vor.u32 %v2351, %v2354
      %v2356 = vsel %vm2189, %v2319, %v2355
      %v2358 = vshrl.u32 %v1645, 16
      %v2360 = vrot.slane %v2358, 1
      %v2361 = vshll.u32 %v1645, 16
      %v2363 = vrot.slane %v2361, 2
      %v2364 = vor.u32 %v2360, %v2363
      %v2365 = vsel %vm2189, %v2328, %v2364
      %v2367 = vshrl.u32 %v1646, 16
      %v2369 = vrot.slane %v2367, 1
      %v2370 = vshll.u32 %v1646, 16
      %v2372 = vrot.slane %v2370, 2
      %v2373 = vor.u32 %v2369, %v2372
      %v2374 = vsel %vm2189, %v2337, %v2373
      %v2376 = vshrl.u32 %v1647, 16
      %v2378 = vrot.slane %v2376, 1
      %v2379 = vshll.u32 %v1647, 16
      %v2381 = vrot.slane %v2379, 2
      %v2382 = vor.u32 %v2378, %v2381
      %v2383 = vsel %vm2189, %v2346, %v2382
      %v2385 = vshrl.u32 %v1648, 16
      %v2387 = vrot.slane %v2385, 1
      %v2388 = vshll.u32 %v1648, 16
      %v2390 = vrot.slane %v2388, 2
      %v2391 = vor.u32 %v2387, %v2390
      %v2392 = vsel %vm2189, %v2355, %v2391
      %v2394 = vshrl.u32 %v1649, 16
      %v2396 = vrot.slane %v2394, 1
      %v2397 = vshll.u32 %v1649, 16
      %v2399 = vrot.slane %v2397, 2
      %v2400 = vor.u32 %v2396, %v2399
      %v2401 = vsel %vm2189, %v2364, %v2400
      %v2403 = vshrl.u32 %v2185, 16
      %v2405 = vrot.slane %v2403, 1
      %v2406 = vshll.u32 %v2185, 16
      %v2408 = vrot.slane %v2406, 2
      %v2409 = vor.u32 %v2405, %v2408
      %v2410 = vsel %vm2189, %v2373, %v2409
      %v2412 = vshrl.u32 %v2186, 16
      %v2414 = vrot.slane %v2412, 1
      %v2415 = vshll.u32 %v2186, 16
      %v2417 = vrot.slane %v2415, 2
      %v2418 = vor.u32 %v2414, %v2417
      %v2419 = vsel %vm2189, %v2382, %v2418
      %v2421 = vshrl.u32 %v2187, 16
      %v2423 = vrot.slane %v2421, 1
      %v2424 = vshll.u32 %v2187, 16
      %v2426 = vrot.slane %v2424, 2
      %v2427 = vor.u32 %v2423, %v2426
      %v2428 = vsel %vm2189, %v2391, %v2427
      %v2430 = vshrl.u32 %v2188, 16
      %v2432 = vrot.slane %v2430, 1
      %v2433 = vshll.u32 %v2188, 16
      %v2435 = vrot.slane %v2433, 2
      %v2436 = vor.u32 %v2432, %v2435
      %v2437 = vsel %vm2189, %v2400, %v2436
      %v2530 = vunpack.c.l.b16 %v2115
      %v2531 = vunpack.c.l.b16 %v2116
      %v2532 = vunpack.c.l.b16 %v2117
      %v2533 = vunpack.c.l.b16 %v2118
      %v2534 = vunpack.c.l.b16 %v2119
      %v2535 = vunpack.c.l.b16 %v2120
      %v2536 = vunpack.c.l.b16 %v2121
      %v2537 = vunpack.c.l.b16 %v2122
      %v2538 = vunpack.c.l.b16 %v2123
      %v2539 = vunpack.c.l.b16 %v2124
      %v2540 = vunpack.c.l.b16 %v2125
      %v2541 = vunpack.c.l.b16 %v2126
      %v2542 = vunpack.c.l.b16 %v2127
      %v2543 = vunpack.c.l.b16 %v2128
      %v2544 = vunpack.c.l.b16 %v2129
      %v2545 = vunpack.c.l.b16 %v2130
      %v2546 = vunpack.c.l.b16 %v2131
      %v2547 = vunpack.c.l.b16 %v2132
      %v2548 = vunpack.c.l.b16 %v2133
      %v2549 = vunpack.c.l.b16 %v2134
      %v2550 = vunpack.c.l.b16 %v2135
      %v2551 = vunpack.c.l.b16 %v2136
      %v2552 = vunpack.c.l.b16 %v2137
      %v2553 = vunpack.c.l.b16 %v2138
      %v2554 = vunpack.c.l.b16 %v2139
      %v2555 = vunpack.c.l.b16 %v2140
      %v2556 = vunpack.c.l.b16 %v2141
      %v2557 = vunpack.c.l.b16 %v2142
      %v2558 = vunpack.c.l.b16 %v2143
      %v2559 = vunpack.c.l.b16 %v2144
      %v2560 = vunpack.c.l.b16 %v2145
      %v2561 = vunpack.c.l.b16 %v2146
      %v2562 = vunpack.c.l.b16 %v2147
      %v2563 = vunpack.c.l.b16 %v2148
      %v2564 = vunpack.c.l.b16 %v2149
      %v2565 = vunpack.c.l.b16 %v2150
      %v2566 = vunpack.c.l.b16 %v2151
      %v2567 = vunpack.c.l.b16 %v2152
      %v2568 = vunpack.c.l.b16 %v2153
      %v2569 = vunpack.c.l.b16 %v2154
      %v2570 = vunpack.c.l.b16 %v2155
      %v2571 = vunpack.c.l.b16 %v2156
      %v2572 = vunpack.c.l.b16 %v2157
      %v2573 = vunpack.c.l.b16 %v2158
      %v2574 = vunpack.c.l.b16 %v2159
      %v2575 = vunpack.c.l.b16 %v2160
      %v2576 = vunpack.c.l.b16 %v2161
      %v2577 = vunpack.c.l.b16 %v2162
      %v2578 = vunpack.c.l.b16 %v2163
      %v2579 = vunpack.c.l.b16 %v2164
      %v2580 = vunpack.c.l.b16 %v2165
      %v2581 = vunpack.c.l.b16 %v2166
      %v2582 = vunpack.c.l.b16 %v2167
      %v2583 = vunpack.c.l.b16 %v2168
      %v2584 = vunpack.c.l.b16 %v2169
      %v2585 = vunpack.c.l.b16 %v2170
      %v2586 = vunpack.c.l.b16 %v2171
      %v2587 = vunpack.c.l.b16 %v2172
      %v2588 = vunpack.c.l.b16 %v2173
      %v2589 = vunpack.c.l.b16 %v2174
      %v2590 = vunpack.c.l.b16 %v2175
      %v2591 = vunpack.c.l.b16 %v2176
      %v2592 = vunpack.c.l.b16 %v2177
      %v2593 = vunpack.c.l.b16 %v2178
      %v2594 = vpack.c.b16 %v2531, %v2530
      %v2595 = vpack.c.b16 %v2533, %v2532
      %v2596 = vpack.c.b16 %v2535, %v2534
      %v2597 = vpack.c.b16 %v2537, %v2536
      %v2598 = vpack.c.b16 %v2539, %v2538
      %v2599 = vpack.c.b16 %v2541, %v2540
      %v2600 = vpack.c.b16 %v2543, %v2542
      %v2601 = vpack.c.b16 %v2545, %v2544
      %v2602 = vpack.c.b16 %v2547, %v2546
      %v2603 = vpack.c.b16 %v2549, %v2548
      %v2604 = vpack.c.b16 %v2551, %v2550
      %v2605 = vpack.c.b16 %v2553, %v2552
      %v2606 = vpack.c.b16 %v2555, %v2554
      %v2607 = vpack.c.b16 %v2557, %v2556
      %v2608 = vpack.c.b16 %v2559, %v2558
      %v2609 = vpack.c.b16 %v2561, %v2560
      %v2610 = vpack.c.b16 %v2563, %v2562
      %v2611 = vpack.c.b16 %v2565, %v2564
      %v2612 = vpack.c.b16 %v2567, %v2566
      %v2613 = vpack.c.b16 %v2569, %v2568
      %v2614 = vpack.c.b16 %v2571, %v2570
      %v2615 = vpack.c.b16 %v2573, %v2572
      %v2616 = vpack.c.b16 %v2575, %v2574
      %v2617 = vpack.c.b16 %v2577, %v2576
      %v2618 = vpack.c.b16 %v2579, %v2578
      %v2619 = vpack.c.b16 %v2581, %v2580
      %v2620 = vpack.c.b16 %v2583, %v2582
      %v2621 = vpack.c.b16 %v2585, %v2584
      %v2622 = vpack.c.b16 %v2587, %v2586
      %v2623 = vpack.c.b16 %v2589, %v2588
      %v2624 = vpack.c.b16 %v2591, %v2590
      %v2625 = vpack.c.b16 %v2593, %v2592
      %2658 = vmatpush.bf16.msra.mxu0 %v2601
      %2659 = vmatpush.bf16.msra.mxu0 %v2600
      %2660 = vmatpush.bf16.msra.mxu0 %v2599
      %2661 = vmatpush.bf16.msra.mxu0 %v2598
      %2662 = vmatpush.bf16.msra.mxu0 %v2597
      %2663 = vmatpush.bf16.msra.mxu0 %v2596
      %2664 = vmatpush.bf16.msra.mxu0 %v2595
      %2665 = vmatpush.bf16.msra.mxu0 %v2594
      %2666 = vmatmul.bf16.gmra.mxu0 %v2206
      %v2667 = vpop.f32.mrf.mxu0
      %v2668 = vadd.f32 0.0, %v2667
      %v2669 = vpop.f32.mrf.mxu0
      %v2670 = vadd.f32 0.0, %v2669
      %2671 = vmatmul.bf16.gmra.mxu0 %v2266
      %v2672 = vpop.f32.mrf.mxu0
      %v2673 = vadd.f32 0.0, %v2672
      %v2674 = vpop.f32.mrf.mxu0
      %v2675 = vadd.f32 0.0, %v2674
      %2676 = vmatmul.bf16.gmra.mxu0 %v2302
      %v2677 = vpop.f32.mrf.mxu0
      %v2678 = vadd.f32 0.0, %v2677
      %v2679 = vpop.f32.mrf.mxu0
      %v2680 = vadd.f32 0.0, %v2679
      %2681 = vmatmul.bf16.gmra.mxu0 %v2338
      %v2682 = vpop.f32.mrf.mxu0
      %v2683 = vadd.f32 0.0, %v2682
      %v2684 = vpop.f32.mrf.mxu0
      %v2685 = vadd.f32 0.0, %v2684
      %2686 = vmatmul.bf16.gmra.mxu0 %v2374
      %v2687 = vpop.f32.mrf.mxu0
      %v2688 = vadd.f32 0.0, %v2687
      %v2689 = vpop.f32.mrf.mxu0
      %v2690 = vadd.f32 0.0, %v2689
      %2691 = vmatmul.bf16.gmra.mxu0 %v2410
      %v2692 = vpop.f32.mrf.mxu0
      %v2693 = vadd.f32 0.0, %v2692
      %v2694 = vpop.f32.mrf.mxu0
      %v2695 = vadd.f32 0.0, %v2694
      %2696 = vmatmul.bf16.gmra.mxu0 %v2409
      %v2697 = vpop.f32.mrf.mxu0
      %v2698 = vadd.f32 0.0, %v2697
      %v2699 = vpop.f32.mrf.mxu0
      %2700 = vdwg.mxu0
      %2701 = vmatpush.bf16.msra.mxu0 %v2609
      %2702 = vmatpush.bf16.msra.mxu0 %v2608
      %2703 = vmatpush.bf16.msra.mxu0 %v2607
      %2704 = vmatpush.bf16.msra.mxu0 %v2606
      %2705 = vmatpush.bf16.msra.mxu0 %v2605
      %2706 = vmatpush.bf16.msra.mxu0 %v2604
      %2707 = vmatpush.bf16.msra.mxu0 %v2603
      %2708 = vmatpush.bf16.msra.mxu0 %v2602
      %2709 = vmatmul.bf16.gmra.mxu0 %v2223
      %v2710 = vpop.f32.mrf.mxu0
      %v2711 = vadd.f32 %v2668, %v2710
      %v2712 = vpop.f32.mrf.mxu0
      %v2713 = vadd.f32 %v2670, %v2712
      %2714 = vmatmul.bf16.gmra.mxu0 %v2275
      %v2715 = vpop.f32.mrf.mxu0
      %v2716 = vadd.f32 %v2673, %v2715
      %v2717 = vpop.f32.mrf.mxu0
      %v2718 = vadd.f32 %v2675, %v2717
      %2719 = vmatmul.bf16.gmra.mxu0 %v2311
      %v2720 = vpop.f32.mrf.mxu0
      %v2721 = vadd.f32 %v2678, %v2720
      %v2722 = vpop.f32.mrf.mxu0
      %v2723 = vadd.f32 %v2680, %v2722
      %2724 = vmatmul.bf16.gmra.mxu0 %v2347
      %v2725 = vpop.f32.mrf.mxu0
      %v2726 = vadd.f32 %v2683, %v2725
      %v2727 = vpop.f32.mrf.mxu0
      %v2728 = vadd.f32 %v2685, %v2727
      %2729 = vmatmul.bf16.gmra.mxu0 %v2383
      %v2730 = vpop.f32.mrf.mxu0
      %v2731 = vadd.f32 %v2688, %v2730
      %v2732 = vpop.f32.mrf.mxu0
      %v2733 = vadd.f32 %v2690, %v2732
      %2734 = vmatmul.bf16.gmra.mxu0 %v2419
      %v2735 = vpop.f32.mrf.mxu0
      %v2736 = vadd.f32 %v2693, %v2735
      %v2737 = vpop.f32.mrf.mxu0
      %v2738 = vadd.f32 %v2695, %v2737
      %2739 = vmatmul.bf16.gmra.mxu0 %v2418
      %v2740 = vpop.f32.mrf.mxu0
      %v2741 = vadd.f32 %v2698, %v2740
      %v2742 = vpop.f32.mrf.mxu0
      %2743 = vdwg.mxu0
      %2744 = vmatpush.bf16.msra.mxu0 %v2617
      %2745 = vmatpush.bf16.msra.mxu0 %v2616
      %2746 = vmatpush.bf16.msra.mxu0 %v2615
      %2747 = vmatpush.bf16.msra.mxu0 %v2614
      %2748 = vmatpush.bf16.msra.mxu0 %v2613
      %2749 = vmatpush.bf16.msra.mxu0 %v2612
      %2750 = vmatpush.bf16.msra.mxu0 %v2611
      %2751 = vmatpush.bf16.msra.mxu0 %v2610
      %2752 = vmatmul.bf16.gmra.mxu0 %v2240
      %v2753 = vpop.f32.mrf.mxu0
      %v2754 = vadd.f32 %v2711, %v2753
      %v2755 = vpop.f32.mrf.mxu0
      %v2756 = vadd.f32 %v2713, %v2755
      %2757 = vmatmul.bf16.gmra.mxu0 %v2284
      %v2758 = vpop.f32.mrf.mxu0
      %v2759 = vadd.f32 %v2716, %v2758
      %v2760 = vpop.f32.mrf.mxu0
      %v2761 = vadd.f32 %v2718, %v2760
      %2762 = vmatmul.bf16.gmra.mxu0 %v2320
      %v2763 = vpop.f32.mrf.mxu0
      %v2764 = vadd.f32 %v2721, %v2763
      %v2765 = vpop.f32.mrf.mxu0
      %v2766 = vadd.f32 %v2723, %v2765
      %2767 = vmatmul.bf16.gmra.mxu0 %v2356
      %v2768 = vpop.f32.mrf.mxu0
      %v2769 = vadd.f32 %v2726, %v2768
      %v2770 = vpop.f32.mrf.mxu0
      %v2771 = vadd.f32 %v2728, %v2770
      %2772 = vmatmul.bf16.gmra.mxu0 %v2392
      %v2773 = vpop.f32.mrf.mxu0
      %v2774 = vadd.f32 %v2731, %v2773
      %v2775 = vpop.f32.mrf.mxu0
      %v2776 = vadd.f32 %v2733, %v2775
      %2777 = vmatmul.bf16.gmra.mxu0 %v2428
      %v2778 = vpop.f32.mrf.mxu0
      %v2779 = vadd.f32 %v2736, %v2778
      %v2780 = vpop.f32.mrf.mxu0
      %v2781 = vadd.f32 %v2738, %v2780
      %2782 = vmatmul.bf16.gmra.mxu0 %v2427
      %v2783 = vpop.f32.mrf.mxu0
      %v2784 = vadd.f32 %v2741, %v2783
      %v2785 = vpop.f32.mrf.mxu0
      %2786 = vdwg.mxu0
      %2787 = vmatpush.bf16.msra.mxu0 %v2625
      %2788 = vmatpush.bf16.msra.mxu0 %v2624
      %2789 = vmatpush.bf16.msra.mxu0 %v2623
      %2790 = vmatpush.bf16.msra.mxu0 %v2622
      %2791 = vmatpush.bf16.msra.mxu0 %v2621
      %2792 = vmatpush.bf16.msra.mxu0 %v2620
      %2793 = vmatpush.bf16.msra.mxu0 %v2619
      %2794 = vmatpush.bf16.msra.mxu0 %v2618
      %2795 = vmatmul.bf16.gmra.mxu0 %v2257
      %v2796 = vpop.f32.mrf.mxu0
      %v2797 = vadd.f32 %v2754, %v2796
      %v2798 = vpop.f32.mrf.mxu0
      %v2799 = vadd.f32 %v2756, %v2798
      %2800 = vmatmul.bf16.gmra.mxu0 %v2293
      %v2801 = vpop.f32.mrf.mxu0
      %v2802 = vadd.f32 %v2759, %v2801
      %v2803 = vpop.f32.mrf.mxu0
      %v2804 = vadd.f32 %v2761, %v2803
      %2805 = vmatmul.bf16.gmra.mxu0 %v2329
      %v2806 = vpop.f32.mrf.mxu0
      %v2807 = vadd.f32 %v2764, %v2806
      %v2808 = vpop.f32.mrf.mxu0
      %v2809 = vadd.f32 %v2766, %v2808
      %2810 = vmatmul.bf16.gmra.mxu0 %v2365
      %v2811 = vpop.f32.mrf.mxu0
      %v2812 = vadd.f32 %v2769, %v2811
      %v2813 = vpop.f32.mrf.mxu0
      %v2814 = vadd.f32 %v2771, %v2813
      %2815 = vmatmul.bf16.gmra.mxu0 %v2401
      %v2816 = vpop.f32.mrf.mxu0
      %v2817 = vadd.f32 %v2774, %v2816
      %v2818 = vpop.f32.mrf.mxu0
      %v2819 = vadd.f32 %v2776, %v2818
      %2820 = vmatmul.bf16.gmra.mxu0 %v2437
      %v2821 = vpop.f32.mrf.mxu0
      %v2822 = vadd.f32 %v2779, %v2821
      %v2823 = vpop.f32.mrf.mxu0
      %v2824 = vadd.f32 %v2781, %v2823
      %2825 = vmatmul.bf16.gmra.mxu0 %v2436
      %v2826 = vpop.f32.mrf.mxu0
      %v2827 = vadd.f32 %v2784, %v2826
      %v2828 = vpop.f32.mrf.mxu0
      %2829 = vdwg.mxu0
      %v2830 = vadd.f32 %v2099, %v2797
      %v2831 = vadd.f32 %v2100, %v2799
      %v2832 = vadd.f32 %v2101, %v2802
      %v2833 = vadd.f32 %v2102, %v2804
      %v2834 = vadd.f32 %v2103, %v2807
      %v2835 = vadd.f32 %v2104, %v2809
      %v2836 = vadd.f32 %v2105, %v2812
      %v2837 = vadd.f32 %v2106, %v2814
      %v2838 = vadd.f32 %v2107, %v2817
      %v2839 = vadd.f32 %v2108, %v2819
      %v2840 = vadd.f32 %v2109, %v2822
      %v2841 = vadd.f32 %v2110, %v2824
      %v2842 = vadd.f32 %v2111, %v2827
      %v2843 = vld [vmem:[%s2] sm:$0x1]
      %v2845 = vperm.slane %v2843, 0
      %v2847 = vadd.f32 %v2830, %v2845
      %v2848 = vadd.f32 %v2831, %v2845
      %v2849 = vadd.f32 %v2832, %v2845
      %v2850 = vadd.f32 %v2833, %v2845
      %v2851 = vadd.f32 %v2834, %v2845
      %v2852 = vadd.f32 %v2835, %v2845
      %v2853 = vadd.f32 %v2836, %v2845
      %v2854 = vadd.f32 %v2837, %v2845
      %v2855 = vadd.f32 %v2838, %v2845
      %v2856 = vadd.f32 %v2839, %v2845
      %v2857 = vadd.f32 %v2840, %v2845
      %v2858 = vadd.f32 %v2841, %v2845
      %v2859 = vadd.f32 %v2842, %v2845
      %v2860 = vmax.f32 %v2847, 0.0
      %v2861 = vmax.f32 %v2848, 0.0
      %v2862 = vmax.f32 %v2849, 0.0
      %v2863 = vmax.f32 %v2850, 0.0
      %v2864 = vmax.f32 %v2851, 0.0
      %v2865 = vmax.f32 %v2852, 0.0
      %v2866 = vmax.f32 %v2853, 0.0
      %v2867 = vmax.f32 %v2854, 0.0
      %v2868 = vmax.f32 %v2855, 0.0
      %v2869 = vmax.f32 %v2856, 0.0
      %v2870 = vmax.f32 %v2857, 0.0
      %v2871 = vmax.f32 %v2858, 0.0
      %v2872 = vmax.f32 %v2859, 0.0
      %v2873 = vpack.c.bf16 %v2860, %v2860
      %v2874 = vpack.c.bf16 %v2861, %v2861
      %v2875 = vpack.c.bf16 %v2862, %v2862
      %v2876 = vpack.c.bf16 %v2863, %v2863
      %v2877 = vpack.c.bf16 %v2864, %v2864
      %v2878 = vpack.c.bf16 %v2865, %v2865
      %v2879 = vpack.c.bf16 %v2866, %v2866
      %v2880 = vpack.c.bf16 %v2867, %v2867
      %v2881 = vpack.c.bf16 %v2868, %v2868
      %v2882 = vpack.c.bf16 %v2869, %v2869
      %v2883 = vpack.c.bf16 %v2870, %v2870
      %v2884 = vpack.c.bf16 %v2871, %v2871
      %v2885 = vpack.c.bf16 %v2872, %v2872
      %2886 = vst [vmem:[%s170] sm:$0xf] %v2873
      %2887 = vst [vmem:[%s170 + $0x4] sm:$0xf] %v2874
      %2888 = vst [vmem:[%s170 + $0x8] sm:$0xf] %v2875
      %2889 = vst [vmem:[%s170 + $0xc] sm:$0xf] %v2876
      %2890 = vst [vmem:[%s170 + $0x10] sm:$0xf] %v2877
      %2891 = vst [vmem:[%s170 + $0x14] sm:$0xf] %v2878
      %2892 = vst [vmem:[%s170 + $0x18] sm:$0xf] %v2879
      %2893 = vst [vmem:[%s170 + $0x1c] sm:$0xf] %v2880
      %2894 = vst [vmem:[%s170 + $0x20] sm:$0xf] %v2881
      %2895 = vst [vmem:[%s170 + $0x24] sm:$0xf] %v2882
      %2896 = vst [vmem:[%s170 + $0x28] sm:$0xf] %v2883
      %2897 = vst [vmem:[%s170 + $0x2c] sm:$0xf] %v2884
      %2898 = vst [vmem:[%s170 + $0x30] sm:$0xf] %v2885
      %p2899 = scmp.lt.s32.totalorder %s14, 1
      %s2900 = scalar_select %p2899, %s14, 1
      %s2901 = smul.addr %s2900, 13
      %s2902 = smul.addr %s2901, 4
      %s2903 = scalar_lea.vmem %s3, %s2902
      // Predicated region
      $region33: #{dqn_forward.5} parent=31 // pred_check
        %p2904 = pneg %p100
      $region34: #{dqn_forward.5} parent=31 // pred_check_branch
        %2906 = sbr.rel (%p2904) target = $region36
      $region35: #{dqn_forward.5} parent=31 // pred_region
        _
      $region36: #{dqn_forward.5} parent=31 // pred_fallthru
        _
    $region32: #{dqn_forward.5} parent=5 // pred_fallthru
      _
    %p2907 = scmp.le.s32.totalorder 2, %s9
    // Predicated region
    $region37: #{dqn_forward.5} parent=5 // pred_check
      %p2908 = pneg %p2907
    $region38: #{dqn_forward.5} parent=5 // pred_check_branch
      %2910 = sbr.rel (%p2908) target = $region40
    $region39: #{dqn_forward.5} parent=5 // pred_region
      %s2911 = ssub.s32 %s9, 2
      // Predicated region
      $region41: #{dqn_forward.5} parent=39 // pred_check
        %p2912 = pneg %p106
      $region42: #{dqn_forward.5} parent=39 // pred_check_branch
        %2914 = sbr.rel (%p2912) target = $region44
      $region43: #{dqn_forward.5} parent=39 // pred_region
        %p2915 = scmp.lt.s32.totalorder %s15, 1
        %s2916 = scalar_select %p2915, %s15, 1
        %s2917 = smul.addr %s2916, 13
        %s2918 = smul.addr %s2917, 4
        %s2919 = scalar_lea.vmem %s3, %s2918
      $region44: #{dqn_forward.5} parent=39 // pred_fallthru
        _
    $region40: #{dqn_forward.5} parent=5 // pred_fallthru
      _
  $region6: #{dqn_forward.5} parent=0 // loop_footer
    %s13 = sadd.s32 1, %s9
  $region7: #{dqn_forward.5} parent=0 // loop_footer_branch
    %8 = sbr.rel target = $region3
  $region8: #{dqn_forward.5} parent=0 // loop_exit
    _

// kernel: dqn_forward.6
$region0: #{dqn_forward.6}
  #allocation0 [shape = 'u32[]', space=smem, size = 0x4, offset = 0x4, fixed_abs, tag = 'smem constant byte address 0x4 - core index']
  #allocation1 [shape = 'u32[72,128]{1,0:T(1,128)}', space=vmem, size = 0x9000, scoped, tag = 'internal scratch']
  %s0 = inlined_call_operand.vmem [shape: bf16[2,108,128], index: 0, kind: input, shape index: {}]
  %s1 = inlined_call_operand.vmem [shape: bf16[9,128,128], index: 1, kind: input, shape index: {}]
  %s2 = inlined_call_operand.vmem [shape: f32[1,128], index: 2, kind: input, shape index: {}]
  %s3 = inlined_call_operand.vmem [shape: bf16[2,88,128], index: 3, kind: output, shape index: {}]
  %s4 = sld [smem:[#allocation0]]
  $region45: #{dqn_forward.6} parent=0
    _
  %s6 = ssub.s32 1, %s4
  %s7 = scalar_select 0, %s6, %s4
  loop: start=0, step=1, limit=4
  $region2: #{dqn_forward.6} parent=0 // loop_pre_header
    _
  $region3: #{dqn_forward.6} parent=0 // loop_header
    %s9 = sphi 0, %s13
    %p10 = scmp.ge.s32.totalorder %s9, 4
    %s19 = sphi 0, %s21
    %s22 = sphi 0, %s19
    %s23 = sphi 0, %s22
    %s39 = sphi 0, %s23
    %s43 = sphi 0, %s43
    %s45 = sphi 0, %s43
    %s46 = sphi 0, %s45
    %s60 = sphi 0, %s46
    %s64 = sphi 0, %s64
    %s66 = sphi 0, %s64
    %s67 = sphi 0, %s66
    %s81 = sphi 0, %s67
    %s87 = sphi 0, %s89
    %s90 = sphi 0, %s87
    %s91 = sphi 0, %s90
    %s107 = sphi 0, %s91
  $region4: #{dqn_forward.6} parent=0 // loop_header_branch
    %12 = sbr.rel (%p10) target = $region8
  $region5: #{dqn_forward.6} parent=0 // loop_body
    %s14 = ssub.s32 %s9, 1
    %s15 = ssub.s32 %s9, 2
    %s16 = sadd.s32 %s9, 1
    %s17 = ssub.s32 %s9, %s16
    %p18 = scmp.eq.s32.totalorder %s17, 0
    %s20 = sadd.s32 %s19, 1
    %s21 = scalar_select %p18, %s19, %s20
    %p24 = pneg %p18
    %p25 = scmp.eq.s32.totalorder %s9, 1
    %p26 = por %p24, %p25
    %p27 = scmp.ne.s32.totalorder %s19, %s22
    %p28 = scmp.eq.s32.totalorder %s9, 0
    %p29 = por %p27, %p28
    %p30 = scmp.ne.s32.totalorder %s19, %s22
    %p31 = scmp.eq.s32.totalorder %s14, 1
    %p32 = por %p30, %p31
    %p33 = scmp.ne.s32.totalorder %s22, %s23
    %p34 = scmp.eq.s32.totalorder %s14, 0
    %p35 = por %p33, %p34
    %p36 = scmp.ne.s32.totalorder %s22, %s23
    %p37 = scmp.eq.s32.totalorder %s15, 1
    %p38 = por %p36, %p37
    %p40 = scmp.ne.s32.totalorder %s23, %s39
    %p41 = scmp.eq.s32.totalorder %s15, 0
    %p42 = por %p40, %p41
    %s44 = sadd.s32 %s43, 1
    %p47 = scmp.eq.s32.totalorder %s9, 1
    %p48 = scmp.ne.s32.totalorder %s43, %s45
    %p49 = scmp.eq.s32.totalorder %s9, 0
    %p50 = por %p48, %p49
    %p51 = scmp.ne.s32.totalorder %s43, %s45
    %p52 = scmp.eq.s32.totalorder %s14, 1
    %p53 = por %p51, %p52
    %p54 = scmp.ne.s32.totalorder %s45, %s46
    %p55 = scmp.eq.s32.totalorder %s14, 0
    %p56 = por %p54, %p55
    %p57 = scmp.ne.s32.totalorder %s45, %s46
    %p58 = scmp.eq.s32.totalorder %s15, 1
    %p59 = por %p57, %p58
    %p61 = scmp.ne.s32.totalorder %s46, %s60
    %p62 = scmp.eq.s32.totalorder %s15, 0
    %p63 = por %p61, %p62
    %s65 = sadd.s32 %s64, 1
    %p68 = scmp.eq.s32.totalorder %s9, 1
    %p69 = scmp.ne.s32.totalorder %s64, %s66
    %p70 = scmp.eq.s32.totalorder %s9, 0
    %p71 = por %p69, %p70
    %p72 = scmp.ne.s32.totalorder %s64, %s66
    %p73 = scmp.eq.s32.totalorder %s14, 1
    %p74 = por %p72, %p73
    %p75 = scmp.ne.s32.totalorder %s66, %s67
    %p76 = scmp.eq.s32.totalorder %s14, 0
    %p77 = por %p75, %p76
    %p78 = scmp.ne.s32.totalorder %s66, %s67
    %p79 = scmp.eq.s32.totalorder %s15, 1
    %p80 = por %p78, %p79
    %p82 = scmp.ne.s32.totalorder %s67, %s81
    %p83 = scmp.eq.s32.totalorder %s15, 0
    %p84 = por %p82, %p83
    %s85 = ssub.s32 %s9, %s16
    %p86 = scmp.eq.s32.totalorder %s85, 0
    %s88 = sadd.s32 %s87, 1
    %s89 = scalar_select %p86, %s87, %s88
    %p92 = pneg %p86
    %p93 = scmp.eq.s32.totalorder %s9, 1
    %p94 = por %p92, %p93
    %p95 = scmp.ne.s32.totalorder %s87, %s90
    %p96 = scmp.eq.s32.totalorder %s9, 0
    %p97 = por %p95, %p96
    %p98 = scmp.ne.s32.totalorder %s87, %s90
    %p99 = scmp.eq.s32.totalorder %s14, 1
    %p100 = por %p98, %p99
    %p101 = scmp.ne.s32.totalorder %s90, %s91
    %p102 = scmp.eq.s32.totalorder %s14, 0
    %p103 = por %p101, %p102
    %p104 = scmp.ne.s32.totalorder %s90, %s91
    %p105 = scmp.eq.s32.totalorder %s15, 1
    %p106 = por %p104, %p105
    %p108 = scmp.ne.s32.totalorder %s91, %s107
    %p109 = scmp.eq.s32.totalorder %s15, 0
    %p110 = por %p108, %p109
    %p111 = scmp.le.s32.totalorder 1, %s9
    %p112 = scmp.lt.s32.totalorder %s9, 3
    %p113 = pnand %p111, %p112
    %p114 = pneg %p113
    // Predicated region
    $region9: #{dqn_forward.6} parent=5 // pred_check
      _
    $region10: #{dqn_forward.6} parent=5 // pred_check_branch
      %116 = sbr.rel (%p113) target = $region12
    $region11: #{dqn_forward.6} parent=5 // pred_region
      %s117 = ssub.s32 %s9, 1
      // Predicated region
      $region13: #{dqn_forward.6} parent=11 // pred_check
        %p118 = pneg %p56
      $region14: #{dqn_forward.6} parent=11 // pred_check_branch
        %120 = sbr.rel (%p118) target = $region16
      $region15: #{dqn_forward.6} parent=11 // pred_region
        _
      $region16: #{dqn_forward.6} parent=11 // pred_fallthru
        _
      // Predicated region
      $region17: #{dqn_forward.6} parent=11 // pred_check
        %p121 = pneg %p77
      $region18: #{dqn_forward.6} parent=11 // pred_check_branch
        %123 = sbr.rel (%p121) target = $region20
      $region19: #{dqn_forward.6} parent=11 // pred_region
        _
      $region20: #{dqn_forward.6} parent=11 // pred_fallthru
        _
    $region12: #{dqn_forward.6} parent=5 // pred_fallthru
      _
    %p124 = scmp.lt.s32.totalorder %s9, 2
    // Predicated region
    $region21: #{dqn_forward.6} parent=5 // pred_check
      %p125 = pneg %p124
    $region22: #{dqn_forward.6} parent=5 // pred_check_branch
      %127 = sbr.rel (%p125) target = $region24
    $region23: #{dqn_forward.6} parent=5 // pred_region
      // Predicated region
      $region25: #{dqn_forward.6} parent=23 // pred_check
        %p128 = pneg %p29
      $region26: #{dqn_forward.6} parent=23 // pred_check_branch
        %130 = sbr.rel (%p128) target = $region28
      $region27: #{dqn_forward.6} parent=23 // pred_region
        %p131 = scmp.lt.s32.totalorder %s9, 1
        %s132 = scalar_select %p131, %s9, 1
        %s133 = smul.addr %s132, 14
        %s134 = smul.addr %s133, 4
        %s135 = scalar_lea.vmem %s0, %s134
      $region28: #{dqn_forward.6} parent=23 // pred_fallthru
        _
    $region24: #{dqn_forward.6} parent=5 // pred_fallthru
      _
    %p136 = scmp.le.s32.totalorder 1, %s9
    %p137 = scmp.lt.s32.totalorder %s9, 3
    %p138 = pnand %p136, %p137
    %p139 = pneg %p138
    // Predicated region
    $region29: #{dqn_forward.6} parent=5 // pred_check
      _
    $region30: #{dqn_forward.6} parent=5 // pred_check_branch
      %141 = sbr.rel (%p138) target = $region32
    $region31: #{dqn_forward.6} parent=5 // pred_region
      %s142 = ssub.s32 %s9, 1
      %p143 = scmp.lt.s32.totalorder %s14, 1
      %s144 = scalar_select %p143, %s14, 1
      %s145 = smul.addr %s144, 14
      %s146 = smul.addr %s145, 4
      %s147 = scalar_lea.vmem %s0, %s146
      %p148 = pneg %p35
      %p149 = pneg %p32
      %p150 = pneg %p56
      %p151 = pneg %p53
      %p152 = pneg %p77
      %p153 = pneg %p74
      %p154 = pneg %p103
      %p155 = pneg %p100
      %p156 = scmp.lt.s32.totalorder %s14, 1
      %s157 = scalar_select %p156, %s14, 1
      %s158 = smul.addr %s157, 11
      %s159 = smul.addr %s158, 4
      %s160 = scalar_lea.vmem %s3, %s159
      %p161 = scmp.lt.s32.totalorder %s14, 1
      %s162 = scalar_select %p161, %s14, 1
      %s163 = smul.addr %s162, 14
      %s164 = smul.addr %s163, 4
      %s165 = scalar_lea.vmem %s0, %s164
      %p166 = scmp.lt.s32.totalorder %s14, 1
      %s167 = scalar_select %p166, %s14, 1
      %s168 = smul.addr %s167, 11
      %s169 = smul.addr %s168, 4
      %s170 = scalar_lea.vmem %s3, %s169
      %v171 = vld [vmem:[%s165] sm:$0xf]
      %v172 = vld [vmem:[%s165 + $0x4] sm:$0xf]
      %v173 = vld [vmem:[%s165 + $0x8] sm:$0xf]
      %v174 = vld [vmem:[%s165 + $0xc] sm:$0xf]
      %v175 = vld [vmem:[%s165 + $0x10] sm:$0xf]
      %v176 = vld [vmem:[%s165 + $0x14] sm:$0xf]
      %v177 = vld [vmem:[%s165 + $0x18] sm:$0xf]
      %v178 = vld [vmem:[%s165 + $0x1c] sm:$0xf]
      %v179 = vld [vmem:[%s165 + $0x20] sm:$0xf]
      %v180 = vld [vmem:[%s165 + $0x24] sm:$0xf]
      %v181 = vld [vmem:[%s165 + $0x28] sm:$0xf]
      %v182 = vld [vmem:[%s1] sm:$0xf]
      %v183 = vld [vmem:[%s1 + $0x4] sm:$0xf]
      %v184 = vld [vmem:[%s1 + $0x8] sm:$0xf]
      %v185 = vld [vmem:[%s1 + $0xc] sm:$0xf]
      %v186 = vld [vmem:[%s1 + $0x10] sm:$0xf]
      %v187 = vld [vmem:[%s1 + $0x14] sm:$0xf]
      %v188 = vld [vmem:[%s1 + $0x18] sm:$0xf]
      %v189 = vld [vmem:[%s1 + $0x1c] sm:$0xf]
      %v190 = vld [vmem:[%s1 + $0x20] sm:$0xf]
      %v191 = vld [vmem:[%s1 + $0x24] sm:$0xf]
      %v192 = vld [vmem:[%s1 + $0x28] sm:$0xf]
      %v193 = vld [vmem:[%s1 + $0x2c] sm:$0xf]
      %v194 = vld [vmem:[%s1 + $0x30] sm:$0xf]
      %v195 = vld [vmem:[%s1 + $0x34] sm:$0xf]
      %v196 = vld [vmem:[%s1 + $0x38] sm:$0xf]
      %v197 = vld [vmem:[%s1 + $0x3c] sm:$0xf]
      %v198 = vld [vmem:[%s165 + $0x2c] sm:$0x1]
      %s199 = scalar_lea.vmem %s1, 64
      %v200 = vld [vmem:[%s199] sm:$0xf]
      %v201 = vld [vmem:[%s199 + $0x4] sm:$0xf]
      %v202 = vld [vmem:[%s199 + $0x8] sm:$0xf]
      %v203 = vld [vmem:[%s199 + $0xc] sm:$0xf]
      %v204 = vld [vmem:[%s199 + $0x10] sm:$0xf]
      %v205 = vld [vmem:[%s199 + $0x14] sm:$0xf]
      %v206 = vld [vmem:[%s199 + $0x18] sm:$0xf]
      %v207 = vld [vmem:[%s199 + $0x1c] sm:$0xf]
      %v208 = vld [vmem:[%s199 + $0x20] sm:$0xf]
      %v209 = vld [vmem:[%s199 + $0x24] sm:$0xf]
      %v210 = vld [vmem:[%s199 + $0x28] sm:$0xf]
      %v211 = vld [vmem:[%s199 + $0x2c] sm:$0xf]
      %v212 = vld [vmem:[%s199 + $0x30] sm:$0xf]
      %v213 = vld [vmem:[%s199 + $0x34] sm:$0xf]
      %v214 = vld [vmem:[%s199 + $0x38] sm:$0xf]
      %v215 = vld [vmem:[%s199 + $0x3c] sm:$0xf]
      %v228 = vunpack.c.l.b16 %v171
      %v229 = vunpack.c.l.b16 %v172
      %v230 = vunpack.c.l.b16 %v173
      %v231 = vunpack.c.l.b16 %v174
      %v232 = vunpack.c.l.b16 %v175
      %v233 = vunpack.c.l.b16 %v176
      %v234 = vunpack.c.l.b16 %v177
      %v235 = vunpack.c.l.b16 %v178
      %v236 = vunpack.c.l.b16 %v179
      %v237 = vunpack.c.l.b16 %v180
      %v238 = vunpack.c.l.b16 %v181
      %v239 = vunpack.c.l.b16 %v198
      %v240 = vpack.c.b16 %v229, %v228
      %v241 = vpack.c.b16 %v231, %v230
      %v242 = vpack.c.b16 %v233, %v232
      %v243 = vpack.c.b16 %v235, %v234
      %v244 = vpack.c.b16 %v237, %v236
      %v245 = vpack.c.b16 %v239, %v238
      %vm246 = vsmask.f32 7424
      %v248 = vshrl.u32 %v240, 16
      %v250 = vshll.u32 %v240, 16
      %v252 = vrot.slane %v250, 1
      %v253 = vor.u32 %v248, %v252
      %v255 = vshll.u32 %v241, 16
      %v257 = vrot.slane %v255, 1
      %v258 = vsel %vm246, %v253, %v257
      %v259 = vshrl.u32 %v241, 16
      %v261 = vor.u32 %v259, %v257
      %v263 = vshll.u32 %v242, 16
      %v265 = vrot.slane %v263, 1
      %v266 = vsel %vm246, %v261, %v265
      %v267 = vshrl.u32 %v242, 16
      %v269 = vor.u32 %v267, %v265
      %v271 = vshll.u32 %v243, 16
      %v273 = vrot.slane %v271, 1
      %v274 = vsel %vm246, %v269, %v273
      %v275 = vshrl.u32 %v243, 16
      %v277 = vor.u32 %v275, %v273
      %v279 = vshll.u32 %v244, 16
      %v281 = vrot.slane %v279, 1
      %v282 = vsel %vm246, %v277, %v281
      %v283 = vshrl.u32 %v244, 16
      %v285 = vor.u32 %v283, %v281
      %v287 = vshll.u32 %v245, 16
      %v289 = vrot.slane %v287, 1
      %v290 = vsel %vm246, %v285, %v289
      %v291 = vshrl.u32 %v245, 16
      %v293 = vor.u32 %v291, %v289
      %v316 = vunpack.c.l.b16 %v200
      %v317 = vunpack.c.l.b16 %v201
      %v318 = vunpack.c.l.b16 %v202
      %v319 = vunpack.c.l.b16 %v203
      %v320 = vunpack.c.l.b16 %v204
      %v321 = vunpack.c.l.b16 %v205
      %v322 = vunpack.c.l.b16 %v206
      %v323 = vunpack.c.l.b16 %v207
      %v324 = vunpack.c.l.b16 %v208
      %v325 = vunpack.c.l.b16 %v209
      %v326 = vunpack.c.l.b16 %v210
      %v327 = vunpack.c.l.b16 %v211
      %v328 = vunpack.c.l.b16 %v212
      %v329 = vunpack.c.l.b16 %v213
      %v330 = vunpack.c.l.b16 %v214
      %v331 = vunpack.c.l.b16 %v215
      %v332 = vpack.c.b16 %v317, %v316
      %v333 = vpack.c.b16 %v319, %v318
      %v334 = vpack.c.b16 %v321, %v320
      %v335 = vpack.c.b16 %v323, %v322
      %v336 = vpack.c.b16 %v325, %v324
      %v337 = vpack.c.b16 %v327, %v326
      %v338 = vpack.c.b16 %v329, %v328
      %v339 = vpack.c.b16 %v331, %v330
      %348 = vmatpush.bf16.msra.mxu0 %v339
      %349 = vmatpush.bf16.msra.mxu0 %v338
      %350 = vmatpush.bf16.msra.mxu0 %v337
      %351 = vmatpush.bf16.msra.mxu0 %v336
      %352 = vmatpush.bf16.msra.mxu0 %v335
      %353 = vmatpush.bf16.msra.mxu0 %v334
      %354 = vmatpush.bf16.msra.mxu0 %v333
      %355 = vmatpush.bf16.msra.mxu0 %v332
      %356 = vmatmul.bf16.gmra.mxu0 %v258
      %v357 = vpop.f32.mrf.mxu0
      %v358 = vadd.f32 0.0, %v357
      %v359 = vpop.f32.mrf.mxu0
      %v360 = vadd.f32 0.0, %v359
      %361 = vmatmul.bf16.gmra.mxu0 %v266
      %v362 = vpop.f32.mrf.mxu0
      %v363 = vadd.f32 0.0, %v362
      %v364 = vpop.f32.mrf.mxu0
      %v365 = vadd.f32 0.0, %v364
      %366 = vmatmul.bf16.gmra.mxu0 %v274
      %v367 = vpop.f32.mrf.mxu0
      %v368 = vadd.f32 0.0, %v367
      %v369 = vpop.f32.mrf.mxu0
      %v370 = vadd.f32 0.0, %v369
      %371 = vmatmul.bf16.gmra.mxu0 %v282
      %v372 = vpop.f32.mrf.mxu0
      %v373 = vadd.f32 0.0, %v372
      %v374 = vpop.f32.mrf.mxu0
      %v375 = vadd.f32 0.0, %v374
      %376 = vmatmul.bf16.gmra.mxu0 %v290
      %v377 = vpop.f32.mrf.mxu0
      %v378 = vadd.f32 0.0, %v377
      %v379 = vpop.f32.mrf.mxu0
      %v380 = vadd.f32 0.0, %v379
      %381 = vmatmul.bf16.gmra.mxu0 %v293
      %v382 = vpop.f32.mrf.mxu0
      %v383 = vadd.f32 0.0, %v382
      %v384 = vpop.f32.mrf.mxu0
      %385 = vdwg.mxu0
      %v386 = vpack.c.b16 %v238, %v238
      %v409 = vunpack.c.l.b16 %v182
      %v410 = vunpack.c.l.b16 %v183
      %v411 = vunpack.c.l.b16 %v184
      %v412 = vunpack.c.l.b16 %v185
      %v413 = vunpack.c.l.b16 %v186
      %v414 = vunpack.c.l.b16 %v187
      %v415 = vunpack.c.l.b16 %v188
      %v416 = vunpack.c.l.b16 %v189
      %v417 = vunpack.c.l.b16 %v190
      %v418 = vunpack.c.l.b16 %v191
      %v419 = vunpack.c.l.b16 %v192
      %v420 = vunpack.c.l.b16 %v193
      %v421 = vunpack.c.l.b16 %v194
      %v422 = vunpack.c.l.b16 %v195
      %v423 = vunpack.c.l.b16 %v196
      %v424 = vunpack.c.l.b16 %v197
      %v425 = vpack.c.b16 %v410, %v409
      %v426 = vpack.c.b16 %v412, %v411
      %v427 = vpack.c.b16 %v414, %v413
      %v428 = vpack.c.b16 %v416, %v415
      %v429 = vpack.c.b16 %v418, %v417
      %v430 = vpack.c.b16 %v420, %v419
      %v431 = vpack.c.b16 %v422, %v421
      %v432 = vpack.c.b16 %v424, %v423
      %441 = vmatpush.bf16.msra.mxu0 %v432
      %442 = vmatpush.bf16.msra.mxu0 %v431
      %443 = vmatpush.bf16.msra.mxu0 %v430
      %444 = vmatpush.bf16.msra.mxu0 %v429
      %445 = vmatpush.bf16.msra.mxu0 %v428
      %446 = vmatpush.bf16.msra.mxu0 %v427
      %447 = vmatpush.bf16.msra.mxu0 %v426
      %448 = vmatpush.bf16.msra.mxu0 %v425
      %449 = vmatmul.bf16.gmra.mxu0 %v240
      %v450 = vpop.f32.mrf.mxu0
      %v451 = vadd.f32 %v358, %v450
      %v452 = vpop.f32.mrf.mxu0
      %v453 = vadd.f32 %v360, %v452
      %454 = vmatmul.bf16.gmra.mxu0 %v241
      %v455 = vpop.f32.mrf.mxu0
      %v456 = vadd.f32 %v363, %v455
      %v457 = vpop.f32.mrf.mxu0
      %v458 = vadd.f32 %v365, %v457
      %459 = vmatmul.bf16.gmra.mxu0 %v242
      %v460 = vpop.f32.mrf.mxu0
      %v461 = vadd.f32 %v368, %v460
      %v462 = vpop.f32.mrf.mxu0
      %v463 = vadd.f32 %v370, %v462
      %464 = vmatmul.bf16.gmra.mxu0 %v243
      %v465 = vpop.f32.mrf.mxu0
      %v466 = vadd.f32 %v373, %v465
      %v467 = vpop.f32.mrf.mxu0
      %v468 = vadd.f32 %v375, %v467
      %469 = vmatmul.bf16.gmra.mxu0 %v244
      %v470 = vpop.f32.mrf.mxu0
      %v471 = vadd.f32 %v378, %v470
      %v472 = vpop.f32.mrf.mxu0
      %v473 = vadd.f32 %v380, %v472
      %474 = vmatmul.bf16.gmra.mxu0 %v386
      %v475 = vpop.f32.mrf.mxu0
      %v476 = vadd.f32 %v383, %v475
      %v477 = vpop.f32.mrf.mxu0
      %478 = vdwg.mxu0
      %v479 = vld [vmem:[%s165] sm:$0xe]
      %s480 = scalar_lea.vmem %s1, 128
      %v481 = vld [vmem:[%s480] sm:$0xf]
      %v482 = vld [vmem:[%s480 + $0x4] sm:$0xf]
      %v483 = vld [vmem:[%s480 + $0x8] sm:$0xf]
      %v484 = vld [vmem:[%s480 + $0xc] sm:$0xf]
      %v485 = vld [vmem:[%s480 + $0x10] sm:$0xf]
      %v486 = vld [vmem:[%s480 + $0x14] sm:$0xf]
      %v487 = vld [vmem:[%s480 + $0x18] sm:$0xf]
      %v488 = vld [vmem:[%s480 + $0x1c] sm:$0xf]
      %v489 = vld [vmem:[%s480 + $0x20] sm:$0xf]
      %v490 = vld [vmem:[%s480 + $0x24] sm:$0xf]
      %v491 = vld [vmem:[%s480 + $0x28] sm:$0xf]
      %v492 = vld [vmem:[%s480 + $0x2c] sm:$0xf]
      %v493 = vld [vmem:[%s480 + $0x30] sm:$0xf]
      %v494 = vld [vmem:[%s480 + $0x34] sm:$0xf]
      %v495 = vld [vmem:[%s480 + $0x38] sm:$0xf]
      %v496 = vld [vmem:[%s480 + $0x3c] sm:$0xf]
      %v498 = vunpack.c.l.b16 %v479
      %v499 = vpack.c.b16 %v229, %v498
      %vm500 = vcmask 1046528
      %v501 = vrot.slane %v499, 1
      %v502 = vrot.slane %v241, 1
      %v503 = vsel %vm500, %v501, %v502
      %v504 = vrot.slane %v242, 1
      %v505 = vsel %vm500, %v502, %v504
      %v506 = vrot.slane %v243, 1
      %v507 = vsel %vm500, %v504, %v506
      %v508 = vrot.slane %v244, 1
      %v509 = vsel %vm500, %v506, %v508
      %v510 = vrot.slane %v245, 1
      %v511 = vsel %vm500, %v508, %v510
      %v534 = vunpack.c.l.b16 %v481
      %v535 = vunpack.c.l.b16 %v482
      %v536 = vunpack.c.l.b16 %v483
      %v537 = vunpack.c.l.b16 %v484
      %v538 = vunpack.c.l.b16 %v485
      %v539 = vunpack.c.l.b16 %v486
      %v540 = vunpack.c.l.b16 %v487
      %v541 = vunpack.c.l.b16 %v488
      %v542 = vunpack.c.l.b16 %v489
      %v543 = vunpack.c.l.b16 %v490
      %v544 = vunpack.c.l.b16 %v491
      %v545 = vunpack.c.l.b16 %v492
      %v546 = vunpack.c.l.b16 %v493
      %v547 = vunpack.c.l.b16 %v494
      %v548 = vunpack.c.l.b16 %v495
      %v549 = vunpack.c.l.b16 %v496
      %v550 = vpack.c.b16 %v535, %v534
      %v551 = vpack.c.b16 %v537, %v536
      %v552 = vpack.c.b16 %v539, %v538
      %v553 = vpack.c.b16 %v541, %v540
      %v554 = vpack.c.b16 %v543, %v542
      %v555 = vpack.c.b16 %v545, %v544
      %v556 = vpack.c.b16 %v547, %v546
      %v557 = vpack.c.b16 %v549, %v548
      %566 = vmatpush.bf16.msra.mxu0 %v557
      %567 = vmatpush.bf16.msra.mxu0 %v556
      %568 = vmatpush.bf16.msra.mxu0 %v555
      %569 = vmatpush.bf16.msra.mxu0 %v554
      %570 = vmatpush.bf16.msra.mxu0 %v553
      %571 = vmatpush.bf16.msra.mxu0 %v552
      %572 = vmatpush.bf16.msra.mxu0 %v551
      %573 = vmatpush.bf16.msra.mxu0 %v550
      %574 = vmatmul.bf16.gmra.mxu0 %v503
      %v575 = vpop.f32.mrf.mxu0
      %v576 = vadd.f32 0.0, %v575
      %v577 = vpop.f32.mrf.mxu0
      %v578 = vadd.f32 0.0, %v577
      %579 = vmatmul.bf16.gmra.mxu0 %v505
      %v580 = vpop.f32.mrf.mxu0
      %v581 = vadd.f32 0.0, %v580
      %v582 = vpop.f32.mrf.mxu0
      %v583 = vadd.f32 0.0, %v582
      %584 = vmatmul.bf16.gmra.mxu0 %v507
      %v585 = vpop.f32.mrf.mxu0
      %v586 = vadd.f32 0.0, %v585
      %v587 = vpop.f32.mrf.mxu0
      %v588 = vadd.f32 0.0, %v587
      %589 = vmatmul.bf16.gmra.mxu0 %v509
      %v590 = vpop.f32.mrf.mxu0
      %v591 = vadd.f32 0.0, %v590
      %v592 = vpop.f32.mrf.mxu0
      %v593 = vadd.f32 0.0, %v592
      %594 = vmatmul.bf16.gmra.mxu0 %v511
      %v595 = vpop.f32.mrf.mxu0
      %v596 = vadd.f32 0.0, %v595
      %v597 = vpop.f32.mrf.mxu0
      %v598 = vadd.f32 0.0, %v597
      %599 = vmatmul.bf16.gmra.mxu0 %v510
      %v600 = vpop.f32.mrf.mxu0
      %v601 = vadd.f32 0.0, %v600
      %v602 = vpop.f32.mrf.mxu0
      %603 = vdwg.mxu0
      %v604 = vadd.f32 %v451, %v576
      %v605 = vadd.f32 %v453, %v578
      %v606 = vadd.f32 %v456, %v581
      %v607 = vadd.f32 %v458, %v583
      %v608 = vadd.f32 %v461, %v586
      %v609 = vadd.f32 %v463, %v588
      %v610 = vadd.f32 %v466, %v591
      %v611 = vadd.f32 %v468, %v593
      %v612 = vadd.f32 %v471, %v596
      %v613 = vadd.f32 %v473, %v598
      %v614 = vadd.f32 %v476, %v601
      %v615 = vld [vmem:[%s165 + $0x4] sm:$0xf]
      %v616 = vld [vmem:[%s165 + $0x8] sm:$0xf]
      %v617 = vld [vmem:[%s165 + $0xc] sm:$0xf]
      %v618 = vld [vmem:[%s165 + $0x10] sm:$0xf]
      %v619 = vld [vmem:[%s165 + $0x14] sm:$0xf]
      %v620 = vld [vmem:[%s165 + $0x18] sm:$0xf]
      %v621 = vld [vmem:[%s165 + $0x1c] sm:$0xf]
      %v622 = vld [vmem:[%s165 + $0x20] sm:$0xf]
      %v623 = vld [vmem:[%s165 + $0x24] sm:$0xf]
      %v624 = vld [vmem:[%s165 + $0x28] sm:$0xf]
      %v625 = vld [vmem:[%s165 + $0x2c] sm:$0xf]
      %v626 = vld [vmem:[%s165 + $0x30] sm:$0x1]
      %s627 = scalar_lea.vmem %s1, 192
      %v628 = vld [vmem:[%s627] sm:$0xf]
      %v629 = vld [vmem:[%s627 + $0x4] sm:$0xf]
      %v630 = vld [vmem:[%s627 + $0x8] sm:$0xf]
      %v631 = vld [vmem:[%s627 + $0xc] sm:$0xf]
      %v632 = vld [vmem:[%s627 + $0x10] sm:$0xf]
      %v633 = vld [vmem:[%s627 + $0x14] sm:$0xf]
      %v634 = vld [vmem:[%s627 + $0x18] sm:$0xf]
      %v635 = vld [vmem:[%s627 + $0x1c] sm:$0xf]
      %v636 = vld [vmem:[%s627 + $0x20] sm:$0xf]
      %v637 = vld [vmem:[%s627 + $0x24] sm:$0xf]
      %v638 = vld [vmem:[%s627 + $0x28] sm:$0xf]
      %v639 = vld [vmem:[%s627 + $0x2c] sm:$0xf]
      %v640 = vld [vmem:[%s627 + $0x30] sm:$0xf]
      %v641 = vld [vmem:[%s627 + $0x34] sm:$0xf]
      %v642 = vld [vmem:[%s627 + $0x38] sm:$0xf]
      %v643 = vld [vmem:[%s627 + $0x3c] sm:$0xf]
      %v656 = vunpack.c.l.b16 %v615
      %v657 = vunpack.c.l.b16 %v616
      %v658 = vunpack.c.l.b16 %v617
      %v659 = vunpack.c.l.b16 %v618
      %v660 = vunpack.c.l.b16 %v619
      %v661 = vunpack.c.l.b16 %v620
      %v662 = vunpack.c.l.b16 %v621
      %v663 = vunpack.c.l.b16 %v622
      %v664 = vunpack.c.l.b16 %v623
      %v665 = vunpack.c.l.b16 %v624
      %v666 = vunpack.c.l.b16 %v625
      %v667 = vunpack.c.l.b16 %v626
      %v668 = vpack.c.b16 %v657, %v656
      %v669 = vpack.c.b16 %v659, %v658
      %v670 = vpack.c.b16 %v661, %v660
      %v671 = vpack.c.b16 %v663, %v662
      %v672 = vpack.c.b16 %v665, %v664
      %v673 = vpack.c.b16 %v667, %v666
      %v675 = vshrl.u32 %v668, 16
      %v677 = vshll.u32 %v668, 16
      %v679 = vrot.slane %v677, 1
      %v680 = vor.u32 %v675, %v679
      %v682 = vshll.u32 %v669, 16
      %v684 = vrot.slane %v682, 1
      %v685 = vsel %vm246, %v680, %v684
      %v686 = vshrl.u32 %v669, 16
      %v688 = vor.u32 %v686, %v684
      %v690 = vshll.u32 %v670, 16
      %v692 = vrot.slane %v690, 1
      %v693 = vsel %vm246, %v688, %v692
      %v694 = vshrl.u32 %v670, 16
      %v696 = vor.u32 %v694, %v692
      %v698 = vshll.u32 %v671, 16
      %v700 = vrot.slane %v698, 1
      %v701 = vsel %vm246, %v696, %v700
      %v702 = vshrl.u32 %v671, 16
      %v704 = vor.u32 %v702, %v700
      %v706 = vshll.u32 %v672, 16
      %v708 = vrot.slane %v706, 1
      %v709 = vsel %vm246, %v704, %v708
      %v710 = vshrl.u32 %v672, 16
      %v712 = vor.u32 %v710, %v708
      %v714 = vshll.u32 %v673, 16
      %v716 = vrot.slane %v714, 1
      %v717 = vsel %vm246, %v712, %v716
      %v718 = vshrl.u32 %v673, 16
      %v720 = vor.u32 %v718, %v716
      %v743 = vunpack.c.l.b16 %v628
      %v744 = vunpack.c.l.b16 %v629
      %v745 = vunpack.c.l.b16 %v630
      %v746 = vunpack.c.l.b16 %v631
      %v747 = vunpack.c.l.b16 %v632
      %v748 = vunpack.c.l.b16 %v633
      %v749 = vunpack.c.l.b16 %v634
      %v750 = vunpack.c.l.b16 %v635
      %v751 = vunpack.c.l.b16 %v636
      %v752 = vunpack.c.l.b16 %v637
      %v753 = vunpack.c.l.b16 %v638
      %v754 = vunpack.c.l.b16 %v639
      %v755 = vunpack.c.l.b16 %v640
      %v756 = vunpack.c.l.b16 %v641
      %v757 = vunpack.c.l.b16 %v642
      %v758 = vunpack.c.l.b16 %v643
      %v759 = vpack.c.b16 %v744, %v743
      %v760 = vpack.c.b16 %v746, %v745
      %v761 = vpack.c.b16 %v748, %v747
      %v762 = vpack.c.b16 %v750, %v749
      %v763 = vpack.c.b16 %v752, %v751
      %v764 = vpack.c.b16 %v754, %v753
      %v765 = vpack.c.b16 %v756, %v755
      %v766 = vpack.c.b16 %v758, %v757
      %775 = vmatpush.bf16.msra.mxu0 %v766
      %776 = vmatpush.bf16.msra.mxu0 %v765
      %777 = vmatpush.bf16.msra.mxu0 %v764
      %778 = vmatpush.bf16.msra.mxu0 %v763
      %779 = vmatpush.bf16.msra.mxu0 %v762
      %780 = vmatpush.bf16.msra.mxu0 %v761
      %781 = vmatpush.bf16.msra.mxu0 %v760
      %782 = vmatpush.bf16.msra.mxu0 %v759
      %783 = vmatmul.bf16.gmra.mxu0 %v685
      %v784 = vpop.f32.mrf.mxu0
      %v785 = vadd.f32 0.0, %v784
      %v786 = vpop.f32.mrf.mxu0
      %v787 = vadd.f32 0.0, %v786
      %788 = vmatmul.bf16.gmra.mxu0 %v693
      %v789 = vpop.f32.mrf.mxu0
      %v790 = vadd.f32 0.0, %v789
      %v791 = vpop.f32.mrf.mxu0
      %v792 = vadd.f32 0.0, %v791
      %793 = vmatmul.bf16.gmra.mxu0 %v701
      %v794 = vpop.f32.mrf.mxu0
      %v795 = vadd.f32 0.0, %v794
      %v796 = vpop.f32.mrf.mxu0
      %v797 = vadd.f32 0.0, %v796
      %798 = vmatmul.bf16.gmra.mxu0 %v709
      %v799 = vpop.f32.mrf.mxu0
      %v800 = vadd.f32 0.0, %v799
      %v801 = vpop.f32.mrf.mxu0
      %v802 = vadd.f32 0.0, %v801
      %803 = vmatmul.bf16.gmra.mxu0 %v717
      %v804 = vpop.f32.mrf.mxu0
      %v805 = vadd.f32 0.0, %v804
      %v806 = vpop.f32.mrf.mxu0
      %v807 = vadd.f32 0.0, %v806
      %808 = vmatmul.bf16.gmra.mxu0 %v720
      %v809 = vpop.f32.mrf.mxu0
      %v810 = vadd.f32 0.0, %v809
      %v811 = vpop.f32.mrf.mxu0
      %812 = vdwg.mxu0
      %v813 = vadd.f32 %v604, %v785
      %v814 = vadd.f32 %v605, %v787
      %v815 = vadd.f32 %v606, %v790
      %v816 = vadd.f32 %v607, %v792
      %v817 = vadd.f32 %v608, %v795
      %v818 = vadd.f32 %v609, %v797
      %v819 = vadd.f32 %v610, %v800
      %v820 = vadd.f32 %v611, %v802
      %v821 = vadd.f32 %v612, %v805
      %v822 = vadd.f32 %v613, %v807
      %v823 = vadd.f32 %v614, %v810
      %v824 = vld [vmem:[%s165 + $0x4] sm:$0xe]
      %s825 = scalar_lea.vmem %s1, 256
      %v826 = vld [vmem:[%s825] sm:$0xf]
      %v827 = vld [vmem:[%s825 + $0x4] sm:$0xf]
      %v828 = vld [vmem:[%s825 + $0x8] sm:$0xf]
      %v829 = vld [vmem:[%s825 + $0xc] sm:$0xf]
      %v830 = vld [vmem:[%s825 + $0x10] sm:$0xf]
      %v831 = vld [vmem:[%s825 + $0x14] sm:$0xf]
      %v832 = vld [vmem:[%s825 + $0x18] sm:$0xf]
      %v833 = vld [vmem:[%s825 + $0x1c] sm:$0xf]
      %v834 = vld [vmem:[%s825 + $0x20] sm:$0xf]
      %v835 = vld [vmem:[%s825 + $0x24] sm:$0xf]
      %v836 = vld [vmem:[%s825 + $0x28] sm:$0xf]
      %v837 = vld [vmem:[%s825 + $0x2c] sm:$0xf]
      %v838 = vld [vmem:[%s825 + $0x30] sm:$0xf]
      %v839 = vld [vmem:[%s825 + $0x34] sm:$0xf]
      %v840 = vld [vmem:[%s825 + $0x38] sm:$0xf]
      %v841 = vld [vmem:[%s825 + $0x3c] sm:$0xf]
      %v843 = vunpack.c.l.b16 %v824
      %v844 = vpack.c.b16 %v657, %v843
      %v845 = vrot.slane %v844, 1
      %v846 = vrot.slane %v669, 1
      %v847 = vsel %vm500, %v845, %v846
      %v848 = vrot.slane %v670, 1
      %v849 = vsel %vm500, %v846, %v848
      %v850 = vrot.slane %v671, 1
      %v851 = vsel %vm500, %v848, %v850
      %v852 = vrot.slane %v672, 1
      %v853 = vsel %vm500, %v850, %v852
      %v854 = vrot.slane %v673, 1
      %v855 = vsel %vm500, %v852, %v854
      %v878 = vunpack.c.l.b16 %v826
      %v879 = vunpack.c.l.b16 %v827
      %v880 = vunpack.c.l.b16 %v828
      %v881 = vunpack.c.l.b16 %v829
      %v882 = vunpack.c.l.b16 %v830
      %v883 = vunpack.c.l.b16 %v831
      %v884 = vunpack.c.l.b16 %v832
      %v885 = vunpack.c.l.b16 %v833
      %v886 = vunpack.c.l.b16 %v834
      %v887 = vunpack.c.l.b16 %v835
      %v888 = vunpack.c.l.b16 %v836
      %v889 = vunpack.c.l.b16 %v837
      %v890 = vunpack.c.l.b16 %v838
      %v891 = vunpack.c.l.b16 %v839
      %v892 = vunpack.c.l.b16 %v840
      %v893 = vunpack.c.l.b16 %v841
      %v894 = vpack.c.b16 %v879, %v878
      %v895 = vpack.c.b16 %v881, %v880
      %v896 = vpack.c.b16 %v883, %v882
      %v897 = vpack.c.b16 %v885, %v884
      %v898 = vpack.c.b16 %v887, %v886
      %v899 = vpack.c.b16 %v889, %v888
      %v900 = vpack.c.b16 %v891, %v890
      %v901 = vpack.c.b16 %v893, %v892
      %910 = vmatpush.bf16.msra.mxu0 %v901
      %911 = vmatpush.bf16.msra.mxu0 %v900
      %912 = vmatpush.bf16.msra.mxu0 %v899
      %913 = vmatpush.bf16.msra.mxu0 %v898
      %914 = vmatpush.bf16.msra.mxu0 %v897
      %915 = vmatpush.bf16.msra.mxu0 %v896
      %916 = vmatpush.bf16.msra.mxu0 %v895
      %917 = vmatpush.bf16.msra.mxu0 %v894
      %918 = vmatmul.bf16.gmra.mxu0 %v847
      %v919 = vpop.f32.mrf.mxu0
      %v920 = vadd.f32 0.0, %v919
      %v921 = vpop.f32.mrf.mxu0
      %v922 = vadd.f32 0.0, %v921
      %923 = vmatmul.bf16.gmra.mxu0 %v849
      %v924 = vpop.f32.mrf.mxu0
      %v925 = vadd.f32 0.0, %v924
      %v926 = vpop.f32.mrf.mxu0
      %v927 = vadd.f32 0.0, %v926
      %928 = vmatmul.bf16.gmra.mxu0 %v851
      %v929 = vpop.f32.mrf.mxu0
      %v930 = vadd.f32 0.0, %v929
      %v931 = vpop.f32.mrf.mxu0
      %v932 = vadd.f32 0.0, %v931
      %933 = vmatmul.bf16.gmra.mxu0 %v853
      %v934 = vpop.f32.mrf.mxu0
      %v935 = vadd.f32 0.0, %v934
      %v936 = vpop.f32.mrf.mxu0
      %v937 = vadd.f32 0.0, %v936
      %938 = vmatmul.bf16.gmra.mxu0 %v855
      %v939 = vpop.f32.mrf.mxu0
      %v940 = vadd.f32 0.0, %v939
      %v941 = vpop.f32.mrf.mxu0
      %v942 = vadd.f32 0.0, %v941
      %943 = vmatmul.bf16.gmra.mxu0 %v854
      %v944 = vpop.f32.mrf.mxu0
      %v945 = vadd.f32 0.0, %v944
      %v946 = vpop.f32.mrf.mxu0
      %947 = vdwg.mxu0
      %v948 = vadd.f32 %v813, %v920
      %v949 = vadd.f32 %v814, %v922
      %v950 = vadd.f32 %v815, %v925
      %v951 = vadd.f32 %v816, %v927
      %v952 = vadd.f32 %v817, %v930
      %v953 = vadd.f32 %v818, %v932
      %v954 = vadd.f32 %v819, %v935
      %v955 = vadd.f32 %v820, %v937
      %v956 = vadd.f32 %v821, %v940
      %v957 = vadd.f32 %v822, %v942
      %v958 = vadd.f32 %v823, %v945
      %v959 = vld [vmem:[%s165 + $0x30] sm:$0x3]
      %s960 = scalar_lea.vmem %s1, 320
      %v961 = vld [vmem:[%s960] sm:$0xf]
      %v962 = vld [vmem:[%s960 + $0x4] sm:$0xf]
      %v963 = vld [vmem:[%s960 + $0x8] sm:$0xf]
      %v964 = vld [vmem:[%s960 + $0xc] sm:$0xf]
      %v965 = vld [vmem:[%s960 + $0x10] sm:$0xf]
      %v966 = vld [vmem:[%s960 + $0x14] sm:$0xf]
      %v967 = vld [vmem:[%s960 + $0x18] sm:$0xf]
      %v968 = vld [vmem:[%s960 + $0x1c] sm:$0xf]
      %v969 = vld [vmem:[%s960 + $0x20] sm:$0xf]
      %v970 = vld [vmem:[%s960 + $0x24] sm:$0xf]
      %v971 = vld [vmem:[%s960 + $0x28] sm:$0xf]
      %v972 = vld [vmem:[%s960 + $0x2c] sm:$0xf]
      %v973 = vld [vmem:[%s960 + $0x30] sm:$0xf]
      %v974 = vld [vmem:[%s960 + $0x34] sm:$0xf]
      %v975 = vld [vmem:[%s960 + $0x38] sm:$0xf]
      %v976 = vld [vmem:[%s960 + $0x3c] sm:$0xf]
      %v978 = vunpack.c.l.b16 %v959
      %v979 = vpack.c.b16 %v978, %v666
      %vm980 = vsmask.f32 6400
      %v982 = vshrl.u32 %v844, 16
      %v984 = vrot.slane %v982, 1
      %v985 = vshll.u32 %v844, 16
      %v987 = vrot.slane %v985, 2
      %v988 = vor.u32 %v984, %v987
      %v989 = vrot.slane %v686, 1
      %v990 = vrot.slane %v682, 2
      %v991 = vor.u32 %v989, %v990
      %v992 = vsel %vm980, %v988, %v991
      %v993 = vrot.slane %v694, 1
      %v994 = vrot.slane %v690, 2
      %v995 = vor.u32 %v993, %v994
      %v996 = vsel %vm980, %v991, %v995
      %v997 = vrot.slane %v702, 1
      %v998 = vrot.slane %v698, 2
      %v999 = vor.u32 %v997, %v998
      %v1000 = vsel %vm980, %v995, %v999
      %v1001 = vrot.slane %v710, 1
      %v1002 = vrot.slane %v706, 2
      %v1003 = vor.u32 %v1001, %v1002
      %v1004 = vsel %vm980, %v999, %v1003
      %v1006 = vshrl.u32 %v979, 16
      %v1008 = vrot.slane %v1006, 1
      %v1009 = vshll.u32 %v979, 16
      %v1011 = vrot.slane %v1009, 2
      %v1012 = vor.u32 %v1008, %v1011
      %v1013 = vsel %vm980, %v1003, %v1012
      %v1036 = vunpack.c.l.b16 %v961
      %v1037 = vunpack.c.l.b16 %v962
      %v1038 = vunpack.c.l.b16 %v963
      %v1039 = vunpack.c.l.b16 %v964
      %v1040 = vunpack.c.l.b16 %v965
      %v1041 = vunpack.c.l.b16 %v966
      %v1042 = vunpack.c.l.b16 %v967
      %v1043 = vunpack.c.l.b16 %v968
      %v1044 = vunpack.c.l.b16 %v969
      %v1045 = vunpack.c.l.b16 %v970
      %v1046 = vunpack.c.l.b16 %v971
      %v1047 = vunpack.c.l.b16 %v972
      %v1048 = vunpack.c.l.b16 %v973
      %v1049 = vunpack.c.l.b16 %v974
      %v1050 = vunpack.c.l.b16 %v975
      %v1051 = vunpack.c.l.b16 %v976
      %v1052 = vpack.c.b16 %v1037, %v1036
      %v1053 = vpack.c.b16 %v1039, %v1038
      %v1054 = vpack.c.b16 %v1041, %v1040
      %v1055 = vpack.c.b16 %v1043, %v1042
      %v1056 = vpack.c.b16 %v1045, %v1044
      %v1057 = vpack.c.b16 %v1047, %v1046
      %v1058 = vpack.c.b16 %v1049, %v1048
      %v1059 = vpack.c.b16 %v1051, %v1050
      %1068 = vmatpush.bf16.msra.mxu0 %v1059
      %1069 = vmatpush.bf16.msra.mxu0 %v1058
      %1070 = vmatpush.bf16.msra.mxu0 %v1057
      %1071 = vmatpush.bf16.msra.mxu0 %v1056
      %1072 = vmatpush.bf16.msra.mxu0 %v1055
      %1073 = vmatpush.bf16.msra.mxu0 %v1054
      %1074 = vmatpush.bf16.msra.mxu0 %v1053
      %1075 = vmatpush.bf16.msra.mxu0 %v1052
      %1076 = vmatmul.bf16.gmra.mxu0 %v992
      %v1077 = vpop.f32.mrf.mxu0
      %v1078 = vadd.f32 0.0, %v1077
      %v1079 = vpop.f32.mrf.mxu0
      %v1080 = vadd.f32 0.0, %v1079
      %1081 = vmatmul.bf16.gmra.mxu0 %v996
      %v1082 = vpop.f32.mrf.mxu0
      %v1083 = vadd.f32 0.0, %v1082
      %v1084 = vpop.f32.mrf.mxu0
      %v1085 = vadd.f32 0.0, %v1084
      %1086 = vmatmul.bf16.gmra.mxu0 %v1000
      %v1087 = vpop.f32.mrf.mxu0
      %v1088 = vadd.f32 0.0, %v1087
      %v1089 = vpop.f32.mrf.mxu0
      %v1090 = vadd.f32 0.0, %v1089
      %1091 = vmatmul.bf16.gmra.mxu0 %v1004
      %v1092 = vpop.f32.mrf.mxu0
      %v1093 = vadd.f32 0.0, %v1092
      %v1094 = vpop.f32.mrf.mxu0
      %v1095 = vadd.f32 0.0, %v1094
      %1096 = vmatmul.bf16.gmra.mxu0 %v1013
      %v1097 = vpop.f32.mrf.mxu0
      %v1098 = vadd.f32 0.0, %v1097
      %v1099 = vpop.f32.mrf.mxu0
      %v1100 = vadd.f32 0.0, %v1099
      %1101 = vmatmul.bf16.gmra.mxu0 %v1012
      %v1102 = vpop.f32.mrf.mxu0
      %v1103 = vadd.f32 0.0, %v1102
      %v1104 = vpop.f32.mrf.mxu0
      %1105 = vdwg.mxu0
      %v1106 = vadd.f32 %v948, %v1078
      %v1107 = vadd.f32 %v949, %v1080
      %v1108 = vadd.f32 %v950, %v1083
      %v1109 = vadd.f32 %v951, %v1085
      %v1110 = vadd.f32 %v952, %v1088
      %v1111 = vadd.f32 %v953, %v1090
      %v1112 = vadd.f32 %v954, %v1093
      %v1113 = vadd.f32 %v955, %v1095
      %v1114 = vadd.f32 %v956, %v1098
      %v1115 = vadd.f32 %v957, %v1100
      %v1116 = vadd.f32 %v958, %v1103
      %v1117 = vld [vmem:[%s165 + $0x8] sm:$0xe]
      %v1118 = vld [vmem:[%s165 + $0xc] sm:$0xf]
      %v1119 = vld [vmem:[%s165 + $0x10] sm:$0xf]
      %v1120 = vld [vmem:[%s165 + $0x14] sm:$0xf]
      %v1121 = vld [vmem:[%s165 + $0x18] sm:$0xf]
      %v1122 = vld [vmem:[%s165 + $0x1c] sm:$0xf]
      %v1123 = vld [vmem:[%s165 + $0x20] sm:$0xf]
      %v1124 = vld [vmem:[%s165 + $0x24] sm:$0xf]
      %v1125 = vld [vmem:[%s165 + $0x28] sm:$0xf]
      %v1126 = vld [vmem:[%s165 + $0x2c] sm:$0xf]
      %v1127 = vld [vmem:[%s165 + $0x30] sm:$0xf]
      %v1128 = vld [vmem:[%s165 + $0x34] sm:$0x1]
      %s1129 = scalar_lea.vmem %s1, 384
      %v1130 = vld [vmem:[%s1129] sm:$0xf]
      %v1131 = vld [vmem:[%s1129 + $0x4] sm:$0xf]
      %v1132 = vld [vmem:[%s1129 + $0x8] sm:$0xf]
      %v1133 = vld [vmem:[%s1129 + $0xc] sm:$0xf]
      %v1134 = vld [vmem:[%s1129 + $0x10] sm:$0xf]
      %v1135 = vld [vmem:[%s1129 + $0x14] sm:$0xf]
      %v1136 = vld [vmem:[%s1129 + $0x18] sm:$0xf]
      %v1137 = vld [vmem:[%s1129 + $0x1c] sm:$0xf]
      %v1138 = vld [vmem:[%s1129 + $0x20] sm:$0xf]
      %v1139 = vld [vmem:[%s1129 + $0x24] sm:$0xf]
      %v1140 = vld [vmem:[%s1129 + $0x28] sm:$0xf]
      %v1141 = vld [vmem:[%s1129 + $0x2c] sm:$0xf]
      %v1142 = vld [vmem:[%s1129 + $0x30] sm:$0xf]
      %v1143 = vld [vmem:[%s1129 + $0x34] sm:$0xf]
      %v1144 = vld [vmem:[%s1129 + $0x38] sm:$0xf]
      %v1145 = vld [vmem:[%s1129 + $0x3c] sm:$0xf]
      %v1158 = vunpack.c.l.b16 %v1117
      %v1159 = vunpack.c.l.b16 %v1118
      %v1160 = vunpack.c.l.b16 %v1119
      %v1161 = vunpack.c.l.b16 %v1120
      %v1162 = vunpack.c.l.b16 %v1121
      %v1163 = vunpack.c.l.b16 %v1122
      %v1164 = vunpack.c.l.b16 %v1123
      %v1165 = vunpack.c.l.b16 %v1124
      %v1166 = vunpack.c.l.b16 %v1125
      %v1167 = vunpack.c.l.b16 %v1126
      %v1168 = vunpack.c.l.b16 %v1127
      %v1169 = vunpack.c.l.b16 %v1128
      %v1170 = vpack.c.b16 %v1159, %v1158
      %v1171 = vpack.c.b16 %v1161, %v1160
      %v1172 = vpack.c.b16 %v1163, %v1162
      %v1173 = vpack.c.b16 %v1165, %v1164
      %v1174 = vpack.c.b16 %v1167, %v1166
      %v1175 = vpack.c.b16 %v1169, %v1168
      %v1176 = vrot.slane %v1170, 1
      %v1177 = vrot.slane %v1171, 1
      %v1178 = vsel %vm500, %v1176, %v1177
      %v1179 = vrot.slane %v1172, 1
      %v1180 = vsel %vm500, %v1177, %v1179
      %v1181 = vrot.slane %v1173, 1
      %v1182 = vsel %vm500, %v1179, %v1181
      %v1183 = vrot.slane %v1174, 1
      %v1184 = vsel %vm500, %v1181, %v1183
      %v1185 = vrot.slane %v1175, 1
      %v1186 = vsel %vm500, %v1183, %v1185
      %v1209 = vunpack.c.l.b16 %v1130
      %v1210 = vunpack.c.l.b16 %v1131
      %v1211 = vunpack.c.l.b16 %v1132
      %v1212 = vunpack.c.l.b16 %v1133
      %v1213 = vunpack.c.l.b16 %v1134
      %v1214 = vunpack.c.l.b16 %v1135
      %v1215 = vunpack.c.l.b16 %v1136
      %v1216 = vunpack.c.l.b16 %v1137
      %v1217 = vunpack.c.l.b16 %v1138
      %v1218 = vunpack.c.l.b16 %v1139
      %v1219 = vunpack.c.l.b16 %v1140
      %v1220 = vunpack.c.l.b16 %v1141
      %v1221 = vunpack.c.l.b16 %v1142
      %v1222 = vunpack.c.l.b16 %v1143
      %v1223 = vunpack.c.l.b16 %v1144
      %v1224 = vunpack.c.l.b16 %v1145
      %v1225 = vpack.c.b16 %v1210, %v1209
      %v1226 = vpack.c.b16 %v1212, %v1211
      %v1227 = vpack.c.b16 %v1214, %v1213
      %v1228 = vpack.c.b16 %v1216, %v1215
      %v1229 = vpack.c.b16 %v1218, %v1217
      %v1230 = vpack.c.b16 %v1220, %v1219
      %v1231 = vpack.c.b16 %v1222, %v1221
      %v1232 = vpack.c.b16 %v1224, %v1223
      %1241 = vmatpush.bf16.msra.mxu0 %v1232
      %1242 = vmatpush.bf16.msra.mxu0 %v1231
      %1243 = vmatpush.bf16.msra.mxu0 %v1230
      %1244 = vmatpush.bf16.msra.mxu0 %v1229
      %1245 = vmatpush.bf16.msra.mxu0 %v1228
      %1246 = vmatpush.bf16.msra.mxu0 %v1227
      %1247 = vmatpush.bf16.msra.mxu0 %v1226
      %1248 = vmatpush.bf16.msra.mxu0 %v1225
      %1249 = vmatmul.bf16.gmra.mxu0 %v1178
      %v1250 = vpop.f32.mrf.mxu0
      %v1251 = vadd.f32 0.0, %v1250
      %v1252 = vpop.f32.mrf.mxu0
      %v1253 = vadd.f32 0.0, %v1252
      %1254 = vmatmul.bf16.gmra.mxu0 %v1180
      %v1255 = vpop.f32.mrf.mxu0
      %v1256 = vadd.f32 0.0, %v1255
      %v1257 = vpop.f32.mrf.mxu0
      %v1258 = vadd.f32 0.0, %v1257
      %1259 = vmatmul.bf16.gmra.mxu0 %v1182
      %v1260 = vpop.f32.mrf.mxu0
      %v1261 = vadd.f32 0.0, %v1260
      %v1262 = vpop.f32.mrf.mxu0
      %v1263 = vadd.f32 0.0, %v1262
      %1264 = vmatmul.bf16.gmra.mxu0 %v1184
      %v1265 = vpop.f32.mrf.mxu0
      %v1266 = vadd.f32 0.0, %v1265
      %v1267 = vpop.f32.mrf.mxu0
      %v1268 = vadd.f32 0.0, %v1267
      %1269 = vmatmul.bf16.gmra.mxu0 %v1186
      %v1270 = vpop.f32.mrf.mxu0
      %v1271 = vadd.f32 0.0, %v1270
      %v1272 = vpop.f32.mrf.mxu0
      %v1273 = vadd.f32 0.0, %v1272
      %1274 = vmatmul.bf16.gmra.mxu0 %v1185
      %v1275 = vpop.f32.mrf.mxu0
      %v1276 = vadd.f32 0.0, %v1275
      %v1277 = vpop.f32.mrf.mxu0
      %1278 = vdwg.mxu0
      %v1279 = vadd.f32 %v1106, %v1251
      %v1280 = vadd.f32 %v1107, %v1253
      %v1281 = vadd.f32 %v1108, %v1256
      %v1282 = vadd.f32 %v1109, %v1258
      %v1283 = vadd.f32 %v1110, %v1261
      %v1284 = vadd.f32 %v1111, %v1263
      %v1285 = vadd.f32 %v1112, %v1266
      %v1286 = vadd.f32 %v1113, %v1268
      %v1287 = vadd.f32 %v1114, %v1271
      %v1288 = vadd.f32 %v1115, %v1273
      %v1289 = vadd.f32 %v1116, %v1276
      %v1290 = vld [vmem:[%s165 + $0x34] sm:$0x3]
      %s1291 = scalar_lea.vmem %s1, 448
      %v1292 = vld [vmem:[%s1291] sm:$0xf]
      %v1293 = vld [vmem:[%s1291 + $0x4] sm:$0xf]
      %v1294 = vld [vmem:[%s1291 + $0x8] sm:$0xf]
      %v1295 = vld [vmem:[%s1291 + $0xc] sm:$0xf]
      %v1296 = vld [vmem:[%s1291 + $0x10] sm:$0xf]
      %v1297 = vld [vmem:[%s1291 + $0x14] sm:$0xf]
      %v1298 = vld [vmem:[%s1291 + $0x18] sm:$0xf]
      %v1299 = vld [vmem:[%s1291 + $0x1c] sm:$0xf]
      %v1300 = vld [vmem:[%s1291 + $0x20] sm:$0xf]
      %v1301 = vld [vmem:[%s1291 + $0x24] sm:$0xf]
      %v1302 = vld [vmem:[%s1291 + $0x28] sm:$0xf]
      %v1303 = vld [vmem:[%s1291 + $0x2c] sm:$0xf]
      %v1304 = vld [vmem:[%s1291 + $0x30] sm:$0xf]
      %v1305 = vld [vmem:[%s1291 + $0x34] sm:$0xf]
      %v1306 = vld [vmem:[%s1291 + $0x38] sm:$0xf]
      %v1307 = vld [vmem:[%s1291 + $0x3c] sm:$0xf]
      %v1309 = vunpack.c.l.b16 %v1290
      %v1310 = vpack.c.b16 %v1309, %v1168
      %v1312 = vshrl.u32 %v1170, 16
      %v1314 = vrot.slane %v1312, 1
      %v1315 = vshll.u32 %v1170, 16
      %v1317 = vrot.slane %v1315, 2
      %v1318 = vor.u32 %v1314, %v1317
      %v1320 = vshrl.u32 %v1171, 16
      %v1322 = vrot.slane %v1320, 1
      %v1323 = vshll.u32 %v1171, 16
      %v1325 = vrot.slane %v1323, 2
      %v1326 = vor.u32 %v1322, %v1325
      %v1327 = vsel %vm980, %v1318, %v1326
      %v1329 = vshrl.u32 %v1172, 16
      %v1331 = vrot.slane %v1329, 1
      %v1332 = vshll.u32 %v1172, 16
      %v1334 = vrot.slane %v1332, 2
      %v1335 = vor.u32 %v1331, %v1334
      %v1336 = vsel %vm980, %v1326, %v1335
      %v1338 = vshrl.u32 %v1173, 16
      %v1340 = vrot.slane %v1338, 1
      %v1341 = vshll.u32 %v1173, 16
      %v1343 = vrot.slane %v1341, 2
      %v1344 = vor.u32 %v1340, %v1343
      %v1345 = vsel %vm980, %v1335, %v1344
      %v1347 = vshrl.u32 %v1174, 16
      %v1349 = vrot.slane %v1347, 1
      %v1350 = vshll.u32 %v1174, 16
      %v1352 = vrot.slane %v1350, 2
      %v1353 = vor.u32 %v1349, %v1352
      %v1354 = vsel %vm980, %v1344, %v1353
      %v1356 = vshrl.u32 %v1310, 16
      %v1358 = vrot.slane %v1356, 1
      %v1359 = vshll.u32 %v1310, 16
      %v1361 = vrot.slane %v1359, 2
      %v1362 = vor.u32 %v1358, %v1361
      %v1363 = vsel %vm980, %v1353, %v1362
      %v1386 = vunpack.c.l.b16 %v1292
      %v1387 = vunpack.c.l.b16 %v1293
      %v1388 = vunpack.c.l.b16 %v1294
      %v1389 = vunpack.c.l.b16 %v1295
      %v1390 = vunpack.c.l.b16 %v1296
      %v1391 = vunpack.c.l.b16 %v1297
      %v1392 = vunpack.c.l.b16 %v1298
      %v1393 = vunpack.c.l.b16 %v1299
      %v1394 = vunpack.c.l.b16 %v1300
      %v1395 = vunpack.c.l.b16 %v1301
      %v1396 = vunpack.c.l.b16 %v1302
      %v1397 = vunpack.c.l.b16 %v1303
      %v1398 = vunpack.c.l.b16 %v1304
      %v1399 = vunpack.c.l.b16 %v1305
      %v1400 = vunpack.c.l.b16 %v1306
      %v1401 = vunpack.c.l.b16 %v1307
      %v1402 = vpack.c.b16 %v1387, %v1386
      %v1403 = vpack.c.b16 %v1389, %v1388
      %v1404 = vpack.c.b16 %v1391, %v1390
      %v1405 = vpack.c.b16 %v1393, %v1392
      %v1406 = vpack.c.b16 %v1395, %v1394
      %v1407 = vpack.c.b16 %v1397, %v1396
      %v1408 = vpack.c.b16 %v1399, %v1398
      %v1409 = vpack.c.b16 %v1401, %v1400
      %1418 = vmatpush.bf16.msra.mxu0 %v1409
      %1419 = vmatpush.bf16.msra.mxu0 %v1408
      %1420 = vmatpush.bf16.msra.mxu0 %v1407
      %1421 = vmatpush.bf16.msra.mxu0 %v1406
      %1422 = vmatpush.bf16.msra.mxu0 %v1405
      %1423 = vmatpush.bf16.msra.mxu0 %v1404
      %1424 = vmatpush.bf16.msra.mxu0 %v1403
      %1425 = vmatpush.bf16.msra.mxu0 %v1402
      %1426 = vmatmul.bf16.gmra.mxu0 %v1327
      %v1427 = vpop.f32.mrf.mxu0
      %v1428 = vadd.f32 0.0, %v1427
      %v1429 = vpop.f32.mrf.mxu0
      %v1430 = vadd.f32 0.0, %v1429
      %1431 = vmatmul.bf16.gmra.mxu0 %v1336
      %v1432 = vpop.f32.mrf.mxu0
      %v1433 = vadd.f32 0.0, %v1432
      %v1434 = vpop.f32.mrf.mxu0
      %v1435 = vadd.f32 0.0, %v1434
      %1436 = vmatmul.bf16.gmra.mxu0 %v1345
      %v1437 = vpop.f32.mrf.mxu0
      %v1438 = vadd.f32 0.0, %v1437
      %v1439 = vpop.f32.mrf.mxu0
      %v1440 = vadd.f32 0.0, %v1439
      %1441 = vmatmul.bf16.gmra.mxu0 %v1354
      %v1442 = vpop.f32.mrf.mxu0
      %v1443 = vadd.f32 0.0, %v1442
      %v1444 = vpop.f32.mrf.mxu0
      %v1445 = vadd.f32 0.0, %v1444
      %1446 = vmatmul.bf16.gmra.mxu0 %v1363
      %v1447 = vpop.f32.mrf.mxu0
      %v1448 = vadd.f32 0.0, %v1447
      %v1449 = vpop.f32.mrf.mxu0
      %v1450 = vadd.f32 0.0, %v1449
      %1451 = vmatmul.bf16.gmra.mxu0 %v1362
      %v1452 = vpop.f32.mrf.mxu0
      %v1453 = vadd.f32 0.0, %v1452
      %v1454 = vpop.f32.mrf.mxu0
      %1455 = vdwg.mxu0
      %v1456 = vadd.f32 %v1279, %v1428
      %v1457 = vadd.f32 %v1280, %v1430
      %v1458 = vadd.f32 %v1281, %v1433
      %v1459 = vadd.f32 %v1282, %v1435
      %v1460 = vadd.f32 %v1283, %v1438
      %v1461 = vadd.f32 %v1284, %v1440
      %v1462 = vadd.f32 %v1285, %v1443
      %v1463 = vadd.f32 %v1286, %v1445
      %v1464 = vadd.f32 %v1287, %v1448
      %v1465 = vadd.f32 %v1288, %v1450
      %v1466 = vadd.f32 %v1289, %v1453
      %v1467 = vld [vmem:[%s165 + $0x8] sm:$0xc]
      %s1468 = scalar_lea.vmem %s1, 512
      %v1469 = vld [vmem:[%s1468] sm:$0xf]
      %v1470 = vld [vmem:[%s1468 + $0x4] sm:$0xf]
      %v1471 = vld [vmem:[%s1468 + $0x8] sm:$0xf]
      %v1472 = vld [vmem:[%s1468 + $0xc] sm:$0xf]
      %v1473 = vld [vmem:[%s1468 + $0x10] sm:$0xf]
      %v1474 = vld [vmem:[%s1468 + $0x14] sm:$0xf]
      %v1475 = vld [vmem:[%s1468 + $0x18] sm:$0xf]
      %v1476 = vld [vmem:[%s1468 + $0x1c] sm:$0xf]
      %v1477 = vld [vmem:[%s1468 + $0x20] sm:$0xf]
      %v1478 = vld [vmem:[%s1468 + $0x24] sm:$0xf]
      %v1479 = vld [vmem:[%s1468 + $0x28] sm:$0xf]
      %v1480 = vld [vmem:[%s1468 + $0x2c] sm:$0xf]
      %v1481 = vld [vmem:[%s1468 + $0x30] sm:$0xf]
      %v1482 = vld [vmem:[%s1468 + $0x34] sm:$0xf]
      %v1483 = vld [vmem:[%s1468 + $0x38] sm:$0xf]
      %v1484 = vld [vmem:[%s1468 + $0x3c] sm:$0xf]
      %v1486 = vunpack.c.l.b16 %v1467
      %v1487 = vpack.c.b16 %v1159, %v1486
      %vm1488 = vcmask 1045504
      %v1489 = vrot.slane %v1487, 2
      %v1490 = vrot.slane %v1171, 2
      %v1491 = vsel %vm1488, %v1489, %v1490
      %v1492 = vrot.slane %v1172, 2
      %v1493 = vsel %vm1488, %v1490, %v1492
      %v1494 = vrot.slane %v1173, 2
      %v1495 = vsel %vm1488, %v1492, %v1494
      %v1496 = vrot.slane %v1174, 2
      %v1497 = vsel %vm1488, %v1494, %v1496
      %v1498 = vrot.slane %v1310, 2
      %v1499 = vsel %vm1488, %v1496, %v1498
      %v1522 = vunpack.c.l.b16 %v1469
      %v1523 = vunpack.c.l.b16 %v1470
      %v1524 = vunpack.c.l.b16 %v1471
      %v1525 = vunpack.c.l.b16 %v1472
      %v1526 = vunpack.c.l.b16 %v1473
      %v1527 = vunpack.c.l.b16 %v1474
      %v1528 = vunpack.c.l.b16 %v1475
      %v1529 = vunpack.c.l.b16 %v1476
      %v1530 = vunpack.c.l.b16 %v1477
      %v1531 = vunpack.c.l.b16 %v1478
      %v1532 = vunpack.c.l.b16 %v1479
      %v1533 = vunpack.c.l.b16 %v1480
      %v1534 = vunpack.c.l.b16 %v1481
      %v1535 = vunpack.c.l.b16 %v1482
      %v1536 = vunpack.c.l.b16 %v1483
      %v1537 = vunpack.c.l.b16 %v1484
      %v1538 = vpack.c.b16 %v1523, %v1522
      %v1539 = vpack.c.b16 %v1525, %v1524
      %v1540 = vpack.c.b16 %v1527, %v1526
      %v1541 = vpack.c.b16 %v1529, %v1528
      %v1542 = vpack.c.b16 %v1531, %v1530
      %v1543 = vpack.c.b16 %v1533, %v1532
      %v1544 = vpack.c.b16 %v1535, %v1534
      %v1545 = vpack.c.b16 %v1537, %v1536
      %1554 = vmatpush.bf16.msra.mxu0 %v1545
      %1555 = vmatpush.bf16.msra.mxu0 %v1544
      %1556 = vmatpush.bf16.msra.mxu0 %v1543
      %1557 = vmatpush.bf16.msra.mxu0 %v1542
      %1558 = vmatpush.bf16.msra.mxu0 %v1541
      %1559 = vmatpush.bf16.msra.mxu0 %v1540
      %1560 = vmatpush.bf16.msra.mxu0 %v1539
      %1561 = vmatpush.bf16.msra.mxu0 %v1538
      %1562 = vmatmul.bf16.gmra.mxu0 %v1491
      %v1563 = vpop.f32.mrf.mxu0
      %v1564 = vadd.f32 0.0, %v1563
      %v1565 = vpop.f32.mrf.mxu0
      %v1566 = vadd.f32 0.0, %v1565
      %1567 = vmatmul.bf16.gmra.mxu0 %v1493
      %v1568 = vpop.f32.mrf.mxu0
      %v1569 = vadd.f32 0.0, %v1568
      %v1570 = vpop.f32.mrf.mxu0
      %v1571 = vadd.f32 0.0, %v1570
      %1572 = vmatmul.bf16.gmra.mxu0 %v1495
      %v1573 = vpop.f32.mrf.mxu0
      %v1574 = vadd.f32 0.0, %v1573
      %v1575 = vpop.f32.mrf.mxu0
      %v1576 = vadd.f32 0.0, %v1575
      %1577 = vmatmul.bf16.gmra.mxu0 %v1497
      %v1578 = vpop.f32.mrf.mxu0
      %v1579 = vadd.f32 0.0, %v1578
      %v1580 = vpop.f32.mrf.mxu0
      %v1581 = vadd.f32 0.0, %v1580
      %1582 = vmatmul.bf16.gmra.mxu0 %v1499
      %v1583 = vpop.f32.mrf.mxu0
      %v1584 = vadd.f32 0.0, %v1583
      %v1585 = vpop.f32.mrf.mxu0
      %v1586 = vadd.f32 0.0, %v1585
      %1587 = vmatmul.bf16.gmra.mxu0 %v1498
      %v1588 = vpop.f32.mrf.mxu0
      %v1589 = vadd.f32 0.0, %v1588
      %v1590 = vpop.f32.mrf.mxu0
      %1591 = vdwg.mxu0
      %v1592 = vadd.f32 %v1456, %v1564
      %v1593 = vadd.f32 %v1457, %v1566
      %v1594 = vadd.f32 %v1458, %v1569
      %v1595 = vadd.f32 %v1459, %v1571
      %v1596 = vadd.f32 %v1460, %v1574
      %v1597 = vadd.f32 %v1461, %v1576
      %v1598 = vadd.f32 %v1462, %v1579
      %v1599 = vadd.f32 %v1463, %v1581
      %v1600 = vadd.f32 %v1464, %v1584
      %v1601 = vadd.f32 %v1465, %v1586
      %v1602 = vadd.f32 %v1466, %v1589
      %v1603 = vld [vmem:[%s2] sm:$0x1]
      %v1605 = vperm.slane %v1603, 0
      %v1607 = vadd.f32 %v1592, %v1605
      %v1608 = vadd.f32 %v1593, %v1605
      %v1609 = vadd.f32 %v1594, %v1605
      %v1610 = vadd.f32 %v1595, %v1605
      %v1611 = vadd.f32 %v1596, %v1605
      %v1612 = vadd.f32 %v1597, %v1605
      %v1613 = vadd.f32 %v1598, %v1605
      %v1614 = vadd.f32 %v1599, %v1605
      %v1615 = vadd.f32 %v1600, %v1605
      %v1616 = vadd.f32 %v1601, %v1605
      %v1617 = vadd.f32 %v1602, %v1605
      %v1618 = vmax.f32 %v1607, 0.0
      %v1619 = vmax.f32 %v1608, 0.0
      %v1620 = vmax.f32 %v1609, 0.0
      %v1621 = vmax.f32 %v1610, 0.0
      %v1622 = vmax.f32 %v1611, 0.0
      %v1623 = vmax.f32 %v1612, 0.0
      %v1624 = vmax.f32 %v1613, 0.0
      %v1625 = vmax.f32 %v1614, 0.0
      %v1626 = vmax.f32 %v1615, 0.0
      %v1627 = vmax.f32 %v1616, 0.0
      %v1628 = vmax.f32 %v1617, 0.0
      %v1629 = vpack.c.bf16 %v1618, %v1618
      %v1630 = vpack.c.bf16 %v1619, %v1619
      %v1631 = vpack.c.bf16 %v1620, %v1620
      %v1632 = vpack.c.bf16 %v1621, %v1621
      %v1633 = vpack.c.bf16 %v1622, %v1622
      %v1634 = vpack.c.bf16 %v1623, %v1623
      %v1635 = vpack.c.bf16 %v1624, %v1624
      %v1636 = vpack.c.bf16 %v1625, %v1625
      %v1637 = vpack.c.bf16 %v1626, %v1626
      %v1638 = vpack.c.bf16 %v1627, %v1627
      %v1639 = vpack.c.bf16 %v1628, %v1628
      %1640 = vst [vmem:[%s170] sm:$0xf] %v1629
      %1641 = vst [vmem:[%s170 + $0x4] sm:$0xf] %v1630
      %1642 = vst [vmem:[%s170 + $0x8] sm:$0xf] %v1631
      %1643 = vst [vmem:[%s170 + $0xc] sm:$0xf] %v1632
      %1644 = vst [vmem:[%s170 + $0x10] sm:$0xf] %v1633
      %1645 = vst [vmem:[%s170 + $0x14] sm:$0xf] %v1634
      %1646 = vst [vmem:[%s170 + $0x18] sm:$0xf] %v1635
      %1647 = vst [vmem:[%s170 + $0x1c] sm:$0xf] %v1636
      %1648 = vst [vmem:[%s170 + $0x20] sm:$0xf] %v1637
      %1649 = vst [vmem:[%s170 + $0x24] sm:$0xf] %v1638
      %1650 = vst [vmem:[%s170 + $0x28] sm:$0xf] %v1639
      %p1651 = scmp.lt.s32.totalorder %s14, 1
      %s1652 = scalar_select %p1651, %s14, 1
      %s1653 = smul.addr %s1652, 11
      %s1654 = smul.addr %s1653, 4
      %s1655 = scalar_lea.vmem %s3, %s1654
      // Predicated region
      $region33: #{dqn_forward.6} parent=31 // pred_check
        %p1656 = pneg %p100
      $region34: #{dqn_forward.6} parent=31 // pred_check_branch
        %1658 = sbr.rel (%p1656) target = $region36
      $region35: #{dqn_forward.6} parent=31 // pred_region
        _
      $region36: #{dqn_forward.6} parent=31 // pred_fallthru
        _
    $region32: #{dqn_forward.6} parent=5 // pred_fallthru
      _
    %p1659 = scmp.le.s32.totalorder 2, %s9
    // Predicated region
    $region37: #{dqn_forward.6} parent=5 // pred_check
      %p1660 = pneg %p1659
    $region38: #{dqn_forward.6} parent=5 // pred_check_branch
      %1662 = sbr.rel (%p1660) target = $region40
    $region39: #{dqn_forward.6} parent=5 // pred_region
      %s1663 = ssub.s32 %s9, 2
      // Predicated region
      $region41: #{dqn_forward.6} parent=39 // pred_check
        %p1664 = pneg %p106
      $region42: #{dqn_forward.6} parent=39 // pred_check_branch
        %1666 = sbr.rel (%p1664) target = $region44
      $region43: #{dqn_forward.6} parent=39 // pred_region
        %p1667 = scmp.lt.s32.totalorder %s15, 1
        %s1668 = scalar_select %p1667, %s15, 1
        %s1669 = smul.addr %s1668, 11
        %s1670 = smul.addr %s1669, 4
        %s1671 = scalar_lea.vmem %s3, %s1670
      $region44: #{dqn_forward.6} parent=39 // pred_fallthru
        _
    $region40: #{dqn_forward.6} parent=5 // pred_fallthru
      _
  $region6: #{dqn_forward.6} parent=0 // loop_footer
    %s13 = sadd.s32 1, %s9
  $region7: #{dqn_forward.6} parent=0 // loop_footer_branch
    %8 = sbr.rel target = $region3
  $region8: #{dqn_forward.6} parent=0 // loop_exit
    _

// kernel: dqn_forward.7
$region0: #{dqn_forward.7}
  #allocation0 [shape = 'u32[]', space=smem, size = 0x4, offset = 0x4, fixed_abs, tag = 'smem constant byte address 0x4 - core index']
  #allocation1 [shape = 'u32[72,128]{1,0:T(1,128)}', space=vmem, size = 0x9000, scoped, tag = 'internal scratch']
  %s0 = inlined_call_operand.vmem [shape: bf16[2,3136], index: 0, kind: input, shape index: {}]
  %s1 = inlined_call_operand.vmem [shape: bf16[3136,512], index: 1, kind: input, shape index: {}]
  %s2 = inlined_call_operand.vmem [shape: f32[1,512], index: 2, kind: input, shape index: {}]
  %s3 = inlined_call_operand.vmem [shape: bf16[512,128], index: 3, kind: input, shape index: {}]
  %s4 = inlined_call_operand.vmem [shape: f32[1,128], index: 4, kind: input, shape index: {}]
  %s5 = inlined_call_operand.hbm [shape: f32[2,128], index: 5, kind: output, shape index: {}]
  %s6 = sld [smem:[#allocation0]]
  $region30: #{dqn_forward.7} parent=0
    _
  %s8 = ssub.s32 1, %s6
  %s9 = scalar_select 0, %s8, %s6
  $region1: #{dqn_forward.7} parent=0
    #allocation2 [shape = 'u8[1024]{0}', space=vmem, size = 0x400, scoped, tag = 'output window, operand 0, single buffered']
    #allocation3 [shape = 's32[1]{0}', space=sflag, size = 0x4, scoped, tag = 'scoped memory for dqn_forward.7']
    %10 = vsyncpa [#allocation3], 0
    // Predicated region
    $region2: #{dqn_forward.7} parent=1 // pred_check
      _
    $region3: #{dqn_forward.7} parent=1 // pred_check_branch
      %12 = sbr.rel (0) target = $region5
    $region4: #{dqn_forward.7} parent=1 // pred_region
      _
    $region5: #{dqn_forward.7} parent=1 // pred_fallthru
      _
    // Predicated region
    $region6: #{dqn_forward.7} parent=1 // pred_check
      _
    $region7: #{dqn_forward.7} parent=1 // pred_check_branch
      %14 = sbr.rel (0) target = $region9
    $region8: #{dqn_forward.7} parent=1 // pred_region
      _
    $region9: #{dqn_forward.7} parent=1 // pred_fallthru
      _
    // Predicated region
    $region10: #{dqn_forward.7} parent=1 // pred_check
      _
    $region11: #{dqn_forward.7} parent=1 // pred_check_branch
      %16 = sbr.rel (0) target = $region13
    $region12: #{dqn_forward.7} parent=1 // pred_region
      _
    $region13: #{dqn_forward.7} parent=1 // pred_fallthru
      _
    // Predicated region
    $region14: #{dqn_forward.7} parent=1 // pred_check
      _
    $region15: #{dqn_forward.7} parent=1 // pred_check_branch
      %18 = sbr.rel (0) target = $region17
    $region16: #{dqn_forward.7} parent=1 // pred_region
      _
    $region17: #{dqn_forward.7} parent=1 // pred_fallthru
      _
    // Predicated region
    $region18: #{dqn_forward.7} parent=1 // pred_check
      _
    $region19: #{dqn_forward.7} parent=1 // pred_check_branch
      %20 = sbr.rel (0) target = $region21
    $region20: #{dqn_forward.7} parent=1 // pred_region
      _
    $region21: #{dqn_forward.7} parent=1 // pred_fallthru
      _
    %v22 = vld [vmem:[%s0] sm:$0xff]
    %v23 = vld [vmem:[%s0 + $0x8] sm:$0xff]
    %v24 = vld [vmem:[%s0 + $0x10] sm:$0xff]
    %v25 = vld [vmem:[%s0 + $0x18] sm:$0x1]
    %v26 = vld [vmem:[%s1] sm:$0xff]
    %v27 = vld [vmem:[%s1 + $0x8] sm:$0xff]
    %v28 = vld [vmem:[%s1 + $0x10] sm:$0xff]
    %v29 = vld [vmem:[%s1 + $0x18] sm:$0xff]
    %v30 = vld [vmem:[%s1 + $0x20] sm:$0xff]
    %v31 = vld [vmem:[%s1 + $0x28] sm:$0xff]
    %v32 = vld [vmem:[%s1 + $0x30] sm:$0xff]
    %v33 = vld [vmem:[%s1 + $0x38] sm:$0xff]
    %v34 = vld [vmem:[%s1 + $0x40] sm:$0xff]
    %v35 = vld [vmem:[%s1 + $0x48] sm:$0xff]
    %v36 = vld [vmem:[%s1 + $0x50] sm:$0xff]
    %v37 = vld [vmem:[%s1 + $0x58] sm:$0xff]
    %v38 = vld [vmem:[%s1 + $0x60] sm:$0xff]
    %v39 = vld [vmem:[%s1 + $0x68] sm:$0xff]
    %v40 = vld [vmem:[%s1 + $0x70] sm:$0xff]
    %v41 = vld [vmem:[%s1 + $0x78] sm:$0xff]
    %v42 = vld [vmem:[%s1 + $0x80] sm:$0xff]
    %v43 = vld [vmem:[%s1 + $0x88] sm:$0xff]
    %v44 = vld [vmem:[%s1 + $0x90] sm:$0xff]
    %v45 = vld [vmem:[%s1 + $0x98] sm:$0xff]
    %v46 = vld [vmem:[%s1 + $0xa0] sm:$0xff]
    %v47 = vld [vmem:[%s1 + $0xa8] sm:$0xff]
    %v48 = vld [vmem:[%s1 + $0xb0] sm:$0xff]
    %v49 = vld [vmem:[%s1 + $0xb8] sm:$0xff]
    %v50 = vld [vmem:[%s1 + $0xc0] sm:$0xff]
    %v51 = vld [vmem:[%s1 + $0xc8] sm:$0xff]
    %v52 = vld [vmem:[%s1 + $0xd0] sm:$0xff]
    %v53 = vld [vmem:[%s1 + $0xd8] sm:$0xff]
    %v54 = vld [vmem:[%s1 + $0xe0] sm:$0xff]
    %v55 = vld [vmem:[%s1 + $0xe8] sm:$0xff]
    %v56 = vld [vmem:[%s1 + $0xf0] sm:$0xff]
    %v57 = vld [vmem:[%s1 + $0xf8] sm:$0xff]
    %v58 = vld [vmem:[%s1 + $0x100] sm:$0xff]
    %v59 = vld [vmem:[%s1 + $0x108] sm:$0xff]
    %v60 = vld [vmem:[%s1 + $0x110] sm:$0xff]
    %v61 = vld [vmem:[%s1 + $0x118] sm:$0xff]
    %v62 = vld [vmem:[%s1 + $0x120] sm:$0xff]
    %v63 = vld [vmem:[%s1 + $0x128] sm:$0xff]
    %v64 = vld [vmem:[%s1 + $0x130] sm:$0xff]
    %v65 = vld [vmem:[%s1 + $0x138] sm:$0xff]
    %v66 = vld [vmem:[%s1 + $0x140] sm:$0xff]
    %v67 = vld [vmem:[%s1 + $0x148] sm:$0xff]
    %v68 = vld [vmem:[%s1 + $0x150] sm:$0xff]
    %v69 = vld [vmem:[%s1 + $0x158] sm:$0xff]
    %v70 = vld [vmem:[%s1 + $0x160] sm:$0xff]
    %v71 = vld [vmem:[%s1 + $0x168] sm:$0xff]
    %v72 = vld [vmem:[%s1 + $0x170] sm:$0xff]
    %v73 = vld [vmem:[%s1 + $0x178] sm:$0xff]
    %v74 = vld [vmem:[%s1 + $0x180] sm:$0xff]
    %v75 = vld [vmem:[%s1 + $0x188] sm:$0xff]
    %v76 = vld [vmem:[%s1 + $0x190] sm:$0xff]
    %v77 = vld [vmem:[%s1 + $0x198] sm:$0xff]
    %v78 = vld [vmem:[%s1 + $0x1a0] sm:$0xff]
    %v79 = vld [vmem:[%s1 + $0x1a8] sm:$0xff]
    %v80 = vld [vmem:[%s1 + $0x1b0] sm:$0xff]
    %v81 = vld [vmem:[%s1 + $0x1b8] sm:$0xff]
    %v82 = vld [vmem:[%s1 + $0x1c0] sm:$0xff]
    %v83 = vld [vmem:[%s1 + $0x1c8] sm:$0xff]
    %v84 = vld [vmem:[%s1 + $0x1d0] sm:$0xff]
    %v85 = vld [vmem:[%s1 + $0x1d8] sm:$0xff]
    %v86 = vld [vmem:[%s1 + $0x1e0] sm:$0xff]
    %v87 = vld [vmem:[%s1 + $0x1e8] sm:$0xff]
    %v88 = vld [vmem:[%s1 + $0x1f0] sm:$0xff]
    %v89 = vld [vmem:[%s1 + $0x1f8] sm:$0xff]
    %v90 = vld [vmem:[%s1 + $0x200] sm:$0xff]
    %v91 = vld [vmem:[%s1 + $0x208] sm:$0xff]
    %v92 = vld [vmem:[%s1 + $0x210] sm:$0xff]
    %v93 = vld [vmem:[%s1 + $0x218] sm:$0xff]
    %v94 = vld [vmem:[%s1 + $0x220] sm:$0xff]
    %v95 = vld [vmem:[%s1 + $0x228] sm:$0xff]
    %v96 = vld [vmem:[%s1 + $0x230] sm:$0xff]
    %v97 = vld [vmem:[%s1 + $0x238] sm:$0xff]
    %v98 = vld [vmem:[%s1 + $0x240] sm:$0xff]
    %v99 = vld [vmem:[%s1 + $0x248] sm:$0xff]
    %v100 = vld [vmem:[%s1 + $0x250] sm:$0xff]
    %v101 = vld [vmem:[%s1 + $0x258] sm:$0xff]
    %v102 = vld [vmem:[%s1 + $0x260] sm:$0xff]
    %v103 = vld [vmem:[%s1 + $0x268] sm:$0xff]
    %v104 = vld [vmem:[%s1 + $0x270] sm:$0xff]
    %v105 = vld [vmem:[%s1 + $0x278] sm:$0xff]
    %v106 = vld [vmem:[%s1 + $0x280] sm:$0xff]
    %v107 = vld [vmem:[%s1 + $0x288] sm:$0xff]
    %v108 = vld [vmem:[%s1 + $0x290] sm:$0xff]
    %v109 = vld [vmem:[%s1 + $0x298] sm:$0xff]
    %v110 = vld [vmem:[%s1 + $0x2a0] sm:$0xff]
    %v111 = vld [vmem:[%s1 + $0x2a8] sm:$0xff]
    %v112 = vld [vmem:[%s1 + $0x2b0] sm:$0xff]
    %v113 = vld [vmem:[%s1 + $0x2b8] sm:$0xff]
    %v114 = vld [vmem:[%s1 + $0x2c0] sm:$0xff]
    %v115 = vld [vmem:[%s1 + $0x2c8] sm:$0xff]
    %v116 = vld [vmem:[%s1 + $0x2d0] sm:$0xff]
    %v117 = vld [vmem:[%s1 + $0x2d8] sm:$0xff]
    %v118 = vld [vmem:[%s1 + $0x2e0] sm:$0xff]
    %v119 = vld [vmem:[%s1 + $0x2e8] sm:$0xff]
    %v120 = vld [vmem:[%s1 + $0x2f0] sm:$0xff]
    %v121 = vld [vmem:[%s1 + $0x2f8] sm:$0xff]
    %v122 = vld [vmem:[%s1 + $0x300] sm:$0xff]
    %v123 = vld [vmem:[%s1 + $0x308] sm:$0xff]
    %v124 = vld [vmem:[%s1 + $0x310] sm:$0xff]
    %v125 = vld [vmem:[%s1 + $0x318] sm:$0xff]
    %v126 = vld [vmem:[%s1 + $0x320] sm:$0xff]
    %v127 = vld [vmem:[%s1 + $0x328] sm:$0xff]
    %v128 = vld [vmem:[%s1 + $0x330] sm:$0xff]
    %v129 = vld [vmem:[%s1 + $0x338] sm:$0xff]
    %v130 = vld [vmem:[%s1 + $0x340] sm:$0xff]
    %v131 = vld [vmem:[%s1 + $0x348] sm:$0xff]
    %v132 = vld [vmem:[%s1 + $0x350] sm:$0xff]
    %v133 = vld [vmem:[%s1 + $0x358] sm:$0xff]
    %v134 = vld [vmem:[%s1 + $0x360] sm:$0xff]
    %v135 = vld [vmem:[%s1 + $0x368] sm:$0xff]
    %v136 = vld [vmem:[%s1 + $0x370] sm:$0xff]
    %v137 = vld [vmem:[%s1 + $0x378] sm:$0xff]
    %v138 = vld [vmem:[%s1 + $0x380] sm:$0xff]
    %v139 = vld [vmem:[%s1 + $0x388] sm:$0xff]
    %v140 = vld [vmem:[%s1 + $0x390] sm:$0xff]
    %v141 = vld [vmem:[%s1 + $0x398] sm:$0xff]
    %v142 = vld [vmem:[%s1 + $0x3a0] sm:$0xff]
    %v143 = vld [vmem:[%s1 + $0x3a8] sm:$0xff]
    %v144 = vld [vmem:[%s1 + $0x3b0] sm:$0xff]
    %v145 = vld [vmem:[%s1 + $0x3b8] sm:$0xff]
    %v146 = vld [vmem:[%s1 + $0x3c0] sm:$0xff]
    %v147 = vld [vmem:[%s1 + $0x3c8] sm:$0xff]
    %v148 = vld [vmem:[%s1 + $0x3d0] sm:$0xff]
    %v149 = vld [vmem:[%s1 + $0x3d8] sm:$0xff]
    %v150 = vld [vmem:[%s1 + $0x3e0] sm:$0xff]
    %v151 = vld [vmem:[%s1 + $0x3e8] sm:$0xff]
    %v152 = vld [vmem:[%s1 + $0x3f0] sm:$0xff]
    %v153 = vld [vmem:[%s1 + $0x3f8] sm:$0xff]
    %v154 = vld [vmem:[%s1 + $0x400] sm:$0xff]
    %v155 = vld [vmem:[%s1 + $0x408] sm:$0xff]
    %v156 = vld [vmem:[%s1 + $0x410] sm:$0xff]
    %v157 = vld [vmem:[%s1 + $0x418] sm:$0xff]
    %v158 = vld [vmem:[%s1 + $0x420] sm:$0xff]
    %v159 = vld [vmem:[%s1 + $0x428] sm:$0xff]
    %v160 = vld [vmem:[%s1 + $0x430] sm:$0xff]
    %v161 = vld [vmem:[%s1 + $0x438] sm:$0xff]
    %v162 = vld [vmem:[%s1 + $0x440] sm:$0xff]
    %v163 = vld [vmem:[%s1 + $0x448] sm:$0xff]
    %v164 = vld [vmem:[%s1 + $0x450] sm:$0xff]
    %v165 = vld [vmem:[%s1 + $0x458] sm:$0xff]
    %v166 = vld [vmem:[%s1 + $0x460] sm:$0xff]
    %v167 = vld [vmem:[%s1 + $0x468] sm:$0xff]
    %v168 = vld [vmem:[%s1 + $0x470] sm:$0xff]
    %v169 = vld [vmem:[%s1 + $0x478] sm:$0xff]
    %v170 = vld [vmem:[%s1 + $0x480] sm:$0xff]
    %v171 = vld [vmem:[%s1 + $0x488] sm:$0xff]
    %v172 = vld [vmem:[%s1 + $0x490] sm:$0xff]
    %v173 = vld [vmem:[%s1 + $0x498] sm:$0xff]
    %v174 = vld [vmem:[%s1 + $0x4a0] sm:$0xff]
    %v175 = vld [vmem:[%s1 + $0x4a8] sm:$0xff]
    %v176 = vld [vmem:[%s1 + $0x4b0] sm:$0xff]
    %v177 = vld [vmem:[%s1 + $0x4b8] sm:$0xff]
    %v178 = vld [vmem:[%s1 + $0x4c0] sm:$0xff]
    %v179 = vld [vmem:[%s1 + $0x4c8] sm:$0xff]
    %v180 = vld [vmem:[%s1 + $0x4d0] sm:$0xff]
    %v181 = vld [vmem:[%s1 + $0x4d8] sm:$0xff]
    %v182 = vld [vmem:[%s1 + $0x4e0] sm:$0xff]
    %v183 = vld [vmem:[%s1 + $0x4e8] sm:$0xff]
    %v184 = vld [vmem:[%s1 + $0x4f0] sm:$0xff]
    %v185 = vld [vmem:[%s1 + $0x4f8] sm:$0xff]
    %v186 = vld [vmem:[%s1 + $0x500] sm:$0xff]
    %v187 = vld [vmem:[%s1 + $0x508] sm:$0xff]
    %v188 = vld [vmem:[%s1 + $0x510] sm:$0xff]
    %v189 = vld [vmem:[%s1 + $0x518] sm:$0xff]
    %v190 = vld [vmem:[%s1 + $0x520] sm:$0xff]
    %v191 = vld [vmem:[%s1 + $0x528] sm:$0xff]
    %v192 = vld [vmem:[%s1 + $0x530] sm:$0xff]
    %v193 = vld [vmem:[%s1 + $0x538] sm:$0xff]
    %v194 = vld [vmem:[%s1 + $0x540] sm:$0xff]
    %v195 = vld [vmem:[%s1 + $0x548] sm:$0xff]
    %v196 = vld [vmem:[%s1 + $0x550] sm:$0xff]
    %v197 = vld [vmem:[%s1 + $0x558] sm:$0xff]
    %v198 = vld [vmem:[%s1 + $0x560] sm:$0xff]
    %v199 = vld [vmem:[%s1 + $0x568] sm:$0xff]
    %v200 = vld [vmem:[%s1 + $0x570] sm:$0xff]
    %v201 = vld [vmem:[%s1 + $0x578] sm:$0xff]
    %v202 = vld [vmem:[%s1 + $0x580] sm:$0xff]
    %v203 = vld [vmem:[%s1 + $0x588] sm:$0xff]
    %v204 = vld [vmem:[%s1 + $0x590] sm:$0xff]
    %v205 = vld [vmem:[%s1 + $0x598] sm:$0xff]
    %v206 = vld [vmem:[%s1 + $0x5a0] sm:$0xff]
    %v207 = vld [vmem:[%s1 + $0x5a8] sm:$0xff]
    %v208 = vld [vmem:[%s1 + $0x5b0] sm:$0xff]
    %v209 = vld [vmem:[%s1 + $0x5b8] sm:$0xff]
    %v210 = vld [vmem:[%s1 + $0x5c0] sm:$0xff]
    %v211 = vld [vmem:[%s1 + $0x5c8] sm:$0xff]
    %v212 = vld [vmem:[%s1 + $0x5d0] sm:$0xff]
    %v213 = vld [vmem:[%s1 + $0x5d8] sm:$0xff]
    %v214 = vld [vmem:[%s1 + $0x5e0] sm:$0xff]
    %v215 = vld [vmem:[%s1 + $0x5e8] sm:$0xff]
    %v216 = vld [vmem:[%s1 + $0x5f0] sm:$0xff]
    %v217 = vld [vmem:[%s1 + $0x5f8] sm:$0xff]
    %v218 = vld [vmem:[%s1 + $0x600] sm:$0xff]
    %v219 = vld [vmem:[%s1 + $0x608] sm:$0xff]
    %v220 = vld [vmem:[%s1 + $0x610] sm:$0xff]
    %v221 = vld [vmem:[%s1 + $0x618] sm:$0xff]
    %v222 = vld [vmem:[%s1 + $0x620] sm:$0xff]
    %v223 = vld [vmem:[%s1 + $0x628] sm:$0xff]
    %v224 = vld [vmem:[%s1 + $0x630] sm:$0xff]
    %v225 = vld [vmem:[%s1 + $0x638] sm:$0xff]
    %v226 = vld [vmem:[%s1 + $0x640] sm:$0xff]
    %v227 = vld [vmem:[%s1 + $0x648] sm:$0xff]
    %v228 = vld [vmem:[%s1 + $0x650] sm:$0xff]
    %v229 = vld [vmem:[%s1 + $0x658] sm:$0xff]
    %v230 = vld [vmem:[%s1 + $0x660] sm:$0xff]
    %v231 = vld [vmem:[%s1 + $0x668] sm:$0xff]
    %v232 = vld [vmem:[%s1 + $0x670] sm:$0xff]
    %v233 = vld [vmem:[%s1 + $0x678] sm:$0xff]
    %v234 = vld [vmem:[%s1 + $0x680] sm:$0xff]
    %v235 = vld [vmem:[%s1 + $0x688] sm:$0xff]
    %v236 = vld [vmem:[%s1 + $0x690] sm:$0xff]
    %v237 = vld [vmem:[%s1 + $0x698] sm:$0xff]
    %v238 = vld [vmem:[%s1 + $0x6a0] sm:$0xff]
    %v239 = vld [vmem:[%s1 + $0x6a8] sm:$0xff]
    %v240 = vld [vmem:[%s1 + $0x6b0] sm:$0xff]
    %v241 = vld [vmem:[%s1 + $0x6b8] sm:$0xff]
    %v242 = vld [vmem:[%s1 + $0x6c0] sm:$0xff]
    %v243 = vld [vmem:[%s1 + $0x6c8] sm:$0xff]
    %v244 = vld [vmem:[%s1 + $0x6d0] sm:$0xff]
    %v245 = vld [vmem:[%s1 + $0x6d8] sm:$0xff]
    %v246 = vld [vmem:[%s1 + $0x6e0] sm:$0xff]
    %v247 = vld [vmem:[%s1 + $0x6e8] sm:$0xff]
    %v248 = vld [vmem:[%s1 + $0x6f0] sm:$0xff]
    %v249 = vld [vmem:[%s1 + $0x6f8] sm:$0xff]
    %v250 = vld [vmem:[%s1 + $0x700] sm:$0xff]
    %v251 = vld [vmem:[%s1 + $0x708] sm:$0xff]
    %v252 = vld [vmem:[%s1 + $0x710] sm:$0xff]
    %v253 = vld [vmem:[%s1 + $0x718] sm:$0xff]
    %v254 = vld [vmem:[%s1 + $0x720] sm:$0xff]
    %v255 = vld [vmem:[%s1 + $0x728] sm:$0xff]
    %v256 = vld [vmem:[%s1 + $0x730] sm:$0xff]
    %v257 = vld [vmem:[%s1 + $0x738] sm:$0xff]
    %v258 = vld [vmem:[%s1 + $0x740] sm:$0xff]
    %v259 = vld [vmem:[%s1 + $0x748] sm:$0xff]
    %v260 = vld [vmem:[%s1 + $0x750] sm:$0xff]
    %v261 = vld [vmem:[%s1 + $0x758] sm:$0xff]
    %v262 = vld [vmem:[%s1 + $0x760] sm:$0xff]
    %v263 = vld [vmem:[%s1 + $0x768] sm:$0xff]
    %v264 = vld [vmem:[%s1 + $0x770] sm:$0xff]
    %v265 = vld [vmem:[%s1 + $0x778] sm:$0xff]
    %v266 = vld [vmem:[%s1 + $0x780] sm:$0xff]
    %v267 = vld [vmem:[%s1 + $0x788] sm:$0xff]
    %v268 = vld [vmem:[%s1 + $0x790] sm:$0xff]
    %v269 = vld [vmem:[%s1 + $0x798] sm:$0xff]
    %v270 = vld [vmem:[%s1 + $0x7a0] sm:$0xff]
    %v271 = vld [vmem:[%s1 + $0x7a8] sm:$0xff]
    %v272 = vld [vmem:[%s1 + $0x7b0] sm:$0xff]
    %v273 = vld [vmem:[%s1 + $0x7b8] sm:$0xff]
    %v274 = vld [vmem:[%s1 + $0x7c0] sm:$0xff]
    %v275 = vld [vmem:[%s1 + $0x7c8] sm:$0xff]
    %v276 = vld [vmem:[%s1 + $0x7d0] sm:$0xff]
    %v277 = vld [vmem:[%s1 + $0x7d8] sm:$0xff]
    %v278 = vld [vmem:[%s1 + $0x7e0] sm:$0xff]
    %v279 = vld [vmem:[%s1 + $0x7e8] sm:$0xff]
    %v280 = vld [vmem:[%s1 + $0x7f0] sm:$0xff]
    %v281 = vld [vmem:[%s1 + $0x7f8] sm:$0xff]
    %v282 = vld [vmem:[%s1 + $0x800] sm:$0xff]
    %v283 = vld [vmem:[%s1 + $0x808] sm:$0xff]
    %v284 = vld [vmem:[%s1 + $0x810] sm:$0xff]
    %v285 = vld [vmem:[%s1 + $0x818] sm:$0xff]
    %v286 = vld [vmem:[%s1 + $0x820] sm:$0xff]
    %v287 = vld [vmem:[%s1 + $0x828] sm:$0xff]
    %v288 = vld [vmem:[%s1 + $0x830] sm:$0xff]
    %v289 = vld [vmem:[%s1 + $0x838] sm:$0xff]
    %v290 = vld [vmem:[%s1 + $0x840] sm:$0xff]
    %v291 = vld [vmem:[%s1 + $0x848] sm:$0xff]
    %v292 = vld [vmem:[%s1 + $0x850] sm:$0xff]
    %v293 = vld [vmem:[%s1 + $0x858] sm:$0xff]
    %v294 = vld [vmem:[%s1 + $0x860] sm:$0xff]
    %v295 = vld [vmem:[%s1 + $0x868] sm:$0xff]
    %v296 = vld [vmem:[%s1 + $0x870] sm:$0xff]
    %v297 = vld [vmem:[%s1 + $0x878] sm:$0xff]
    %v298 = vld [vmem:[%s1 + $0x880] sm:$0xff]
    %v299 = vld [vmem:[%s1 + $0x888] sm:$0xff]
    %v300 = vld [vmem:[%s1 + $0x890] sm:$0xff]
    %v301 = vld [vmem:[%s1 + $0x898] sm:$0xff]
    %v302 = vld [vmem:[%s1 + $0x8a0] sm:$0xff]
    %v303 = vld [vmem:[%s1 + $0x8a8] sm:$0xff]
    %v304 = vld [vmem:[%s1 + $0x8b0] sm:$0xff]
    %v305 = vld [vmem:[%s1 + $0x8b8] sm:$0xff]
    %v306 = vld [vmem:[%s1 + $0x8c0] sm:$0xff]
    %v307 = vld [vmem:[%s1 + $0x8c8] sm:$0xff]
    %v308 = vld [vmem:[%s1 + $0x8d0] sm:$0xff]
    %v309 = vld [vmem:[%s1 + $0x8d8] sm:$0xff]
    %v310 = vld [vmem:[%s1 + $0x8e0] sm:$0xff]
    %v311 = vld [vmem:[%s1 + $0x8e8] sm:$0xff]
    %v312 = vld [vmem:[%s1 + $0x8f0] sm:$0xff]
    %v313 = vld [vmem:[%s1 + $0x8f8] sm:$0xff]
    %v314 = vld [vmem:[%s1 + $0x900] sm:$0xff]
    %v315 = vld [vmem:[%s1 + $0x908] sm:$0xff]
    %v316 = vld [vmem:[%s1 + $0x910] sm:$0xff]
    %v317 = vld [vmem:[%s1 + $0x918] sm:$0xff]
    %v318 = vld [vmem:[%s1 + $0x920] sm:$0xff]
    %v319 = vld [vmem:[%s1 + $0x928] sm:$0xff]
    %v320 = vld [vmem:[%s1 + $0x930] sm:$0xff]
    %v321 = vld [vmem:[%s1 + $0x938] sm:$0xff]
    %v322 = vld [vmem:[%s1 + $0x940] sm:$0xff]
    %v323 = vld [vmem:[%s1 + $0x948] sm:$0xff]
    %v324 = vld [vmem:[%s1 + $0x950] sm:$0xff]
    %v325 = vld [vmem:[%s1 + $0x958] sm:$0xff]
    %v326 = vld [vmem:[%s1 + $0x960] sm:$0xff]
    %v327 = vld [vmem:[%s1 + $0x968] sm:$0xff]
    %v328 = vld [vmem:[%s1 + $0x970] sm:$0xff]
    %v329 = vld [vmem:[%s1 + $0x978] sm:$0xff]
    %v330 = vld [vmem:[%s1 + $0x980] sm:$0xff]
    %v331 = vld [vmem:[%s1 + $0x988] sm:$0xff]
    %v332 = vld [vmem:[%s1 + $0x990] sm:$0xff]
    %v333 = vld [vmem:[%s1 + $0x998] sm:$0xff]
    %v334 = vld [vmem:[%s1 + $0x9a0] sm:$0xff]
    %v335 = vld [vmem:[%s1 + $0x9a8] sm:$0xff]
    %v336 = vld [vmem:[%s1 + $0x9b0] sm:$0xff]
    %v337 = vld [vmem:[%s1 + $0x9b8] sm:$0xff]
    %v338 = vld [vmem:[%s1 + $0x9c0] sm:$0xff]
    %v339 = vld [vmem:[%s1 + $0x9c8] sm:$0xff]
    %v340 = vld [vmem:[%s1 + $0x9d0] sm:$0xff]
    %v341 = vld [vmem:[%s1 + $0x9d8] sm:$0xff]
    %v342 = vld [vmem:[%s1 + $0x9e0] sm:$0xff]
    %v343 = vld [vmem:[%s1 + $0x9e8] sm:$0xff]
    %v344 = vld [vmem:[%s1 + $0x9f0] sm:$0xff]
    %v345 = vld [vmem:[%s1 + $0x9f8] sm:$0xff]
    %v346 = vld [vmem:[%s1 + $0xa00] sm:$0xff]
    %v347 = vld [vmem:[%s1 + $0xa08] sm:$0xff]
    %v348 = vld [vmem:[%s1 + $0xa10] sm:$0xff]
    %v349 = vld [vmem:[%s1 + $0xa18] sm:$0xff]
    %v350 = vld [vmem:[%s1 + $0xa20] sm:$0xff]
    %v351 = vld [vmem:[%s1 + $0xa28] sm:$0xff]
    %v352 = vld [vmem:[%s1 + $0xa30] sm:$0xff]
    %v353 = vld [vmem:[%s1 + $0xa38] sm:$0xff]
    %v354 = vld [vmem:[%s1 + $0xa40] sm:$0xff]
    %v355 = vld [vmem:[%s1 + $0xa48] sm:$0xff]
    %v356 = vld [vmem:[%s1 + $0xa50] sm:$0xff]
    %v357 = vld [vmem:[%s1 + $0xa58] sm:$0xff]
    %v358 = vld [vmem:[%s1 + $0xa60] sm:$0xff]
    %v359 = vld [vmem:[%s1 + $0xa68] sm:$0xff]
    %v360 = vld [vmem:[%s1 + $0xa70] sm:$0xff]
    %v361 = vld [vmem:[%s1 + $0xa78] sm:$0xff]
    %v362 = vld [vmem:[%s1 + $0xa80] sm:$0xff]
    %v363 = vld [vmem:[%s1 + $0xa88] sm:$0xff]
    %v364 = vld [vmem:[%s1 + $0xa90] sm:$0xff]
    %v365 = vld [vmem:[%s1 + $0xa98] sm:$0xff]
    %v366 = vld [vmem:[%s1 + $0xaa0] sm:$0xff]
    %v367 = vld [vmem:[%s1 + $0xaa8] sm:$0xff]
    %v368 = vld [vmem:[%s1 + $0xab0] sm:$0xff]
    %v369 = vld [vmem:[%s1 + $0xab8] sm:$0xff]
    %v370 = vld [vmem:[%s1 + $0xac0] sm:$0xff]
    %v371 = vld [vmem:[%s1 + $0xac8] sm:$0xff]
    %v372 = vld [vmem:[%s1 + $0xad0] sm:$0xff]
    %v373 = vld [vmem:[%s1 + $0xad8] sm:$0xff]
    %v374 = vld [vmem:[%s1 + $0xae0] sm:$0xff]
    %v375 = vld [vmem:[%s1 + $0xae8] sm:$0xff]
    %v376 = vld [vmem:[%s1 + $0xaf0] sm:$0xff]
    %v377 = vld [vmem:[%s1 + $0xaf8] sm:$0xff]
    %v378 = vld [vmem:[%s1 + $0xb00] sm:$0xff]
    %v379 = vld [vmem:[%s1 + $0xb08] sm:$0xff]
    %v380 = vld [vmem:[%s1 + $0xb10] sm:$0xff]
    %v381 = vld [vmem:[%s1 + $0xb18] sm:$0xff]
    %v382 = vld [vmem:[%s1 + $0xb20] sm:$0xff]
    %v383 = vld [vmem:[%s1 + $0xb28] sm:$0xff]
    %v384 = vld [vmem:[%s1 + $0xb30] sm:$0xff]
    %v385 = vld [vmem:[%s1 + $0xb38] sm:$0xff]
    %v386 = vld [vmem:[%s1 + $0xb40] sm:$0xff]
    %v387 = vld [vmem:[%s1 + $0xb48] sm:$0xff]
    %v388 = vld [vmem:[%s1 + $0xb50] sm:$0xff]
    %v389 = vld [vmem:[%s1 + $0xb58] sm:$0xff]
    %v390 = vld [vmem:[%s1 + $0xb60] sm:$0xff]
    %v391 = vld [vmem:[%s1 + $0xb68] sm:$0xff]
    %v392 = vld [vmem:[%s1 + $0xb70] sm:$0xff]
    %v393 = vld [vmem:[%s1 + $0xb78] sm:$0xff]
    %v394 = vld [vmem:[%s1 + $0xb80] sm:$0xff]
    %v395 = vld [vmem:[%s1 + $0xb88] sm:$0xff]
    %v396 = vld [vmem:[%s1 + $0xb90] sm:$0xff]
    %v397 = vld [vmem:[%s1 + $0xb98] sm:$0xff]
    %v398 = vld [vmem:[%s1 + $0xba0] sm:$0xff]
    %v399 = vld [vmem:[%s1 + $0xba8] sm:$0xff]
    %v400 = vld [vmem:[%s1 + $0xbb0] sm:$0xff]
    %v401 = vld [vmem:[%s1 + $0xbb8] sm:$0xff]
    %v402 = vld [vmem:[%s1 + $0xbc0] sm:$0xff]
    %v403 = vld [vmem:[%s1 + $0xbc8] sm:$0xff]
    %v404 = vld [vmem:[%s1 + $0xbd0] sm:$0xff]
    %v405 = vld [vmem:[%s1 + $0xbd8] sm:$0xff]
    %v406 = vld [vmem:[%s1 + $0xbe0] sm:$0xff]
    %v407 = vld [vmem:[%s1 + $0xbe8] sm:$0xff]
    %v408 = vld [vmem:[%s1 + $0xbf0] sm:$0xff]
    %v409 = vld [vmem:[%s1 + $0xbf8] sm:$0xff]
    %v410 = vld [vmem:[%s1 + $0xc00] sm:$0xff]
    %v411 = vld [vmem:[%s1 + $0xc08] sm:$0xff]
    %v412 = vld [vmem:[%s1 + $0xc10] sm:$0xff]
    %v413 = vld [vmem:[%s1 + $0xc18] sm:$0xff]
    %v414 = vld [vmem:[%s1 + $0xc20] sm:$0xff]
    %v415 = vld [vmem:[%s1 + $0xc28] sm:$0xff]
    %v416 = vld [vmem:[%s1 + $0xc30] sm:$0xff]
    %v417 = vld [vmem:[%s1 + $0xc38] sm:$0xff]
    %v418 = vld [vmem:[%s1 + $0xc40] sm:$0xff]
    %v419 = vld [vmem:[%s1 + $0xc48] sm:$0xff]
    %v420 = vld [vmem:[%s1 + $0xc50] sm:$0xff]
    %v421 = vld [vmem:[%s1 + $0xc58] sm:$0xff]
    %v422 = vld [vmem:[%s1 + $0xc60] sm:$0xff]
    %v423 = vld [vmem:[%s1 + $0xc68] sm:$0xff]
    %v424 = vld [vmem:[%s1 + $0xc70] sm:$0xff]
    %v425 = vld [vmem:[%s1 + $0xc78] sm:$0xff]
    %v426 = vld [vmem:[%s1 + $0xc80] sm:$0xff]
    %v427 = vld [vmem:[%s1 + $0xc88] sm:$0xff]
    %v428 = vld [vmem:[%s1 + $0xc90] sm:$0xff]
    %v429 = vld [vmem:[%s1 + $0xc98] sm:$0xff]
    %v430 = vld [vmem:[%s1 + $0xca0] sm:$0xff]
    %v431 = vld [vmem:[%s1 + $0xca8] sm:$0xff]
    %v432 = vld [vmem:[%s1 + $0xcb0] sm:$0xff]
    %v433 = vld [vmem:[%s1 + $0xcb8] sm:$0xff]
    %v434 = vld [vmem:[%s1 + $0xcc0] sm:$0xff]
    %v435 = vld [vmem:[%s1 + $0xcc8] sm:$0xff]
    %v436 = vld [vmem:[%s1 + $0xcd0] sm:$0xff]
    %v437 = vld [vmem:[%s1 + $0xcd8] sm:$0xff]
    %v438 = vld [vmem:[%s1 + $0xce0] sm:$0xff]
    %v439 = vld [vmem:[%s1 + $0xce8] sm:$0xff]
    %v440 = vld [vmem:[%s1 + $0xcf0] sm:$0xff]
    %v441 = vld [vmem:[%s1 + $0xcf8] sm:$0xff]
    %v442 = vld [vmem:[%s1 + $0xd00] sm:$0xff]
    %v443 = vld [vmem:[%s1 + $0xd08] sm:$0xff]
    %v444 = vld [vmem:[%s1 + $0xd10] sm:$0xff]
    %v445 = vld [vmem:[%s1 + $0xd18] sm:$0xff]
    %v446 = vld [vmem:[%s1 + $0xd20] sm:$0xff]
    %v447 = vld [vmem:[%s1 + $0xd28] sm:$0xff]
    %v448 = vld [vmem:[%s1 + $0xd30] sm:$0xff]
    %v449 = vld [vmem:[%s1 + $0xd38] sm:$0xff]
    %v450 = vld [vmem:[%s1 + $0xd40] sm:$0xff]
    %v451 = vld [vmem:[%s1 + $0xd48] sm:$0xff]
    %v452 = vld [vmem:[%s1 + $0xd50] sm:$0xff]
    %v453 = vld [vmem:[%s1 + $0xd58] sm:$0xff]
    %v454 = vld [vmem:[%s1 + $0xd60] sm:$0xff]
    %v455 = vld [vmem:[%s1 + $0xd68] sm:$0xff]
    %v456 = vld [vmem:[%s1 + $0xd70] sm:$0xff]
    %v457 = vld [vmem:[%s1 + $0xd78] sm:$0xff]
    %v458 = vld [vmem:[%s1 + $0xd80] sm:$0xff]
    %v459 = vld [vmem:[%s1 + $0xd88] sm:$0xff]
    %v460 = vld [vmem:[%s1 + $0xd90] sm:$0xff]
    %v461 = vld [vmem:[%s1 + $0xd98] sm:$0xff]
    %v462 = vld [vmem:[%s1 + $0xda0] sm:$0xff]
    %v463 = vld [vmem:[%s1 + $0xda8] sm:$0xff]
    %v464 = vld [vmem:[%s1 + $0xdb0] sm:$0xff]
    %v465 = vld [vmem:[%s1 + $0xdb8] sm:$0xff]
    %v466 = vld [vmem:[%s1 + $0xdc0] sm:$0xff]
    %v467 = vld [vmem:[%s1 + $0xdc8] sm:$0xff]
    %v468 = vld [vmem:[%s1 + $0xdd0] sm:$0xff]
    %v469 = vld [vmem:[%s1 + $0xdd8] sm:$0xff]
    %v470 = vld [vmem:[%s1 + $0xde0] sm:$0xff]
    %v471 = vld [vmem:[%s1 + $0xde8] sm:$0xff]
    %v472 = vld [vmem:[%s1 + $0xdf0] sm:$0xff]
    %v473 = vld [vmem:[%s1 + $0xdf8] sm:$0xff]
    %v474 = vld [vmem:[%s1 + $0xe00] sm:$0xff]
    %v475 = vld [vmem:[%s1 + $0xe08] sm:$0xff]
    %v476 = vld [vmem:[%s1 + $0xe10] sm:$0xff]
    %v477 = vld [vmem:[%s1 + $0xe18] sm:$0xff]
    %v478 = vld [vmem:[%s1 + $0xe20] sm:$0xff]
    %v479 = vld [vmem:[%s1 + $0xe28] sm:$0xff]
    %v480 = vld [vmem:[%s1 + $0xe30] sm:$0xff]
    %v481 = vld [vmem:[%s1 + $0xe38] sm:$0xff]
    %v482 = vld [vmem:[%s1 + $0xe40] sm:$0xff]
    %v483 = vld [vmem:[%s1 + $0xe48] sm:$0xff]
    %v484 = vld [vmem:[%s1 + $0xe50] sm:$0xff]
    %v485 = vld [vmem:[%s1 + $0xe58] sm:$0xff]
    %v486 = vld [vmem:[%s1 + $0xe60] sm:$0xff]
    %v487 = vld [vmem:[%s1 + $0xe68] sm:$0xff]
    %v488 = vld [vmem:[%s1 + $0xe70] sm:$0xff]
    %v489 = vld [vmem:[%s1 + $0xe78] sm:$0xff]
    %v490 = vld [vmem:[%s1 + $0xe80] sm:$0xff]
    %v491 = vld [vmem:[%s1 + $0xe88] sm:$0xff]
    %v492 = vld [vmem:[%s1 + $0xe90] sm:$0xff]
    %v493 = vld [vmem:[%s1 + $0xe98] sm:$0xff]
    %v494 = vld [vmem:[%s1 + $0xea0] sm:$0xff]
    %v495 = vld [vmem:[%s1 + $0xea8] sm:$0xff]
    %v496 = vld [vmem:[%s1 + $0xeb0] sm:$0xff]
    %v497 = vld [vmem:[%s1 + $0xeb8] sm:$0xff]
    %v498 = vld [vmem:[%s1 + $0xec0] sm:$0xff]
    %v499 = vld [vmem:[%s1 + $0xec8] sm:$0xff]
    %v500 = vld [vmem:[%s1 + $0xed0] sm:$0xff]
    %v501 = vld [vmem:[%s1 + $0xed8] sm:$0xff]
    %v502 = vld [vmem:[%s1 + $0xee0] sm:$0xff]
    %v503 = vld [vmem:[%s1 + $0xee8] sm:$0xff]
    %v504 = vld [vmem:[%s1 + $0xef0] sm:$0xff]
    %v505 = vld [vmem:[%s1 + $0xef8] sm:$0xff]
    %v506 = vld [vmem:[%s1 + $0xf00] sm:$0xff]
    %v507 = vld [vmem:[%s1 + $0xf08] sm:$0xff]
    %v508 = vld [vmem:[%s1 + $0xf10] sm:$0xff]
    %v509 = vld [vmem:[%s1 + $0xf18] sm:$0xff]
    %v510 = vld [vmem:[%s1 + $0xf20] sm:$0xff]
    %v511 = vld [vmem:[%s1 + $0xf28] sm:$0xff]
    %v512 = vld [vmem:[%s1 + $0xf30] sm:$0xff]
    %v513 = vld [vmem:[%s1 + $0xf38] sm:$0xff]
    %v514 = vld [vmem:[%s1 + $0xf40] sm:$0xff]
    %v515 = vld [vmem:[%s1 + $0xf48] sm:$0xff]
    %v516 = vld [vmem:[%s1 + $0xf50] sm:$0xff]
    %v517 = vld [vmem:[%s1 + $0xf58] sm:$0xff]
    %v518 = vld [vmem:[%s1 + $0xf60] sm:$0xff]
    %v519 = vld [vmem:[%s1 + $0xf68] sm:$0xff]
    %v520 = vld [vmem:[%s1 + $0xf70] sm:$0xff]
    %v521 = vld [vmem:[%s1 + $0xf78] sm:$0xff]
    %v522 = vld [vmem:[%s1 + $0xf80] sm:$0xff]
    %v523 = vld [vmem:[%s1 + $0xf88] sm:$0xff]
    %v524 = vld [vmem:[%s1 + $0xf90] sm:$0xff]
    %v525 = vld [vmem:[%s1 + $0xf98] sm:$0xff]
    %v526 = vld [vmem:[%s1 + $0xfa0] sm:$0xff]
    %v527 = vld [vmem:[%s1 + $0xfa8] sm:$0xff]
    %v528 = vld [vmem:[%s1 + $0xfb0] sm:$0xff]
    %v529 = vld [vmem:[%s1 + $0xfb8] sm:$0xff]
    %v530 = vld [vmem:[%s1 + $0xfc0] sm:$0xff]
    %v531 = vld [vmem:[%s1 + $0xfc8] sm:$0xff]
    %v532 = vld [vmem:[%s1 + $0xfd0] sm:$0xff]
    %v533 = vld [vmem:[%s1 + $0xfd8] sm:$0xff]
    %v534 = vld [vmem:[%s1 + $0xfe0] sm:$0xff]
    %v535 = vld [vmem:[%s1 + $0xfe8] sm:$0xff]
    %v536 = vld [vmem:[%s1 + $0xff0] sm:$0xff]
    %v537 = vld [vmem:[%s1 + $0xff8] sm:$0xff]
    %v538 = vld [vmem:[%s1 + $0x1000] sm:$0xff]
    %v539 = vld [vmem:[%s1 + $0x1008] sm:$0xff]
    %v540 = vld [vmem:[%s1 + $0x1010] sm:$0xff]
    %v541 = vld [vmem:[%s1 + $0x1018] sm:$0xff]
    %v542 = vld [vmem:[%s1 + $0x1020] sm:$0xff]
    %v543 = vld [vmem:[%s1 + $0x1028] sm:$0xff]
    %v544 = vld [vmem:[%s1 + $0x1030] sm:$0xff]
    %v545 = vld [vmem:[%s1 + $0x1038] sm:$0xff]
    %v546 = vld [vmem:[%s1 + $0x1040] sm:$0xff]
    %v547 = vld [vmem:[%s1 + $0x1048] sm:$0xff]
    %v548 = vld [vmem:[%s1 + $0x1050] sm:$0xff]
    %v549 = vld [vmem:[%s1 + $0x1058] sm:$0xff]
    %v550 = vld [vmem:[%s1 + $0x1060] sm:$0xff]
    %v551 = vld [vmem:[%s1 + $0x1068] sm:$0xff]
    %v552 = vld [vmem:[%s1 + $0x1070] sm:$0xff]
    %v553 = vld [vmem:[%s1 + $0x1078] sm:$0xff]
    %v554 = vld [vmem:[%s1 + $0x1080] sm:$0xff]
    %v555 = vld [vmem:[%s1 + $0x1088] sm:$0xff]
    %v556 = vld [vmem:[%s1 + $0x1090] sm:$0xff]
    %v557 = vld [vmem:[%s1 + $0x1098] sm:$0xff]
    %v558 = vld [vmem:[%s1 + $0x10a0] sm:$0xff]
    %v559 = vld [vmem:[%s1 + $0x10a8] sm:$0xff]
    %v560 = vld [vmem:[%s1 + $0x10b0] sm:$0xff]
    %v561 = vld [vmem:[%s1 + $0x10b8] sm:$0xff]
    %v562 = vld [vmem:[%s1 + $0x10c0] sm:$0xff]
    %v563 = vld [vmem:[%s1 + $0x10c8] sm:$0xff]
    %v564 = vld [vmem:[%s1 + $0x10d0] sm:$0xff]
    %v565 = vld [vmem:[%s1 + $0x10d8] sm:$0xff]
    %v566 = vld [vmem:[%s1 + $0x10e0] sm:$0xff]
    %v567 = vld [vmem:[%s1 + $0x10e8] sm:$0xff]
    %v568 = vld [vmem:[%s1 + $0x10f0] sm:$0xff]
    %v569 = vld [vmem:[%s1 + $0x10f8] sm:$0xff]
    %v570 = vld [vmem:[%s1 + $0x1100] sm:$0xff]
    %v571 = vld [vmem:[%s1 + $0x1108] sm:$0xff]
    %v572 = vld [vmem:[%s1 + $0x1110] sm:$0xff]
    %v573 = vld [vmem:[%s1 + $0x1118] sm:$0xff]
    %v574 = vld [vmem:[%s1 + $0x1120] sm:$0xff]
    %v575 = vld [vmem:[%s1 + $0x1128] sm:$0xff]
    %v576 = vld [vmem:[%s1 + $0x1130] sm:$0xff]
    %v577 = vld [vmem:[%s1 + $0x1138] sm:$0xff]
    %v578 = vld [vmem:[%s1 + $0x1140] sm:$0xff]
    %v579 = vld [vmem:[%s1 + $0x1148] sm:$0xff]
    %v580 = vld [vmem:[%s1 + $0x1150] sm:$0xff]
    %v581 = vld [vmem:[%s1 + $0x1158] sm:$0xff]
    %v582 = vld [vmem:[%s1 + $0x1160] sm:$0xff]
    %v583 = vld [vmem:[%s1 + $0x1168] sm:$0xff]
    %v584 = vld [vmem:[%s1 + $0x1170] sm:$0xff]
    %v585 = vld [vmem:[%s1 + $0x1178] sm:$0xff]
    %v586 = vld [vmem:[%s1 + $0x1180] sm:$0xff]
    %v587 = vld [vmem:[%s1 + $0x1188] sm:$0xff]
    %v588 = vld [vmem:[%s1 + $0x1190] sm:$0xff]
    %v589 = vld [vmem:[%s1 + $0x1198] sm:$0xff]
    %v590 = vld [vmem:[%s1 + $0x11a0] sm:$0xff]
    %v591 = vld [vmem:[%s1 + $0x11a8] sm:$0xff]
    %v592 = vld [vmem:[%s1 + $0x11b0] sm:$0xff]
    %v593 = vld [vmem:[%s1 + $0x11b8] sm:$0xff]
    %v594 = vld [vmem:[%s1 + $0x11c0] sm:$0xff]
    %v595 = vld [vmem:[%s1 + $0x11c8] sm:$0xff]
    %v596 = vld [vmem:[%s1 + $0x11d0] sm:$0xff]
    %v597 = vld [vmem:[%s1 + $0x11d8] sm:$0xff]
    %v598 = vld [vmem:[%s1 + $0x11e0] sm:$0xff]
    %v599 = vld [vmem:[%s1 + $0x11e8] sm:$0xff]
    %v600 = vld [vmem:[%s1 + $0x11f0] sm:$0xff]
    %v601 = vld [vmem:[%s1 + $0x11f8] sm:$0xff]
    %v602 = vld [vmem:[%s1 + $0x1200] sm:$0xff]
    %v603 = vld [vmem:[%s1 + $0x1208] sm:$0xff]
    %v604 = vld [vmem:[%s1 + $0x1210] sm:$0xff]
    %v605 = vld [vmem:[%s1 + $0x1218] sm:$0xff]
    %v606 = vld [vmem:[%s1 + $0x1220] sm:$0xff]
    %v607 = vld [vmem:[%s1 + $0x1228] sm:$0xff]
    %v608 = vld [vmem:[%s1 + $0x1230] sm:$0xff]
    %v609 = vld [vmem:[%s1 + $0x1238] sm:$0xff]
    %v610 = vld [vmem:[%s1 + $0x1240] sm:$0xff]
    %v611 = vld [vmem:[%s1 + $0x1248] sm:$0xff]
    %v612 = vld [vmem:[%s1 + $0x1250] sm:$0xff]
    %v613 = vld [vmem:[%s1 + $0x1258] sm:$0xff]
    %v614 = vld [vmem:[%s1 + $0x1260] sm:$0xff]
    %v615 = vld [vmem:[%s1 + $0x1268] sm:$0xff]
    %v616 = vld [vmem:[%s1 + $0x1270] sm:$0xff]
    %v617 = vld [vmem:[%s1 + $0x1278] sm:$0xff]
    %v618 = vld [vmem:[%s1 + $0x1280] sm:$0xff]
    %v619 = vld [vmem:[%s1 + $0x1288] sm:$0xff]
    %v620 = vld [vmem:[%s1 + $0x1290] sm:$0xff]
    %v621 = vld [vmem:[%s1 + $0x1298] sm:$0xff]
    %v622 = vld [vmem:[%s1 + $0x12a0] sm:$0xff]
    %v623 = vld [vmem:[%s1 + $0x12a8] sm:$0xff]
    %v624 = vld [vmem:[%s1 + $0x12b0] sm:$0xff]
    %v625 = vld [vmem:[%s1 + $0x12b8] sm:$0xff]
    %v626 = vld [vmem:[%s1 + $0x12c0] sm:$0xff]
    %v627 = vld [vmem:[%s1 + $0x12c8] sm:$0xff]
    %v628 = vld [vmem:[%s1 + $0x12d0] sm:$0xff]
    %v629 = vld [vmem:[%s1 + $0x12d8] sm:$0xff]
    %v630 = vld [vmem:[%s1 + $0x12e0] sm:$0xff]
    %v631 = vld [vmem:[%s1 + $0x12e8] sm:$0xff]
    %v632 = vld [vmem:[%s1 + $0x12f0] sm:$0xff]
    %v633 = vld [vmem:[%s1 + $0x12f8] sm:$0xff]
    %v634 = vld [vmem:[%s1 + $0x1300] sm:$0xff]
    %v635 = vld [vmem:[%s1 + $0x1308] sm:$0xff]
    %v636 = vld [vmem:[%s1 + $0x1310] sm:$0xff]
    %v637 = vld [vmem:[%s1 + $0x1318] sm:$0xff]
    %v638 = vld [vmem:[%s1 + $0x1320] sm:$0xff]
    %v639 = vld [vmem:[%s1 + $0x1328] sm:$0xff]
    %v640 = vld [vmem:[%s1 + $0x1330] sm:$0xff]
    %v641 = vld [vmem:[%s1 + $0x1338] sm:$0xff]
    %v642 = vld [vmem:[%s1 + $0x1340] sm:$0xff]
    %v643 = vld [vmem:[%s1 + $0x1348] sm:$0xff]
    %v644 = vld [vmem:[%s1 + $0x1350] sm:$0xff]
    %v645 = vld [vmem:[%s1 + $0x1358] sm:$0xff]
    %v646 = vld [vmem:[%s1 + $0x1360] sm:$0xff]
    %v647 = vld [vmem:[%s1 + $0x1368] sm:$0xff]
    %v648 = vld [vmem:[%s1 + $0x1370] sm:$0xff]
    %v649 = vld [vmem:[%s1 + $0x1378] sm:$0xff]
    %v650 = vld [vmem:[%s1 + $0x1380] sm:$0xff]
    %v651 = vld [vmem:[%s1 + $0x1388] sm:$0xff]
    %v652 = vld [vmem:[%s1 + $0x1390] sm:$0xff]
    %v653 = vld [vmem:[%s1 + $0x1398] sm:$0xff]
    %v654 = vld [vmem:[%s1 + $0x13a0] sm:$0xff]
    %v655 = vld [vmem:[%s1 + $0x13a8] sm:$0xff]
    %v656 = vld [vmem:[%s1 + $0x13b0] sm:$0xff]
    %v657 = vld [vmem:[%s1 + $0x13b8] sm:$0xff]
    %v658 = vld [vmem:[%s1 + $0x13c0] sm:$0xff]
    %v659 = vld [vmem:[%s1 + $0x13c8] sm:$0xff]
    %v660 = vld [vmem:[%s1 + $0x13d0] sm:$0xff]
    %v661 = vld [vmem:[%s1 + $0x13d8] sm:$0xff]
    %v662 = vld [vmem:[%s1 + $0x13e0] sm:$0xff]
    %v663 = vld [vmem:[%s1 + $0x13e8] sm:$0xff]
    %v664 = vld [vmem:[%s1 + $0x13f0] sm:$0xff]
    %v665 = vld [vmem:[%s1 + $0x13f8] sm:$0xff]
    %v666 = vld [vmem:[%s1 + $0x1400] sm:$0xff]
    %v667 = vld [vmem:[%s1 + $0x1408] sm:$0xff]
    %v668 = vld [vmem:[%s1 + $0x1410] sm:$0xff]
    %v669 = vld [vmem:[%s1 + $0x1418] sm:$0xff]
    %v670 = vld [vmem:[%s1 + $0x1420] sm:$0xff]
    %v671 = vld [vmem:[%s1 + $0x1428] sm:$0xff]
    %v672 = vld [vmem:[%s1 + $0x1430] sm:$0xff]
    %v673 = vld [vmem:[%s1 + $0x1438] sm:$0xff]
    %v674 = vld [vmem:[%s1 + $0x1440] sm:$0xff]
    %v675 = vld [vmem:[%s1 + $0x1448] sm:$0xff]
    %v676 = vld [vmem:[%s1 + $0x1450] sm:$0xff]
    %v677 = vld [vmem:[%s1 + $0x1458] sm:$0xff]
    %v678 = vld [vmem:[%s1 + $0x1460] sm:$0xff]
    %v679 = vld [vmem:[%s1 + $0x1468] sm:$0xff]
    %v680 = vld [vmem:[%s1 + $0x1470] sm:$0xff]
    %v681 = vld [vmem:[%s1 + $0x1478] sm:$0xff]
    %v682 = vld [vmem:[%s1 + $0x1480] sm:$0xff]
    %v683 = vld [vmem:[%s1 + $0x1488] sm:$0xff]
    %v684 = vld [vmem:[%s1 + $0x1490] sm:$0xff]
    %v685 = vld [vmem:[%s1 + $0x1498] sm:$0xff]
    %v686 = vld [vmem:[%s1 + $0x14a0] sm:$0xff]
    %v687 = vld [vmem:[%s1 + $0x14a8] sm:$0xff]
    %v688 = vld [vmem:[%s1 + $0x14b0] sm:$0xff]
    %v689 = vld [vmem:[%s1 + $0x14b8] sm:$0xff]
    %v690 = vld [vmem:[%s1 + $0x14c0] sm:$0xff]
    %v691 = vld [vmem:[%s1 + $0x14c8] sm:$0xff]
    %v692 = vld [vmem:[%s1 + $0x14d0] sm:$0xff]
    %v693 = vld [vmem:[%s1 + $0x14d8] sm:$0xff]
    %v694 = vld [vmem:[%s1 + $0x14e0] sm:$0xff]
    %v695 = vld [vmem:[%s1 + $0x14e8] sm:$0xff]
    %v696 = vld [vmem:[%s1 + $0x14f0] sm:$0xff]
    %v697 = vld [vmem:[%s1 + $0x14f8] sm:$0xff]
    %v698 = vld [vmem:[%s1 + $0x1500] sm:$0xff]
    %v699 = vld [vmem:[%s1 + $0x1508] sm:$0xff]
    %v700 = vld [vmem:[%s1 + $0x1510] sm:$0xff]
    %v701 = vld [vmem:[%s1 + $0x1518] sm:$0xff]
    %v702 = vld [vmem:[%s1 + $0x1520] sm:$0xff]
    %v703 = vld [vmem:[%s1 + $0x1528] sm:$0xff]
    %v704 = vld [vmem:[%s1 + $0x1530] sm:$0xff]
    %v705 = vld [vmem:[%s1 + $0x1538] sm:$0xff]
    %v706 = vld [vmem:[%s1 + $0x1540] sm:$0xff]
    %v707 = vld [vmem:[%s1 + $0x1548] sm:$0xff]
    %v708 = vld [vmem:[%s1 + $0x1550] sm:$0xff]
    %v709 = vld [vmem:[%s1 + $0x1558] sm:$0xff]
    %v710 = vld [vmem:[%s1 + $0x1560] sm:$0xff]
    %v711 = vld [vmem:[%s1 + $0x1568] sm:$0xff]
    %v712 = vld [vmem:[%s1 + $0x1570] sm:$0xff]
    %v713 = vld [vmem:[%s1 + $0x1578] sm:$0xff]
    %v714 = vld [vmem:[%s1 + $0x1580] sm:$0xff]
    %v715 = vld [vmem:[%s1 + $0x1588] sm:$0xff]
    %v716 = vld [vmem:[%s1 + $0x1590] sm:$0xff]
    %v717 = vld [vmem:[%s1 + $0x1598] sm:$0xff]
    %v718 = vld [vmem:[%s1 + $0x15a0] sm:$0xff]
    %v719 = vld [vmem:[%s1 + $0x15a8] sm:$0xff]
    %v720 = vld [vmem:[%s1 + $0x15b0] sm:$0xff]
    %v721 = vld [vmem:[%s1 + $0x15b8] sm:$0xff]
    %v722 = vld [vmem:[%s1 + $0x15c0] sm:$0xff]
    %v723 = vld [vmem:[%s1 + $0x15c8] sm:$0xff]
    %v724 = vld [vmem:[%s1 + $0x15d0] sm:$0xff]
    %v725 = vld [vmem:[%s1 + $0x15d8] sm:$0xff]
    %v726 = vld [vmem:[%s1 + $0x15e0] sm:$0xff]
    %v727 = vld [vmem:[%s1 + $0x15e8] sm:$0xff]
    %v728 = vld [vmem:[%s1 + $0x15f0] sm:$0xff]
    %v729 = vld [vmem:[%s1 + $0x15f8] sm:$0xff]
    %v730 = vld [vmem:[%s1 + $0x1600] sm:$0xff]
    %v731 = vld [vmem:[%s1 + $0x1608] sm:$0xff]
    %v732 = vld [vmem:[%s1 + $0x1610] sm:$0xff]
    %v733 = vld [vmem:[%s1 + $0x1618] sm:$0xff]
    %v734 = vld [vmem:[%s1 + $0x1620] sm:$0xff]
    %v735 = vld [vmem:[%s1 + $0x1628] sm:$0xff]
    %v736 = vld [vmem:[%s1 + $0x1630] sm:$0xff]
    %v737 = vld [vmem:[%s1 + $0x1638] sm:$0xff]
    %v738 = vld [vmem:[%s1 + $0x1640] sm:$0xff]
    %v739 = vld [vmem:[%s1 + $0x1648] sm:$0xff]
    %v740 = vld [vmem:[%s1 + $0x1650] sm:$0xff]
    %v741 = vld [vmem:[%s1 + $0x1658] sm:$0xff]
    %v742 = vld [vmem:[%s1 + $0x1660] sm:$0xff]
    %v743 = vld [vmem:[%s1 + $0x1668] sm:$0xff]
    %v744 = vld [vmem:[%s1 + $0x1670] sm:$0xff]
    %v745 = vld [vmem:[%s1 + $0x1678] sm:$0xff]
    %v746 = vld [vmem:[%s1 + $0x1680] sm:$0xff]
    %v747 = vld [vmem:[%s1 + $0x1688] sm:$0xff]
    %v748 = vld [vmem:[%s1 + $0x1690] sm:$0xff]
    %v749 = vld [vmem:[%s1 + $0x1698] sm:$0xff]
    %v750 = vld [vmem:[%s1 + $0x16a0] sm:$0xff]
    %v751 = vld [vmem:[%s1 + $0x16a8] sm:$0xff]
    %v752 = vld [vmem:[%s1 + $0x16b0] sm:$0xff]
    %v753 = vld [vmem:[%s1 + $0x16b8] sm:$0xff]
    %v754 = vld [vmem:[%s1 + $0x16c0] sm:$0xff]
    %v755 = vld [vmem:[%s1 + $0x16c8] sm:$0xff]
    %v756 = vld [vmem:[%s1 + $0x16d0] sm:$0xff]
    %v757 = vld [vmem:[%s1 + $0x16d8] sm:$0xff]
    %v758 = vld [vmem:[%s1 + $0x16e0] sm:$0xff]
    %v759 = vld [vmem:[%s1 + $0x16e8] sm:$0xff]
    %v760 = vld [vmem:[%s1 + $0x16f0] sm:$0xff]
    %v761 = vld [vmem:[%s1 + $0x16f8] sm:$0xff]
    %v762 = vld [vmem:[%s1 + $0x1700] sm:$0xff]
    %v763 = vld [vmem:[%s1 + $0x1708] sm:$0xff]
    %v764 = vld [vmem:[%s1 + $0x1710] sm:$0xff]
    %v765 = vld [vmem:[%s1 + $0x1718] sm:$0xff]
    %v766 = vld [vmem:[%s1 + $0x1720] sm:$0xff]
    %v767 = vld [vmem:[%s1 + $0x1728] sm:$0xff]
    %v768 = vld [vmem:[%s1 + $0x1730] sm:$0xff]
    %v769 = vld [vmem:[%s1 + $0x1738] sm:$0xff]
    %v770 = vld [vmem:[%s1 + $0x1740] sm:$0xff]
    %v771 = vld [vmem:[%s1 + $0x1748] sm:$0xff]
    %v772 = vld [vmem:[%s1 + $0x1750] sm:$0xff]
    %v773 = vld [vmem:[%s1 + $0x1758] sm:$0xff]
    %v774 = vld [vmem:[%s1 + $0x1760] sm:$0xff]
    %v775 = vld [vmem:[%s1 + $0x1768] sm:$0xff]
    %v776 = vld [vmem:[%s1 + $0x1770] sm:$0xff]
    %v777 = vld [vmem:[%s1 + $0x1778] sm:$0xff]
    %v778 = vld [vmem:[%s1 + $0x1780] sm:$0xff]
    %v779 = vld [vmem:[%s1 + $0x1788] sm:$0xff]
    %v780 = vld [vmem:[%s1 + $0x1790] sm:$0xff]
    %v781 = vld [vmem:[%s1 + $0x1798] sm:$0xff]
    %v782 = vld [vmem:[%s1 + $0x17a0] sm:$0xff]
    %v783 = vld [vmem:[%s1 + $0x17a8] sm:$0xff]
    %v784 = vld [vmem:[%s1 + $0x17b0] sm:$0xff]
    %v785 = vld [vmem:[%s1 + $0x17b8] sm:$0xff]
    %v786 = vld [vmem:[%s1 + $0x17c0] sm:$0xff]
    %v787 = vld [vmem:[%s1 + $0x17c8] sm:$0xff]
    %v788 = vld [vmem:[%s1 + $0x17d0] sm:$0xff]
    %v789 = vld [vmem:[%s1 + $0x17d8] sm:$0xff]
    %v790 = vld [vmem:[%s1 + $0x17e0] sm:$0xff]
    %v791 = vld [vmem:[%s1 + $0x17e8] sm:$0xff]
    %v792 = vld [vmem:[%s1 + $0x17f0] sm:$0xff]
    %v793 = vld [vmem:[%s1 + $0x17f8] sm:$0xff]
    %v794 = vld [vmem:[%s1 + $0x1800] sm:$0xff]
    %v795 = vld [vmem:[%s1 + $0x1808] sm:$0xff]
    %v796 = vld [vmem:[%s1 + $0x1810] sm:$0xff]
    %v797 = vld [vmem:[%s1 + $0x1818] sm:$0xff]
    %v798 = vld [vmem:[%s1 + $0x1820] sm:$0xff]
    %v799 = vld [vmem:[%s1 + $0x1828] sm:$0xff]
    %v800 = vld [vmem:[%s1 + $0x1830] sm:$0xff]
    %v801 = vld [vmem:[%s1 + $0x1838] sm:$0xff]
    %v802 = vld [vmem:[%s1 + $0x1840] sm:$0xff]
    %v803 = vld [vmem:[%s1 + $0x1848] sm:$0xff]
    %v804 = vld [vmem:[%s1 + $0x1850] sm:$0xff]
    %v805 = vld [vmem:[%s1 + $0x1858] sm:$0xff]
    %v806 = vld [vmem:[%s1 + $0x1860] sm:$0xff]
    %v807 = vld [vmem:[%s1 + $0x1868] sm:$0xff]
    %v808 = vld [vmem:[%s1 + $0x1870] sm:$0xff]
    %v809 = vld [vmem:[%s1 + $0x1878] sm:$0xff]
    %v810 = vld [vmem:[%s2] sm:$0xf]
    %v812 = vperm.slane %v810, 0
    %v813 = vperm.slane %v810, 1
    %v814 = vperm.slane %v810, 2
    %v815 = vperm.slane %v810, 3
    %821 = vst [vmem:[#allocation1] ss:$9 sm:$0xff] %v22
    %v822 = vld [vmem:[#allocation1] sm:$0xff]
    %v823 = vld [vmem:[#allocation1 + $0x9] sm:$0xff]
    %v824 = vld [vmem:[#allocation1 + $0x12] sm:$0xff]
    %v825 = vld [vmem:[#allocation1 + $0x1b] sm:$0xff]
    %v826 = vld [vmem:[#allocation1 + $0x24] sm:$0xff]
    %v827 = vld [vmem:[#allocation1 + $0x2d] sm:$0xff]
    %v828 = vld [vmem:[#allocation1 + $0x36] sm:$0xff]
    %v829 = vld [vmem:[#allocation1 + $0x3f] sm:$0xff]
    %831 = vst [vmem:[#allocation1] ss:$9 sm:$0xff] %v23
    %v832 = vld [vmem:[#allocation1] sm:$0xff]
    %v833 = vld [vmem:[#allocation1 + $0x9] sm:$0xff]
    %v834 = vld [vmem:[#allocation1 + $0x12] sm:$0xff]
    %v835 = vld [vmem:[#allocation1 + $0x1b] sm:$0xff]
    %v836 = vld [vmem:[#allocation1 + $0x24] sm:$0xff]
    %v837 = vld [vmem:[#allocation1 + $0x2d] sm:$0xff]
    %v838 = vld [vmem:[#allocation1 + $0x36] sm:$0xff]
    %v839 = vld [vmem:[#allocation1 + $0x3f] sm:$0xff]
    %841 = vst [vmem:[#allocation1] ss:$9 sm:$0xff] %v24
    %v842 = vld [vmem:[#allocation1] sm:$0xff]
    %v843 = vld [vmem:[#allocation1 + $0x9] sm:$0xff]
    %v844 = vld [vmem:[#allocation1 + $0x12] sm:$0xff]
    %v845 = vld [vmem:[#allocation1 + $0x1b] sm:$0xff]
    %v846 = vld [vmem:[#allocation1 + $0x24] sm:$0xff]
    %v847 = vld [vmem:[#allocation1 + $0x2d] sm:$0xff]
    %v848 = vld [vmem:[#allocation1 + $0x36] sm:$0xff]
    %v849 = vld [vmem:[#allocation1 + $0x3f] sm:$0xff]
    %851 = vst [vmem:[#allocation1] ss:$9 sm:$0xff] %v25
    %v852 = vld [vmem:[#allocation1] sm:$0xff]
    %v1661 = vunpack.c.l.b16 %v26
    %v1662 = vunpack.c.h.b16 %v26
    %v1663 = vunpack.c.l.b16 %v27
    %v1664 = vunpack.c.h.b16 %v27
    %v1665 = vunpack.c.l.b16 %v28
    %v1666 = vunpack.c.h.b16 %v28
    %v1667 = vunpack.c.l.b16 %v29
    %v1668 = vunpack.c.h.b16 %v29
    %v1669 = vunpack.c.l.b16 %v30
    %v1670 = vunpack.c.h.b16 %v30
    %v1671 = vunpack.c.l.b16 %v31
    %v1672 = vunpack.c.h.b16 %v31
    %v1673 = vunpack.c.l.b16 %v32
    %v1674 = vunpack.c.h.b16 %v32
    %v1675 = vunpack.c.l.b16 %v33
    %v1676 = vunpack.c.h.b16 %v33
    %v1677 = vunpack.c.l.b16 %v34
    %v1678 = vunpack.c.h.b16 %v34
    %v1679 = vunpack.c.l.b16 %v35
    %v1680 = vunpack.c.h.b16 %v35
    %v1681 = vunpack.c.l.b16 %v36
    %v1682 = vunpack.c.h.b16 %v36
    %v1683 = vunpack.c.l.b16 %v37
    %v1684 = vunpack.c.h.b16 %v37
    %v1685 = vunpack.c.l.b16 %v38
    %v1686 = vunpack.c.h.b16 %v38
    %v1687 = vunpack.c.l.b16 %v39
    %v1688 = vunpack.c.h.b16 %v39
    %v1689 = vunpack.c.l.b16 %v40
    %v1690 = vunpack.c.h.b16 %v40
    %v1691 = vunpack.c.l.b16 %v41
    %v1692 = vunpack.c.h.b16 %v41
    %v1693 = vunpack.c.l.b16 %v42
    %v1694 = vunpack.c.h.b16 %v42
    %v1695 = vunpack.c.l.b16 %v43
    %v1696 = vunpack.c.h.b16 %v43
    %v1697 = vunpack.c.l.b16 %v44
    %v1698 = vunpack.c.h.b16 %v44
    %v1699 = vunpack.c.l.b16 %v45
    %v1700 = vunpack.c.h.b16 %v45
    %v1701 = vunpack.c.l.b16 %v46
    %v1702 = vunpack.c.h.b16 %v46
    %v1703 = vunpack.c.l.b16 %v47
    %v1704 = vunpack.c.h.b16 %v47
    %v1705 = vunpack.c.l.b16 %v48
    %v1706 = vunpack.c.h.b16 %v48
    %v1707 = vunpack.c.l.b16 %v49
    %v1708 = vunpack.c.h.b16 %v49
    %v1709 = vunpack.c.l.b16 %v50
    %v1710 = vunpack.c.h.b16 %v50
    %v1711 = vunpack.c.l.b16 %v51
    %v1712 = vunpack.c.h.b16 %v51
    %v1713 = vunpack.c.l.b16 %v52
    %v1714 = vunpack.c.h.b16 %v52
    %v1715 = vunpack.c.l.b16 %v53
    %v1716 = vunpack.c.h.b16 %v53
    %v1717 = vunpack.c.l.b16 %v54
    %v1718 = vunpack.c.h.b16 %v54
    %v1719 = vunpack.c.l.b16 %v55
    %v1720 = vunpack.c.h.b16 %v55
    %v1721 = vunpack.c.l.b16 %v56
    %v1722 = vunpack.c.h.b16 %v56
    %v1723 = vunpack.c.l.b16 %v57
    %v1724 = vunpack.c.h.b16 %v57
    %v1725 = vunpack.c.l.b16 %v58
    %v1726 = vunpack.c.h.b16 %v58
    %v1727 = vunpack.c.l.b16 %v59
    %v1728 = vunpack.c.h.b16 %v59
    %v1729 = vunpack.c.l.b16 %v60
    %v1730 = vunpack.c.h.b16 %v60
    %v1731 = vunpack.c.l.b16 %v61
    %v1732 = vunpack.c.h.b16 %v61
    %v1733 = vunpack.c.l.b16 %v62
    %v1734 = vunpack.c.h.b16 %v62
    %v1735 = vunpack.c.l.b16 %v63
    %v1736 = vunpack.c.h.b16 %v63
    %v1737 = vunpack.c.l.b16 %v64
    %v1738 = vunpack.c.h.b16 %v64
    %v1739 = vunpack.c.l.b16 %v65
    %v1740 = vunpack.c.h.b16 %v65
    %v1741 = vunpack.c.l.b16 %v66
    %v1742 = vunpack.c.h.b16 %v66
    %v1743 = vunpack.c.l.b16 %v67
    %v1744 = vunpack.c.h.b16 %v67
    %v1745 = vunpack.c.l.b16 %v68
    %v1746 = vunpack.c.h.b16 %v68
    %v1747 = vunpack.c.l.b16 %v69
    %v1748 = vunpack.c.h.b16 %v69
    %v1749 = vunpack.c.l.b16 %v70
    %v1750 = vunpack.c.h.b16 %v70
    %v1751 = vunpack.c.l.b16 %v71
    %v1752 = vunpack.c.h.b16 %v71
    %v1753 = vunpack.c.l.b16 %v72
    %v1754 = vunpack.c.h.b16 %v72
    %v1755 = vunpack.c.l.b16 %v73
    %v1756 = vunpack.c.h.b16 %v73
    %v1757 = vunpack.c.l.b16 %v74
    %v1758 = vunpack.c.h.b16 %v74
    %v1759 = vunpack.c.l.b16 %v75
    %v1760 = vunpack.c.h.b16 %v75
    %v1761 = vunpack.c.l.b16 %v76
    %v1762 = vunpack.c.h.b16 %v76
    %v1763 = vunpack.c.l.b16 %v77
    %v1764 = vunpack.c.h.b16 %v77
    %v1765 = vunpack.c.l.b16 %v78
    %v1766 = vunpack.c.h.b16 %v78
    %v1767 = vunpack.c.l.b16 %v79
    %v1768 = vunpack.c.h.b16 %v79
    %v1769 = vunpack.c.l.b16 %v80
    %v1770 = vunpack.c.h.b16 %v80
    %v1771 = vunpack.c.l.b16 %v81
    %v1772 = vunpack.c.h.b16 %v81
    %v1773 = vunpack.c.l.b16 %v82
    %v1774 = vunpack.c.h.b16 %v82
    %v1775 = vunpack.c.l.b16 %v83
    %v1776 = vunpack.c.h.b16 %v83
    %v1777 = vunpack.c.l.b16 %v84
    %v1778 = vunpack.c.h.b16 %v84
    %v1779 = vunpack.c.l.b16 %v85
    %v1780 = vunpack.c.h.b16 %v85
    %v1781 = vunpack.c.l.b16 %v86
    %v1782 = vunpack.c.h.b16 %v86
    %v1783 = vunpack.c.l.b16 %v87
    %v1784 = vunpack.c.h.b16 %v87
    %v1785 = vunpack.c.l.b16 %v88
    %v1786 = vunpack.c.h.b16 %v88
    %v1787 = vunpack.c.l.b16 %v89
    %v1788 = vunpack.c.h.b16 %v89
    %v1789 = vunpack.c.l.b16 %v90
    %v1790 = vunpack.c.h.b16 %v90
    %v1791 = vunpack.c.l.b16 %v91
    %v1792 = vunpack.c.h.b16 %v91
    %v1793 = vunpack.c.l.b16 %v92
    %v1794 = vunpack.c.h.b16 %v92
    %v1795 = vunpack.c.l.b16 %v93
    %v1796 = vunpack.c.h.b16 %v93
    %v1797 = vunpack.c.l.b16 %v94
    %v1798 = vunpack.c.h.b16 %v94
    %v1799 = vunpack.c.l.b16 %v95
    %v1800 = vunpack.c.h.b16 %v95
    %v1801 = vunpack.c.l.b16 %v96
    %v1802 = vunpack.c.h.b16 %v96
    %v1803 = vunpack.c.l.b16 %v97
    %v1804 = vunpack.c.h.b16 %v97
    %v1805 = vunpack.c.l.b16 %v98
    %v1806 = vunpack.c.h.b16 %v98
    %v1807 = vunpack.c.l.b16 %v99
    %v1808 = vunpack.c.h.b16 %v99
    %v1809 = vunpack.c.l.b16 %v100
    %v1810 = vunpack.c.h.b16 %v100
    %v1811 = vunpack.c.l.b16 %v101
    %v1812 = vunpack.c.h.b16 %v101
    %v1813 = vunpack.c.l.b16 %v102
    %v1814 = vunpack.c.h.b16 %v102
    %v1815 = vunpack.c.l.b16 %v103
    %v1816 = vunpack.c.h.b16 %v103
    %v1817 = vunpack.c.l.b16 %v104
    %v1818 = vunpack.c.h.b16 %v104
    %v1819 = vunpack.c.l.b16 %v105
    %v1820 = vunpack.c.h.b16 %v105
    %v1821 = vunpack.c.l.b16 %v106
    %v1822 = vunpack.c.h.b16 %v106
    %v1823 = vunpack.c.l.b16 %v107
    %v1824 = vunpack.c.h.b16 %v107
    %v1825 = vunpack.c.l.b16 %v108
    %v1826 = vunpack.c.h.b16 %v108
    %v1827 = vunpack.c.l.b16 %v109
    %v1828 = vunpack.c.h.b16 %v109
    %v1829 = vunpack.c.l.b16 %v110
    %v1830 = vunpack.c.h.b16 %v110
    %v1831 = vunpack.c.l.b16 %v111
    %v1832 = vunpack.c.h.b16 %v111
    %v1833 = vunpack.c.l.b16 %v112
    %v1834 = vunpack.c.h.b16 %v112
    %v1835 = vunpack.c.l.b16 %v113
    %v1836 = vunpack.c.h.b16 %v113
    %v1837 = vunpack.c.l.b16 %v114
    %v1838 = vunpack.c.h.b16 %v114
    %v1839 = vunpack.c.l.b16 %v115
    %v1840 = vunpack.c.h.b16 %v115
    %v1841 = vunpack.c.l.b16 %v116
    %v1842 = vunpack.c.h.b16 %v116
    %v1843 = vunpack.c.l.b16 %v117
    %v1844 = vunpack.c.h.b16 %v117
    %v1845 = vunpack.c.l.b16 %v118
    %v1846 = vunpack.c.h.b16 %v118
    %v1847 = vunpack.c.l.b16 %v119
    %v1848 = vunpack.c.h.b16 %v119
    %v1849 = vunpack.c.l.b16 %v120
    %v1850 = vunpack.c.h.b16 %v120
    %v1851 = vunpack.c.l.b16 %v121
    %v1852 = vunpack.c.h.b16 %v121
    %v1853 = vunpack.c.l.b16 %v122
    %v1854 = vunpack.c.h.b16 %v122
    %v1855 = vunpack.c.l.b16 %v123
    %v1856 = vunpack.c.h.b16 %v123
    %v1857 = vunpack.c.l.b16 %v124
    %v1858 = vunpack.c.h.b16 %v124
    %v1859 = vunpack.c.l.b16 %v125
    %v1860 = vunpack.c.h.b16 %v125
    %v1861 = vunpack.c.l.b16 %v126
    %v1862 = vunpack.c.h.b16 %v126
    %v1863 = vunpack.c.l.b16 %v127
    %v1864 = vunpack.c.h.b16 %v127
    %v1865 = vunpack.c.l.b16 %v128
    %v1866 = vunpack.c.h.b16 %v128
    %v1867 = vunpack.c.l.b16 %v129
    %v1868 = vunpack.c.h.b16 %v129
    %v1869 = vunpack.c.l.b16 %v130
    %v1870 = vunpack.c.h.b16 %v130
    %v1871 = vunpack.c.l.b16 %v131
    %v1872 = vunpack.c.h.b16 %v131
    %v1873 = vunpack.c.l.b16 %v132
    %v1874 = vunpack.c.h.b16 %v132
    %v1875 = vunpack.c.l.b16 %v133
    %v1876 = vunpack.c.h.b16 %v133
    %v1877 = vunpack.c.l.b16 %v134
    %v1878 = vunpack.c.h.b16 %v134
    %v1879 = vunpack.c.l.b16 %v135
    %v1880 = vunpack.c.h.b16 %v135
    %v1881 = vunpack.c.l.b16 %v136
    %v1882 = vunpack.c.h.b16 %v136
    %v1883 = vunpack.c.l.b16 %v137
    %v1884 = vunpack.c.h.b16 %v137
    %v1885 = vunpack.c.l.b16 %v138
    %v1886 = vunpack.c.h.b16 %v138
    %v1887 = vunpack.c.l.b16 %v139
    %v1888 = vunpack.c.h.b16 %v139
    %v1889 = vunpack.c.l.b16 %v140
    %v1890 = vunpack.c.h.b16 %v140
    %v1891 = vunpack.c.l.b16 %v141
    %v1892 = vunpack.c.h.b16 %v141
    %v1893 = vunpack.c.l.b16 %v142
    %v1894 = vunpack.c.h.b16 %v142
    %v1895 = vunpack.c.l.b16 %v143
    %v1896 = vunpack.c.h.b16 %v143
    %v1897 = vunpack.c.l.b16 %v144
    %v1898 = vunpack.c.h.b16 %v144
    %v1899 = vunpack.c.l.b16 %v145
    %v1900 = vunpack.c.h.b16 %v145
    %v1901 = vunpack.c.l.b16 %v146
    %v1902 = vunpack.c.h.b16 %v146
    %v1903 = vunpack.c.l.b16 %v147
    %v1904 = vunpack.c.h.b16 %v147
    %v1905 = vunpack.c.l.b16 %v148
    %v1906 = vunpack.c.h.b16 %v148
    %v1907 = vunpack.c.l.b16 %v149
    %v1908 = vunpack.c.h.b16 %v149
    %v1909 = vunpack.c.l.b16 %v150
    %v1910 = vunpack.c.h.b16 %v150
    %v1911 = vunpack.c.l.b16 %v151
    %v1912 = vunpack.c.h.b16 %v151
    %v1913 = vunpack.c.l.b16 %v152
    %v1914 = vunpack.c.h.b16 %v152
    %v1915 = vunpack.c.l.b16 %v153
    %v1916 = vunpack.c.h.b16 %v153
    %v1917 = vunpack.c.l.b16 %v154
    %v1918 = vunpack.c.h.b16 %v154
    %v1919 = vunpack.c.l.b16 %v155
    %v1920 = vunpack.c.h.b16 %v155
    %v1921 = vunpack.c.l.b16 %v156
    %v1922 = vunpack.c.h.b16 %v156
    %v1923 = vunpack.c.l.b16 %v157
    %v1924 = vunpack.c.h.b16 %v157
    %v1925 = vunpack.c.l.b16 %v158
    %v1926 = vunpack.c.h.b16 %v158
    %v1927 = vunpack.c.l.b16 %v159
    %v1928 = vunpack.c.h.b16 %v159
    %v1929 = vunpack.c.l.b16 %v160
    %v1930 = vunpack.c.h.b16 %v160
    %v1931 = vunpack.c.l.b16 %v161
    %v1932 = vunpack.c.h.b16 %v161
    %v1933 = vunpack.c.l.b16 %v162
    %v1934 = vunpack.c.h.b16 %v162
    %v1935 = vunpack.c.l.b16 %v163
    %v1936 = vunpack.c.h.b16 %v163
    %v1937 = vunpack.c.l.b16 %v164
    %v1938 = vunpack.c.h.b16 %v164
    %v1939 = vunpack.c.l.b16 %v165
    %v1940 = vunpack.c.h.b16 %v165
    %v1941 = vunpack.c.l.b16 %v166
    %v1942 = vunpack.c.h.b16 %v166
    %v1943 = vunpack.c.l.b16 %v167
    %v1944 = vunpack.c.h.b16 %v167
    %v1945 = vunpack.c.l.b16 %v168
    %v1946 = vunpack.c.h.b16 %v168
    %v1947 = vunpack.c.l.b16 %v169
    %v1948 = vunpack.c.h.b16 %v169
    %v1949 = vunpack.c.l.b16 %v170
    %v1950 = vunpack.c.h.b16 %v170
    %v1951 = vunpack.c.l.b16 %v171
    %v1952 = vunpack.c.h.b16 %v171
    %v1953 = vunpack.c.l.b16 %v172
    %v1954 = vunpack.c.h.b16 %v172
    %v1955 = vunpack.c.l.b16 %v173
    %v1956 = vunpack.c.h.b16 %v173
    %v1957 = vunpack.c.l.b16 %v174
    %v1958 = vunpack.c.h.b16 %v174
    %v1959 = vunpack.c.l.b16 %v175
    %v1960 = vunpack.c.h.b16 %v175
    %v1961 = vunpack.c.l.b16 %v176
    %v1962 = vunpack.c.h.b16 %v176
    %v1963 = vunpack.c.l.b16 %v177
    %v1964 = vunpack.c.h.b16 %v177
    %v1965 = vunpack.c.l.b16 %v178
    %v1966 = vunpack.c.h.b16 %v178
    %v1967 = vunpack.c.l.b16 %v179
    %v1968 = vunpack.c.h.b16 %v179
    %v1969 = vunpack.c.l.b16 %v180
    %v1970 = vunpack.c.h.b16 %v180
    %v1971 = vunpack.c.l.b16 %v181
    %v1972 = vunpack.c.h.b16 %v181
    %v1973 = vunpack.c.l.b16 %v182
    %v1974 = vunpack.c.h.b16 %v182
    %v1975 = vunpack.c.l.b16 %v183
    %v1976 = vunpack.c.h.b16 %v183
    %v1977 = vunpack.c.l.b16 %v184
    %v1978 = vunpack.c.h.b16 %v184
    %v1979 = vunpack.c.l.b16 %v185
    %v1980 = vunpack.c.h.b16 %v185
    %v1981 = vunpack.c.l.b16 %v186
    %v1982 = vunpack.c.h.b16 %v186
    %v1983 = vunpack.c.l.b16 %v187
    %v1984 = vunpack.c.h.b16 %v187
    %v1985 = vunpack.c.l.b16 %v188
    %v1986 = vunpack.c.h.b16 %v188
    %v1987 = vunpack.c.l.b16 %v189
    %v1988 = vunpack.c.h.b16 %v189
    %v1989 = vunpack.c.l.b16 %v190
    %v1990 = vunpack.c.h.b16 %v190
    %v1991 = vunpack.c.l.b16 %v191
    %v1992 = vunpack.c.h.b16 %v191
    %v1993 = vunpack.c.l.b16 %v192
    %v1994 = vunpack.c.h.b16 %v192
    %v1995 = vunpack.c.l.b16 %v193
    %v1996 = vunpack.c.h.b16 %v193
    %v1997 = vunpack.c.l.b16 %v194
    %v1998 = vunpack.c.h.b16 %v194
    %v1999 = vunpack.c.l.b16 %v195
    %v2000 = vunpack.c.h.b16 %v195
    %v2001 = vunpack.c.l.b16 %v196
    %v2002 = vunpack.c.h.b16 %v196
    %v2003 = vunpack.c.l.b16 %v197
    %v2004 = vunpack.c.h.b16 %v197
    %v2005 = vunpack.c.l.b16 %v198
    %v2006 = vunpack.c.h.b16 %v198
    %v2007 = vunpack.c.l.b16 %v199
    %v2008 = vunpack.c.h.b16 %v199
    %v2009 = vunpack.c.l.b16 %v200
    %v2010 = vunpack.c.h.b16 %v200
    %v2011 = vunpack.c.l.b16 %v201
    %v2012 = vunpack.c.h.b16 %v201
    %v2013 = vunpack.c.l.b16 %v202
    %v2014 = vunpack.c.h.b16 %v202
    %v2015 = vunpack.c.l.b16 %v203
    %v2016 = vunpack.c.h.b16 %v203
    %v2017 = vunpack.c.l.b16 %v204
    %v2018 = vunpack.c.h.b16 %v204
    %v2019 = vunpack.c.l.b16 %v205
    %v2020 = vunpack.c.h.b16 %v205
    %v2021 = vunpack.c.l.b16 %v206
    %v2022 = vunpack.c.h.b16 %v206
    %v2023 = vunpack.c.l.b16 %v207
    %v2024 = vunpack.c.h.b16 %v207
    %v2025 = vunpack.c.l.b16 %v208
    %v2026 = vunpack.c.h.b16 %v208
    %v2027 = vunpack.c.l.b16 %v209
    %v2028 = vunpack.c.h.b16 %v209
    %v2029 = vunpack.c.l.b16 %v210
    %v2030 = vunpack.c.h.b16 %v210
    %v2031 = vunpack.c.l.b16 %v211
    %v2032 = vunpack.c.h.b16 %v211
    %v2033 = vunpack.c.l.b16 %v212
    %v2034 = vunpack.c.h.b16 %v212
    %v2035 = vunpack.c.l.b16 %v213
    %v2036 = vunpack.c.h.b16 %v213
    %v2037 = vunpack.c.l.b16 %v214
    %v2038 = vunpack.c.h.b16 %v214
    %v2039 = vunpack.c.l.b16 %v215
    %v2040 = vunpack.c.h.b16 %v215
    %v2041 = vunpack.c.l.b16 %v216
    %v2042 = vunpack.c.h.b16 %v216
    %v2043 = vunpack.c.l.b16 %v217
    %v2044 = vunpack.c.h.b16 %v217
    %v2045 = vunpack.c.l.b16 %v218
    %v2046 = vunpack.c.h.b16 %v218
    %v2047 = vunpack.c.l.b16 %v219
    %v2048 = vunpack.c.h.b16 %v219
    %v2049 = vunpack.c.l.b16 %v220
    %v2050 = vunpack.c.h.b16 %v220
    %v2051 = vunpack.c.l.b16 %v221
    %v2052 = vunpack.c.h.b16 %v221
    %v2053 = vunpack.c.l.b16 %v222
    %v2054 = vunpack.c.h.b16 %v222
    %v2055 = vunpack.c.l.b16 %v223
    %v2056 = vunpack.c.h.b16 %v223
    %v2057 = vunpack.c.l.b16 %v224
    %v2058 = vunpack.c.h.b16 %v224
    %v2059 = vunpack.c.l.b16 %v225
    %v2060 = vunpack.c.h.b16 %v225
    %v2061 = vunpack.c.l.b16 %v226
    %v2062 = vunpack.c.h.b16 %v226
    %v2063 = vunpack.c.l.b16 %v227
    %v2064 = vunpack.c.h.b16 %v227
    %v2065 = vunpack.c.l.b16 %v228
    %v2066 = vunpack.c.h.b16 %v228
    %v2067 = vunpack.c.l.b16 %v229
    %v2068 = vunpack.c.h.b16 %v229
    %v2069 = vunpack.c.l.b16 %v230
    %v2070 = vunpack.c.h.b16 %v230
    %v2071 = vunpack.c.l.b16 %v231
    %v2072 = vunpack.c.h.b16 %v231
    %v2073 = vunpack.c.l.b16 %v232
    %v2074 = vunpack.c.h.b16 %v232
    %v2075 = vunpack.c.l.b16 %v233
    %v2076 = vunpack.c.h.b16 %v233
    %v2077 = vunpack.c.l.b16 %v234
    %v2078 = vunpack.c.h.b16 %v234
    %v2079 = vunpack.c.l.b16 %v235
    %v2080 = vunpack.c.h.b16 %v235
    %v2081 = vunpack.c.l.b16 %v236
    %v2082 = vunpack.c.h.b16 %v236
    %v2083 = vunpack.c.l.b16 %v237
    %v2084 = vunpack.c.h.b16 %v237
    %v2085 = vunpack.c.l.b16 %v238
    %v2086 = vunpack.c.h.b16 %v238
    %v2087 = vunpack.c.l.b16 %v239
    %v2088 = vunpack.c.h.b16 %v239
    %v2089 = vunpack.c.l.b16 %v240
    %v2090 = vunpack.c.h.b16 %v240
    %v2091 = vunpack.c.l.b16 %v241
    %v2092 = vunpack.c.h.b16 %v241
    %v2093 = vunpack.c.l.b16 %v242
    %v2094 = vunpack.c.h.b16 %v242
    %v2095 = vunpack.c.l.b16 %v243
    %v2096 = vunpack.c.h.b16 %v243
    %v2097 = vunpack.c.l.b16 %v244
    %v2098 = vunpack.c.h.b16 %v244
    %v2099 = vunpack.c.l.b16 %v245
    %v2100 = vunpack.c.h.b16 %v245
    %v2101 = vunpack.c.l.b16 %v246
    %v2102 = vunpack.c.h.b16 %v246
    %v2103 = vunpack.c.l.b16 %v247
    %v2104 = vunpack.c.h.b16 %v247
    %v2105 = vunpack.c.l.b16 %v248
    %v2106 = vunpack.c.h.b16 %v248
    %v2107 = vunpack.c.l.b16 %v249
    %v2108 = vunpack.c.h.b16 %v249
    %v2109 = vunpack.c.l.b16 %v250
    %v2110 = vunpack.c.h.b16 %v250
    %v2111 = vunpack.c.l.b16 %v251
    %v2112 = vunpack.c.h.b16 %v251
    %v2113 = vunpack.c.l.b16 %v252
    %v2114 = vunpack.c.h.b16 %v252
    %v2115 = vunpack.c.l.b16 %v253
    %v2116 = vunpack.c.h.b16 %v253
    %v2117 = vunpack.c.l.b16 %v254
    %v2118 = vunpack.c.h.b16 %v254
    %v2119 = vunpack.c.l.b16 %v255
    %v2120 = vunpack.c.h.b16 %v255
    %v2121 = vunpack.c.l.b16 %v256
    %v2122 = vunpack.c.h.b16 %v256
    %v2123 = vunpack.c.l.b16 %v257
    %v2124 = vunpack.c.h.b16 %v257
    %v2125 = vunpack.c.l.b16 %v258
    %v2126 = vunpack.c.h.b16 %v258
    %v2127 = vunpack.c.l.b16 %v259
    %v2128 = vunpack.c.h.b16 %v259
    %v2129 = vunpack.c.l.b16 %v260
    %v2130 = vunpack.c.h.b16 %v260
    %v2131 = vunpack.c.l.b16 %v261
    %v2132 = vunpack.c.h.b16 %v261
    %v2133 = vunpack.c.l.b16 %v262
    %v2134 = vunpack.c.h.b16 %v262
    %v2135 = vunpack.c.l.b16 %v263
    %v2136 = vunpack.c.h.b16 %v263
    %v2137 = vunpack.c.l.b16 %v264
    %v2138 = vunpack.c.h.b16 %v264
    %v2139 = vunpack.c.l.b16 %v265
    %v2140 = vunpack.c.h.b16 %v265
    %v2141 = vunpack.c.l.b16 %v266
    %v2142 = vunpack.c.h.b16 %v266
    %v2143 = vunpack.c.l.b16 %v267
    %v2144 = vunpack.c.h.b16 %v267
    %v2145 = vunpack.c.l.b16 %v268
    %v2146 = vunpack.c.h.b16 %v268
    %v2147 = vunpack.c.l.b16 %v269
    %v2148 = vunpack.c.h.b16 %v269
    %v2149 = vunpack.c.l.b16 %v270
    %v2150 = vunpack.c.h.b16 %v270
    %v2151 = vunpack.c.l.b16 %v271
    %v2152 = vunpack.c.h.b16 %v271
    %v2153 = vunpack.c.l.b16 %v272
    %v2154 = vunpack.c.h.b16 %v272
    %v2155 = vunpack.c.l.b16 %v273
    %v2156 = vunpack.c.h.b16 %v273
    %v2157 = vunpack.c.l.b16 %v274
    %v2158 = vunpack.c.h.b16 %v274
    %v2159 = vunpack.c.l.b16 %v275
    %v2160 = vunpack.c.h.b16 %v275
    %v2161 = vunpack.c.l.b16 %v276
    %v2162 = vunpack.c.h.b16 %v276
    %v2163 = vunpack.c.l.b16 %v277
    %v2164 = vunpack.c.h.b16 %v277
    %v2165 = vunpack.c.l.b16 %v278
    %v2166 = vunpack.c.h.b16 %v278
    %v2167 = vunpack.c.l.b16 %v279
    %v2168 = vunpack.c.h.b16 %v279
    %v2169 = vunpack.c.l.b16 %v280
    %v2170 = vunpack.c.h.b16 %v280
    %v2171 = vunpack.c.l.b16 %v281
    %v2172 = vunpack.c.h.b16 %v281
    %v2173 = vunpack.c.l.b16 %v282
    %v2174 = vunpack.c.h.b16 %v282
    %v2175 = vunpack.c.l.b16 %v283
    %v2176 = vunpack.c.h.b16 %v283
    %v2177 = vunpack.c.l.b16 %v284
    %v2178 = vunpack.c.h.b16 %v284
    %v2179 = vunpack.c.l.b16 %v285
    %v2180 = vunpack.c.h.b16 %v285
    %v2181 = vunpack.c.l.b16 %v286
    %v2182 = vunpack.c.h.b16 %v286
    %v2183 = vunpack.c.l.b16 %v287
    %v2184 = vunpack.c.h.b16 %v287
    %v2185 = vunpack.c.l.b16 %v288
    %v2186 = vunpack.c.h.b16 %v288
    %v2187 = vunpack.c.l.b16 %v289
    %v2188 = vunpack.c.h.b16 %v289
    %v2189 = vunpack.c.l.b16 %v290
    %v2190 = vunpack.c.h.b16 %v290
    %v2191 = vunpack.c.l.b16 %v291
    %v2192 = vunpack.c.h.b16 %v291
    %v2193 = vunpack.c.l.b16 %v292
    %v2194 = vunpack.c.h.b16 %v292
    %v2195 = vunpack.c.l.b16 %v293
    %v2196 = vunpack.c.h.b16 %v293
    %v2197 = vunpack.c.l.b16 %v294
    %v2198 = vunpack.c.h.b16 %v294
    %v2199 = vunpack.c.l.b16 %v295
    %v2200 = vunpack.c.h.b16 %v295
    %v2201 = vunpack.c.l.b16 %v296
    %v2202 = vunpack.c.h.b16 %v296
    %v2203 = vunpack.c.l.b16 %v297
    %v2204 = vunpack.c.h.b16 %v297
    %v2205 = vunpack.c.l.b16 %v298
    %v2206 = vunpack.c.h.b16 %v298
    %v2207 = vunpack.c.l.b16 %v299
    %v2208 = vunpack.c.h.b16 %v299
    %v2209 = vunpack.c.l.b16 %v300
    %v2210 = vunpack.c.h.b16 %v300
    %v2211 = vunpack.c.l.b16 %v301
    %v2212 = vunpack.c.h.b16 %v301
    %v2213 = vunpack.c.l.b16 %v302
    %v2214 = vunpack.c.h.b16 %v302
    %v2215 = vunpack.c.l.b16 %v303
    %v2216 = vunpack.c.h.b16 %v303
    %v2217 = vunpack.c.l.b16 %v304
    %v2218 = vunpack.c.h.b16 %v304
    %v2219 = vunpack.c.l.b16 %v305
    %v2220 = vunpack.c.h.b16 %v305
    %v2221 = vunpack.c.l.b16 %v306
    %v2222 = vunpack.c.h.b16 %v306
    %v2223 = vunpack.c.l.b16 %v307
    %v2224 = vunpack.c.h.b16 %v307
    %v2225 = vunpack.c.l.b16 %v308
    %v2226 = vunpack.c.h.b16 %v308
    %v2227 = vunpack.c.l.b16 %v309
    %v2228 = vunpack.c.h.b16 %v309
    %v2229 = vunpack.c.l.b16 %v310
    %v2230 = vunpack.c.h.b16 %v310
    %v2231 = vunpack.c.l.b16 %v311
    %v2232 = vunpack.c.h.b16 %v311
    %v2233 = vunpack.c.l.b16 %v312
    %v2234 = vunpack.c.h.b16 %v312
    %v2235 = vunpack.c.l.b16 %v313
    %v2236 = vunpack.c.h.b16 %v313
    %v2237 = vunpack.c.l.b16 %v314
    %v2238 = vunpack.c.h.b16 %v314
    %v2239 = vunpack.c.l.b16 %v315
    %v2240 = vunpack.c.h.b16 %v315
    %v2241 = vunpack.c.l.b16 %v316
    %v2242 = vunpack.c.h.b16 %v316
    %v2243 = vunpack.c.l.b16 %v317
    %v2244 = vunpack.c.h.b16 %v317
    %v2245 = vunpack.c.l.b16 %v318
    %v2246 = vunpack.c.h.b16 %v318
    %v2247 = vunpack.c.l.b16 %v319
    %v2248 = vunpack.c.h.b16 %v319
    %v2249 = vunpack.c.l.b16 %v320
    %v2250 = vunpack.c.h.b16 %v320
    %v2251 = vunpack.c.l.b16 %v321
    %v2252 = vunpack.c.h.b16 %v321
    %v2253 = vunpack.c.l.b16 %v322
    %v2254 = vunpack.c.h.b16 %v322
    %v2255 = vunpack.c.l.b16 %v323
    %v2256 = vunpack.c.h.b16 %v323
    %v2257 = vunpack.c.l.b16 %v324
    %v2258 = vunpack.c.h.b16 %v324
    %v2259 = vunpack.c.l.b16 %v325
    %v2260 = vunpack.c.h.b16 %v325
    %v2261 = vunpack.c.l.b16 %v326
    %v2262 = vunpack.c.h.b16 %v326
    %v2263 = vunpack.c.l.b16 %v327
    %v2264 = vunpack.c.h.b16 %v327
    %v2265 = vunpack.c.l.b16 %v328
    %v2266 = vunpack.c.h.b16 %v328
    %v2267 = vunpack.c.l.b16 %v329
    %v2268 = vunpack.c.h.b16 %v329
    %v2269 = vunpack.c.l.b16 %v330
    %v2270 = vunpack.c.h.b16 %v330
    %v2271 = vunpack.c.l.b16 %v331
    %v2272 = vunpack.c.h.b16 %v331
    %v2273 = vunpack.c.l.b16 %v332
    %v2274 = vunpack.c.h.b16 %v332
    %v2275 = vunpack.c.l.b16 %v333
    %v2276 = vunpack.c.h.b16 %v333
    %v2277 = vunpack.c.l.b16 %v334
    %v2278 = vunpack.c.h.b16 %v334
    %v2279 = vunpack.c.l.b16 %v335
    %v2280 = vunpack.c.h.b16 %v335
    %v2281 = vunpack.c.l.b16 %v336
    %v2282 = vunpack.c.h.b16 %v336
    %v2283 = vunpack.c.l.b16 %v337
    %v2284 = vunpack.c.h.b16 %v337
    %v2285 = vunpack.c.l.b16 %v338
    %v2286 = vunpack.c.h.b16 %v338
    %v2287 = vunpack.c.l.b16 %v339
    %v2288 = vunpack.c.h.b16 %v339
    %v2289 = vunpack.c.l.b16 %v340
    %v2290 = vunpack.c.h.b16 %v340
    %v2291 = vunpack.c.l.b16 %v341
    %v2292 = vunpack.c.h.b16 %v341
    %v2293 = vunpack.c.l.b16 %v342
    %v2294 = vunpack.c.h.b16 %v342
    %v2295 = vunpack.c.l.b16 %v343
    %v2296 = vunpack.c.h.b16 %v343
    %v2297 = vunpack.c.l.b16 %v344
    %v2298 = vunpack.c.h.b16 %v344
    %v2299 = vunpack.c.l.b16 %v345
    %v2300 = vunpack.c.h.b16 %v345
    %v2301 = vunpack.c.l.b16 %v346
    %v2302 = vunpack.c.h.b16 %v346
    %v2303 = vunpack.c.l.b16 %v347
    %v2304 = vunpack.c.h.b16 %v347
    %v2305 = vunpack.c.l.b16 %v348
    %v2306 = vunpack.c.h.b16 %v348
    %v2307 = vunpack.c.l.b16 %v349
    %v2308 = vunpack.c.h.b16 %v349
    %v2309 = vunpack.c.l.b16 %v350
    %v2310 = vunpack.c.h.b16 %v350
    %v2311 = vunpack.c.l.b16 %v351
    %v2312 = vunpack.c.h.b16 %v351
    %v2313 = vunpack.c.l.b16 %v352
    %v2314 = vunpack.c.h.b16 %v352
    %v2315 = vunpack.c.l.b16 %v353
    %v2316 = vunpack.c.h.b16 %v353
    %v2317 = vunpack.c.l.b16 %v354
    %v2318 = vunpack.c.h.b16 %v354
    %v2319 = vunpack.c.l.b16 %v355
    %v2320 = vunpack.c.h.b16 %v355
    %v2321 = vunpack.c.l.b16 %v356
    %v2322 = vunpack.c.h.b16 %v356
    %v2323 = vunpack.c.l.b16 %v357
    %v2324 = vunpack.c.h.b16 %v357
    %v2325 = vunpack.c.l.b16 %v358
    %v2326 = vunpack.c.h.b16 %v358
    %v2327 = vunpack.c.l.b16 %v359
    %v2328 = vunpack.c.h.b16 %v359
    %v2329 = vunpack.c.l.b16 %v360
    %v2330 = vunpack.c.h.b16 %v360
    %v2331 = vunpack.c.l.b16 %v361
    %v2332 = vunpack.c.h.b16 %v361
    %v2333 = vunpack.c.l.b16 %v362
    %v2334 = vunpack.c.h.b16 %v362
    %v2335 = vunpack.c.l.b16 %v363
    %v2336 = vunpack.c.h.b16 %v363
    %v2337 = vunpack.c.l.b16 %v364
    %v2338 = vunpack.c.h.b16 %v364
    %v2339 = vunpack.c.l.b16 %v365
    %v2340 = vunpack.c.h.b16 %v365
    %v2341 = vunpack.c.l.b16 %v366
    %v2342 = vunpack.c.h.b16 %v366
    %v2343 = vunpack.c.l.b16 %v367
    %v2344 = vunpack.c.h.b16 %v367
    %v2345 = vunpack.c.l.b16 %v368
    %v2346 = vunpack.c.h.b16 %v368
    %v2347 = vunpack.c.l.b16 %v369
    %v2348 = vunpack.c.h.b16 %v369
    %v2349 = vunpack.c.l.b16 %v370
    %v2350 = vunpack.c.h.b16 %v370
    %v2351 = vunpack.c.l.b16 %v371
    %v2352 = vunpack.c.h.b16 %v371
    %v2353 = vunpack.c.l.b16 %v372
    %v2354 = vunpack.c.h.b16 %v372
    %v2355 = vunpack.c.l.b16 %v373
    %v2356 = vunpack.c.h.b16 %v373
    %v2357 = vunpack.c.l.b16 %v374
    %v2358 = vunpack.c.h.b16 %v374
    %v2359 = vunpack.c.l.b16 %v375
    %v2360 = vunpack.c.h.b16 %v375
    %v2361 = vunpack.c.l.b16 %v376
    %v2362 = vunpack.c.h.b16 %v376
    %v2363 = vunpack.c.l.b16 %v377
    %v2364 = vunpack.c.h.b16 %v377
    %v2365 = vunpack.c.l.b16 %v378
    %v2366 = vunpack.c.h.b16 %v378
    %v2367 = vunpack.c.l.b16 %v379
    %v2368 = vunpack.c.h.b16 %v379
    %v2369 = vunpack.c.l.b16 %v380
    %v2370 = vunpack.c.h.b16 %v380
    %v2371 = vunpack.c.l.b16 %v381
    %v2372 = vunpack.c.h.b16 %v381
    %v2373 = vunpack.c.l.b16 %v382
    %v2374 = vunpack.c.h.b16 %v382
    %v2375 = vunpack.c.l.b16 %v383
    %v2376 = vunpack.c.h.b16 %v383
    %v2377 = vunpack.c.l.b16 %v384
    %v2378 = vunpack.c.h.b16 %v384
    %v2379 = vunpack.c.l.b16 %v385
    %v2380 = vunpack.c.h.b16 %v385
    %v2381 = vunpack.c.l.b16 %v386
    %v2382 = vunpack.c.h.b16 %v386
    %v2383 = vunpack.c.l.b16 %v387
    %v2384 = vunpack.c.h.b16 %v387
    %v2385 = vunpack.c.l.b16 %v388
    %v2386 = vunpack.c.h.b16 %v388
    %v2387 = vunpack.c.l.b16 %v389
    %v2388 = vunpack.c.h.b16 %v389
    %v2389 = vunpack.c.l.b16 %v390
    %v2390 = vunpack.c.h.b16 %v390
    %v2391 = vunpack.c.l.b16 %v391
    %v2392 = vunpack.c.h.b16 %v391
    %v2393 = vunpack.c.l.b16 %v392
    %v2394 = vunpack.c.h.b16 %v392
    %v2395 = vunpack.c.l.b16 %v393
    %v2396 = vunpack.c.h.b16 %v393
    %v2397 = vunpack.c.l.b16 %v394
    %v2398 = vunpack.c.h.b16 %v394
    %v2399 = vunpack.c.l.b16 %v395
    %v2400 = vunpack.c.h.b16 %v395
    %v2401 = vunpack.c.l.b16 %v396
    %v2402 = vunpack.c.h.b16 %v396
    %v2403 = vunpack.c.l.b16 %v397
    %v2404 = vunpack.c.h.b16 %v397
    %v2405 = vunpack.c.l.b16 %v398
    %v2406 = vunpack.c.h.b16 %v398
    %v2407 = vunpack.c.l.b16 %v399
    %v2408 = vunpack.c.h.b16 %v399
    %v2409 = vunpack.c.l.b16 %v400
    %v2410 = vunpack.c.h.b16 %v400
    %v2411 = vunpack.c.l.b16 %v401
    %v2412 = vunpack.c.h.b16 %v401
    %v2413 = vunpack.c.l.b16 %v402
    %v2414 = vunpack.c.h.b16 %v402
    %v2415 = vunpack.c.l.b16 %v403
    %v2416 = vunpack.c.h.b16 %v403
    %v2417 = vunpack.c.l.b16 %v404
    %v2418 = vunpack.c.h.b16 %v404
    %v2419 = vunpack.c.l.b16 %v405
    %v2420 = vunpack.c.h.b16 %v405
    %v2421 = vunpack.c.l.b16 %v406
    %v2422 = vunpack.c.h.b16 %v406
    %v2423 = vunpack.c.l.b16 %v407
    %v2424 = vunpack.c.h.b16 %v407
    %v2425 = vunpack.c.l.b16 %v408
    %v2426 = vunpack.c.h.b16 %v408
    %v2427 = vunpack.c.l.b16 %v409
    %v2428 = vunpack.c.h.b16 %v409
    %v2429 = vunpack.c.l.b16 %v410
    %v2430 = vunpack.c.h.b16 %v410
    %v2431 = vunpack.c.l.b16 %v411
    %v2432 = vunpack.c.h.b16 %v411
    %v2433 = vunpack.c.l.b16 %v412
    %v2434 = vunpack.c.h.b16 %v412
    %v2435 = vunpack.c.l.b16 %v413
    %v2436 = vunpack.c.h.b16 %v413
    %v2437 = vunpack.c.l.b16 %v414
    %v2438 = vunpack.c.h.b16 %v414
    %v2439 = vunpack.c.l.b16 %v415
    %v2440 = vunpack.c.h.b16 %v415
    %v2441 = vunpack.c.l.b16 %v416
    %v2442 = vunpack.c.h.b16 %v416
    %v2443 = vunpack.c.l.b16 %v417
    %v2444 = vunpack.c.h.b16 %v417
    %v2445 = vunpack.c.l.b16 %v418
    %v2446 = vunpack.c.h.b16 %v418
    %v2447 = vunpack.c.l.b16 %v419
    %v2448 = vunpack.c.h.b16 %v419
    %v2449 = vunpack.c.l.b16 %v420
    %v2450 = vunpack.c.h.b16 %v420
    %v2451 = vunpack.c.l.b16 %v421
    %v2452 = vunpack.c.h.b16 %v421
    %v2453 = vunpack.c.l.b16 %v422
    %v2454 = vunpack.c.h.b16 %v422
    %v2455 = vunpack.c.l.b16 %v423
    %v2456 = vunpack.c.h.b16 %v423
    %v2457 = vunpack.c.l.b16 %v424
    %v2458 = vunpack.c.h.b16 %v424
    %v2459 = vunpack.c.l.b16 %v425
    %v2460 = vunpack.c.h.b16 %v425
    %v2461 = vunpack.c.l.b16 %v426
    %v2462 = vunpack.c.h.b16 %v426
    %v2463 = vunpack.c.l.b16 %v427
    %v2464 = vunpack.c.h.b16 %v427
    %v2465 = vunpack.c.l.b16 %v428
    %v2466 = vunpack.c.h.b16 %v428
    %v2467 = vunpack.c.l.b16 %v429
    %v2468 = vunpack.c.h.b16 %v429
    %v2469 = vunpack.c.l.b16 %v430
    %v2470 = vunpack.c.h.b16 %v430
    %v2471 = vunpack.c.l.b16 %v431
    %v2472 = vunpack.c.h.b16 %v431
    %v2473 = vunpack.c.l.b16 %v432
    %v2474 = vunpack.c.h.b16 %v432
    %v2475 = vunpack.c.l.b16 %v433
    %v2476 = vunpack.c.h.b16 %v433
    %v2477 = vunpack.c.l.b16 %v434
    %v2478 = vunpack.c.h.b16 %v434
    %v2479 = vunpack.c.l.b16 %v435
    %v2480 = vunpack.c.h.b16 %v435
    %v2481 = vunpack.c.l.b16 %v436
    %v2482 = vunpack.c.h.b16 %v436
    %v2483 = vunpack.c.l.b16 %v437
    %v2484 = vunpack.c.h.b16 %v437
    %v2485 = vunpack.c.l.b16 %v438
    %v2486 = vunpack.c.h.b16 %v438
    %v2487 = vunpack.c.l.b16 %v439
    %v2488 = vunpack.c.h.b16 %v439
    %v2489 = vunpack.c.l.b16 %v440
    %v2490 = vunpack.c.h.b16 %v440
    %v2491 = vunpack.c.l.b16 %v441
    %v2492 = vunpack.c.h.b16 %v441
    %v2493 = vunpack.c.l.b16 %v442
    %v2494 = vunpack.c.h.b16 %v442
    %v2495 = vunpack.c.l.b16 %v443
    %v2496 = vunpack.c.h.b16 %v443
    %v2497 = vunpack.c.l.b16 %v444
    %v2498 = vunpack.c.h.b16 %v444
    %v2499 = vunpack.c.l.b16 %v445
    %v2500 = vunpack.c.h.b16 %v445
    %v2501 = vunpack.c.l.b16 %v446
    %v2502 = vunpack.c.h.b16 %v446
    %v2503 = vunpack.c.l.b16 %v447
    %v2504 = vunpack.c.h.b16 %v447
    %v2505 = vunpack.c.l.b16 %v448
    %v2506 = vunpack.c.h.b16 %v448
    %v2507 = vunpack.c.l.b16 %v449
    %v2508 = vunpack.c.h.b16 %v449
    %v2509 = vunpack.c.l.b16 %v450
    %v2510 = vunpack.c.h.b16 %v450
    %v2511 = vunpack.c.l.b16 %v451
    %v2512 = vunpack.c.h.b16 %v451
    %v2513 = vunpack.c.l.b16 %v452
    %v2514 = vunpack.c.h.b16 %v452
    %v2515 = vunpack.c.l.b16 %v453
    %v2516 = vunpack.c.h.b16 %v453
    %v2517 = vunpack.c.l.b16 %v454
    %v2518 = vunpack.c.h.b16 %v454
    %v2519 = vunpack.c.l.b16 %v455
    %v2520 = vunpack.c.h.b16 %v455
    %v2521 = vunpack.c.l.b16 %v456
    %v2522 = vunpack.c.h.b16 %v456
    %v2523 = vunpack.c.l.b16 %v457
    %v2524 = vunpack.c.h.b16 %v457
    %v2525 = vunpack.c.l.b16 %v458
    %v2526 = vunpack.c.h.b16 %v458
    %v2527 = vunpack.c.l.b16 %v459
    %v2528 = vunpack.c.h.b16 %v459
    %v2529 = vunpack.c.l.b16 %v460
    %v2530 = vunpack.c.h.b16 %v460
    %v2531 = vunpack.c.l.b16 %v461
    %v2532 = vunpack.c.h.b16 %v461
    %v2533 = vunpack.c.l.b16 %v462
    %v2534 = vunpack.c.h.b16 %v462
    %v2535 = vunpack.c.l.b16 %v463
    %v2536 = vunpack.c.h.b16 %v463
    %v2537 = vunpack.c.l.b16 %v464
    %v2538 = vunpack.c.h.b16 %v464
    %v2539 = vunpack.c.l.b16 %v465
    %v2540 = vunpack.c.h.b16 %v465
    %v2541 = vunpack.c.l.b16 %v466
    %v2542 = vunpack.c.h.b16 %v466
    %v2543 = vunpack.c.l.b16 %v467
    %v2544 = vunpack.c.h.b16 %v467
    %v2545 = vunpack.c.l.b16 %v468
    %v2546 = vunpack.c.h.b16 %v468
    %v2547 = vunpack.c.l.b16 %v469
    %v2548 = vunpack.c.h.b16 %v469
    %v2549 = vunpack.c.l.b16 %v470
    %v2550 = vunpack.c.h.b16 %v470
    %v2551 = vunpack.c.l.b16 %v471
    %v2552 = vunpack.c.h.b16 %v471
    %v2553 = vunpack.c.l.b16 %v472
    %v2554 = vunpack.c.h.b16 %v472
    %v2555 = vunpack.c.l.b16 %v473
    %v2556 = vunpack.c.h.b16 %v473
    %v2557 = vunpack.c.l.b16 %v474
    %v2558 = vunpack.c.h.b16 %v474
    %v2559 = vunpack.c.l.b16 %v475
    %v2560 = vunpack.c.h.b16 %v475
    %v2561 = vunpack.c.l.b16 %v476
    %v2562 = vunpack.c.h.b16 %v476
    %v2563 = vunpack.c.l.b16 %v477
    %v2564 = vunpack.c.h.b16 %v477
    %v2565 = vunpack.c.l.b16 %v478
    %v2566 = vunpack.c.h.b16 %v478
    %v2567 = vunpack.c.l.b16 %v479
    %v2568 = vunpack.c.h.b16 %v479
    %v2569 = vunpack.c.l.b16 %v480
    %v2570 = vunpack.c.h.b16 %v480
    %v2571 = vunpack.c.l.b16 %v481
    %v2572 = vunpack.c.h.b16 %v481
    %v2573 = vunpack.c.l.b16 %v482
    %v2574 = vunpack.c.h.b16 %v482
    %v2575 = vunpack.c.l.b16 %v483
    %v2576 = vunpack.c.h.b16 %v483
    %v2577 = vunpack.c.l.b16 %v484
    %v2578 = vunpack.c.h.b16 %v484
    %v2579 = vunpack.c.l.b16 %v485
    %v2580 = vunpack.c.h.b16 %v485
    %v2581 = vunpack.c.l.b16 %v486
    %v2582 = vunpack.c.h.b16 %v486
    %v2583 = vunpack.c.l.b16 %v487
    %v2584 = vunpack.c.h.b16 %v487
    %v2585 = vunpack.c.l.b16 %v488
    %v2586 = vunpack.c.h.b16 %v488
    %v2587 = vunpack.c.l.b16 %v489
    %v2588 = vunpack.c.h.b16 %v489
    %v2589 = vunpack.c.l.b16 %v490
    %v2590 = vunpack.c.h.b16 %v490
    %v2591 = vunpack.c.l.b16 %v491
    %v2592 = vunpack.c.h.b16 %v491
    %v2593 = vunpack.c.l.b16 %v492
    %v2594 = vunpack.c.h.b16 %v492
    %v2595 = vunpack.c.l.b16 %v493
    %v2596 = vunpack.c.h.b16 %v493
    %v2597 = vunpack.c.l.b16 %v494
    %v2598 = vunpack.c.h.b16 %v494
    %v2599 = vunpack.c.l.b16 %v495
    %v2600 = vunpack.c.h.b16 %v495
    %v2601 = vunpack.c.l.b16 %v496
    %v2602 = vunpack.c.h.b16 %v496
    %v2603 = vunpack.c.l.b16 %v497
    %v2604 = vunpack.c.h.b16 %v497
    %v2605 = vunpack.c.l.b16 %v498
    %v2606 = vunpack.c.h.b16 %v498
    %v2607 = vunpack.c.l.b16 %v499
    %v2608 = vunpack.c.h.b16 %v499
    %v2609 = vunpack.c.l.b16 %v500
    %v2610 = vunpack.c.h.b16 %v500
    %v2611 = vunpack.c.l.b16 %v501
    %v2612 = vunpack.c.h.b16 %v501
    %v2613 = vunpack.c.l.b16 %v502
    %v2614 = vunpack.c.h.b16 %v502
    %v2615 = vunpack.c.l.b16 %v503
    %v2616 = vunpack.c.h.b16 %v503
    %v2617 = vunpack.c.l.b16 %v504
    %v2618 = vunpack.c.h.b16 %v504
    %v2619 = vunpack.c.l.b16 %v505
    %v2620 = vunpack.c.h.b16 %v505
    %v2621 = vunpack.c.l.b16 %v506
    %v2622 = vunpack.c.h.b16 %v506
    %v2623 = vunpack.c.l.b16 %v507
    %v2624 = vunpack.c.h.b16 %v507
    %v2625 = vunpack.c.l.b16 %v508
    %v2626 = vunpack.c.h.b16 %v508
    %v2627 = vunpack.c.l.b16 %v509
    %v2628 = vunpack.c.h.b16 %v509
    %v2629 = vunpack.c.l.b16 %v510
    %v2630 = vunpack.c.h.b16 %v510
    %v2631 = vunpack.c.l.b16 %v511
    %v2632 = vunpack.c.h.b16 %v511
    %v2633 = vunpack.c.l.b16 %v512
    %v2634 = vunpack.c.h.b16 %v512
    %v2635 = vunpack.c.l.b16 %v513
    %v2636 = vunpack.c.h.b16 %v513
    %v2637 = vunpack.c.l.b16 %v514
    %v2638 = vunpack.c.h.b16 %v514
    %v2639 = vunpack.c.l.b16 %v515
    %v2640 = vunpack.c.h.b16 %v515
    %v2641 = vunpack.c.l.b16 %v516
    %v2642 = vunpack.c.h.b16 %v516
    %v2643 = vunpack.c.l.b16 %v517
    %v2644 = vunpack.c.h.b16 %v517
    %v2645 = vunpack.c.l.b16 %v518
    %v2646 = vunpack.c.h.b16 %v518
    %v2647 = vunpack.c.l.b16 %v519
    %v2648 = vunpack.c.h.b16 %v519
    %v2649 = vunpack.c.l.b16 %v520
    %v2650 = vunpack.c.h.b16 %v520
    %v2651 = vunpack.c.l.b16 %v521
    %v2652 = vunpack.c.h.b16 %v521
    %v2653 = vunpack.c.l.b16 %v522
    %v2654 = vunpack.c.h.b16 %v522
    %v2655 = vunpack.c.l.b16 %v523
    %v2656 = vunpack.c.h.b16 %v523
    %v2657 = vunpack.c.l.b16 %v524
    %v2658 = vunpack.c.h.b16 %v524
    %v2659 = vunpack.c.l.b16 %v525
    %v2660 = vunpack.c.h.b16 %v525
    %v2661 = vunpack.c.l.b16 %v526
    %v2662 = vunpack.c.h.b16 %v526
    %v2663 = vunpack.c.l.b16 %v527
    %v2664 = vunpack.c.h.b16 %v527
    %v2665 = vunpack.c.l.b16 %v528
    %v2666 = vunpack.c.h.b16 %v528
    %v2667 = vunpack.c.l.b16 %v529
    %v2668 = vunpack.c.h.b16 %v529
    %v2669 = vunpack.c.l.b16 %v530
    %v2670 = vunpack.c.h.b16 %v530
    %v2671 = vunpack.c.l.b16 %v531
    %v2672 = vunpack.c.h.b16 %v531
    %v2673 = vunpack.c.l.b16 %v532
    %v2674 = vunpack.c.h.b16 %v532
    %v2675 = vunpack.c.l.b16 %v533
    %v2676 = vunpack.c.h.b16 %v533
    %v2677 = vunpack.c.l.b16 %v534
    %v2678 = vunpack.c.h.b16 %v534
    %v2679 = vunpack.c.l.b16 %v535
    %v2680 = vunpack.c.h.b16 %v535
    %v2681 = vunpack.c.l.b16 %v536
    %v2682 = vunpack.c.h.b16 %v536
    %v2683 = vunpack.c.l.b16 %v537
    %v2684 = vunpack.c.h.b16 %v537
    %v2685 = vunpack.c.l.b16 %v538
    %v2686 = vunpack.c.h.b16 %v538
    %v2687 = vunpack.c.l.b16 %v539
    %v2688 = vunpack.c.h.b16 %v539
    %v2689 = vunpack.c.l.b16 %v540
    %v2690 = vunpack.c.h.b16 %v540
    %v2691 = vunpack.c.l.b16 %v541
    %v2692 = vunpack.c.h.b16 %v541
    %v2693 = vunpack.c.l.b16 %v542
    %v2694 = vunpack.c.h.b16 %v542
    %v2695 = vunpack.c.l.b16 %v543
    %v2696 = vunpack.c.h.b16 %v543
    %v2697 = vunpack.c.l.b16 %v544
    %v2698 = vunpack.c.h.b16 %v544
    %v2699 = vunpack.c.l.b16 %v545
    %v2700 = vunpack.c.h.b16 %v545
    %v2701 = vunpack.c.l.b16 %v546
    %v2702 = vunpack.c.h.b16 %v546
    %v2703 = vunpack.c.l.b16 %v547
    %v2704 = vunpack.c.h.b16 %v547
    %v2705 = vunpack.c.l.b16 %v548
    %v2706 = vunpack.c.h.b16 %v548
    %v2707 = vunpack.c.l.b16 %v549
    %v2708 = vunpack.c.h.b16 %v549
    %v2709 = vunpack.c.l.b16 %v550
    %v2710 = vunpack.c.h.b16 %v550
    %v2711 = vunpack.c.l.b16 %v551
    %v2712 = vunpack.c.h.b16 %v551
    %v2713 = vunpack.c.l.b16 %v552
    %v2714 = vunpack.c.h.b16 %v552
    %v2715 = vunpack.c.l.b16 %v553
    %v2716 = vunpack.c.h.b16 %v553
    %v2717 = vunpack.c.l.b16 %v554
    %v2718 = vunpack.c.h.b16 %v554
    %v2719 = vunpack.c.l.b16 %v555
    %v2720 = vunpack.c.h.b16 %v555
    %v2721 = vunpack.c.l.b16 %v556
    %v2722 = vunpack.c.h.b16 %v556
    %v2723 = vunpack.c.l.b16 %v557
    %v2724 = vunpack.c.h.b16 %v557
    %v2725 = vunpack.c.l.b16 %v558
    %v2726 = vunpack.c.h.b16 %v558
    %v2727 = vunpack.c.l.b16 %v559
    %v2728 = vunpack.c.h.b16 %v559
    %v2729 = vunpack.c.l.b16 %v560
    %v2730 = vunpack.c.h.b16 %v560
    %v2731 = vunpack.c.l.b16 %v561
    %v2732 = vunpack.c.h.b16 %v561
    %v2733 = vunpack.c.l.b16 %v562
    %v2734 = vunpack.c.h.b16 %v562
    %v2735 = vunpack.c.l.b16 %v563
    %v2736 = vunpack.c.h.b16 %v563
    %v2737 = vunpack.c.l.b16 %v564
    %v2738 = vunpack.c.h.b16 %v564
    %v2739 = vunpack.c.l.b16 %v565
    %v2740 = vunpack.c.h.b16 %v565
    %v2741 = vunpack.c.l.b16 %v566
    %v2742 = vunpack.c.h.b16 %v566
    %v2743 = vunpack.c.l.b16 %v567
    %v2744 = vunpack.c.h.b16 %v567
    %v2745 = vunpack.c.l.b16 %v568
    %v2746 = vunpack.c.h.b16 %v568
    %v2747 = vunpack.c.l.b16 %v569
    %v2748 = vunpack.c.h.b16 %v569
    %v2749 = vunpack.c.l.b16 %v570
    %v2750 = vunpack.c.h.b16 %v570
    %v2751 = vunpack.c.l.b16 %v571
    %v2752 = vunpack.c.h.b16 %v571
    %v2753 = vunpack.c.l.b16 %v572
    %v2754 = vunpack.c.h.b16 %v572
    %v2755 = vunpack.c.l.b16 %v573
    %v2756 = vunpack.c.h.b16 %v573
    %v2757 = vunpack.c.l.b16 %v574
    %v2758 = vunpack.c.h.b16 %v574
    %v2759 = vunpack.c.l.b16 %v575
    %v2760 = vunpack.c.h.b16 %v575
    %v2761 = vunpack.c.l.b16 %v576
    %v2762 = vunpack.c.h.b16 %v576
    %v2763 = vunpack.c.l.b16 %v577
    %v2764 = vunpack.c.h.b16 %v577
    %v2765 = vunpack.c.l.b16 %v578
    %v2766 = vunpack.c.h.b16 %v578
    %v2767 = vunpack.c.l.b16 %v579
    %v2768 = vunpack.c.h.b16 %v579
    %v2769 = vunpack.c.l.b16 %v580
    %v2770 = vunpack.c.h.b16 %v580
    %v2771 = vunpack.c.l.b16 %v581
    %v2772 = vunpack.c.h.b16 %v581
    %v2773 = vunpack.c.l.b16 %v582
    %v2774 = vunpack.c.h.b16 %v582
    %v2775 = vunpack.c.l.b16 %v583
    %v2776 = vunpack.c.h.b16 %v583
    %v2777 = vunpack.c.l.b16 %v584
    %v2778 = vunpack.c.h.b16 %v584
    %v2779 = vunpack.c.l.b16 %v585
    %v2780 = vunpack.c.h.b16 %v585
    %v2781 = vunpack.c.l.b16 %v586
    %v2782 = vunpack.c.h.b16 %v586
    %v2783 = vunpack.c.l.b16 %v587
    %v2784 = vunpack.c.h.b16 %v587
    %v2785 = vunpack.c.l.b16 %v588
    %v2786 = vunpack.c.h.b16 %v588
    %v2787 = vunpack.c.l.b16 %v589
    %v2788 = vunpack.c.h.b16 %v589
    %v2789 = vunpack.c.l.b16 %v590
    %v2790 = vunpack.c.h.b16 %v590
    %v2791 = vunpack.c.l.b16 %v591
    %v2792 = vunpack.c.h.b16 %v591
    %v2793 = vunpack.c.l.b16 %v592
    %v2794 = vunpack.c.h.b16 %v592
    %v2795 = vunpack.c.l.b16 %v593
    %v2796 = vunpack.c.h.b16 %v593
    %v2797 = vunpack.c.l.b16 %v594
    %v2798 = vunpack.c.h.b16 %v594
    %v2799 = vunpack.c.l.b16 %v595
    %v2800 = vunpack.c.h.b16 %v595
    %v2801 = vunpack.c.l.b16 %v596
    %v2802 = vunpack.c.h.b16 %v596
    %v2803 = vunpack.c.l.b16 %v597
    %v2804 = vunpack.c.h.b16 %v597
    %v2805 = vunpack.c.l.b16 %v598
    %v2806 = vunpack.c.h.b16 %v598
    %v2807 = vunpack.c.l.b16 %v599
    %v2808 = vunpack.c.h.b16 %v599
    %v2809 = vunpack.c.l.b16 %v600
    %v2810 = vunpack.c.h.b16 %v600
    %v2811 = vunpack.c.l.b16 %v601
    %v2812 = vunpack.c.h.b16 %v601
    %v2813 = vunpack.c.l.b16 %v602
    %v2814 = vunpack.c.h.b16 %v602
    %v2815 = vunpack.c.l.b16 %v603
    %v2816 = vunpack.c.h.b16 %v603
    %v2817 = vunpack.c.l.b16 %v604
    %v2818 = vunpack.c.h.b16 %v604
    %v2819 = vunpack.c.l.b16 %v605
    %v2820 = vunpack.c.h.b16 %v605
    %v2821 = vunpack.c.l.b16 %v606
    %v2822 = vunpack.c.h.b16 %v606
    %v2823 = vunpack.c.l.b16 %v607
    %v2824 = vunpack.c.h.b16 %v607
    %v2825 = vunpack.c.l.b16 %v608
    %v2826 = vunpack.c.h.b16 %v608
    %v2827 = vunpack.c.l.b16 %v609
    %v2828 = vunpack.c.h.b16 %v609
    %v2829 = vunpack.c.l.b16 %v610
    %v2830 = vunpack.c.h.b16 %v610
    %v2831 = vunpack.c.l.b16 %v611
    %v2832 = vunpack.c.h.b16 %v611
    %v2833 = vunpack.c.l.b16 %v612
    %v2834 = vunpack.c.h.b16 %v612
    %v2835 = vunpack.c.l.b16 %v613
    %v2836 = vunpack.c.h.b16 %v613
    %v2837 = vunpack.c.l.b16 %v614
    %v2838 = vunpack.c.h.b16 %v614
    %v2839 = vunpack.c.l.b16 %v615
    %v2840 = vunpack.c.h.b16 %v615
    %v2841 = vunpack.c.l.b16 %v616
    %v2842 = vunpack.c.h.b16 %v616
    %v2843 = vunpack.c.l.b16 %v617
    %v2844 = vunpack.c.h.b16 %v617
    %v2845 = vunpack.c.l.b16 %v618
    %v2846 = vunpack.c.h.b16 %v618
    %v2847 = vunpack.c.l.b16 %v619
    %v2848 = vunpack.c.h.b16 %v619
    %v2849 = vunpack.c.l.b16 %v620
    %v2850 = vunpack.c.h.b16 %v620
    %v2851 = vunpack.c.l.b16 %v621
    %v2852 = vunpack.c.h.b16 %v621
    %v2853 = vunpack.c.l.b16 %v622
    %v2854 = vunpack.c.h.b16 %v622
    %v2855 = vunpack.c.l.b16 %v623
    %v2856 = vunpack.c.h.b16 %v623
    %v2857 = vunpack.c.l.b16 %v624
    %v2858 = vunpack.c.h.b16 %v624
    %v2859 = vunpack.c.l.b16 %v625
    %v2860 = vunpack.c.h.b16 %v625
    %v2861 = vunpack.c.l.b16 %v626
    %v2862 = vunpack.c.h.b16 %v626
    %v2863 = vunpack.c.l.b16 %v627
    %v2864 = vunpack.c.h.b16 %v627
    %v2865 = vunpack.c.l.b16 %v628
    %v2866 = vunpack.c.h.b16 %v628
    %v2867 = vunpack.c.l.b16 %v629
    %v2868 = vunpack.c.h.b16 %v629
    %v2869 = vunpack.c.l.b16 %v630
    %v2870 = vunpack.c.h.b16 %v630
    %v2871 = vunpack.c.l.b16 %v631
    %v2872 = vunpack.c.h.b16 %v631
    %v2873 = vunpack.c.l.b16 %v632
    %v2874 = vunpack.c.h.b16 %v632
    %v2875 = vunpack.c.l.b16 %v633
    %v2876 = vunpack.c.h.b16 %v633
    %v2877 = vunpack.c.l.b16 %v634
    %v2878 = vunpack.c.h.b16 %v634
    %v2879 = vunpack.c.l.b16 %v635
    %v2880 = vunpack.c.h.b16 %v635
    %v2881 = vunpack.c.l.b16 %v636
    %v2882 = vunpack.c.h.b16 %v636
    %v2883 = vunpack.c.l.b16 %v637
    %v2884 = vunpack.c.h.b16 %v637
    %v2885 = vunpack.c.l.b16 %v638
    %v2886 = vunpack.c.h.b16 %v638
    %v2887 = vunpack.c.l.b16 %v639
    %v2888 = vunpack.c.h.b16 %v639
    %v2889 = vunpack.c.l.b16 %v640
    %v2890 = vunpack.c.h.b16 %v640
    %v2891 = vunpack.c.l.b16 %v641
    %v2892 = vunpack.c.h.b16 %v641
    %v2893 = vunpack.c.l.b16 %v642
    %v2894 = vunpack.c.h.b16 %v642
    %v2895 = vunpack.c.l.b16 %v643
    %v2896 = vunpack.c.h.b16 %v643
    %v2897 = vunpack.c.l.b16 %v644
    %v2898 = vunpack.c.h.b16 %v644
    %v2899 = vunpack.c.l.b16 %v645
    %v2900 = vunpack.c.h.b16 %v645
    %v2901 = vunpack.c.l.b16 %v646
    %v2902 = vunpack.c.h.b16 %v646
    %v2903 = vunpack.c.l.b16 %v647
    %v2904 = vunpack.c.h.b16 %v647
    %v2905 = vunpack.c.l.b16 %v648
    %v2906 = vunpack.c.h.b16 %v648
    %v2907 = vunpack.c.l.b16 %v649
    %v2908 = vunpack.c.h.b16 %v649
    %v2909 = vunpack.c.l.b16 %v650
    %v2910 = vunpack.c.h.b16 %v650
    %v2911 = vunpack.c.l.b16 %v651
    %v2912 = vunpack.c.h.b16 %v651
    %v2913 = vunpack.c.l.b16 %v652
    %v2914 = vunpack.c.h.b16 %v652
    %v2915 = vunpack.c.l.b16 %v653
    %v2916 = vunpack.c.h.b16 %v653
    %v2917 = vunpack.c.l.b16 %v654
    %v2918 = vunpack.c.h.b16 %v654
    %v2919 = vunpack.c.l.b16 %v655
    %v2920 = vunpack.c.h.b16 %v655
    %v2921 = vunpack.c.l.b16 %v656
    %v2922 = vunpack.c.h.b16 %v656
    %v2923 = vunpack.c.l.b16 %v657
    %v2924 = vunpack.c.h.b16 %v657
    %v2925 = vunpack.c.l.b16 %v658
    %v2926 = vunpack.c.h.b16 %v658
    %v2927 = vunpack.c.l.b16 %v659
    %v2928 = vunpack.c.h.b16 %v659
    %v2929 = vunpack.c.l.b16 %v660
    %v2930 = vunpack.c.h.b16 %v660
    %v2931 = vunpack.c.l.b16 %v661
    %v2932 = vunpack.c.h.b16 %v661
    %v2933 = vunpack.c.l.b16 %v662
    %v2934 = vunpack.c.h.b16 %v662
    %v2935 = vunpack.c.l.b16 %v663
    %v2936 = vunpack.c.h.b16 %v663
    %v2937 = vunpack.c.l.b16 %v664
    %v2938 = vunpack.c.h.b16 %v664
    %v2939 = vunpack.c.l.b16 %v665
    %v2940 = vunpack.c.h.b16 %v665
    %v2941 = vunpack.c.l.b16 %v666
    %v2942 = vunpack.c.h.b16 %v666
    %v2943 = vunpack.c.l.b16 %v667
    %v2944 = vunpack.c.h.b16 %v667
    %v2945 = vunpack.c.l.b16 %v668
    %v2946 = vunpack.c.h.b16 %v668
    %v2947 = vunpack.c.l.b16 %v669
    %v2948 = vunpack.c.h.b16 %v669
    %v2949 = vunpack.c.l.b16 %v670
    %v2950 = vunpack.c.h.b16 %v670
    %v2951 = vunpack.c.l.b16 %v671
    %v2952 = vunpack.c.h.b16 %v671
    %v2953 = vunpack.c.l.b16 %v672
    %v2954 = vunpack.c.h.b16 %v672
    %v2955 = vunpack.c.l.b16 %v673
    %v2956 = vunpack.c.h.b16 %v673
    %v2957 = vunpack.c.l.b16 %v674
    %v2958 = vunpack.c.h.b16 %v674
    %v2959 = vunpack.c.l.b16 %v675
    %v2960 = vunpack.c.h.b16 %v675
    %v2961 = vunpack.c.l.b16 %v676
    %v2962 = vunpack.c.h.b16 %v676
    %v2963 = vunpack.c.l.b16 %v677
    %v2964 = vunpack.c.h.b16 %v677
    %v2965 = vunpack.c.l.b16 %v678
    %v2966 = vunpack.c.h.b16 %v678
    %v2967 = vunpack.c.l.b16 %v679
    %v2968 = vunpack.c.h.b16 %v679
    %v2969 = vunpack.c.l.b16 %v680
    %v2970 = vunpack.c.h.b16 %v680
    %v2971 = vunpack.c.l.b16 %v681
    %v2972 = vunpack.c.h.b16 %v681
    %v2973 = vunpack.c.l.b16 %v682
    %v2974 = vunpack.c.h.b16 %v682
    %v2975 = vunpack.c.l.b16 %v683
    %v2976 = vunpack.c.h.b16 %v683
    %v2977 = vunpack.c.l.b16 %v684
    %v2978 = vunpack.c.h.b16 %v684
    %v2979 = vunpack.c.l.b16 %v685
    %v2980 = vunpack.c.h.b16 %v685
    %v2981 = vunpack.c.l.b16 %v686
    %v2982 = vunpack.c.h.b16 %v686
    %v2983 = vunpack.c.l.b16 %v687
    %v2984 = vunpack.c.h.b16 %v687
    %v2985 = vunpack.c.l.b16 %v688
    %v2986 = vunpack.c.h.b16 %v688
    %v2987 = vunpack.c.l.b16 %v689
    %v2988 = vunpack.c.h.b16 %v689
    %v2989 = vunpack.c.l.b16 %v690
    %v2990 = vunpack.c.h.b16 %v690
    %v2991 = vunpack.c.l.b16 %v691
    %v2992 = vunpack.c.h.b16 %v691
    %v2993 = vunpack.c.l.b16 %v692
    %v2994 = vunpack.c.h.b16 %v692
    %v2995 = vunpack.c.l.b16 %v693
    %v2996 = vunpack.c.h.b16 %v693
    %v2997 = vunpack.c.l.b16 %v694
    %v2998 = vunpack.c.h.b16 %v694
    %v2999 = vunpack.c.l.b16 %v695
    %v3000 = vunpack.c.h.b16 %v695
    %v3001 = vunpack.c.l.b16 %v696
    %v3002 = vunpack.c.h.b16 %v696
    %v3003 = vunpack.c.l.b16 %v697
    %v3004 = vunpack.c.h.b16 %v697
    %v3005 = vunpack.c.l.b16 %v698
    %v3006 = vunpack.c.h.b16 %v698
    %v3007 = vunpack.c.l.b16 %v699
    %v3008 = vunpack.c.h.b16 %v699
    %v3009 = vunpack.c.l.b16 %v700
    %v3010 = vunpack.c.h.b16 %v700
    %v3011 = vunpack.c.l.b16 %v701
    %v3012 = vunpack.c.h.b16 %v701
    %v3013 = vunpack.c.l.b16 %v702
    %v3014 = vunpack.c.h.b16 %v702
    %v3015 = vunpack.c.l.b16 %v703
    %v3016 = vunpack.c.h.b16 %v703
    %v3017 = vunpack.c.l.b16 %v704
    %v3018 = vunpack.c.h.b16 %v704
    %v3019 = vunpack.c.l.b16 %v705
    %v3020 = vunpack.c.h.b16 %v705
    %v3021 = vunpack.c.l.b16 %v706
    %v3022 = vunpack.c.h.b16 %v706
    %v3023 = vunpack.c.l.b16 %v707
    %v3024 = vunpack.c.h.b16 %v707
    %v3025 = vunpack.c.l.b16 %v708
    %v3026 = vunpack.c.h.b16 %v708
    %v3027 = vunpack.c.l.b16 %v709
    %v3028 = vunpack.c.h.b16 %v709
    %v3029 = vunpack.c.l.b16 %v710
    %v3030 = vunpack.c.h.b16 %v710
    %v3031 = vunpack.c.l.b16 %v711
    %v3032 = vunpack.c.h.b16 %v711
    %v3033 = vunpack.c.l.b16 %v712
    %v3034 = vunpack.c.h.b16 %v712
    %v3035 = vunpack.c.l.b16 %v713
    %v3036 = vunpack.c.h.b16 %v713
    %v3037 = vunpack.c.l.b16 %v714
    %v3038 = vunpack.c.h.b16 %v714
    %v3039 = vunpack.c.l.b16 %v715
    %v3040 = vunpack.c.h.b16 %v715
    %v3041 = vunpack.c.l.b16 %v716
    %v3042 = vunpack.c.h.b16 %v716
    %v3043 = vunpack.c.l.b16 %v717
    %v3044 = vunpack.c.h.b16 %v717
    %v3045 = vunpack.c.l.b16 %v718
    %v3046 = vunpack.c.h.b16 %v718
    %v3047 = vunpack.c.l.b16 %v719
    %v3048 = vunpack.c.h.b16 %v719
    %v3049 = vunpack.c.l.b16 %v720
    %v3050 = vunpack.c.h.b16 %v720
    %v3051 = vunpack.c.l.b16 %v721
    %v3052 = vunpack.c.h.b16 %v721
    %v3053 = vunpack.c.l.b16 %v722
    %v3054 = vunpack.c.h.b16 %v722
    %v3055 = vunpack.c.l.b16 %v723
    %v3056 = vunpack.c.h.b16 %v723
    %v3057 = vunpack.c.l.b16 %v724
    %v3058 = vunpack.c.h.b16 %v724
    %v3059 = vunpack.c.l.b16 %v725
    %v3060 = vunpack.c.h.b16 %v725
    %v3061 = vunpack.c.l.b16 %v726
    %v3062 = vunpack.c.h.b16 %v726
    %v3063 = vunpack.c.l.b16 %v727
    %v3064 = vunpack.c.h.b16 %v727
    %v3065 = vunpack.c.l.b16 %v728
    %v3066 = vunpack.c.h.b16 %v728
    %v3067 = vunpack.c.l.b16 %v729
    %v3068 = vunpack.c.h.b16 %v729
    %v3069 = vunpack.c.l.b16 %v730
    %v3070 = vunpack.c.h.b16 %v730
    %v3071 = vunpack.c.l.b16 %v731
    %v3072 = vunpack.c.h.b16 %v731
    %v3073 = vunpack.c.l.b16 %v732
    %v3074 = vunpack.c.h.b16 %v732
    %v3075 = vunpack.c.l.b16 %v733
    %v3076 = vunpack.c.h.b16 %v733
    %v3077 = vunpack.c.l.b16 %v734
    %v3078 = vunpack.c.h.b16 %v734
    %v3079 = vunpack.c.l.b16 %v735
    %v3080 = vunpack.c.h.b16 %v735
    %v3081 = vunpack.c.l.b16 %v736
    %v3082 = vunpack.c.h.b16 %v736
    %v3083 = vunpack.c.l.b16 %v737
    %v3084 = vunpack.c.h.b16 %v737
    %v3085 = vunpack.c.l.b16 %v738
    %v3086 = vunpack.c.h.b16 %v738
    %v3087 = vunpack.c.l.b16 %v739
    %v3088 = vunpack.c.h.b16 %v739
    %v3089 = vunpack.c.l.b16 %v740
    %v3090 = vunpack.c.h.b16 %v740
    %v3091 = vunpack.c.l.b16 %v741
    %v3092 = vunpack.c.h.b16 %v741
    %v3093 = vunpack.c.l.b16 %v742
    %v3094 = vunpack.c.h.b16 %v742
    %v3095 = vunpack.c.l.b16 %v743
    %v3096 = vunpack.c.h.b16 %v743
    %v3097 = vunpack.c.l.b16 %v744
    %v3098 = vunpack.c.h.b16 %v744
    %v3099 = vunpack.c.l.b16 %v745
    %v3100 = vunpack.c.h.b16 %v745
    %v3101 = vunpack.c.l.b16 %v746
    %v3102 = vunpack.c.h.b16 %v746
    %v3103 = vunpack.c.l.b16 %v747
    %v3104 = vunpack.c.h.b16 %v747
    %v3105 = vunpack.c.l.b16 %v748
    %v3106 = vunpack.c.h.b16 %v748
    %v3107 = vunpack.c.l.b16 %v749
    %v3108 = vunpack.c.h.b16 %v749
    %v3109 = vunpack.c.l.b16 %v750
    %v3110 = vunpack.c.h.b16 %v750
    %v3111 = vunpack.c.l.b16 %v751
    %v3112 = vunpack.c.h.b16 %v751
    %v3113 = vunpack.c.l.b16 %v752
    %v3114 = vunpack.c.h.b16 %v752
    %v3115 = vunpack.c.l.b16 %v753
    %v3116 = vunpack.c.h.b16 %v753
    %v3117 = vunpack.c.l.b16 %v754
    %v3118 = vunpack.c.h.b16 %v754
    %v3119 = vunpack.c.l.b16 %v755
    %v3120 = vunpack.c.h.b16 %v755
    %v3121 = vunpack.c.l.b16 %v756
    %v3122 = vunpack.c.h.b16 %v756
    %v3123 = vunpack.c.l.b16 %v757
    %v3124 = vunpack.c.h.b16 %v757
    %v3125 = vunpack.c.l.b16 %v758
    %v3126 = vunpack.c.h.b16 %v758
    %v3127 = vunpack.c.l.b16 %v759
    %v3128 = vunpack.c.h.b16 %v759
    %v3129 = vunpack.c.l.b16 %v760
    %v3130 = vunpack.c.h.b16 %v760
    %v3131 = vunpack.c.l.b16 %v761
    %v3132 = vunpack.c.h.b16 %v761
    %v3133 = vunpack.c.l.b16 %v762
    %v3134 = vunpack.c.h.b16 %v762
    %v3135 = vunpack.c.l.b16 %v763
    %v3136 = vunpack.c.h.b16 %v763
    %v3137 = vunpack.c.l.b16 %v764
    %v3138 = vunpack.c.h.b16 %v764
    %v3139 = vunpack.c.l.b16 %v765
    %v3140 = vunpack.c.h.b16 %v765
    %v3141 = vunpack.c.l.b16 %v766
    %v3142 = vunpack.c.h.b16 %v766
    %v3143 = vunpack.c.l.b16 %v767
    %v3144 = vunpack.c.h.b16 %v767
    %v3145 = vunpack.c.l.b16 %v768
    %v3146 = vunpack.c.h.b16 %v768
    %v3147 = vunpack.c.l.b16 %v769
    %v3148 = vunpack.c.h.b16 %v769
    %v3149 = vunpack.c.l.b16 %v770
    %v3150 = vunpack.c.h.b16 %v770
    %v3151 = vunpack.c.l.b16 %v771
    %v3152 = vunpack.c.h.b16 %v771
    %v3153 = vunpack.c.l.b16 %v772
    %v3154 = vunpack.c.h.b16 %v772
    %v3155 = vunpack.c.l.b16 %v773
    %v3156 = vunpack.c.h.b16 %v773
    %v3157 = vunpack.c.l.b16 %v774
    %v3158 = vunpack.c.h.b16 %v774
    %v3159 = vunpack.c.l.b16 %v775
    %v3160 = vunpack.c.h.b16 %v775
    %v3161 = vunpack.c.l.b16 %v776
    %v3162 = vunpack.c.h.b16 %v776
    %v3163 = vunpack.c.l.b16 %v777
    %v3164 = vunpack.c.h.b16 %v777
    %v3165 = vunpack.c.l.b16 %v778
    %v3166 = vunpack.c.h.b16 %v778
    %v3167 = vunpack.c.l.b16 %v779
    %v3168 = vunpack.c.h.b16 %v779
    %v3169 = vunpack.c.l.b16 %v780
    %v3170 = vunpack.c.h.b16 %v780
    %v3171 = vunpack.c.l.b16 %v781
    %v3172 = vunpack.c.h.b16 %v781
    %v3173 = vunpack.c.l.b16 %v782
    %v3174 = vunpack.c.h.b16 %v782
    %v3175 = vunpack.c.l.b16 %v783
    %v3176 = vunpack.c.h.b16 %v783
    %v3177 = vunpack.c.l.b16 %v784
    %v3178 = vunpack.c.h.b16 %v784
    %v3179 = vunpack.c.l.b16 %v785
    %v3180 = vunpack.c.h.b16 %v785
    %v3181 = vunpack.c.l.b16 %v786
    %v3182 = vunpack.c.h.b16 %v786
    %v3183 = vunpack.c.l.b16 %v787
    %v3184 = vunpack.c.h.b16 %v787
    %v3185 = vunpack.c.l.b16 %v788
    %v3186 = vunpack.c.h.b16 %v788
    %v3187 = vunpack.c.l.b16 %v789
    %v3188 = vunpack.c.h.b16 %v789
    %v3189 = vunpack.c.l.b16 %v790
    %v3190 = vunpack.c.h.b16 %v790
    %v3191 = vunpack.c.l.b16 %v791
    %v3192 = vunpack.c.h.b16 %v791
    %v3193 = vunpack.c.l.b16 %v792
    %v3194 = vunpack.c.h.b16 %v792
    %v3195 = vunpack.c.l.b16 %v793
    %v3196 = vunpack.c.h.b16 %v793
    %v3197 = vunpack.c.l.b16 %v794
    %v3198 = vunpack.c.h.b16 %v794
    %v3199 = vunpack.c.l.b16 %v795
    %v3200 = vunpack.c.h.b16 %v795
    %v3201 = vunpack.c.l.b16 %v796
    %v3202 = vunpack.c.h.b16 %v796
    %v3203 = vunpack.c.l.b16 %v797
    %v3204 = vunpack.c.h.b16 %v797
    %v3205 = vunpack.c.l.b16 %v798
    %v3206 = vunpack.c.h.b16 %v798
    %v3207 = vunpack.c.l.b16 %v799
    %v3208 = vunpack.c.h.b16 %v799
    %v3209 = vunpack.c.l.b16 %v800
    %v3210 = vunpack.c.h.b16 %v800
    %v3211 = vunpack.c.l.b16 %v801
    %v3212 = vunpack.c.h.b16 %v801
    %v3213 = vunpack.c.l.b16 %v802
    %v3214 = vunpack.c.h.b16 %v802
    %v3215 = vunpack.c.l.b16 %v803
    %v3216 = vunpack.c.h.b16 %v803
    %v3217 = vunpack.c.l.b16 %v804
    %v3218 = vunpack.c.h.b16 %v804
    %v3219 = vunpack.c.l.b16 %v805
    %v3220 = vunpack.c.h.b16 %v805
    %v3221 = vunpack.c.l.b16 %v806
    %v3222 = vunpack.c.h.b16 %v806
    %v3223 = vunpack.c.l.b16 %v807
    %v3224 = vunpack.c.h.b16 %v807
    %v3225 = vunpack.c.l.b16 %v808
    %v3226 = vunpack.c.h.b16 %v808
    %v3227 = vunpack.c.l.b16 %v809
    %v3228 = vunpack.c.h.b16 %v809
    %v3229 = vpack.c.b16 %v1665, %v1661
    %v3230 = vpack.c.b16 %v1666, %v1662
    %v3231 = vpack.c.b16 %v1667, %v1663
    %v3232 = vpack.c.b16 %v1668, %v1664
    %v3233 = vpack.c.b16 %v1673, %v1669
    %v3234 = vpack.c.b16 %v1674, %v1670
    %v3235 = vpack.c.b16 %v1675, %v1671
    %v3236 = vpack.c.b16 %v1676, %v1672
    %v3237 = vpack.c.b16 %v1681, %v1677
    %v3238 = vpack.c.b16 %v1682, %v1678
    %v3239 = vpack.c.b16 %v1683, %v1679
    %v3240 = vpack.c.b16 %v1684, %v1680
    %v3241 = vpack.c.b16 %v1689, %v1685
    %v3242 = vpack.c.b16 %v1690, %v1686
    %v3243 = vpack.c.b16 %v1691, %v1687
    %v3244 = vpack.c.b16 %v1692, %v1688
    %v3245 = vpack.c.b16 %v1697, %v1693
    %v3246 = vpack.c.b16 %v1698, %v1694
    %v3247 = vpack.c.b16 %v1699, %v1695
    %v3248 = vpack.c.b16 %v1700, %v1696
    %v3249 = vpack.c.b16 %v1705, %v1701
    %v3250 = vpack.c.b16 %v1706, %v1702
    %v3251 = vpack.c.b16 %v1707, %v1703
    %v3252 = vpack.c.b16 %v1708, %v1704
    %v3253 = vpack.c.b16 %v1713, %v1709
    %v3254 = vpack.c.b16 %v1714, %v1710
    %v3255 = vpack.c.b16 %v1715, %v1711
    %v3256 = vpack.c.b16 %v1716, %v1712
    %v3257 = vpack.c.b16 %v1721, %v1717
    %v3258 = vpack.c.b16 %v1722, %v1718
    %v3259 = vpack.c.b16 %v1723, %v1719
    %v3260 = vpack.c.b16 %v1724, %v1720
    %v3261 = vpack.c.b16 %v1729, %v1725
    %v3262 = vpack.c.b16 %v1730, %v1726
    %v3263 = vpack.c.b16 %v1731, %v1727
    %v3264 = vpack.c.b16 %v1732, %v1728
    %v3265 = vpack.c.b16 %v1737, %v1733
    %v3266 = vpack.c.b16 %v1738, %v1734
    %v3267 = vpack.c.b16 %v1739, %v1735
    %v3268 = vpack.c.b16 %v1740, %v1736
    %v3269 = vpack.c.b16 %v1745, %v1741
    %v3270 = vpack.c.b16 %v1746, %v1742
    %v3271 = vpack.c.b16 %v1747, %v1743
    %v3272 = vpack.c.b16 %v1748, %v1744
    %v3273 = vpack.c.b16 %v1753, %v1749
    %v3274 = vpack.c.b16 %v1754, %v1750
    %v3275 = vpack.c.b16 %v1755, %v1751
    %v3276 = vpack.c.b16 %v1756, %v1752
    %v3277 = vpack.c.b16 %v1761, %v1757
    %v3278 = vpack.c.b16 %v1762, %v1758
    %v3279 = vpack.c.b16 %v1763, %v1759
    %v3280 = vpack.c.b16 %v1764, %v1760
    %v3281 = vpack.c.b16 %v1769, %v1765
    %v3282 = vpack.c.b16 %v1770, %v1766
    %v3283 = vpack.c.b16 %v1771, %v1767
    %v3284 = vpack.c.b16 %v1772, %v1768
    %v3285 = vpack.c.b16 %v1777, %v1773
    %v3286 = vpack.c.b16 %v1778, %v1774
    %v3287 = vpack.c.b16 %v1779, %v1775
    %v3288 = vpack.c.b16 %v1780, %v1776
    %v3289 = vpack.c.b16 %v1785, %v1781
    %v3290 = vpack.c.b16 %v1786, %v1782
    %v3291 = vpack.c.b16 %v1787, %v1783
    %v3292 = vpack.c.b16 %v1788, %v1784
    %v3293 = vpack.c.b16 %v1793, %v1789
    %v3294 = vpack.c.b16 %v1794, %v1790
    %v3295 = vpack.c.b16 %v1795, %v1791
    %v3296 = vpack.c.b16 %v1796, %v1792
    %v3297 = vpack.c.b16 %v1801, %v1797
    %v3298 = vpack.c.b16 %v1802, %v1798
    %v3299 = vpack.c.b16 %v1803, %v1799
    %v3300 = vpack.c.b16 %v1804, %v1800
    %v3301 = vpack.c.b16 %v1809, %v1805
    %v3302 = vpack.c.b16 %v1810, %v1806
    %v3303 = vpack.c.b16 %v1811, %v1807
    %v3304 = vpack.c.b16 %v1812, %v1808
    %v3305 = vpack.c.b16 %v1817, %v1813
    %v3306 = vpack.c.b16 %v1818, %v1814
    %v3307 = vpack.c.b16 %v1819, %v1815
    %v3308 = vpack.c.b16 %v1820, %v1816
    %v3309 = vpack.c.b16 %v1825, %v1821
    %v3310 = vpack.c.b16 %v1826, %v1822
    %v3311 = vpack.c.b16 %v1827, %v1823
    %v3312 = vpack.c.b16 %v1828, %v1824
    %v3313 = vpack.c.b16 %v1833, %v1829
    %v3314 = vpack.c.b16 %v1834, %v1830
    %v3315 = vpack.c.b16 %v1835, %v1831
    %v3316 = vpack.c.b16 %v1836, %v1832
    %v3317 = vpack.c.b16 %v1841, %v1837
    %v3318 = vpack.c.b16 %v1842, %v1838
    %v3319 = vpack.c.b16 %v1843, %v1839
    %v3320 = vpack.c.b16 %v1844, %v1840
    %v3321 = vpack.c.b16 %v1849, %v1845
    %v3322 = vpack.c.b16 %v1850, %v1846
    %v3323 = vpack.c.b16 %v1851, %v1847
    %v3324 = vpack.c.b16 %v1852, %v1848
    %v3325 = vpack.c.b16 %v1857, %v1853
    %v3326 = vpack.c.b16 %v1858, %v1854
    %v3327 = vpack.c.b16 %v1859, %v1855
    %v3328 = vpack.c.b16 %v1860, %v1856
    %v3329 = vpack.c.b16 %v1865, %v1861
    %v3330 = vpack.c.b16 %v1866, %v1862
    %v3331 = vpack.c.b16 %v1867, %v1863
    %v3332 = vpack.c.b16 %v1868, %v1864
    %v3333 = vpack.c.b16 %v1873, %v1869
    %v3334 = vpack.c.b16 %v1874, %v1870
    %v3335 = vpack.c.b16 %v1875, %v1871
    %v3336 = vpack.c.b16 %v1876, %v1872
    %v3337 = vpack.c.b16 %v1881, %v1877
    %v3338 = vpack.c.b16 %v1882, %v1878
    %v3339 = vpack.c.b16 %v1883, %v1879
    %v3340 = vpack.c.b16 %v1884, %v1880
    %v3341 = vpack.c.b16 %v1889, %v1885
    %v3342 = vpack.c.b16 %v1890, %v1886
    %v3343 = vpack.c.b16 %v1891, %v1887
    %v3344 = vpack.c.b16 %v1892, %v1888
    %v3345 = vpack.c.b16 %v1897, %v1893
    %v3346 = vpack.c.b16 %v1898, %v1894
    %v3347 = vpack.c.b16 %v1899, %v1895
    %v3348 = vpack.c.b16 %v1900, %v1896
    %v3349 = vpack.c.b16 %v1905, %v1901
    %v3350 = vpack.c.b16 %v1906, %v1902
    %v3351 = vpack.c.b16 %v1907, %v1903
    %v3352 = vpack.c.b16 %v1908, %v1904
    %v3353 = vpack.c.b16 %v1913, %v1909
    %v3354 = vpack.c.b16 %v1914, %v1910
    %v3355 = vpack.c.b16 %v1915, %v1911
    %v3356 = vpack.c.b16 %v1916, %v1912
    %v3357 = vpack.c.b16 %v1921, %v1917
    %v3358 = vpack.c.b16 %v1922, %v1918
    %v3359 = vpack.c.b16 %v1923, %v1919
    %v3360 = vpack.c.b16 %v1924, %v1920
    %v3361 = vpack.c.b16 %v1929, %v1925
    %v3362 = vpack.c.b16 %v1930, %v1926
    %v3363 = vpack.c.b16 %v1931, %v1927
    %v3364 = vpack.c.b16 %v1932, %v1928
    %v3365 = vpack.c.b16 %v1937, %v1933
    %v3366 = vpack.c.b16 %v1938, %v1934
    %v3367 = vpack.c.b16 %v1939, %v1935
    %v3368 = vpack.c.b16 %v1940, %v1936
    %v3369 = vpack.c.b16 %v1945, %v1941
    %v3370 = vpack.c.b16 %v1946, %v1942
    %v3371 = vpack.c.b16 %v1947, %v1943
    %v3372 = vpack.c.b16 %v1948, %v1944
    %v3373 = vpack.c.b16 %v1953, %v1949
    %v3374 = vpack.c.b16 %v1954, %v1950
    %v3375 = vpack.c.b16 %v1955, %v1951
    %v3376 = vpack.c.b16 %v1956, %v1952
    %v3377 = vpack.c.b16 %v1961, %v1957
    %v3378 = vpack.c.b16 %v1962, %v1958
    %v3379 = vpack.c.b16 %v1963, %v1959
    %v3380 = vpack.c.b16 %v1964, %v1960
    %v3381 = vpack.c.b16 %v1969, %v1965
    %v3382 = vpack.c.b16 %v1970, %v1966
    %v3383 = vpack.c.b16 %v1971, %v1967
    %v3384 = vpack.c.b16 %v1972, %v1968
    %v3385 = vpack.c.b16 %v1977, %v1973
    %v3386 = vpack.c.b16 %v1978, %v1974
    %v3387 = vpack.c.b16 %v1979, %v1975
    %v3388 = vpack.c.b16 %v1980, %v1976
    %v3389 = vpack.c.b16 %v1985, %v1981
    %v3390 = vpack.c.b16 %v1986, %v1982
    %v3391 = vpack.c.b16 %v1987, %v1983
    %v3392 = vpack.c.b16 %v1988, %v1984
    %v3393 = vpack.c.b16 %v1993, %v1989
    %v3394 = vpack.c.b16 %v1994, %v1990
    %v3395 = vpack.c.b16 %v1995, %v1991
    %v3396 = vpack.c.b16 %v1996, %v1992
    %v3397 = vpack.c.b16 %v2001, %v1997
    %v3398 = vpack.c.b16 %v2002, %v1998
    %v3399 = vpack.c.b16 %v2003, %v1999
    %v3400 = vpack.c.b16 %v2004, %v2000
    %v3401 = vpack.c.b16 %v2009, %v2005
    %v3402 = vpack.c.b16 %v2010, %v2006
    %v3403 = vpack.c.b16 %v2011, %v2007
    %v3404 = vpack.c.b16 %v2012, %v2008
    %v3405 = vpack.c.b16 %v2017, %v2013
    %v3406 = vpack.c.b16 %v2018, %v2014
    %v3407 = vpack.c.b16 %v2019, %v2015
    %v3408 = vpack.c.b16 %v2020, %v2016
    %v3409 = vpack.c.b16 %v2025, %v2021
    %v3410 = vpack.c.b16 %v2026, %v2022
    %v3411 = vpack.c.b16 %v2027, %v2023
    %v3412 = vpack.c.b16 %v2028, %v2024
    %v3413 = vpack.c.b16 %v2033, %v2029
    %v3414 = vpack.c.b16 %v2034, %v2030
    %v3415 = vpack.c.b16 %v2035, %v2031
    %v3416 = vpack.c.b16 %v2036, %v2032
    %v3417 = vpack.c.b16 %v2041, %v2037
    %v3418 = vpack.c.b16 %v2042, %v2038
    %v3419 = vpack.c.b16 %v2043, %v2039
    %v3420 = vpack.c.b16 %v2044, %v2040
    %v3421 = vpack.c.b16 %v2049, %v2045
    %v3422 = vpack.c.b16 %v2050, %v2046
    %v3423 = vpack.c.b16 %v2051, %v2047
    %v3424 = vpack.c.b16 %v2052, %v2048
    %v3425 = vpack.c.b16 %v2057, %v2053
    %v3426 = vpack.c.b16 %v2058, %v2054
    %v3427 = vpack.c.b16 %v2059, %v2055
    %v3428 = vpack.c.b16 %v2060, %v2056
    %v3429 = vpack.c.b16 %v2065, %v2061
    %v3430 = vpack.c.b16 %v2066, %v2062
    %v3431 = vpack.c.b16 %v2067, %v2063
    %v3432 = vpack.c.b16 %v2068, %v2064
    %v3433 = vpack.c.b16 %v2073, %v2069
    %v3434 = vpack.c.b16 %v2074, %v2070
    %v3435 = vpack.c.b16 %v2075, %v2071
    %v3436 = vpack.c.b16 %v2076, %v2072
    %v3437 = vpack.c.b16 %v2081, %v2077
    %v3438 = vpack.c.b16 %v2082, %v2078
    %v3439 = vpack.c.b16 %v2083, %v2079
    %v3440 = vpack.c.b16 %v2084, %v2080
    %v3441 = vpack.c.b16 %v2089, %v2085
    %v3442 = vpack.c.b16 %v2090, %v2086
    %v3443 = vpack.c.b16 %v2091, %v2087
    %v3444 = vpack.c.b16 %v2092, %v2088
    %v3445 = vpack.c.b16 %v2097, %v2093
    %v3446 = vpack.c.b16 %v2098, %v2094
    %v3447 = vpack.c.b16 %v2099, %v2095
    %v3448 = vpack.c.b16 %v2100, %v2096
    %v3449 = vpack.c.b16 %v2105, %v2101
    %v3450 = vpack.c.b16 %v2106, %v2102
    %v3451 = vpack.c.b16 %v2107, %v2103
    %v3452 = vpack.c.b16 %v2108, %v2104
    %v3453 = vpack.c.b16 %v2113, %v2109
    %v3454 = vpack.c.b16 %v2114, %v2110
    %v3455 = vpack.c.b16 %v2115, %v2111
    %v3456 = vpack.c.b16 %v2116, %v2112
    %v3457 = vpack.c.b16 %v2121, %v2117
    %v3458 = vpack.c.b16 %v2122, %v2118
    %v3459 = vpack.c.b16 %v2123, %v2119
    %v3460 = vpack.c.b16 %v2124, %v2120
    %v3461 = vpack.c.b16 %v2129, %v2125
    %v3462 = vpack.c.b16 %v2130, %v2126
    %v3463 = vpack.c.b16 %v2131, %v2127
    %v3464 = vpack.c.b16 %v2132, %v2128
    %v3465 = vpack.c.b16 %v2137, %v2133
    %v3466 = vpack.c.b16 %v2138, %v2134
    %v3467 = vpack.c.b16 %v2139, %v2135
    %v3468 = vpack.c.b16 %v2140, %v2136
    %v3469 = vpack.c.b16 %v2145, %v2141
    %v3470 = vpack.c.b16 %v2146, %v2142
    %v3471 = vpack.c.b16 %v2147, %v2143
    %v3472 = vpack.c.b16 %v2148, %v2144
    %v3473 = vpack.c.b16 %v2153, %v2149
    %v3474 = vpack.c.b16 %v2154, %v2150
    %v3475 = vpack.c.b16 %v2155, %v2151
    %v3476 = vpack.c.b16 %v2156, %v2152
    %v3477 = vpack.c.b16 %v2161, %v2157
    %v3478 = vpack.c.b16 %v2162, %v2158
    %v3479 = vpack.c.b16 %v2163, %v2159
    %v3480 = vpack.c.b16 %v2164, %v2160
    %v3481 = vpack.c.b16 %v2169, %v2165
    %v3482 = vpack.c.b16 %v2170, %v2166
    %v3483 = vpack.c.b16 %v2171, %v2167
    %v3484 = vpack.c.b16 %v2172, %v2168
    %v3485 = vpack.c.b16 %v2177, %v2173
    %v3486 = vpack.c.b16 %v2178, %v2174
    %v3487 = vpack.c.b16 %v2179, %v2175
    %v3488 = vpack.c.b16 %v2180, %v2176
    %v3489 = vpack.c.b16 %v2185, %v2181
    %v3490 = vpack.c.b16 %v2186, %v2182
    %v3491 = vpack.c.b16 %v2187, %v2183
    %v3492 = vpack.c.b16 %v2188, %v2184
    %v3493 = vpack.c.b16 %v2193, %v2189
    %v3494 = vpack.c.b16 %v2194, %v2190
    %v3495 = vpack.c.b16 %v2195, %v2191
    %v3496 = vpack.c.b16 %v2196, %v2192
    %v3497 = vpack.c.b16 %v2201, %v2197
    %v3498 = vpack.c.b16 %v2202, %v2198
    %v3499 = vpack.c.b16 %v2203, %v2199
    %v3500 = vpack.c.b16 %v2204, %v2200
    %v3501 = vpack.c.b16 %v2209, %v2205
    %v3502 = vpack.c.b16 %v2210, %v2206
    %v3503 = vpack.c.b16 %v2211, %v2207
    %v3504 = vpack.c.b16 %v2212, %v2208
    %v3505 = vpack.c.b16 %v2217, %v2213
    %v3506 = vpack.c.b16 %v2218, %v2214
    %v3507 = vpack.c.b16 %v2219, %v2215
    %v3508 = vpack.c.b16 %v2220, %v2216
    %v3509 = vpack.c.b16 %v2225, %v2221
    %v3510 = vpack.c.b16 %v2226, %v2222
    %v3511 = vpack.c.b16 %v2227, %v2223
    %v3512 = vpack.c.b16 %v2228, %v2224
    %v3513 = vpack.c.b16 %v2233, %v2229
    %v3514 = vpack.c.b16 %v2234, %v2230
    %v3515 = vpack.c.b16 %v2235, %v2231
    %v3516 = vpack.c.b16 %v2236, %v2232
    %v3517 = vpack.c.b16 %v2241, %v2237
    %v3518 = vpack.c.b16 %v2242, %v2238
    %v3519 = vpack.c.b16 %v2243, %v2239
    %v3520 = vpack.c.b16 %v2244, %v2240
    %v3521 = vpack.c.b16 %v2249, %v2245
    %v3522 = vpack.c.b16 %v2250, %v2246
    %v3523 = vpack.c.b16 %v2251, %v2247
    %v3524 = vpack.c.b16 %v2252, %v2248
    %v3525 = vpack.c.b16 %v2257, %v2253
    %v3526 = vpack.c.b16 %v2258, %v2254
    %v3527 = vpack.c.b16 %v2259, %v2255
    %v3528 = vpack.c.b16 %v2260, %v2256
    %v3529 = vpack.c.b16 %v2265, %v2261
    %v3530 = vpack.c.b16 %v2266, %v2262
    %v3531 = vpack.c.b16 %v2267, %v2263
    %v3532 = vpack.c.b16 %v2268, %v2264
    %v3533 = vpack.c.b16 %v2273, %v2269
    %v3534 = vpack.c.b16 %v2274, %v2270
    %v3535 = vpack.c.b16 %v2275, %v2271
    %v3536 = vpack.c.b16 %v2276, %v2272
    %v3537 = vpack.c.b16 %v2281, %v2277
    %v3538 = vpack.c.b16 %v2282, %v2278
    %v3539 = vpack.c.b16 %v2283, %v2279
    %v3540 = vpack.c.b16 %v2284, %v2280
    %v3541 = vpack.c.b16 %v2289, %v2285
    %v3542 = vpack.c.b16 %v2290, %v2286
    %v3543 = vpack.c.b16 %v2291, %v2287
    %v3544 = vpack.c.b16 %v2292, %v2288
    %v3545 = vpack.c.b16 %v2297, %v2293
    %v3546 = vpack.c.b16 %v2298, %v2294
    %v3547 = vpack.c.b16 %v2299, %v2295
    %v3548 = vpack.c.b16 %v2300, %v2296
    %v3549 = vpack.c.b16 %v2305, %v2301
    %v3550 = vpack.c.b16 %v2306, %v2302
    %v3551 = vpack.c.b16 %v2307, %v2303
    %v3552 = vpack.c.b16 %v2308, %v2304
    %v3553 = vpack.c.b16 %v2313, %v2309
    %v3554 = vpack.c.b16 %v2314, %v2310
    %v3555 = vpack.c.b16 %v2315, %v2311
    %v3556 = vpack.c.b16 %v2316, %v2312
    %v3557 = vpack.c.b16 %v2321, %v2317
    %v3558 = vpack.c.b16 %v2322, %v2318
    %v3559 = vpack.c.b16 %v2323, %v2319
    %v3560 = vpack.c.b16 %v2324, %v2320
    %v3561 = vpack.c.b16 %v2329, %v2325
    %v3562 = vpack.c.b16 %v2330, %v2326
    %v3563 = vpack.c.b16 %v2331, %v2327
    %v3564 = vpack.c.b16 %v2332, %v2328
    %v3565 = vpack.c.b16 %v2337, %v2333
    %v3566 = vpack.c.b16 %v2338, %v2334
    %v3567 = vpack.c.b16 %v2339, %v2335
    %v3568 = vpack.c.b16 %v2340, %v2336
    %v3569 = vpack.c.b16 %v2345, %v2341
    %v3570 = vpack.c.b16 %v2346, %v2342
    %v3571 = vpack.c.b16 %v2347, %v2343
    %v3572 = vpack.c.b16 %v2348, %v2344
    %v3573 = vpack.c.b16 %v2353, %v2349
    %v3574 = vpack.c.b16 %v2354, %v2350
    %v3575 = vpack.c.b16 %v2355, %v2351
    %v3576 = vpack.c.b16 %v2356, %v2352
    %v3577 = vpack.c.b16 %v2361, %v2357
    %v3578 = vpack.c.b16 %v2362, %v2358
    %v3579 = vpack.c.b16 %v2363, %v2359
    %v3580 = vpack.c.b16 %v2364, %v2360
    %v3581 = vpack.c.b16 %v2369, %v2365
    %v3582 = vpack.c.b16 %v2370, %v2366
    %v3583 = vpack.c.b16 %v2371, %v2367
    %v3584 = vpack.c.b16 %v2372, %v2368
    %v3585 = vpack.c.b16 %v2377, %v2373
    %v3586 = vpack.c.b16 %v2378, %v2374
    %v3587 = vpack.c.b16 %v2379, %v2375
    %v3588 = vpack.c.b16 %v2380, %v2376
    %v3589 = vpack.c.b16 %v2385, %v2381
    %v3590 = vpack.c.b16 %v2386, %v2382
    %v3591 = vpack.c.b16 %v2387, %v2383
    %v3592 = vpack.c.b16 %v2388, %v2384
    %v3593 = vpack.c.b16 %v2393, %v2389
    %v3594 = vpack.c.b16 %v2394, %v2390
    %v3595 = vpack.c.b16 %v2395, %v2391
    %v3596 = vpack.c.b16 %v2396, %v2392
    %v3597 = vpack.c.b16 %v2401, %v2397
    %v3598 = vpack.c.b16 %v2402, %v2398
    %v3599 = vpack.c.b16 %v2403, %v2399
    %v3600 = vpack.c.b16 %v2404, %v2400
    %v3601 = vpack.c.b16 %v2409, %v2405
    %v3602 = vpack.c.b16 %v2410, %v2406
    %v3603 = vpack.c.b16 %v2411, %v2407
    %v3604 = vpack.c.b16 %v2412, %v2408
    %v3605 = vpack.c.b16 %v2417, %v2413
    %v3606 = vpack.c.b16 %v2418, %v2414
    %v3607 = vpack.c.b16 %v2419, %v2415
    %v3608 = vpack.c.b16 %v2420, %v2416
    %v3609 = vpack.c.b16 %v2425, %v2421
    %v3610 = vpack.c.b16 %v2426, %v2422
    %v3611 = vpack.c.b16 %v2427, %v2423
    %v3612 = vpack.c.b16 %v2428, %v2424
    %v3613 = vpack.c.b16 %v2433, %v2429
    %v3614 = vpack.c.b16 %v2434, %v2430
    %v3615 = vpack.c.b16 %v2435, %v2431
    %v3616 = vpack.c.b16 %v2436, %v2432
    %v3617 = vpack.c.b16 %v2441, %v2437
    %v3618 = vpack.c.b16 %v2442, %v2438
    %v3619 = vpack.c.b16 %v2443, %v2439
    %v3620 = vpack.c.b16 %v2444, %v2440
    %v3621 = vpack.c.b16 %v2449, %v2445
    %v3622 = vpack.c.b16 %v2450, %v2446
    %v3623 = vpack.c.b16 %v2451, %v2447
    %v3624 = vpack.c.b16 %v2452, %v2448
    %v3625 = vpack.c.b16 %v2457, %v2453
    %v3626 = vpack.c.b16 %v2458, %v2454
    %v3627 = vpack.c.b16 %v2459, %v2455
    %v3628 = vpack.c.b16 %v2460, %v2456
    %v3629 = vpack.c.b16 %v2465, %v2461
    %v3630 = vpack.c.b16 %v2466, %v2462
    %v3631 = vpack.c.b16 %v2467, %v2463
    %v3632 = vpack.c.b16 %v2468, %v2464
    %v3633 = vpack.c.b16 %v2473, %v2469
    %v3634 = vpack.c.b16 %v2474, %v2470
    %v3635 = vpack.c.b16 %v2475, %v2471
    %v3636 = vpack.c.b16 %v2476, %v2472
    %v3637 = vpack.c.b16 %v2481, %v2477
    %v3638 = vpack.c.b16 %v2482, %v2478
    %v3639 = vpack.c.b16 %v2483, %v2479
    %v3640 = vpack.c.b16 %v2484, %v2480
    %v3641 = vpack.c.b16 %v2489, %v2485
    %v3642 = vpack.c.b16 %v2490, %v2486
    %v3643 = vpack.c.b16 %v2491, %v2487
    %v3644 = vpack.c.b16 %v2492, %v2488
    %v3645 = vpack.c.b16 %v2497, %v2493
    %v3646 = vpack.c.b16 %v2498, %v2494
    %v3647 = vpack.c.b16 %v2499, %v2495
    %v3648 = vpack.c.b16 %v2500, %v2496
    %v3649 = vpack.c.b16 %v2505, %v2501
    %v3650 = vpack.c.b16 %v2506, %v2502
    %v3651 = vpack.c.b16 %v2507, %v2503
    %v3652 = vpack.c.b16 %v2508, %v2504
    %v3653 = vpack.c.b16 %v2513, %v2509
    %v3654 = vpack.c.b16 %v2514, %v2510
    %v3655 = vpack.c.b16 %v2515, %v2511
    %v3656 = vpack.c.b16 %v2516, %v2512
    %v3657 = vpack.c.b16 %v2521, %v2517
    %v3658 = vpack.c.b16 %v2522, %v2518
    %v3659 = vpack.c.b16 %v2523, %v2519
    %v3660 = vpack.c.b16 %v2524, %v2520
    %v3661 = vpack.c.b16 %v2529, %v2525
    %v3662 = vpack.c.b16 %v2530, %v2526
    %v3663 = vpack.c.b16 %v2531, %v2527
    %v3664 = vpack.c.b16 %v2532, %v2528
    %v3665 = vpack.c.b16 %v2537, %v2533
    %v3666 = vpack.c.b16 %v2538, %v2534
    %v3667 = vpack.c.b16 %v2539, %v2535
    %v3668 = vpack.c.b16 %v2540, %v2536
    %v3669 = vpack.c.b16 %v2545, %v2541
    %v3670 = vpack.c.b16 %v2546, %v2542
    %v3671 = vpack.c.b16 %v2547, %v2543
    %v3672 = vpack.c.b16 %v2548, %v2544
    %v3673 = vpack.c.b16 %v2553, %v2549
    %v3674 = vpack.c.b16 %v2554, %v2550
    %v3675 = vpack.c.b16 %v2555, %v2551
    %v3676 = vpack.c.b16 %v2556, %v2552
    %v3677 = vpack.c.b16 %v2561, %v2557
    %v3678 = vpack.c.b16 %v2562, %v2558
    %v3679 = vpack.c.b16 %v2563, %v2559
    %v3680 = vpack.c.b16 %v2564, %v2560
    %v3681 = vpack.c.b16 %v2569, %v2565
    %v3682 = vpack.c.b16 %v2570, %v2566
    %v3683 = vpack.c.b16 %v2571, %v2567
    %v3684 = vpack.c.b16 %v2572, %v2568
    %v3685 = vpack.c.b16 %v2577, %v2573
    %v3686 = vpack.c.b16 %v2578, %v2574
    %v3687 = vpack.c.b16 %v2579, %v2575
    %v3688 = vpack.c.b16 %v2580, %v2576
    %v3689 = vpack.c.b16 %v2585, %v2581
    %v3690 = vpack.c.b16 %v2586, %v2582
    %v3691 = vpack.c.b16 %v2587, %v2583
    %v3692 = vpack.c.b16 %v2588, %v2584
    %v3693 = vpack.c.b16 %v2593, %v2589
    %v3694 = vpack.c.b16 %v2594, %v2590
    %v3695 = vpack.c.b16 %v2595, %v2591
    %v3696 = vpack.c.b16 %v2596, %v2592
    %v3697 = vpack.c.b16 %v2601, %v2597
    %v3698 = vpack.c.b16 %v2602, %v2598
    %v3699 = vpack.c.b16 %v2603, %v2599
    %v3700 = vpack.c.b16 %v2604, %v2600
    %v3701 = vpack.c.b16 %v2609, %v2605
    %v3702 = vpack.c.b16 %v2610, %v2606
    %v3703 = vpack.c.b16 %v2611, %v2607
    %v3704 = vpack.c.b16 %v2612, %v2608
    %v3705 = vpack.c.b16 %v2617, %v2613
    %v3706 = vpack.c.b16 %v2618, %v2614
    %v3707 = vpack.c.b16 %v2619, %v2615
    %v3708 = vpack.c.b16 %v2620, %v2616
    %v3709 = vpack.c.b16 %v2625, %v2621
    %v3710 = vpack.c.b16 %v2626, %v2622
    %v3711 = vpack.c.b16 %v2627, %v2623
    %v3712 = vpack.c.b16 %v2628, %v2624
    %v3713 = vpack.c.b16 %v2633, %v2629
    %v3714 = vpack.c.b16 %v2634, %v2630
    %v3715 = vpack.c.b16 %v2635, %v2631
    %v3716 = vpack.c.b16 %v2636, %v2632
    %v3717 = vpack.c.b16 %v2641, %v2637
    %v3718 = vpack.c.b16 %v2642, %v2638
    %v3719 = vpack.c.b16 %v2643, %v2639
    %v3720 = vpack.c.b16 %v2644, %v2640
    %v3721 = vpack.c.b16 %v2649, %v2645
    %v3722 = vpack.c.b16 %v2650, %v2646
    %v3723 = vpack.c.b16 %v2651, %v2647
    %v3724 = vpack.c.b16 %v2652, %v2648
    %v3725 = vpack.c.b16 %v2657, %v2653
    %v3726 = vpack.c.b16 %v2658, %v2654
    %v3727 = vpack.c.b16 %v2659, %v2655
    %v3728 = vpack.c.b16 %v2660, %v2656
    %v3729 = vpack.c.b16 %v2665, %v2661
    %v3730 = vpack.c.b16 %v2666, %v2662
    %v3731 = vpack.c.b16 %v2667, %v2663
    %v3732 = vpack.c.b16 %v2668, %v2664
    %v3733 = vpack.c.b16 %v2673, %v2669
    %v3734 = vpack.c.b16 %v2674, %v2670
    %v3735 = vpack.c.b16 %v2675, %v2671
    %v3736 = vpack.c.b16 %v2676, %v2672
    %v3737 = vpack.c.b16 %v2681, %v2677
    %v3738 = vpack.c.b16 %v2682, %v2678
    %v3739 = vpack.c.b16 %v2683, %v2679
    %v3740 = vpack.c.b16 %v2684, %v2680
    %v3741 = vpack.c.b16 %v2689, %v2685
    %v3742 = vpack.c.b16 %v2690, %v2686
    %v3743 = vpack.c.b16 %v2691, %v2687
    %v3744 = vpack.c.b16 %v2692, %v2688
    %v3745 = vpack.c.b16 %v2697, %v2693
    %v3746 = vpack.c.b16 %v2698, %v2694
    %v3747 = vpack.c.b16 %v2699, %v2695
    %v3748 = vpack.c.b16 %v2700, %v2696
    %v3749 = vpack.c.b16 %v2705, %v2701
    %v3750 = vpack.c.b16 %v2706, %v2702
    %v3751 = vpack.c.b16 %v2707, %v2703
    %v3752 = vpack.c.b16 %v2708, %v2704
    %v3753 = vpack.c.b16 %v2713, %v2709
    %v3754 = vpack.c.b16 %v2714, %v2710
    %v3755 = vpack.c.b16 %v2715, %v2711
    %v3756 = vpack.c.b16 %v2716, %v2712
    %v3757 = vpack.c.b16 %v2721, %v2717
    %v3758 = vpack.c.b16 %v2722, %v2718
    %v3759 = vpack.c.b16 %v2723, %v2719
    %v3760 = vpack.c.b16 %v2724, %v2720
    %v3761 = vpack.c.b16 %v2729, %v2725
    %v3762 = vpack.c.b16 %v2730, %v2726
    %v3763 = vpack.c.b16 %v2731, %v2727
    %v3764 = vpack.c.b16 %v2732, %v2728
    %v3765 = vpack.c.b16 %v2737, %v2733
    %v3766 = vpack.c.b16 %v2738, %v2734
    %v3767 = vpack.c.b16 %v2739, %v2735
    %v3768 = vpack.c.b16 %v2740, %v2736
    %v3769 = vpack.c.b16 %v2745, %v2741
    %v3770 = vpack.c.b16 %v2746, %v2742
    %v3771 = vpack.c.b16 %v2747, %v2743
    %v3772 = vpack.c.b16 %v2748, %v2744
    %v3773 = vpack.c.b16 %v2753, %v2749
    %v3774 = vpack.c.b16 %v2754, %v2750
    %v3775 = vpack.c.b16 %v2755, %v2751
    %v3776 = vpack.c.b16 %v2756, %v2752
    %v3777 = vpack.c.b16 %v2761, %v2757
    %v3778 = vpack.c.b16 %v2762, %v2758
    %v3779 = vpack.c.b16 %v2763, %v2759
    %v3780 = vpack.c.b16 %v2764, %v2760
    %v3781 = vpack.c.b16 %v2769, %v2765
    %v3782 = vpack.c.b16 %v2770, %v2766
    %v3783 = vpack.c.b16 %v2771, %v2767
    %v3784 = vpack.c.b16 %v2772, %v2768
    %v3785 = vpack.c.b16 %v2777, %v2773
    %v3786 = vpack.c.b16 %v2778, %v2774
    %v3787 = vpack.c.b16 %v2779, %v2775
    %v3788 = vpack.c.b16 %v2780, %v2776
    %v3789 = vpack.c.b16 %v2785, %v2781
    %v3790 = vpack.c.b16 %v2786, %v2782
    %v3791 = vpack.c.b16 %v2787, %v2783
    %v3792 = vpack.c.b16 %v2788, %v2784
    %v3793 = vpack.c.b16 %v2793, %v2789
    %v3794 = vpack.c.b16 %v2794, %v2790
    %v3795 = vpack.c.b16 %v2795, %v2791
    %v3796 = vpack.c.b16 %v2796, %v2792
    %v3797 = vpack.c.b16 %v2801, %v2797
    %v3798 = vpack.c.b16 %v2802, %v2798
    %v3799 = vpack.c.b16 %v2803, %v2799
    %v3800 = vpack.c.b16 %v2804, %v2800
    %v3801 = vpack.c.b16 %v2809, %v2805
    %v3802 = vpack.c.b16 %v2810, %v2806
    %v3803 = vpack.c.b16 %v2811, %v2807
    %v3804 = vpack.c.b16 %v2812, %v2808
    %v3805 = vpack.c.b16 %v2817, %v2813
    %v3806 = vpack.c.b16 %v2818, %v2814
    %v3807 = vpack.c.b16 %v2819, %v2815
    %v3808 = vpack.c.b16 %v2820, %v2816
    %v3809 = vpack.c.b16 %v2825, %v2821
    %v3810 = vpack.c.b16 %v2826, %v2822
    %v3811 = vpack.c.b16 %v2827, %v2823
    %v3812 = vpack.c.b16 %v2828, %v2824
    %v3813 = vpack.c.b16 %v2833, %v2829
    %v3814 = vpack.c.b16 %v2834, %v2830
    %v3815 = vpack.c.b16 %v2835, %v2831
    %v3816 = vpack.c.b16 %v2836, %v2832
    %v3817 = vpack.c.b16 %v2841, %v2837
    %v3818 = vpack.c.b16 %v2842, %v2838
    %v3819 = vpack.c.b16 %v2843, %v2839
    %v3820 = vpack.c.b16 %v2844, %v2840
    %v3821 = vpack.c.b16 %v2849, %v2845
    %v3822 = vpack.c.b16 %v2850, %v2846
    %v3823 = vpack.c.b16 %v2851, %v2847
    %v3824 = vpack.c.b16 %v2852, %v2848
    %v3825 = vpack.c.b16 %v2857, %v2853
    %v3826 = vpack.c.b16 %v2858, %v2854
    %v3827 = vpack.c.b16 %v2859, %v2855
    %v3828 = vpack.c.b16 %v2860, %v2856
    %v3829 = vpack.c.b16 %v2865, %v2861
    %v3830 = vpack.c.b16 %v2866, %v2862
    %v3831 = vpack.c.b16 %v2867, %v2863
    %v3832 = vpack.c.b16 %v2868, %v2864
    %v3833 = vpack.c.b16 %v2873, %v2869
    %v3834 = vpack.c.b16 %v2874, %v2870
    %v3835 = vpack.c.b16 %v2875, %v2871
    %v3836 = vpack.c.b16 %v2876, %v2872
    %v3837 = vpack.c.b16 %v2881, %v2877
    %v3838 = vpack.c.b16 %v2882, %v2878
    %v3839 = vpack.c.b16 %v2883, %v2879
    %v3840 = vpack.c.b16 %v2884, %v2880
    %v3841 = vpack.c.b16 %v2889, %v2885
    %v3842 = vpack.c.b16 %v2890, %v2886
    %v3843 = vpack.c.b16 %v2891, %v2887
    %v3844 = vpack.c.b16 %v2892, %v2888
    %v3845 = vpack.c.b16 %v2897, %v2893
    %v3846 = vpack.c.b16 %v2898, %v2894
    %v3847 = vpack.c.b16 %v2899, %v2895
    %v3848 = vpack.c.b16 %v2900, %v2896
    %v3849 = vpack.c.b16 %v2905, %v2901
    %v3850 = vpack.c.b16 %v2906, %v2902
    %v3851 = vpack.c.b16 %v2907, %v2903
    %v3852 = vpack.c.b16 %v2908, %v2904
    %v3853 = vpack.c.b16 %v2913, %v2909
    %v3854 = vpack.c.b16 %v2914, %v2910
    %v3855 = vpack.c.b16 %v2915, %v2911
    %v3856 = vpack.c.b16 %v2916, %v2912
    %v3857 = vpack.c.b16 %v2921, %v2917
    %v3858 = vpack.c.b16 %v2922, %v2918
    %v3859 = vpack.c.b16 %v2923, %v2919
    %v3860 = vpack.c.b16 %v2924, %v2920
    %v3861 = vpack.c.b16 %v2929, %v2925
    %v3862 = vpack.c.b16 %v2930, %v2926
    %v3863 = vpack.c.b16 %v2931, %v2927
    %v3864 = vpack.c.b16 %v2932, %v2928
    %v3865 = vpack.c.b16 %v2937, %v2933
    %v3866 = vpack.c.b16 %v2938, %v2934
    %v3867 = vpack.c.b16 %v2939, %v2935
    %v3868 = vpack.c.b16 %v2940, %v2936
    %v3869 = vpack.c.b16 %v2945, %v2941
    %v3870 = vpack.c.b16 %v2946, %v2942
    %v3871 = vpack.c.b16 %v2947, %v2943
    %v3872 = vpack.c.b16 %v2948, %v2944
    %v3873 = vpack.c.b16 %v2953, %v2949
    %v3874 = vpack.c.b16 %v2954, %v2950
    %v3875 = vpack.c.b16 %v2955, %v2951
    %v3876 = vpack.c.b16 %v2956, %v2952
    %v3877 = vpack.c.b16 %v2961, %v2957
    %v3878 = vpack.c.b16 %v2962, %v2958
    %v3879 = vpack.c.b16 %v2963, %v2959
    %v3880 = vpack.c.b16 %v2964, %v2960
    %v3881 = vpack.c.b16 %v2969, %v2965
    %v3882 = vpack.c.b16 %v2970, %v2966
    %v3883 = vpack.c.b16 %v2971, %v2967
    %v3884 = vpack.c.b16 %v2972, %v2968
    %v3885 = vpack.c.b16 %v2977, %v2973
    %v3886 = vpack.c.b16 %v2978, %v2974
    %v3887 = vpack.c.b16 %v2979, %v2975
    %v3888 = vpack.c.b16 %v2980, %v2976
    %v3889 = vpack.c.b16 %v2985, %v2981
    %v3890 = vpack.c.b16 %v2986, %v2982
    %v3891 = vpack.c.b16 %v2987, %v2983
    %v3892 = vpack.c.b16 %v2988, %v2984
    %v3893 = vpack.c.b16 %v2993, %v2989
    %v3894 = vpack.c.b16 %v2994, %v2990
    %v3895 = vpack.c.b16 %v2995, %v2991
    %v3896 = vpack.c.b16 %v2996, %v2992
    %v3897 = vpack.c.b16 %v3001, %v2997
    %v3898 = vpack.c.b16 %v3002, %v2998
    %v3899 = vpack.c.b16 %v3003, %v2999
    %v3900 = vpack.c.b16 %v3004, %v3000
    %v3901 = vpack.c.b16 %v3009, %v3005
    %v3902 = vpack.c.b16 %v3010, %v3006
    %v3903 = vpack.c.b16 %v3011, %v3007
    %v3904 = vpack.c.b16 %v3012, %v3008
    %v3905 = vpack.c.b16 %v3017, %v3013
    %v3906 = vpack.c.b16 %v3018, %v3014
    %v3907 = vpack.c.b16 %v3019, %v3015
    %v3908 = vpack.c.b16 %v3020, %v3016
    %v3909 = vpack.c.b16 %v3025, %v3021
    %v3910 = vpack.c.b16 %v3026, %v3022
    %v3911 = vpack.c.b16 %v3027, %v3023
    %v3912 = vpack.c.b16 %v3028, %v3024
    %v3913 = vpack.c.b16 %v3033, %v3029
    %v3914 = vpack.c.b16 %v3034, %v3030
    %v3915 = vpack.c.b16 %v3035, %v3031
    %v3916 = vpack.c.b16 %v3036, %v3032
    %v3917 = vpack.c.b16 %v3041, %v3037
    %v3918 = vpack.c.b16 %v3042, %v3038
    %v3919 = vpack.c.b16 %v3043, %v3039
    %v3920 = vpack.c.b16 %v3044, %v3040
    %v3921 = vpack.c.b16 %v3049, %v3045
    %v3922 = vpack.c.b16 %v3050, %v3046
    %v3923 = vpack.c.b16 %v3051, %v3047
    %v3924 = vpack.c.b16 %v3052, %v3048
    %v3925 = vpack.c.b16 %v3057, %v3053
    %v3926 = vpack.c.b16 %v3058, %v3054
    %v3927 = vpack.c.b16 %v3059, %v3055
    %v3928 = vpack.c.b16 %v3060, %v3056
    %v3929 = vpack.c.b16 %v3065, %v3061
    %v3930 = vpack.c.b16 %v3066, %v3062
    %v3931 = vpack.c.b16 %v3067, %v3063
    %v3932 = vpack.c.b16 %v3068, %v3064
    %v3933 = vpack.c.b16 %v3073, %v3069
    %v3934 = vpack.c.b16 %v3074, %v3070
    %v3935 = vpack.c.b16 %v3075, %v3071
    %v3936 = vpack.c.b16 %v3076, %v3072
    %v3937 = vpack.c.b16 %v3081, %v3077
    %v3938 = vpack.c.b16 %v3082, %v3078
    %v3939 = vpack.c.b16 %v3083, %v3079
    %v3940 = vpack.c.b16 %v3084, %v3080
    %v3941 = vpack.c.b16 %v3089, %v3085
    %v3942 = vpack.c.b16 %v3090, %v3086
    %v3943 = vpack.c.b16 %v3091, %v3087
    %v3944 = vpack.c.b16 %v3092, %v3088
    %v3945 = vpack.c.b16 %v3097, %v3093
    %v3946 = vpack.c.b16 %v3098, %v3094
    %v3947 = vpack.c.b16 %v3099, %v3095
    %v3948 = vpack.c.b16 %v3100, %v3096
    %v3949 = vpack.c.b16 %v3105, %v3101
    %v3950 = vpack.c.b16 %v3106, %v3102
    %v3951 = vpack.c.b16 %v3107, %v3103
    %v3952 = vpack.c.b16 %v3108, %v3104
    %v3953 = vpack.c.b16 %v3113, %v3109
    %v3954 = vpack.c.b16 %v3114, %v3110
    %v3955 = vpack.c.b16 %v3115, %v3111
    %v3956 = vpack.c.b16 %v3116, %v3112
    %v3957 = vpack.c.b16 %v3121, %v3117
    %v3958 = vpack.c.b16 %v3122, %v3118
    %v3959 = vpack.c.b16 %v3123, %v3119
    %v3960 = vpack.c.b16 %v3124, %v3120
    %v3961 = vpack.c.b16 %v3129, %v3125
    %v3962 = vpack.c.b16 %v3130, %v3126
    %v3963 = vpack.c.b16 %v3131, %v3127
    %v3964 = vpack.c.b16 %v3132, %v3128
    %v3965 = vpack.c.b16 %v3137, %v3133
    %v3966 = vpack.c.b16 %v3138, %v3134
    %v3967 = vpack.c.b16 %v3139, %v3135
    %v3968 = vpack.c.b16 %v3140, %v3136
    %v3969 = vpack.c.b16 %v3145, %v3141
    %v3970 = vpack.c.b16 %v3146, %v3142
    %v3971 = vpack.c.b16 %v3147, %v3143
    %v3972 = vpack.c.b16 %v3148, %v3144
    %v3973 = vpack.c.b16 %v3153, %v3149
    %v3974 = vpack.c.b16 %v3154, %v3150
    %v3975 = vpack.c.b16 %v3155, %v3151
    %v3976 = vpack.c.b16 %v3156, %v3152
    %v3977 = vpack.c.b16 %v3161, %v3157
    %v3978 = vpack.c.b16 %v3162, %v3158
    %v3979 = vpack.c.b16 %v3163, %v3159
    %v3980 = vpack.c.b16 %v3164, %v3160
    %v3981 = vpack.c.b16 %v3169, %v3165
    %v3982 = vpack.c.b16 %v3170, %v3166
    %v3983 = vpack.c.b16 %v3171, %v3167
    %v3984 = vpack.c.b16 %v3172, %v3168
    %v3985 = vpack.c.b16 %v3177, %v3173
    %v3986 = vpack.c.b16 %v3178, %v3174
    %v3987 = vpack.c.b16 %v3179, %v3175
    %v3988 = vpack.c.b16 %v3180, %v3176
    %v3989 = vpack.c.b16 %v3185, %v3181
    %v3990 = vpack.c.b16 %v3186, %v3182
    %v3991 = vpack.c.b16 %v3187, %v3183
    %v3992 = vpack.c.b16 %v3188, %v3184
    %v3993 = vpack.c.b16 %v3193, %v3189
    %v3994 = vpack.c.b16 %v3194, %v3190
    %v3995 = vpack.c.b16 %v3195, %v3191
    %v3996 = vpack.c.b16 %v3196, %v3192
    %v3997 = vpack.c.b16 %v3201, %v3197
    %v3998 = vpack.c.b16 %v3202, %v3198
    %v3999 = vpack.c.b16 %v3203, %v3199
    %v4000 = vpack.c.b16 %v3204, %v3200
    %v4001 = vpack.c.b16 %v3209, %v3205
    %v4002 = vpack.c.b16 %v3210, %v3206
    %v4003 = vpack.c.b16 %v3211, %v3207
    %v4004 = vpack.c.b16 %v3212, %v3208
    %v4005 = vpack.c.b16 %v3217, %v3213
    %v4006 = vpack.c.b16 %v3218, %v3214
    %v4007 = vpack.c.b16 %v3219, %v3215
    %v4008 = vpack.c.b16 %v3220, %v3216
    %v4009 = vpack.c.b16 %v3225, %v3221
    %v4010 = vpack.c.b16 %v3226, %v3222
    %v4011 = vpack.c.b16 %v3227, %v3223
    %v4012 = vpack.c.b16 %v3228, %v3224
    %vm4797 = vcmask 523264
    %v4798 = vsel %vm4797, %v852, 0
    %4800 = vmatpush.bf16.msra.mxu0 %v3257
    %4801 = vmatpush.bf16.msra.mxu0 %v3253
    %4802 = vmatpush.bf16.msra.mxu0 %v3249
    %4803 = vmatpush.bf16.msra.mxu0 %v3245
    %4804 = vmatpush.bf16.msra.mxu0 %v3241
    %4805 = vmatpush.bf16.msra.mxu0 %v3237
    %4806 = vmatpush.bf16.msra.mxu0 %v3233
    %4807 = vmatpush.bf16.msra.mxu0 %v3229
    %4808 = vmatmul.bf16.gmra.mxu0 %v822
    %v4809 = vpop.f32.mrf.mxu0
    %v4810 = vadd.f32 %v812, %v4809
    %v4811 = vpop.f32.mrf.mxu0
    %4812 = vdwg.mxu0
    %4813 = vmatpush.bf16.msra.mxu0 %v3289
    %4814 = vmatpush.bf16.msra.mxu0 %v3285
    %4815 = vmatpush.bf16.msra.mxu0 %v3281
    %4816 = vmatpush.bf16.msra.mxu0 %v3277
    %4817 = vmatpush.bf16.msra.mxu0 %v3273
    %4818 = vmatpush.bf16.msra.mxu0 %v3269
    %4819 = vmatpush.bf16.msra.mxu0 %v3265
    %4820 = vmatpush.bf16.msra.mxu0 %v3261
    %4821 = vmatmul.bf16.gmra.mxu0 %v823
    %v4822 = vpop.f32.mrf.mxu0
    %v4823 = vadd.f32 %v4810, %v4822
    %v4824 = vpop.f32.mrf.mxu0
    %4825 = vdwg.mxu0
    %4826 = vmatpush.bf16.msra.mxu0 %v3321
    %4827 = vmatpush.bf16.msra.mxu0 %v3317
    %4828 = vmatpush.bf16.msra.mxu0 %v3313
    %4829 = vmatpush.bf16.msra.mxu0 %v3309
    %4830 = vmatpush.bf16.msra.mxu0 %v3305
    %4831 = vmatpush.bf16.msra.mxu0 %v3301
    %4832 = vmatpush.bf16.msra.mxu0 %v3297
    %4833 = vmatpush.bf16.msra.mxu0 %v3293
    %4834 = vmatmul.bf16.gmra.mxu0 %v824
    %v4835 = vpop.f32.mrf.mxu0
    %v4836 = vadd.f32 %v4823, %v4835
    %v4837 = vpop.f32.mrf.mxu0
    %4838 = vdwg.mxu0
    %4839 = vmatpush.bf16.msra.mxu0 %v3353
    %4840 = vmatpush.bf16.msra.mxu0 %v3349
    %4841 = vmatpush.bf16.msra.mxu0 %v3345
    %4842 = vmatpush.bf16.msra.mxu0 %v3341
    %4843 = vmatpush.bf16.msra.mxu0 %v3337
    %4844 = vmatpush.bf16.msra.mxu0 %v3333
    %4845 = vmatpush.bf16.msra.mxu0 %v3329
    %4846 = vmatpush.bf16.msra.mxu0 %v3325
    %4847 = vmatmul.bf16.gmra.mxu0 %v825
    %v4848 = vpop.f32.mrf.mxu0
    %v4849 = vadd.f32 %v4836, %v4848
    %v4850 = vpop.f32.mrf.mxu0
    %4851 = vdwg.mxu0
    %4852 = vmatpush.bf16.msra.mxu0 %v3385
    %4853 = vmatpush.bf16.msra.mxu0 %v3381
    %4854 = vmatpush.bf16.msra.mxu0 %v3377
    %4855 = vmatpush.bf16.msra.mxu0 %v3373
    %4856 = vmatpush.bf16.msra.mxu0 %v3369
    %4857 = vmatpush.bf16.msra.mxu0 %v3365
    %4858 = vmatpush.bf16.msra.mxu0 %v3361
    %4859 = vmatpush.bf16.msra.mxu0 %v3357
    %4860 = vmatmul.bf16.gmra.mxu0 %v826
    %v4861 = vpop.f32.mrf.mxu0
    %v4862 = vadd.f32 %v4849, %v4861
    %v4863 = vpop.f32.mrf.mxu0
    %4864 = vdwg.mxu0
    %4865 = vmatpush.bf16.msra.mxu0 %v3417
    %4866 = vmatpush.bf16.msra.mxu0 %v3413
    %4867 = vmatpush.bf16.msra.mxu0 %v3409
    %4868 = vmatpush.bf16.msra.mxu0 %v3405
    %4869 = vmatpush.bf16.msra.mxu0 %v3401
    %4870 = vmatpush.bf16.msra.mxu0 %v3397
    %4871 = vmatpush.bf16.msra.mxu0 %v3393
    %4872 = vmatpush.bf16.msra.mxu0 %v3389
    %4873 = vmatmul.bf16.gmra.mxu0 %v827
    %v4874 = vpop.f32.mrf.mxu0
    %v4875 = vadd.f32 %v4862, %v4874
    %v4876 = vpop.f32.mrf.mxu0
    %4877 = vdwg.mxu0
    %4878 = vmatpush.bf16.msra.mxu0 %v3449
    %4879 = vmatpush.bf16.msra.mxu0 %v3445
    %4880 = vmatpush.bf16.msra.mxu0 %v3441
    %4881 = vmatpush.bf16.msra.mxu0 %v3437
    %4882 = vmatpush.bf16.msra.mxu0 %v3433
    %4883 = vmatpush.bf16.msra.mxu0 %v3429
    %4884 = vmatpush.bf16.msra.mxu0 %v3425
    %4885 = vmatpush.bf16.msra.mxu0 %v3421
    %4886 = vmatmul.bf16.gmra.mxu0 %v828
    %v4887 = vpop.f32.mrf.mxu0
    %v4888 = vadd.f32 %v4875, %v4887
    %v4889 = vpop.f32.mrf.mxu0
    %4890 = vdwg.mxu0
    %4891 = vmatpush.bf16.msra.mxu0 %v3481
    %4892 = vmatpush.bf16.msra.mxu0 %v3477
    %4893 = vmatpush.bf16.msra.mxu0 %v3473
    %4894 = vmatpush.bf16.msra.mxu0 %v3469
    %4895 = vmatpush.bf16.msra.mxu0 %v3465
    %4896 = vmatpush.bf16.msra.mxu0 %v3461
    %4897 = vmatpush.bf16.msra.mxu0 %v3457
    %4898 = vmatpush.bf16.msra.mxu0 %v3453
    %4899 = vmatmul.bf16.gmra.mxu0 %v829
    %v4900 = vpop.f32.mrf.mxu0
    %v4901 = vadd.f32 %v4888, %v4900
    %v4902 = vpop.f32.mrf.mxu0
    %4903 = vdwg.mxu0
    %4904 = vmatpush.bf16.msra.mxu0 %v3513
    %4905 = vmatpush.bf16.msra.mxu0 %v3509
    %4906 = vmatpush.bf16.msra.mxu0 %v3505
    %4907 = vmatpush.bf16.msra.mxu0 %v3501
    %4908 = vmatpush.bf16.msra.mxu0 %v3497
    %4909 = vmatpush.bf16.msra.mxu0 %v3493
    %4910 = vmatpush.bf16.msra.mxu0 %v3489
    %4911 = vmatpush.bf16.msra.mxu0 %v3485
    %4912 = vmatmul.bf16.gmra.mxu0 %v832
    %v4913 = vpop.f32.mrf.mxu0
    %v4914 = vadd.f32 %v4901, %v4913
    %v4915 = vpop.f32.mrf.mxu0
    %4916 = vdwg.mxu0
    %4917 = vmatpush.bf16.msra.mxu0 %v3545
    %4918 = vmatpush.bf16.msra.mxu0 %v3541
    %4919 = vmatpush.bf16.msra.mxu0 %v3537
    %4920 = vmatpush.bf16.msra.mxu0 %v3533
    %4921 = vmatpush.bf16.msra.mxu0 %v3529
    %4922 = vmatpush.bf16.msra.mxu0 %v3525
    %4923 = vmatpush.bf16.msra.mxu0 %v3521
    %4924 = vmatpush.bf16.msra.mxu0 %v3517
    %4925 = vmatmul.bf16.gmra.mxu0 %v833
    %v4926 = vpop.f32.mrf.mxu0
    %v4927 = vadd.f32 %v4914, %v4926
    %v4928 = vpop.f32.mrf.mxu0
    %4929 = vdwg.mxu0
    %4930 = vmatpush.bf16.msra.mxu0 %v3577
    %4931 = vmatpush.bf16.msra.mxu0 %v3573
    %4932 = vmatpush.bf16.msra.mxu0 %v3569
    %4933 = vmatpush.bf16.msra.mxu0 %v3565
    %4934 = vmatpush.bf16.msra.mxu0 %v3561
    %4935 = vmatpush.bf16.msra.mxu0 %v3557
    %4936 = vmatpush.bf16.msra.mxu0 %v3553
    %4937 = vmatpush.bf16.msra.mxu0 %v3549
    %4938 = vmatmul.bf16.gmra.mxu0 %v834
    %v4939 = vpop.f32.mrf.mxu0
    %v4940 = vadd.f32 %v4927, %v4939
    %v4941 = vpop.f32.mrf.mxu0
    %4942 = vdwg.mxu0
    %4943 = vmatpush.bf16.msra.mxu0 %v3609
    %4944 = vmatpush.bf16.msra.mxu0 %v3605
    %4945 = vmatpush.bf16.msra.mxu0 %v3601
    %4946 = vmatpush.bf16.msra.mxu0 %v3597
    %4947 = vmatpush.bf16.msra.mxu0 %v3593
    %4948 = vmatpush.bf16.msra.mxu0 %v3589
    %4949 = vmatpush.bf16.msra.mxu0 %v3585
    %4950 = vmatpush.bf16.msra.mxu0 %v3581
    %4951 = vmatmul.bf16.gmra.mxu0 %v835
    %v4952 = vpop.f32.mrf.mxu0
    %v4953 = vadd.f32 %v4940, %v4952
    %v4954 = vpop.f32.mrf.mxu0
    %4955 = vdwg.mxu0
    %4956 = vmatpush.bf16.msra.mxu0 %v3641
    %4957 = vmatpush.bf16.msra.mxu0 %v3637
    %4958 = vmatpush.bf16.msra.mxu0 %v3633
    %4959 = vmatpush.bf16.msra.mxu0 %v3629
    %4960 = vmatpush.bf16.msra.mxu0 %v3625
    %4961 = vmatpush.bf16.msra.mxu0 %v3621
    %4962 = vmatpush.bf16.msra.mxu0 %v3617
    %4963 = vmatpush.bf16.msra.mxu0 %v3613
    %4964 = vmatmul.bf16.gmra.mxu0 %v836
    %v4965 = vpop.f32.mrf.mxu0
    %v4966 = vadd.f32 %v4953, %v4965
    %v4967 = vpop.f32.mrf.mxu0
    %4968 = vdwg.mxu0
    %4969 = vmatpush.bf16.msra.mxu0 %v3673
    %4970 = vmatpush.bf16.msra.mxu0 %v3669
    %4971 = vmatpush.bf16.msra.mxu0 %v3665
    %4972 = vmatpush.bf16.msra.mxu0 %v3661
    %4973 = vmatpush.bf16.msra.mxu0 %v3657
    %4974 = vmatpush.bf16.msra.mxu0 %v3653
    %4975 = vmatpush.bf16.msra.mxu0 %v3649
    %4976 = vmatpush.bf16.msra.mxu0 %v3645
    %4977 = vmatmul.bf16.gmra.mxu0 %v837
    %v4978 = vpop.f32.mrf.mxu0
    %v4979 = vadd.f32 %v4966, %v4978
    %v4980 = vpop.f32.mrf.mxu0
    %4981 = vdwg.mxu0
    %4982 = vmatpush.bf16.msra.mxu0 %v3705
    %4983 = vmatpush.bf16.msra.mxu0 %v3701
    %4984 = vmatpush.bf16.msra.mxu0 %v3697
    %4985 = vmatpush.bf16.msra.mxu0 %v3693
    %4986 = vmatpush.bf16.msra.mxu0 %v3689
    %4987 = vmatpush.bf16.msra.mxu0 %v3685
    %4988 = vmatpush.bf16.msra.mxu0 %v3681
    %4989 = vmatpush.bf16.msra.mxu0 %v3677
    %4990 = vmatmul.bf16.gmra.mxu0 %v838
    %v4991 = vpop.f32.mrf.mxu0
    %v4992 = vadd.f32 %v4979, %v4991
    %v4993 = vpop.f32.mrf.mxu0
    %4994 = vdwg.mxu0
    %4995 = vmatpush.bf16.msra.mxu0 %v3737
    %4996 = vmatpush.bf16.msra.mxu0 %v3733
    %4997 = vmatpush.bf16.msra.mxu0 %v3729
    %4998 = vmatpush.bf16.msra.mxu0 %v3725
    %4999 = vmatpush.bf16.msra.mxu0 %v3721
    %5000 = vmatpush.bf16.msra.mxu0 %v3717
    %5001 = vmatpush.bf16.msra.mxu0 %v3713
    %5002 = vmatpush.bf16.msra.mxu0 %v3709
    %5003 = vmatmul.bf16.gmra.mxu0 %v839
    %v5004 = vpop.f32.mrf.mxu0
    %v5005 = vadd.f32 %v4992, %v5004
    %v5006 = vpop.f32.mrf.mxu0
    %5007 = vdwg.mxu0
    %5008 = vmatpush.bf16.msra.mxu0 %v3769
    %5009 = vmatpush.bf16.msra.mxu0 %v3765
    %5010 = vmatpush.bf16.msra.mxu0 %v3761
    %5011 = vmatpush.bf16.msra.mxu0 %v3757
    %5012 = vmatpush.bf16.msra.mxu0 %v3753
    %5013 = vmatpush.bf16.msra.mxu0 %v3749
    %5014 = vmatpush.bf16.msra.mxu0 %v3745
    %5015 = vmatpush.bf16.msra.mxu0 %v3741
    %5016 = vmatmul.bf16.gmra.mxu0 %v842
    %v5017 = vpop.f32.mrf.mxu0
    %v5018 = vadd.f32 %v5005, %v5017
    %v5019 = vpop.f32.mrf.mxu0
    %5020 = vdwg.mxu0
    %5021 = vmatpush.bf16.msra.mxu0 %v3801
    %5022 = vmatpush.bf16.msra.mxu0 %v3797
    %5023 = vmatpush.bf16.msra.mxu0 %v3793
    %5024 = vmatpush.bf16.msra.mxu0 %v3789
    %5025 = vmatpush.bf16.msra.mxu0 %v3785
    %5026 = vmatpush.bf16.msra.mxu0 %v3781
    %5027 = vmatpush.bf16.msra.mxu0 %v3777
    %5028 = vmatpush.bf16.msra.mxu0 %v3773
    %5029 = vmatmul.bf16.gmra.mxu0 %v843
    %v5030 = vpop.f32.mrf.mxu0
    %v5031 = vadd.f32 %v5018, %v5030
    %v5032 = vpop.f32.mrf.mxu0
    %5033 = vdwg.mxu0
    %5034 = vmatpush.bf16.msra.mxu0 %v3833
    %5035 = vmatpush.bf16.msra.mxu0 %v3829
    %5036 = vmatpush.bf16.msra.mxu0 %v3825
    %5037 = vmatpush.bf16.msra.mxu0 %v3821
    %5038 = vmatpush.bf16.msra.mxu0 %v3817
    %5039 = vmatpush.bf16.msra.mxu0 %v3813
    %5040 = vmatpush.bf16.msra.mxu0 %v3809
    %5041 = vmatpush.bf16.msra.mxu0 %v3805
    %5042 = vmatmul.bf16.gmra.mxu0 %v844
    %v5043 = vpop.f32.mrf.mxu0
    %v5044 = vadd.f32 %v5031, %v5043
    %v5045 = vpop.f32.mrf.mxu0
    %5046 = vdwg.mxu0
    %5047 = vmatpush.bf16.msra.mxu0 %v3865
    %5048 = vmatpush.bf16.msra.mxu0 %v3861
    %5049 = vmatpush.bf16.msra.mxu0 %v3857
    %5050 = vmatpush.bf16.msra.mxu0 %v3853
    %5051 = vmatpush.bf16.msra.mxu0 %v3849
    %5052 = vmatpush.bf16.msra.mxu0 %v3845
    %5053 = vmatpush.bf16.msra.mxu0 %v3841
    %5054 = vmatpush.bf16.msra.mxu0 %v3837
    %5055 = vmatmul.bf16.gmra.mxu0 %v845
    %v5056 = vpop.f32.mrf.mxu0
    %v5057 = vadd.f32 %v5044, %v5056
    %v5058 = vpop.f32.mrf.mxu0
    %5059 = vdwg.mxu0
    %5060 = vmatpush.bf16.msra.mxu0 %v3897
    %5061 = vmatpush.bf16.msra.mxu0 %v3893
    %5062 = vmatpush.bf16.msra.mxu0 %v3889
    %5063 = vmatpush.bf16.msra.mxu0 %v3885
    %5064 = vmatpush.bf16.msra.mxu0 %v3881
    %5065 = vmatpush.bf16.msra.mxu0 %v3877
    %5066 = vmatpush.bf16.msra.mxu0 %v3873
    %5067 = vmatpush.bf16.msra.mxu0 %v3869
    %5068 = vmatmul.bf16.gmra.mxu0 %v846
    %v5069 = vpop.f32.mrf.mxu0
    %v5070 = vadd.f32 %v5057, %v5069
    %v5071 = vpop.f32.mrf.mxu0
    %5072 = vdwg.mxu0
    %5073 = vmatpush.bf16.msra.mxu0 %v3929
    %5074 = vmatpush.bf16.msra.mxu0 %v3925
    %5075 = vmatpush.bf16.msra.mxu0 %v3921
    %5076 = vmatpush.bf16.msra.mxu0 %v3917
    %5077 = vmatpush.bf16.msra.mxu0 %v3913
    %5078 = vmatpush.bf16.msra.mxu0 %v3909
    %5079 = vmatpush.bf16.msra.mxu0 %v3905
    %5080 = vmatpush.bf16.msra.mxu0 %v3901
    %5081 = vmatmul.bf16.gmra.mxu0 %v847
    %v5082 = vpop.f32.mrf.mxu0
    %v5083 = vadd.f32 %v5070, %v5082
    %v5084 = vpop.f32.mrf.mxu0
    %5085 = vdwg.mxu0
    %5086 = vmatpush.bf16.msra.mxu0 %v3961
    %5087 = vmatpush.bf16.msra.mxu0 %v3957
    %5088 = vmatpush.bf16.msra.mxu0 %v3953
    %5089 = vmatpush.bf16.msra.mxu0 %v3949
    %5090 = vmatpush.bf16.msra.mxu0 %v3945
    %5091 = vmatpush.bf16.msra.mxu0 %v3941
    %5092 = vmatpush.bf16.msra.mxu0 %v3937
    %5093 = vmatpush.bf16.msra.mxu0 %v3933
    %5094 = vmatmul.bf16.gmra.mxu0 %v848
    %v5095 = vpop.f32.mrf.mxu0
    %v5096 = vadd.f32 %v5083, %v5095
    %v5097 = vpop.f32.mrf.mxu0
    %5098 = vdwg.mxu0
    %5099 = vmatpush.bf16.msra.mxu0 %v3993
    %5100 = vmatpush.bf16.msra.mxu0 %v3989
    %5101 = vmatpush.bf16.msra.mxu0 %v3985
    %5102 = vmatpush.bf16.msra.mxu0 %v3981
    %5103 = vmatpush.bf16.msra.mxu0 %v3977
    %5104 = vmatpush.bf16.msra.mxu0 %v3973
    %5105 = vmatpush.bf16.msra.mxu0 %v3969
    %5106 = vmatpush.bf16.msra.mxu0 %v3965
    %5107 = vmatmul.bf16.gmra.mxu0 %v849
    %v5108 = vpop.f32.mrf.mxu0
    %v5109 = vadd.f32 %v5096, %v5108
    %v5110 = vpop.f32.mrf.mxu0
    %5111 = vdwg.mxu0
    %5112 = vmatpush.bf16.msra.mxu0 0
    %5113 = vmatpush.bf16.msra.mxu0 0
    %5114 = vmatpush.bf16.msra.mxu0 0
    %5115 = vmatpush.bf16.msra.mxu0 0
    %5116 = vmatpush.bf16.msra.mxu0 %v4009
    %5117 = vmatpush.bf16.msra.mxu0 %v4005
    %5118 = vmatpush.bf16.msra.mxu0 %v4001
    %5119 = vmatpush.bf16.msra.mxu0 %v3997
    %5120 = vmatmul.bf16.gmra.mxu0 %v4798
    %v5121 = vpop.f32.mrf.mxu0
    %v5122 = vadd.f32 %v5109, %v5121
    %v5123 = vpop.f32.mrf.mxu0
    %5124 = vdwg.mxu0
    %5125 = vmatpush.bf16.msra.mxu0 %v3258
    %5126 = vmatpush.bf16.msra.mxu0 %v3254
    %5127 = vmatpush.bf16.msra.mxu0 %v3250
    %5128 = vmatpush.bf16.msra.mxu0 %v3246
    %5129 = vmatpush.bf16.msra.mxu0 %v3242
    %5130 = vmatpush.bf16.msra.mxu0 %v3238
    %5131 = vmatpush.bf16.msra.mxu0 %v3234
    %5132 = vmatpush.bf16.msra.mxu0 %v3230
    %5133 = vmatmul.bf16.gmra.mxu0 %v822
    %v5134 = vpop.f32.mrf.mxu0
    %v5135 = vadd.f32 %v813, %v5134
    %v5136 = vpop.f32.mrf.mxu0
    %5137 = vdwg.mxu0
    %5138 = vmatpush.bf16.msra.mxu0 %v3290
    %5139 = vmatpush.bf16.msra.mxu0 %v3286
    %5140 = vmatpush.bf16.msra.mxu0 %v3282
    %5141 = vmatpush.bf16.msra.mxu0 %v3278
    %5142 = vmatpush.bf16.msra.mxu0 %v3274
    %5143 = vmatpush.bf16.msra.mxu0 %v3270
    %5144 = vmatpush.bf16.msra.mxu0 %v3266
    %5145 = vmatpush.bf16.msra.mxu0 %v3262
    %5146 = vmatmul.bf16.gmra.mxu0 %v823
    %v5147 = vpop.f32.mrf.mxu0
    %v5148 = vadd.f32 %v5135, %v5147
    %v5149 = vpop.f32.mrf.mxu0
    %5150 = vdwg.mxu0
    %5151 = vmatpush.bf16.msra.mxu0 %v3322
    %5152 = vmatpush.bf16.msra.mxu0 %v3318
    %5153 = vmatpush.bf16.msra.mxu0 %v3314
    %5154 = vmatpush.bf16.msra.mxu0 %v3310
    %5155 = vmatpush.bf16.msra.mxu0 %v3306
    %5156 = vmatpush.bf16.msra.mxu0 %v3302
    %5157 = vmatpush.bf16.msra.mxu0 %v3298
    %5158 = vmatpush.bf16.msra.mxu0 %v3294
    %5159 = vmatmul.bf16.gmra.mxu0 %v824
    %v5160 = vpop.f32.mrf.mxu0
    %v5161 = vadd.f32 %v5148, %v5160
    %v5162 = vpop.f32.mrf.mxu0
    %5163 = vdwg.mxu0
    %5164 = vmatpush.bf16.msra.mxu0 %v3354
    %5165 = vmatpush.bf16.msra.mxu0 %v3350
    %5166 = vmatpush.bf16.msra.mxu0 %v3346
    %5167 = vmatpush.bf16.msra.mxu0 %v3342
    %5168 = vmatpush.bf16.msra.mxu0 %v3338
    %5169 = vmatpush.bf16.msra.mxu0 %v3334
    %5170 = vmatpush.bf16.msra.mxu0 %v3330
    %5171 = vmatpush.bf16.msra.mxu0 %v3326
    %5172 = vmatmul.bf16.gmra.mxu0 %v825
    %v5173 = vpop.f32.mrf.mxu0
    %v5174 = vadd.f32 %v5161, %v5173
    %v5175 = vpop.f32.mrf.mxu0
    %5176 = vdwg.mxu0
    %5177 = vmatpush.bf16.msra.mxu0 %v3386
    %5178 = vmatpush.bf16.msra.mxu0 %v3382
    %5179 = vmatpush.bf16.msra.mxu0 %v3378
    %5180 = vmatpush.bf16.msra.mxu0 %v3374
    %5181 = vmatpush.bf16.msra.mxu0 %v3370
    %5182 = vmatpush.bf16.msra.mxu0 %v3366
    %5183 = vmatpush.bf16.msra.mxu0 %v3362
    %5184 = vmatpush.bf16.msra.mxu0 %v3358
    %5185 = vmatmul.bf16.gmra.mxu0 %v826
    %v5186 = vpop.f32.mrf.mxu0
    %v5187 = vadd.f32 %v5174, %v5186
    %v5188 = vpop.f32.mrf.mxu0
    %5189 = vdwg.mxu0
    %5190 = vmatpush.bf16.msra.mxu0 %v3418
    %5191 = vmatpush.bf16.msra.mxu0 %v3414
    %5192 = vmatpush.bf16.msra.mxu0 %v3410
    %5193 = vmatpush.bf16.msra.mxu0 %v3406
    %5194 = vmatpush.bf16.msra.mxu0 %v3402
    %5195 = vmatpush.bf16.msra.mxu0 %v3398
    %5196 = vmatpush.bf16.msra.mxu0 %v3394
    %5197 = vmatpush.bf16.msra.mxu0 %v3390
    %5198 = vmatmul.bf16.gmra.mxu0 %v827
    %v5199 = vpop.f32.mrf.mxu0
    %v5200 = vadd.f32 %v5187, %v5199
    %v5201 = vpop.f32.mrf.mxu0
    %5202 = vdwg.mxu0
    %5203 = vmatpush.bf16.msra.mxu0 %v3450
    %5204 = vmatpush.bf16.msra.mxu0 %v3446
    %5205 = vmatpush.bf16.msra.mxu0 %v3442
    %5206 = vmatpush.bf16.msra.mxu0 %v3438
    %5207 = vmatpush.bf16.msra.mxu0 %v3434
    %5208 = vmatpush.bf16.msra.mxu0 %v3430
    %5209 = vmatpush.bf16.msra.mxu0 %v3426
    %5210 = vmatpush.bf16.msra.mxu0 %v3422
    %5211 = vmatmul.bf16.gmra.mxu0 %v828
    %v5212 = vpop.f32.mrf.mxu0
    %v5213 = vadd.f32 %v5200, %v5212
    %v5214 = vpop.f32.mrf.mxu0
    %5215 = vdwg.mxu0
    %5216 = vmatpush.bf16.msra.mxu0 %v3482
    %5217 = vmatpush.bf16.msra.mxu0 %v3478
    %5218 = vmatpush.bf16.msra.mxu0 %v3474
    %5219 = vmatpush.bf16.msra.mxu0 %v3470
    %5220 = vmatpush.bf16.msra.mxu0 %v3466
    %5221 = vmatpush.bf16.msra.mxu0 %v3462
    %5222 = vmatpush.bf16.msra.mxu0 %v3458
    %5223 = vmatpush.bf16.msra.mxu0 %v3454
    %5224 = vmatmul.bf16.gmra.mxu0 %v829
    %v5225 = vpop.f32.mrf.mxu0
    %v5226 = vadd.f32 %v5213, %v5225
    %v5227 = vpop.f32.mrf.mxu0
    %5228 = vdwg.mxu0
    %5229 = vmatpush.bf16.msra.mxu0 %v3514
    %5230 = vmatpush.bf16.msra.mxu0 %v3510
    %5231 = vmatpush.bf16.msra.mxu0 %v3506
    %5232 = vmatpush.bf16.msra.mxu0 %v3502
    %5233 = vmatpush.bf16.msra.mxu0 %v3498
    %5234 = vmatpush.bf16.msra.mxu0 %v3494
    %5235 = vmatpush.bf16.msra.mxu0 %v3490
    %5236 = vmatpush.bf16.msra.mxu0 %v3486
    %5237 = vmatmul.bf16.gmra.mxu0 %v832
    %v5238 = vpop.f32.mrf.mxu0
    %v5239 = vadd.f32 %v5226, %v5238
    %v5240 = vpop.f32.mrf.mxu0
    %5241 = vdwg.mxu0
    %5242 = vmatpush.bf16.msra.mxu0 %v3546
    %5243 = vmatpush.bf16.msra.mxu0 %v3542
    %5244 = vmatpush.bf16.msra.mxu0 %v3538
    %5245 = vmatpush.bf16.msra.mxu0 %v3534
    %5246 = vmatpush.bf16.msra.mxu0 %v3530
    %5247 = vmatpush.bf16.msra.mxu0 %v3526
    %5248 = vmatpush.bf16.msra.mxu0 %v3522
    %5249 = vmatpush.bf16.msra.mxu0 %v3518
    %5250 = vmatmul.bf16.gmra.mxu0 %v833
    %v5251 = vpop.f32.mrf.mxu0
    %v5252 = vadd.f32 %v5239, %v5251
    %v5253 = vpop.f32.mrf.mxu0
    %5254 = vdwg.mxu0
    %5255 = vmatpush.bf16.msra.mxu0 %v3578
    %5256 = vmatpush.bf16.msra.mxu0 %v3574
    %5257 = vmatpush.bf16.msra.mxu0 %v3570
    %5258 = vmatpush.bf16.msra.mxu0 %v3566
    %5259 = vmatpush.bf16.msra.mxu0 %v3562
    %5260 = vmatpush.bf16.msra.mxu0 %v3558
    %5261 = vmatpush.bf16.msra.mxu0 %v3554
    %5262 = vmatpush.bf16.msra.mxu0 %v3550
    %5263 = vmatmul.bf16.gmra.mxu0 %v834
    %v5264 = vpop.f32.mrf.mxu0
    %v5265 = vadd.f32 %v5252, %v5264
    %v5266 = vpop.f32.mrf.mxu0
    %5267 = vdwg.mxu0
    %5268 = vmatpush.bf16.msra.mxu0 %v3610
    %5269 = vmatpush.bf16.msra.mxu0 %v3606
    %5270 = vmatpush.bf16.msra.mxu0 %v3602
    %5271 = vmatpush.bf16.msra.mxu0 %v3598
    %5272 = vmatpush.bf16.msra.mxu0 %v3594
    %5273 = vmatpush.bf16.msra.mxu0 %v3590
    %5274 = vmatpush.bf16.msra.mxu0 %v3586
    %5275 = vmatpush.bf16.msra.mxu0 %v3582
    %5276 = vmatmul.bf16.gmra.mxu0 %v835
    %v5277 = vpop.f32.mrf.mxu0
    %v5278 = vadd.f32 %v5265, %v5277
    %v5279 = vpop.f32.mrf.mxu0
    %5280 = vdwg.mxu0
    %5281 = vmatpush.bf16.msra.mxu0 %v3642
    %5282 = vmatpush.bf16.msra.mxu0 %v3638
    %5283 = vmatpush.bf16.msra.mxu0 %v3634
    %5284 = vmatpush.bf16.msra.mxu0 %v3630
    %5285 = vmatpush.bf16.msra.mxu0 %v3626
    %5286 = vmatpush.bf16.msra.mxu0 %v3622
    %5287 = vmatpush.bf16.msra.mxu0 %v3618
    %5288 = vmatpush.bf16.msra.mxu0 %v3614
    %5289 = vmatmul.bf16.gmra.mxu0 %v836
    %v5290 = vpop.f32.mrf.mxu0
    %v5291 = vadd.f32 %v5278, %v5290
    %v5292 = vpop.f32.mrf.mxu0
    %5293 = vdwg.mxu0
    %5294 = vmatpush.bf16.msra.mxu0 %v3674
    %5295 = vmatpush.bf16.msra.mxu0 %v3670
    %5296 = vmatpush.bf16.msra.mxu0 %v3666
    %5297 = vmatpush.bf16.msra.mxu0 %v3662
    %5298 = vmatpush.bf16.msra.mxu0 %v3658
    %5299 = vmatpush.bf16.msra.mxu0 %v3654
    %5300 = vmatpush.bf16.msra.mxu0 %v3650
    %5301 = vmatpush.bf16.msra.mxu0 %v3646
    %5302 = vmatmul.bf16.gmra.mxu0 %v837
    %v5303 = vpop.f32.mrf.mxu0
    %v5304 = vadd.f32 %v5291, %v5303
    %v5305 = vpop.f32.mrf.mxu0
    %5306 = vdwg.mxu0
    %5307 = vmatpush.bf16.msra.mxu0 %v3706
    %5308 = vmatpush.bf16.msra.mxu0 %v3702
    %5309 = vmatpush.bf16.msra.mxu0 %v3698
    %5310 = vmatpush.bf16.msra.mxu0 %v3694
    %5311 = vmatpush.bf16.msra.mxu0 %v3690
    %5312 = vmatpush.bf16.msra.mxu0 %v3686
    %5313 = vmatpush.bf16.msra.mxu0 %v3682
    %5314 = vmatpush.bf16.msra.mxu0 %v3678
    %5315 = vmatmul.bf16.gmra.mxu0 %v838
    %v5316 = vpop.f32.mrf.mxu0
    %v5317 = vadd.f32 %v5304, %v5316
    %v5318 = vpop.f32.mrf.mxu0
    %5319 = vdwg.mxu0
    %5320 = vmatpush.bf16.msra.mxu0 %v3738
    %5321 = vmatpush.bf16.msra.mxu0 %v3734
    %5322 = vmatpush.bf16.msra.mxu0 %v3730
    %5323 = vmatpush.bf16.msra.mxu0 %v3726
    %5324 = vmatpush.bf16.msra.mxu0 %v3722
    %5325 = vmatpush.bf16.msra.mxu0 %v3718
    %5326 = vmatpush.bf16.msra.mxu0 %v3714
    %5327 = vmatpush.bf16.msra.mxu0 %v3710
    %5328 = vmatmul.bf16.gmra.mxu0 %v839
    %v5329 = vpop.f32.mrf.mxu0
    %v5330 = vadd.f32 %v5317, %v5329
    %v5331 = vpop.f32.mrf.mxu0
    %5332 = vdwg.mxu0
    %5333 = vmatpush.bf16.msra.mxu0 %v3770
    %5334 = vmatpush.bf16.msra.mxu0 %v3766
    %5335 = vmatpush.bf16.msra.mxu0 %v3762
    %5336 = vmatpush.bf16.msra.mxu0 %v3758
    %5337 = vmatpush.bf16.msra.mxu0 %v3754
    %5338 = vmatpush.bf16.msra.mxu0 %v3750
    %5339 = vmatpush.bf16.msra.mxu0 %v3746
    %5340 = vmatpush.bf16.msra.mxu0 %v3742
    %5341 = vmatmul.bf16.gmra.mxu0 %v842
    %v5342 = vpop.f32.mrf.mxu0
    %v5343 = vadd.f32 %v5330, %v5342
    %v5344 = vpop.f32.mrf.mxu0
    %5345 = vdwg.mxu0
    %5346 = vmatpush.bf16.msra.mxu0 %v3802
    %5347 = vmatpush.bf16.msra.mxu0 %v3798
    %5348 = vmatpush.bf16.msra.mxu0 %v3794
    %5349 = vmatpush.bf16.msra.mxu0 %v3790
    %5350 = vmatpush.bf16.msra.mxu0 %v3786
    %5351 = vmatpush.bf16.msra.mxu0 %v3782
    %5352 = vmatpush.bf16.msra.mxu0 %v3778
    %5353 = vmatpush.bf16.msra.mxu0 %v3774
    %5354 = vmatmul.bf16.gmra.mxu0 %v843
    %v5355 = vpop.f32.mrf.mxu0
    %v5356 = vadd.f32 %v5343, %v5355
    %v5357 = vpop.f32.mrf.mxu0
    %5358 = vdwg.mxu0
    %5359 = vmatpush.bf16.msra.mxu0 %v3834
    %5360 = vmatpush.bf16.msra.mxu0 %v3830
    %5361 = vmatpush.bf16.msra.mxu0 %v3826
    %5362 = vmatpush.bf16.msra.mxu0 %v3822
    %5363 = vmatpush.bf16.msra.mxu0 %v3818
    %5364 = vmatpush.bf16.msra.mxu0 %v3814
    %5365 = vmatpush.bf16.msra.mxu0 %v3810
    %5366 = vmatpush.bf16.msra.mxu0 %v3806
    %5367 = vmatmul.bf16.gmra.mxu0 %v844
    %v5368 = vpop.f32.mrf.mxu0
    %v5369 = vadd.f32 %v5356, %v5368
    %v5370 = vpop.f32.mrf.mxu0
    %5371 = vdwg.mxu0
    %5372 = vmatpush.bf16.msra.mxu0 %v3866
    %5373 = vmatpush.bf16.msra.mxu0 %v3862
    %5374 = vmatpush.bf16.msra.mxu0 %v3858
    %5375 = vmatpush.bf16.msra.mxu0 %v3854
    %5376 = vmatpush.bf16.msra.mxu0 %v3850
    %5377 = vmatpush.bf16.msra.mxu0 %v3846
    %5378 = vmatpush.bf16.msra.mxu0 %v3842
    %5379 = vmatpush.bf16.msra.mxu0 %v3838
    %5380 = vmatmul.bf16.gmra.mxu0 %v845
    %v5381 = vpop.f32.mrf.mxu0
    %v5382 = vadd.f32 %v5369, %v5381
    %v5383 = vpop.f32.mrf.mxu0
    %5384 = vdwg.mxu0
    %5385 = vmatpush.bf16.msra.mxu0 %v3898
    %5386 = vmatpush.bf16.msra.mxu0 %v3894
    %5387 = vmatpush.bf16.msra.mxu0 %v3890
    %5388 = vmatpush.bf16.msra.mxu0 %v3886
    %5389 = vmatpush.bf16.msra.mxu0 %v3882
    %5390 = vmatpush.bf16.msra.mxu0 %v3878
    %5391 = vmatpush.bf16.msra.mxu0 %v3874
    %5392 = vmatpush.bf16.msra.mxu0 %v3870
    %5393 = vmatmul.bf16.gmra.mxu0 %v846
    %v5394 = vpop.f32.mrf.mxu0
    %v5395 = vadd.f32 %v5382, %v5394
    %v5396 = vpop.f32.mrf.mxu0
    %5397 = vdwg.mxu0
    %5398 = vmatpush.bf16.msra.mxu0 %v3930
    %5399 = vmatpush.bf16.msra.mxu0 %v3926
    %5400 = vmatpush.bf16.msra.mxu0 %v3922
    %5401 = vmatpush.bf16.msra.mxu0 %v3918
    %5402 = vmatpush.bf16.msra.mxu0 %v3914
    %5403 = vmatpush.bf16.msra.mxu0 %v3910
    %5404 = vmatpush.bf16.msra.mxu0 %v3906
    %5405 = vmatpush.bf16.msra.mxu0 %v3902
    %5406 = vmatmul.bf16.gmra.mxu0 %v847
    %v5407 = vpop.f32.mrf.mxu0
    %v5408 = vadd.f32 %v5395, %v5407
    %v5409 = vpop.f32.mrf.mxu0
    %5410 = vdwg.mxu0
    %5411 = vmatpush.bf16.msra.mxu0 %v3962
    %5412 = vmatpush.bf16.msra.mxu0 %v3958
    %5413 = vmatpush.bf16.msra.mxu0 %v3954
    %5414 = vmatpush.bf16.msra.mxu0 %v3950
    %5415 = vmatpush.bf16.msra.mxu0 %v3946
    %5416 = vmatpush.bf16.msra.mxu0 %v3942
    %5417 = vmatpush.bf16.msra.mxu0 %v3938
    %5418 = vmatpush.bf16.msra.mxu0 %v3934
    %5419 = vmatmul.bf16.gmra.mxu0 %v848
    %v5420 = vpop.f32.mrf.mxu0
    %v5421 = vadd.f32 %v5408, %v5420
    %v5422 = vpop.f32.mrf.mxu0
    %5423 = vdwg.mxu0
    %5424 = vmatpush.bf16.msra.mxu0 %v3994
    %5425 = vmatpush.bf16.msra.mxu0 %v3990
    %5426 = vmatpush.bf16.msra.mxu0 %v3986
    %5427 = vmatpush.bf16.msra.mxu0 %v3982
    %5428 = vmatpush.bf16.msra.mxu0 %v3978
    %5429 = vmatpush.bf16.msra.mxu0 %v3974
    %5430 = vmatpush.bf16.msra.mxu0 %v3970
    %5431 = vmatpush.bf16.msra.mxu0 %v3966
    %5432 = vmatmul.bf16.gmra.mxu0 %v849
    %v5433 = vpop.f32.mrf.mxu0
    %v5434 = vadd.f32 %v5421, %v5433
    %v5435 = vpop.f32.mrf.mxu0
    %5436 = vdwg.mxu0
    %5437 = vmatpush.bf16.msra.mxu0 0
    %5438 = vmatpush.bf16.msra.mxu0 0
    %5439 = vmatpush.bf16.msra.mxu0 0
    %5440 = vmatpush.bf16.msra.mxu0 0
    %5441 = vmatpush.bf16.msra.mxu0 %v4010
    %5442 = vmatpush.bf16.msra.mxu0 %v4006
    %5443 = vmatpush.bf16.msra.mxu0 %v4002
    %5444 = vmatpush.bf16.msra.mxu0 %v3998
    %5445 = vmatmul.bf16.gmra.mxu0 %v4798
    %v5446 = vpop.f32.mrf.mxu0
    %v5447 = vadd.f32 %v5434, %v5446
    %v5448 = vpop.f32.mrf.mxu0
    %5449 = vdwg.mxu0
    %5450 = vmatpush.bf16.msra.mxu0 %v3259
    %5451 = vmatpush.bf16.msra.mxu0 %v3255
    %5452 = vmatpush.bf16.msra.mxu0 %v3251
    %5453 = vmatpush.bf16.msra.mxu0 %v3247
    %5454 = vmatpush.bf16.msra.mxu0 %v3243
    %5455 = vmatpush.bf16.msra.mxu0 %v3239
    %5456 = vmatpush.bf16.msra.mxu0 %v3235
    %5457 = vmatpush.bf16.msra.mxu0 %v3231
    %5458 = vmatmul.bf16.gmra.mxu0 %v822
    %v5459 = vpop.f32.mrf.mxu0
    %v5460 = vadd.f32 %v814, %v5459
    %v5461 = vpop.f32.mrf.mxu0
    %5462 = vdwg.mxu0
    %5463 = vmatpush.bf16.msra.mxu0 %v3291
    %5464 = vmatpush.bf16.msra.mxu0 %v3287
    %5465 = vmatpush.bf16.msra.mxu0 %v3283
    %5466 = vmatpush.bf16.msra.mxu0 %v3279
    %5467 = vmatpush.bf16.msra.mxu0 %v3275
    %5468 = vmatpush.bf16.msra.mxu0 %v3271
    %5469 = vmatpush.bf16.msra.mxu0 %v3267
    %5470 = vmatpush.bf16.msra.mxu0 %v3263
    %5471 = vmatmul.bf16.gmra.mxu0 %v823
    %v5472 = vpop.f32.mrf.mxu0
    %v5473 = vadd.f32 %v5460, %v5472
    %v5474 = vpop.f32.mrf.mxu0
    %5475 = vdwg.mxu0
    %5476 = vmatpush.bf16.msra.mxu0 %v3323
    %5477 = vmatpush.bf16.msra.mxu0 %v3319
    %5478 = vmatpush.bf16.msra.mxu0 %v3315
    %5479 = vmatpush.bf16.msra.mxu0 %v3311
    %5480 = vmatpush.bf16.msra.mxu0 %v3307
    %5481 = vmatpush.bf16.msra.mxu0 %v3303
    %5482 = vmatpush.bf16.msra.mxu0 %v3299
    %5483 = vmatpush.bf16.msra.mxu0 %v3295
    %5484 = vmatmul.bf16.gmra.mxu0 %v824
    %v5485 = vpop.f32.mrf.mxu0
    %v5486 = vadd.f32 %v5473, %v5485
    %v5487 = vpop.f32.mrf.mxu0
    %5488 = vdwg.mxu0
    %5489 = vmatpush.bf16.msra.mxu0 %v3355
    %5490 = vmatpush.bf16.msra.mxu0 %v3351
    %5491 = vmatpush.bf16.msra.mxu0 %v3347
    %5492 = vmatpush.bf16.msra.mxu0 %v3343
    %5493 = vmatpush.bf16.msra.mxu0 %v3339
    %5494 = vmatpush.bf16.msra.mxu0 %v3335
    %5495 = vmatpush.bf16.msra.mxu0 %v3331
    %5496 = vmatpush.bf16.msra.mxu0 %v3327
    %5497 = vmatmul.bf16.gmra.mxu0 %v825
    %v5498 = vpop.f32.mrf.mxu0
    %v5499 = vadd.f32 %v5486, %v5498
    %v5500 = vpop.f32.mrf.mxu0
    %5501 = vdwg.mxu0
    %5502 = vmatpush.bf16.msra.mxu0 %v3387
    %5503 = vmatpush.bf16.msra.mxu0 %v3383
    %5504 = vmatpush.bf16.msra.mxu0 %v3379
    %5505 = vmatpush.bf16.msra.mxu0 %v3375
    %5506 = vmatpush.bf16.msra.mxu0 %v3371
    %5507 = vmatpush.bf16.msra.mxu0 %v3367
    %5508 = vmatpush.bf16.msra.mxu0 %v3363
    %5509 = vmatpush.bf16.msra.mxu0 %v3359
    %5510 = vmatmul.bf16.gmra.mxu0 %v826
    %v5511 = vpop.f32.mrf.mxu0
    %v5512 = vadd.f32 %v5499, %v5511
    %v5513 = vpop.f32.mrf.mxu0
    %5514 = vdwg.mxu0
    %5515 = vmatpush.bf16.msra.mxu0 %v3419
    %5516 = vmatpush.bf16.msra.mxu0 %v3415
    %5517 = vmatpush.bf16.msra.mxu0 %v3411
    %5518 = vmatpush.bf16.msra.mxu0 %v3407
    %5519 = vmatpush.bf16.msra.mxu0 %v3403
    %5520 = vmatpush.bf16.msra.mxu0 %v3399
    %5521 = vmatpush.bf16.msra.mxu0 %v3395
    %5522 = vmatpush.bf16.msra.mxu0 %v3391
    %5523 = vmatmul.bf16.gmra.mxu0 %v827
    %v5524 = vpop.f32.mrf.mxu0
    %v5525 = vadd.f32 %v5512, %v5524
    %v5526 = vpop.f32.mrf.mxu0
    %5527 = vdwg.mxu0
    %5528 = vmatpush.bf16.msra.mxu0 %v3451
    %5529 = vmatpush.bf16.msra.mxu0 %v3447
    %5530 = vmatpush.bf16.msra.mxu0 %v3443
    %5531 = vmatpush.bf16.msra.mxu0 %v3439
    %5532 = vmatpush.bf16.msra.mxu0 %v3435
    %5533 = vmatpush.bf16.msra.mxu0 %v3431
    %5534 = vmatpush.bf16.msra.mxu0 %v3427
    %5535 = vmatpush.bf16.msra.mxu0 %v3423
    %5536 = vmatmul.bf16.gmra.mxu0 %v828
    %v5537 = vpop.f32.mrf.mxu0
    %v5538 = vadd.f32 %v5525, %v5537
    %v5539 = vpop.f32.mrf.mxu0
    %5540 = vdwg.mxu0
    %5541 = vmatpush.bf16.msra.mxu0 %v3483
    %5542 = vmatpush.bf16.msra.mxu0 %v3479
    %5543 = vmatpush.bf16.msra.mxu0 %v3475
    %5544 = vmatpush.bf16.msra.mxu0 %v3471
    %5545 = vmatpush.bf16.msra.mxu0 %v3467
    %5546 = vmatpush.bf16.msra.mxu0 %v3463
    %5547 = vmatpush.bf16.msra.mxu0 %v3459
    %5548 = vmatpush.bf16.msra.mxu0 %v3455
    %5549 = vmatmul.bf16.gmra.mxu0 %v829
    %v5550 = vpop.f32.mrf.mxu0
    %v5551 = vadd.f32 %v5538, %v5550
    %v5552 = vpop.f32.mrf.mxu0
    %5553 = vdwg.mxu0
    %5554 = vmatpush.bf16.msra.mxu0 %v3515
    %5555 = vmatpush.bf16.msra.mxu0 %v3511
    %5556 = vmatpush.bf16.msra.mxu0 %v3507
    %5557 = vmatpush.bf16.msra.mxu0 %v3503
    %5558 = vmatpush.bf16.msra.mxu0 %v3499
    %5559 = vmatpush.bf16.msra.mxu0 %v3495
    %5560 = vmatpush.bf16.msra.mxu0 %v3491
    %5561 = vmatpush.bf16.msra.mxu0 %v3487
    %5562 = vmatmul.bf16.gmra.mxu0 %v832
    %v5563 = vpop.f32.mrf.mxu0
    %v5564 = vadd.f32 %v5551, %v5563
    %v5565 = vpop.f32.mrf.mxu0
    %5566 = vdwg.mxu0
    %5567 = vmatpush.bf16.msra.mxu0 %v3547
    %5568 = vmatpush.bf16.msra.mxu0 %v3543
    %5569 = vmatpush.bf16.msra.mxu0 %v3539
    %5570 = vmatpush.bf16.msra.mxu0 %v3535
    %5571 = vmatpush.bf16.msra.mxu0 %v3531
    %5572 = vmatpush.bf16.msra.mxu0 %v3527
    %5573 = vmatpush.bf16.msra.mxu0 %v3523
    %5574 = vmatpush.bf16.msra.mxu0 %v3519
    %5575 = vmatmul.bf16.gmra.mxu0 %v833
    %v5576 = vpop.f32.mrf.mxu0
    %v5577 = vadd.f32 %v5564, %v5576
    %v5578 = vpop.f32.mrf.mxu0
    %5579 = vdwg.mxu0
    %5580 = vmatpush.bf16.msra.mxu0 %v3579
    %5581 = vmatpush.bf16.msra.mxu0 %v3575
    %5582 = vmatpush.bf16.msra.mxu0 %v3571
    %5583 = vmatpush.bf16.msra.mxu0 %v3567
    %5584 = vmatpush.bf16.msra.mxu0 %v3563
    %5585 = vmatpush.bf16.msra.mxu0 %v3559
    %5586 = vmatpush.bf16.msra.mxu0 %v3555
    %5587 = vmatpush.bf16.msra.mxu0 %v3551
    %5588 = vmatmul.bf16.gmra.mxu0 %v834
    %v5589 = vpop.f32.mrf.mxu0
    %v5590 = vadd.f32 %v5577, %v5589
    %v5591 = vpop.f32.mrf.mxu0
    %5592 = vdwg.mxu0
    %5593 = vmatpush.bf16.msra.mxu0 %v3611
    %5594 = vmatpush.bf16.msra.mxu0 %v3607
    %5595 = vmatpush.bf16.msra.mxu0 %v3603
    %5596 = vmatpush.bf16.msra.mxu0 %v3599
    %5597 = vmatpush.bf16.msra.mxu0 %v3595
    %5598 = vmatpush.bf16.msra.mxu0 %v3591
    %5599 = vmatpush.bf16.msra.mxu0 %v3587
    %5600 = vmatpush.bf16.msra.mxu0 %v3583
    %5601 = vmatmul.bf16.gmra.mxu0 %v835
    %v5602 = vpop.f32.mrf.mxu0
    %v5603 = vadd.f32 %v5590, %v5602
    %v5604 = vpop.f32.mrf.mxu0
    %5605 = vdwg.mxu0
    %5606 = vmatpush.bf16.msra.mxu0 %v3643
    %5607 = vmatpush.bf16.msra.mxu0 %v3639
    %5608 = vmatpush.bf16.msra.mxu0 %v3635
    %5609 = vmatpush.bf16.msra.mxu0 %v3631
    %5610 = vmatpush.bf16.msra.mxu0 %v3627
    %5611 = vmatpush.bf16.msra.mxu0 %v3623
    %5612 = vmatpush.bf16.msra.mxu0 %v3619
    %5613 = vmatpush.bf16.msra.mxu0 %v3615
    %5614 = vmatmul.bf16.gmra.mxu0 %v836
    %v5615 = vpop.f32.mrf.mxu0
    %v5616 = vadd.f32 %v5603, %v5615
    %v5617 = vpop.f32.mrf.mxu0
    %5618 = vdwg.mxu0
    %5619 = vmatpush.bf16.msra.mxu0 %v3675
    %5620 = vmatpush.bf16.msra.mxu0 %v3671
    %5621 = vmatpush.bf16.msra.mxu0 %v3667
    %5622 = vmatpush.bf16.msra.mxu0 %v3663
    %5623 = vmatpush.bf16.msra.mxu0 %v3659
    %5624 = vmatpush.bf16.msra.mxu0 %v3655
    %5625 = vmatpush.bf16.msra.mxu0 %v3651
    %5626 = vmatpush.bf16.msra.mxu0 %v3647
    %5627 = vmatmul.bf16.gmra.mxu0 %v837
    %v5628 = vpop.f32.mrf.mxu0
    %v5629 = vadd.f32 %v5616, %v5628
    %v5630 = vpop.f32.mrf.mxu0
    %5631 = vdwg.mxu0
    %5632 = vmatpush.bf16.msra.mxu0 %v3707
    %5633 = vmatpush.bf16.msra.mxu0 %v3703
    %5634 = vmatpush.bf16.msra.mxu0 %v3699
    %5635 = vmatpush.bf16.msra.mxu0 %v3695
    %5636 = vmatpush.bf16.msra.mxu0 %v3691
    %5637 = vmatpush.bf16.msra.mxu0 %v3687
    %5638 = vmatpush.bf16.msra.mxu0 %v3683
    %5639 = vmatpush.bf16.msra.mxu0 %v3679
    %5640 = vmatmul.bf16.gmra.mxu0 %v838
    %v5641 = vpop.f32.mrf.mxu0
    %v5642 = vadd.f32 %v5629, %v5641
    %v5643 = vpop.f32.mrf.mxu0
    %5644 = vdwg.mxu0
    %5645 = vmatpush.bf16.msra.mxu0 %v3739
    %5646 = vmatpush.bf16.msra.mxu0 %v3735
    %5647 = vmatpush.bf16.msra.mxu0 %v3731
    %5648 = vmatpush.bf16.msra.mxu0 %v3727
    %5649 = vmatpush.bf16.msra.mxu0 %v3723
    %5650 = vmatpush.bf16.msra.mxu0 %v3719
    %5651 = vmatpush.bf16.msra.mxu0 %v3715
    %5652 = vmatpush.bf16.msra.mxu0 %v3711
    %5653 = vmatmul.bf16.gmra.mxu0 %v839
    %v5654 = vpop.f32.mrf.mxu0
    %v5655 = vadd.f32 %v5642, %v5654
    %v5656 = vpop.f32.mrf.mxu0
    %5657 = vdwg.mxu0
    %5658 = vmatpush.bf16.msra.mxu0 %v3771
    %5659 = vmatpush.bf16.msra.mxu0 %v3767
    %5660 = vmatpush.bf16.msra.mxu0 %v3763
    %5661 = vmatpush.bf16.msra.mxu0 %v3759
    %5662 = vmatpush.bf16.msra.mxu0 %v3755
    %5663 = vmatpush.bf16.msra.mxu0 %v3751
    %5664 = vmatpush.bf16.msra.mxu0 %v3747
    %5665 = vmatpush.bf16.msra.mxu0 %v3743
    %5666 = vmatmul.bf16.gmra.mxu0 %v842
    %v5667 = vpop.f32.mrf.mxu0
    %v5668 = vadd.f32 %v5655, %v5667
    %v5669 = vpop.f32.mrf.mxu0
    %5670 = vdwg.mxu0
    %5671 = vmatpush.bf16.msra.mxu0 %v3803
    %5672 = vmatpush.bf16.msra.mxu0 %v3799
    %5673 = vmatpush.bf16.msra.mxu0 %v3795
    %5674 = vmatpush.bf16.msra.mxu0 %v3791
    %5675 = vmatpush.bf16.msra.mxu0 %v3787
    %5676 = vmatpush.bf16.msra.mxu0 %v3783
    %5677 = vmatpush.bf16.msra.mxu0 %v3779
    %5678 = vmatpush.bf16.msra.mxu0 %v3775
    %5679 = vmatmul.bf16.gmra.mxu0 %v843
    %v5680 = vpop.f32.mrf.mxu0
    %v5681 = vadd.f32 %v5668, %v5680
    %v5682 = vpop.f32.mrf.mxu0
    %5683 = vdwg.mxu0
    %5684 = vmatpush.bf16.msra.mxu0 %v3835
    %5685 = vmatpush.bf16.msra.mxu0 %v3831
    %5686 = vmatpush.bf16.msra.mxu0 %v3827
    %5687 = vmatpush.bf16.msra.mxu0 %v3823
    %5688 = vmatpush.bf16.msra.mxu0 %v3819
    %5689 = vmatpush.bf16.msra.mxu0 %v3815
    %5690 = vmatpush.bf16.msra.mxu0 %v3811
    %5691 = vmatpush.bf16.msra.mxu0 %v3807
    %5692 = vmatmul.bf16.gmra.mxu0 %v844
    %v5693 = vpop.f32.mrf.mxu0
    %v5694 = vadd.f32 %v5681, %v5693
    %v5695 = vpop.f32.mrf.mxu0
    %5696 = vdwg.mxu0
    %5697 = vmatpush.bf16.msra.mxu0 %v3867
    %5698 = vmatpush.bf16.msra.mxu0 %v3863
    %5699 = vmatpush.bf16.msra.mxu0 %v3859
    %5700 = vmatpush.bf16.msra.mxu0 %v3855
    %5701 = vmatpush.bf16.msra.mxu0 %v3851
    %5702 = vmatpush.bf16.msra.mxu0 %v3847
    %5703 = vmatpush.bf16.msra.mxu0 %v3843
    %5704 = vmatpush.bf16.msra.mxu0 %v3839
    %5705 = vmatmul.bf16.gmra.mxu0 %v845
    %v5706 = vpop.f32.mrf.mxu0
    %v5707 = vadd.f32 %v5694, %v5706
    %v5708 = vpop.f32.mrf.mxu0
    %5709 = vdwg.mxu0
    %5710 = vmatpush.bf16.msra.mxu0 %v3899
    %5711 = vmatpush.bf16.msra.mxu0 %v3895
    %5712 = vmatpush.bf16.msra.mxu0 %v3891
    %5713 = vmatpush.bf16.msra.mxu0 %v3887
    %5714 = vmatpush.bf16.msra.mxu0 %v3883
    %5715 = vmatpush.bf16.msra.mxu0 %v3879
    %5716 = vmatpush.bf16.msra.mxu0 %v3875
    %5717 = vmatpush.bf16.msra.mxu0 %v3871
    %5718 = vmatmul.bf16.gmra.mxu0 %v846
    %v5719 = vpop.f32.mrf.mxu0
    %v5720 = vadd.f32 %v5707, %v5719
    %v5721 = vpop.f32.mrf.mxu0
    %5722 = vdwg.mxu0
    %5723 = vmatpush.bf16.msra.mxu0 %v3931
    %5724 = vmatpush.bf16.msra.mxu0 %v3927
    %5725 = vmatpush.bf16.msra.mxu0 %v3923
    %5726 = vmatpush.bf16.msra.mxu0 %v3919
    %5727 = vmatpush.bf16.msra.mxu0 %v3915
    %5728 = vmatpush.bf16.msra.mxu0 %v3911
    %5729 = vmatpush.bf16.msra.mxu0 %v3907
    %5730 = vmatpush.bf16.msra.mxu0 %v3903
    %5731 = vmatmul.bf16.gmra.mxu0 %v847
    %v5732 = vpop.f32.mrf.mxu0
    %v5733 = vadd.f32 %v5720, %v5732
    %v5734 = vpop.f32.mrf.mxu0
    %5735 = vdwg.mxu0
    %5736 = vmatpush.bf16.msra.mxu0 %v3963
    %5737 = vmatpush.bf16.msra.mxu0 %v3959
    %5738 = vmatpush.bf16.msra.mxu0 %v3955
    %5739 = vmatpush.bf16.msra.mxu0 %v3951
    %5740 = vmatpush.bf16.msra.mxu0 %v3947
    %5741 = vmatpush.bf16.msra.mxu0 %v3943
    %5742 = vmatpush.bf16.msra.mxu0 %v3939
    %5743 = vmatpush.bf16.msra.mxu0 %v3935
    %5744 = vmatmul.bf16.gmra.mxu0 %v848
    %v5745 = vpop.f32.mrf.mxu0
    %v5746 = vadd.f32 %v5733, %v5745
    %v5747 = vpop.f32.mrf.mxu0
    %5748 = vdwg.mxu0
    %5749 = vmatpush.bf16.msra.mxu0 %v3995
    %5750 = vmatpush.bf16.msra.mxu0 %v3991
    %5751 = vmatpush.bf16.msra.mxu0 %v3987
    %5752 = vmatpush.bf16.msra.mxu0 %v3983
    %5753 = vmatpush.bf16.msra.mxu0 %v3979
    %5754 = vmatpush.bf16.msra.mxu0 %v3975
    %5755 = vmatpush.bf16.msra.mxu0 %v3971
    %5756 = vmatpush.bf16.msra.mxu0 %v3967
    %5757 = vmatmul.bf16.gmra.mxu0 %v849
    %v5758 = vpop.f32.mrf.mxu0
    %v5759 = vadd.f32 %v5746, %v5758
    %v5760 = vpop.f32.mrf.mxu0
    %5761 = vdwg.mxu0
    %5762 = vmatpush.bf16.msra.mxu0 0
    %5763 = vmatpush.bf16.msra.mxu0 0
    %5764 = vmatpush.bf16.msra.mxu0 0
    %5765 = vmatpush.bf16.msra.mxu0 0
    %5766 = vmatpush.bf16.msra.mxu0 %v4011
    %5767 = vmatpush.bf16.msra.mxu0 %v4007
    %5768 = vmatpush.bf16.msra.mxu0 %v4003
    %5769 = vmatpush.bf16.msra.mxu0 %v3999
    %5770 = vmatmul.bf16.gmra.mxu0 %v4798
    %v5771 = vpop.f32.mrf.mxu0
    %v5772 = vadd.f32 %v5759, %v5771
    %v5773 = vpop.f32.mrf.mxu0
    %5774 = vdwg.mxu0
    %5775 = vmatpush.bf16.msra.mxu0 %v3260
    %5776 = vmatpush.bf16.msra.mxu0 %v3256
    %5777 = vmatpush.bf16.msra.mxu0 %v3252
    %5778 = vmatpush.bf16.msra.mxu0 %v3248
    %5779 = vmatpush.bf16.msra.mxu0 %v3244
    %5780 = vmatpush.bf16.msra.mxu0 %v3240
    %5781 = vmatpush.bf16.msra.mxu0 %v3236
    %5782 = vmatpush.bf16.msra.mxu0 %v3232
    %5783 = vmatmul.bf16.gmra.mxu0 %v822
    %v5784 = vpop.f32.mrf.mxu0
    %v5785 = vadd.f32 %v815, %v5784
    %v5786 = vpop.f32.mrf.mxu0
    %5787 = vdwg.mxu0
    %5788 = vmatpush.bf16.msra.mxu0 %v3292
    %5789 = vmatpush.bf16.msra.mxu0 %v3288
    %5790 = vmatpush.bf16.msra.mxu0 %v3284
    %5791 = vmatpush.bf16.msra.mxu0 %v3280
    %5792 = vmatpush.bf16.msra.mxu0 %v3276
    %5793 = vmatpush.bf16.msra.mxu0 %v3272
    %5794 = vmatpush.bf16.msra.mxu0 %v3268
    %5795 = vmatpush.bf16.msra.mxu0 %v3264
    %5796 = vmatmul.bf16.gmra.mxu0 %v823
    %v5797 = vpop.f32.mrf.mxu0
    %v5798 = vadd.f32 %v5785, %v5797
    %v5799 = vpop.f32.mrf.mxu0
    %5800 = vdwg.mxu0
    %5801 = vmatpush.bf16.msra.mxu0 %v3324
    %5802 = vmatpush.bf16.msra.mxu0 %v3320
    %5803 = vmatpush.bf16.msra.mxu0 %v3316
    %5804 = vmatpush.bf16.msra.mxu0 %v3312
    %5805 = vmatpush.bf16.msra.mxu0 %v3308
    %5806 = vmatpush.bf16.msra.mxu0 %v3304
    %5807 = vmatpush.bf16.msra.mxu0 %v3300
    %5808 = vmatpush.bf16.msra.mxu0 %v3296
    %5809 = vmatmul.bf16.gmra.mxu0 %v824
    %v5810 = vpop.f32.mrf.mxu0
    %v5811 = vadd.f32 %v5798, %v5810
    %v5812 = vpop.f32.mrf.mxu0
    %5813 = vdwg.mxu0
    %5814 = vmatpush.bf16.msra.mxu0 %v3356
    %5815 = vmatpush.bf16.msra.mxu0 %v3352
    %5816 = vmatpush.bf16.msra.mxu0 %v3348
    %5817 = vmatpush.bf16.msra.mxu0 %v3344
    %5818 = vmatpush.bf16.msra.mxu0 %v3340
    %5819 = vmatpush.bf16.msra.mxu0 %v3336
    %5820 = vmatpush.bf16.msra.mxu0 %v3332
    %5821 = vmatpush.bf16.msra.mxu0 %v3328
    %5822 = vmatmul.bf16.gmra.mxu0 %v825
    %v5823 = vpop.f32.mrf.mxu0
    %v5824 = vadd.f32 %v5811, %v5823
    %v5825 = vpop.f32.mrf.mxu0
    %5826 = vdwg.mxu0
    %5827 = vmatpush.bf16.msra.mxu0 %v3388
    %5828 = vmatpush.bf16.msra.mxu0 %v3384
    %5829 = vmatpush.bf16.msra.mxu0 %v3380
    %5830 = vmatpush.bf16.msra.mxu0 %v3376
    %5831 = vmatpush.bf16.msra.mxu0 %v3372
    %5832 = vmatpush.bf16.msra.mxu0 %v3368
    %5833 = vmatpush.bf16.msra.mxu0 %v3364
    %5834 = vmatpush.bf16.msra.mxu0 %v3360
    %5835 = vmatmul.bf16.gmra.mxu0 %v826
    %v5836 = vpop.f32.mrf.mxu0
    %v5837 = vadd.f32 %v5824, %v5836
    %v5838 = vpop.f32.mrf.mxu0
    %5839 = vdwg.mxu0
    %5840 = vmatpush.bf16.msra.mxu0 %v3420
    %5841 = vmatpush.bf16.msra.mxu0 %v3416
    %5842 = vmatpush.bf16.msra.mxu0 %v3412
    %5843 = vmatpush.bf16.msra.mxu0 %v3408
    %5844 = vmatpush.bf16.msra.mxu0 %v3404
    %5845 = vmatpush.bf16.msra.mxu0 %v3400
    %5846 = vmatpush.bf16.msra.mxu0 %v3396
    %5847 = vmatpush.bf16.msra.mxu0 %v3392
    %5848 = vmatmul.bf16.gmra.mxu0 %v827
    %v5849 = vpop.f32.mrf.mxu0
    %v5850 = vadd.f32 %v5837, %v5849
    %v5851 = vpop.f32.mrf.mxu0
    %5852 = vdwg.mxu0
    %5853 = vmatpush.bf16.msra.mxu0 %v3452
    %5854 = vmatpush.bf16.msra.mxu0 %v3448
    %5855 = vmatpush.bf16.msra.mxu0 %v3444
    %5856 = vmatpush.bf16.msra.mxu0 %v3440
    %5857 = vmatpush.bf16.msra.mxu0 %v3436
    %5858 = vmatpush.bf16.msra.mxu0 %v3432
    %5859 = vmatpush.bf16.msra.mxu0 %v3428
    %5860 = vmatpush.bf16.msra.mxu0 %v3424
    %5861 = vmatmul.bf16.gmra.mxu0 %v828
    %v5862 = vpop.f32.mrf.mxu0
    %v5863 = vadd.f32 %v5850, %v5862
    %v5864 = vpop.f32.mrf.mxu0
    %5865 = vdwg.mxu0
    %5866 = vmatpush.bf16.msra.mxu0 %v3484
    %5867 = vmatpush.bf16.msra.mxu0 %v3480
    %5868 = vmatpush.bf16.msra.mxu0 %v3476
    %5869 = vmatpush.bf16.msra.mxu0 %v3472
    %5870 = vmatpush.bf16.msra.mxu0 %v3468
    %5871 = vmatpush.bf16.msra.mxu0 %v3464
    %5872 = vmatpush.bf16.msra.mxu0 %v3460
    %5873 = vmatpush.bf16.msra.mxu0 %v3456
    %5874 = vmatmul.bf16.gmra.mxu0 %v829
    %v5875 = vpop.f32.mrf.mxu0
    %v5876 = vadd.f32 %v5863, %v5875
    %v5877 = vpop.f32.mrf.mxu0
    %5878 = vdwg.mxu0
    %5879 = vmatpush.bf16.msra.mxu0 %v3516
    %5880 = vmatpush.bf16.msra.mxu0 %v3512
    %5881 = vmatpush.bf16.msra.mxu0 %v3508
    %5882 = vmatpush.bf16.msra.mxu0 %v3504
    %5883 = vmatpush.bf16.msra.mxu0 %v3500
    %5884 = vmatpush.bf16.msra.mxu0 %v3496
    %5885 = vmatpush.bf16.msra.mxu0 %v3492
    %5886 = vmatpush.bf16.msra.mxu0 %v3488
    %5887 = vmatmul.bf16.gmra.mxu0 %v832
    %v5888 = vpop.f32.mrf.mxu0
    %v5889 = vadd.f32 %v5876, %v5888
    %v5890 = vpop.f32.mrf.mxu0
    %5891 = vdwg.mxu0
    %5892 = vmatpush.bf16.msra.mxu0 %v3548
    %5893 = vmatpush.bf16.msra.mxu0 %v3544
    %5894 = vmatpush.bf16.msra.mxu0 %v3540
    %5895 = vmatpush.bf16.msra.mxu0 %v3536
    %5896 = vmatpush.bf16.msra.mxu0 %v3532
    %5897 = vmatpush.bf16.msra.mxu0 %v3528
    %5898 = vmatpush.bf16.msra.mxu0 %v3524
    %5899 = vmatpush.bf16.msra.mxu0 %v3520
    %5900 = vmatmul.bf16.gmra.mxu0 %v833
    %v5901 = vpop.f32.mrf.mxu0
    %v5902 = vadd.f32 %v5889, %v5901
    %v5903 = vpop.f32.mrf.mxu0
    %5904 = vdwg.mxu0
    %5905 = vmatpush.bf16.msra.mxu0 %v3580
    %5906 = vmatpush.bf16.msra.mxu0 %v3576
    %5907 = vmatpush.bf16.msra.mxu0 %v3572
    %5908 = vmatpush.bf16.msra.mxu0 %v3568
    %5909 = vmatpush.bf16.msra.mxu0 %v3564
    %5910 = vmatpush.bf16.msra.mxu0 %v3560
    %5911 = vmatpush.bf16.msra.mxu0 %v3556
    %5912 = vmatpush.bf16.msra.mxu0 %v3552
    %5913 = vmatmul.bf16.gmra.mxu0 %v834
    %v5914 = vpop.f32.mrf.mxu0
    %v5915 = vadd.f32 %v5902, %v5914
    %v5916 = vpop.f32.mrf.mxu0
    %5917 = vdwg.mxu0
    %5918 = vmatpush.bf16.msra.mxu0 %v3612
    %5919 = vmatpush.bf16.msra.mxu0 %v3608
    %5920 = vmatpush.bf16.msra.mxu0 %v3604
    %5921 = vmatpush.bf16.msra.mxu0 %v3600
    %5922 = vmatpush.bf16.msra.mxu0 %v3596
    %5923 = vmatpush.bf16.msra.mxu0 %v3592
    %5924 = vmatpush.bf16.msra.mxu0 %v3588
    %5925 = vmatpush.bf16.msra.mxu0 %v3584
    %5926 = vmatmul.bf16.gmra.mxu0 %v835
    %v5927 = vpop.f32.mrf.mxu0
    %v5928 = vadd.f32 %v5915, %v5927
    %v5929 = vpop.f32.mrf.mxu0
    %5930 = vdwg.mxu0
    %5931 = vmatpush.bf16.msra.mxu0 %v3644
    %5932 = vmatpush.bf16.msra.mxu0 %v3640
    %5933 = vmatpush.bf16.msra.mxu0 %v3636
    %5934 = vmatpush.bf16.msra.mxu0 %v3632
    %5935 = vmatpush.bf16.msra.mxu0 %v3628
    %5936 = vmatpush.bf16.msra.mxu0 %v3624
    %5937 = vmatpush.bf16.msra.mxu0 %v3620
    %5938 = vmatpush.bf16.msra.mxu0 %v3616
    %5939 = vmatmul.bf16.gmra.mxu0 %v836
    %v5940 = vpop.f32.mrf.mxu0
    %v5941 = vadd.f32 %v5928, %v5940
    %v5942 = vpop.f32.mrf.mxu0
    %5943 = vdwg.mxu0
    %5944 = vmatpush.bf16.msra.mxu0 %v3676
    %5945 = vmatpush.bf16.msra.mxu0 %v3672
    %5946 = vmatpush.bf16.msra.mxu0 %v3668
    %5947 = vmatpush.bf16.msra.mxu0 %v3664
    %5948 = vmatpush.bf16.msra.mxu0 %v3660
    %5949 = vmatpush.bf16.msra.mxu0 %v3656
    %5950 = vmatpush.bf16.msra.mxu0 %v3652
    %5951 = vmatpush.bf16.msra.mxu0 %v3648
    %5952 = vmatmul.bf16.gmra.mxu0 %v837
    %v5953 = vpop.f32.mrf.mxu0
    %v5954 = vadd.f32 %v5941, %v5953
    %v5955 = vpop.f32.mrf.mxu0
    %5956 = vdwg.mxu0
    %5957 = vmatpush.bf16.msra.mxu0 %v3708
    %5958 = vmatpush.bf16.msra.mxu0 %v3704
    %5959 = vmatpush.bf16.msra.mxu0 %v3700
    %5960 = vmatpush.bf16.msra.mxu0 %v3696
    %5961 = vmatpush.bf16.msra.mxu0 %v3692
    %5962 = vmatpush.bf16.msra.mxu0 %v3688
    %5963 = vmatpush.bf16.msra.mxu0 %v3684
    %5964 = vmatpush.bf16.msra.mxu0 %v3680
    %5965 = vmatmul.bf16.gmra.mxu0 %v838
    %v5966 = vpop.f32.mrf.mxu0
    %v5967 = vadd.f32 %v5954, %v5966
    %v5968 = vpop.f32.mrf.mxu0
    %5969 = vdwg.mxu0
    %5970 = vmatpush.bf16.msra.mxu0 %v3740
    %5971 = vmatpush.bf16.msra.mxu0 %v3736
    %5972 = vmatpush.bf16.msra.mxu0 %v3732
    %5973 = vmatpush.bf16.msra.mxu0 %v3728
    %5974 = vmatpush.bf16.msra.mxu0 %v3724
    %5975 = vmatpush.bf16.msra.mxu0 %v3720
    %5976 = vmatpush.bf16.msra.mxu0 %v3716
    %5977 = vmatpush.bf16.msra.mxu0 %v3712
    %5978 = vmatmul.bf16.gmra.mxu0 %v839
    %v5979 = vpop.f32.mrf.mxu0
    %v5980 = vadd.f32 %v5967, %v5979
    %v5981 = vpop.f32.mrf.mxu0
    %5982 = vdwg.mxu0
    %5983 = vmatpush.bf16.msra.mxu0 %v3772
    %5984 = vmatpush.bf16.msra.mxu0 %v3768
    %5985 = vmatpush.bf16.msra.mxu0 %v3764
    %5986 = vmatpush.bf16.msra.mxu0 %v3760
    %5987 = vmatpush.bf16.msra.mxu0 %v3756
    %5988 = vmatpush.bf16.msra.mxu0 %v3752
    %5989 = vmatpush.bf16.msra.mxu0 %v3748
    %5990 = vmatpush.bf16.msra.mxu0 %v3744
    %5991 = vmatmul.bf16.gmra.mxu0 %v842
    %v5992 = vpop.f32.mrf.mxu0
    %v5993 = vadd.f32 %v5980, %v5992
    %v5994 = vpop.f32.mrf.mxu0
    %5995 = vdwg.mxu0
    %5996 = vmatpush.bf16.msra.mxu0 %v3804
    %5997 = vmatpush.bf16.msra.mxu0 %v3800
    %5998 = vmatpush.bf16.msra.mxu0 %v3796
    %5999 = vmatpush.bf16.msra.mxu0 %v3792
    %6000 = vmatpush.bf16.msra.mxu0 %v3788
    %6001 = vmatpush.bf16.msra.mxu0 %v3784
    %6002 = vmatpush.bf16.msra.mxu0 %v3780
    %6003 = vmatpush.bf16.msra.mxu0 %v3776
    %6004 = vmatmul.bf16.gmra.mxu0 %v843
    %v6005 = vpop.f32.mrf.mxu0
    %v6006 = vadd.f32 %v5993, %v6005
    %v6007 = vpop.f32.mrf.mxu0
    %6008 = vdwg.mxu0
    %6009 = vmatpush.bf16.msra.mxu0 %v3836
    %6010 = vmatpush.bf16.msra.mxu0 %v3832
    %6011 = vmatpush.bf16.msra.mxu0 %v3828
    %6012 = vmatpush.bf16.msra.mxu0 %v3824
    %6013 = vmatpush.bf16.msra.mxu0 %v3820
    %6014 = vmatpush.bf16.msra.mxu0 %v3816
    %6015 = vmatpush.bf16.msra.mxu0 %v3812
    %6016 = vmatpush.bf16.msra.mxu0 %v3808
    %6017 = vmatmul.bf16.gmra.mxu0 %v844
    %v6018 = vpop.f32.mrf.mxu0
    %v6019 = vadd.f32 %v6006, %v6018
    %v6020 = vpop.f32.mrf.mxu0
    %6021 = vdwg.mxu0
    %6022 = vmatpush.bf16.msra.mxu0 %v3868
    %6023 = vmatpush.bf16.msra.mxu0 %v3864
    %6024 = vmatpush.bf16.msra.mxu0 %v3860
    %6025 = vmatpush.bf16.msra.mxu0 %v3856
    %6026 = vmatpush.bf16.msra.mxu0 %v3852
    %6027 = vmatpush.bf16.msra.mxu0 %v3848
    %6028 = vmatpush.bf16.msra.mxu0 %v3844
    %6029 = vmatpush.bf16.msra.mxu0 %v3840
    %6030 = vmatmul.bf16.gmra.mxu0 %v845
    %v6031 = vpop.f32.mrf.mxu0
    %v6032 = vadd.f32 %v6019, %v6031
    %v6033 = vpop.f32.mrf.mxu0
    %6034 = vdwg.mxu0
    %6035 = vmatpush.bf16.msra.mxu0 %v3900
    %6036 = vmatpush.bf16.msra.mxu0 %v3896
    %6037 = vmatpush.bf16.msra.mxu0 %v3892
    %6038 = vmatpush.bf16.msra.mxu0 %v3888
    %6039 = vmatpush.bf16.msra.mxu0 %v3884
    %6040 = vmatpush.bf16.msra.mxu0 %v3880
    %6041 = vmatpush.bf16.msra.mxu0 %v3876
    %6042 = vmatpush.bf16.msra.mxu0 %v3872
    %6043 = vmatmul.bf16.gmra.mxu0 %v846
    %v6044 = vpop.f32.mrf.mxu0
    %v6045 = vadd.f32 %v6032, %v6044
    %v6046 = vpop.f32.mrf.mxu0
    %6047 = vdwg.mxu0
    %6048 = vmatpush.bf16.msra.mxu0 %v3932
    %6049 = vmatpush.bf16.msra.mxu0 %v3928
    %6050 = vmatpush.bf16.msra.mxu0 %v3924
    %6051 = vmatpush.bf16.msra.mxu0 %v3920
    %6052 = vmatpush.bf16.msra.mxu0 %v3916
    %6053 = vmatpush.bf16.msra.mxu0 %v3912
    %6054 = vmatpush.bf16.msra.mxu0 %v3908
    %6055 = vmatpush.bf16.msra.mxu0 %v3904
    %6056 = vmatmul.bf16.gmra.mxu0 %v847
    %v6057 = vpop.f32.mrf.mxu0
    %v6058 = vadd.f32 %v6045, %v6057
    %v6059 = vpop.f32.mrf.mxu0
    %6060 = vdwg.mxu0
    %6061 = vmatpush.bf16.msra.mxu0 %v3964
    %6062 = vmatpush.bf16.msra.mxu0 %v3960
    %6063 = vmatpush.bf16.msra.mxu0 %v3956
    %6064 = vmatpush.bf16.msra.mxu0 %v3952
    %6065 = vmatpush.bf16.msra.mxu0 %v3948
    %6066 = vmatpush.bf16.msra.mxu0 %v3944
    %6067 = vmatpush.bf16.msra.mxu0 %v3940
    %6068 = vmatpush.bf16.msra.mxu0 %v3936
    %6069 = vmatmul.bf16.gmra.mxu0 %v848
    %v6070 = vpop.f32.mrf.mxu0
    %v6071 = vadd.f32 %v6058, %v6070
    %v6072 = vpop.f32.mrf.mxu0
    %6073 = vdwg.mxu0
    %6074 = vmatpush.bf16.msra.mxu0 %v3996
    %6075 = vmatpush.bf16.msra.mxu0 %v3992
    %6076 = vmatpush.bf16.msra.mxu0 %v3988
    %6077 = vmatpush.bf16.msra.mxu0 %v3984
    %6078 = vmatpush.bf16.msra.mxu0 %v3980
    %6079 = vmatpush.bf16.msra.mxu0 %v3976
    %6080 = vmatpush.bf16.msra.mxu0 %v3972
    %6081 = vmatpush.bf16.msra.mxu0 %v3968
    %6082 = vmatmul.bf16.gmra.mxu0 %v849
    %v6083 = vpop.f32.mrf.mxu0
    %v6084 = vadd.f32 %v6071, %v6083
    %v6085 = vpop.f32.mrf.mxu0
    %6086 = vdwg.mxu0
    %6087 = vmatpush.bf16.msra.mxu0 0
    %6088 = vmatpush.bf16.msra.mxu0 0
    %6089 = vmatpush.bf16.msra.mxu0 0
    %6090 = vmatpush.bf16.msra.mxu0 0
    %6091 = vmatpush.bf16.msra.mxu0 %v4012
    %6092 = vmatpush.bf16.msra.mxu0 %v4008
    %6093 = vmatpush.bf16.msra.mxu0 %v4004
    %6094 = vmatpush.bf16.msra.mxu0 %v4000
    %6095 = vmatmul.bf16.gmra.mxu0 %v4798
    %v6096 = vpop.f32.mrf.mxu0
    %v6097 = vadd.f32 %v6084, %v6096
    %v6098 = vpop.f32.mrf.mxu0
    %6099 = vdwg.mxu0
    %v6100 = vmax.f32 %v5122, 0.0
    %v6101 = vmax.f32 %v5447, 0.0
    %v6102 = vmax.f32 %v5772, 0.0
    %v6103 = vmax.f32 %v6097, 0.0
    %v6104 = vpack.c.bf16 %v6100, %v6100
    %v6105 = vpack.c.bf16 %v6101, %v6101
    %v6106 = vpack.c.bf16 %v6102, %v6102
    %v6107 = vpack.c.bf16 %v6103, %v6103
    %v6108 = vld [vmem:[%s3] sm:$0xf]
    %v6109 = vld [vmem:[%s3 + $0x4] sm:$0xf]
    %v6110 = vld [vmem:[%s3 + $0x8] sm:$0xf]
    %v6111 = vld [vmem:[%s3 + $0xc] sm:$0xf]
    %v6112 = vld [vmem:[%s3 + $0x10] sm:$0xf]
    %v6113 = vld [vmem:[%s3 + $0x14] sm:$0xf]
    %v6114 = vld [vmem:[%s3 + $0x18] sm:$0xf]
    %v6115 = vld [vmem:[%s3 + $0x1c] sm:$0xf]
    %v6116 = vld [vmem:[%s3 + $0x20] sm:$0xf]
    %v6117 = vld [vmem:[%s3 + $0x24] sm:$0xf]
    %v6118 = vld [vmem:[%s3 + $0x28] sm:$0xf]
    %v6119 = vld [vmem:[%s3 + $0x2c] sm:$0xf]
    %v6120 = vld [vmem:[%s3 + $0x30] sm:$0xf]
    %v6121 = vld [vmem:[%s3 + $0x34] sm:$0xf]
    %v6122 = vld [vmem:[%s3 + $0x38] sm:$0xf]
    %v6123 = vld [vmem:[%s3 + $0x3c] sm:$0xf]
    %v6124 = vld [vmem:[%s3 + $0x40] sm:$0xf]
    %v6125 = vld [vmem:[%s3 + $0x44] sm:$0xf]
    %v6126 = vld [vmem:[%s3 + $0x48] sm:$0xf]
    %v6127 = vld [vmem:[%s3 + $0x4c] sm:$0xf]
    %v6128 = vld [vmem:[%s3 + $0x50] sm:$0xf]
    %v6129 = vld [vmem:[%s3 + $0x54] sm:$0xf]
    %v6130 = vld [vmem:[%s3 + $0x58] sm:$0xf]
    %v6131 = vld [vmem:[%s3 + $0x5c] sm:$0xf]
    %v6132 = vld [vmem:[%s3 + $0x60] sm:$0xf]
    %v6133 = vld [vmem:[%s3 + $0x64] sm:$0xf]
    %v6134 = vld [vmem:[%s3 + $0x68] sm:$0xf]
    %v6135 = vld [vmem:[%s3 + $0x6c] sm:$0xf]
    %v6136 = vld [vmem:[%s3 + $0x70] sm:$0xf]
    %v6137 = vld [vmem:[%s3 + $0x74] sm:$0xf]
    %v6138 = vld [vmem:[%s3 + $0x78] sm:$0xf]
    %v6139 = vld [vmem:[%s3 + $0x7c] sm:$0xf]
    %v6140 = vld [vmem:[%s3 + $0x80] sm:$0xf]
    %v6141 = vld [vmem:[%s3 + $0x84] sm:$0xf]
    %v6142 = vld [vmem:[%s3 + $0x88] sm:$0xf]
    %v6143 = vld [vmem:[%s3 + $0x8c] sm:$0xf]
    %v6144 = vld [vmem:[%s3 + $0x90] sm:$0xf]
    %v6145 = vld [vmem:[%s3 + $0x94] sm:$0xf]
    %v6146 = vld [vmem:[%s3 + $0x98] sm:$0xf]
    %v6147 = vld [vmem:[%s3 + $0x9c] sm:$0xf]
    %v6148 = vld [vmem:[%s3 + $0xa0] sm:$0xf]
    %v6149 = vld [vmem:[%s3 + $0xa4] sm:$0xf]
    %v6150 = vld [vmem:[%s3 + $0xa8] sm:$0xf]
    %v6151 = vld [vmem:[%s3 + $0xac] sm:$0xf]
    %v6152 = vld [vmem:[%s3 + $0xb0] sm:$0xf]
    %v6153 = vld [vmem:[%s3 + $0xb4] sm:$0xf]
    %v6154 = vld [vmem:[%s3 + $0xb8] sm:$0xf]
    %v6155 = vld [vmem:[%s3 + $0xbc] sm:$0xf]
    %v6156 = vld [vmem:[%s3 + $0xc0] sm:$0xf]
    %v6157 = vld [vmem:[%s3 + $0xc4] sm:$0xf]
    %v6158 = vld [vmem:[%s3 + $0xc8] sm:$0xf]
    %v6159 = vld [vmem:[%s3 + $0xcc] sm:$0xf]
    %v6160 = vld [vmem:[%s3 + $0xd0] sm:$0xf]
    %v6161 = vld [vmem:[%s3 + $0xd4] sm:$0xf]
    %v6162 = vld [vmem:[%s3 + $0xd8] sm:$0xf]
    %v6163 = vld [vmem:[%s3 + $0xdc] sm:$0xf]
    %v6164 = vld [vmem:[%s3 + $0xe0] sm:$0xf]
    %v6165 = vld [vmem:[%s3 + $0xe4] sm:$0xf]
    %v6166 = vld [vmem:[%s3 + $0xe8] sm:$0xf]
    %v6167 = vld [vmem:[%s3 + $0xec] sm:$0xf]
    %v6168 = vld [vmem:[%s3 + $0xf0] sm:$0xf]
    %v6169 = vld [vmem:[%s3 + $0xf4] sm:$0xf]
    %v6170 = vld [vmem:[%s3 + $0xf8] sm:$0xf]
    %v6171 = vld [vmem:[%s3 + $0xfc] sm:$0xf]
    %v6172 = vld [vmem:[%s4] sm:$0x1]
    %v6174 = vperm.slane %v6172, 0
    %v6240 = vunpack.c.l.b16 %v6108
    %v6241 = vunpack.c.l.b16 %v6109
    %v6242 = vunpack.c.l.b16 %v6110
    %v6243 = vunpack.c.l.b16 %v6111
    %v6244 = vunpack.c.l.b16 %v6112
    %v6245 = vunpack.c.l.b16 %v6113
    %v6246 = vunpack.c.l.b16 %v6114
    %v6247 = vunpack.c.l.b16 %v6115
    %v6248 = vunpack.c.l.b16 %v6116
    %v6249 = vunpack.c.l.b16 %v6117
    %v6250 = vunpack.c.l.b16 %v6118
    %v6251 = vunpack.c.l.b16 %v6119
    %v6252 = vunpack.c.l.b16 %v6120
    %v6253 = vunpack.c.l.b16 %v6121
    %v6254 = vunpack.c.l.b16 %v6122
    %v6255 = vunpack.c.l.b16 %v6123
    %v6256 = vunpack.c.l.b16 %v6124
    %v6257 = vunpack.c.l.b16 %v6125
    %v6258 = vunpack.c.l.b16 %v6126
    %v6259 = vunpack.c.l.b16 %v6127
    %v6260 = vunpack.c.l.b16 %v6128
    %v6261 = vunpack.c.l.b16 %v6129
    %v6262 = vunpack.c.l.b16 %v6130
    %v6263 = vunpack.c.l.b16 %v6131
    %v6264 = vunpack.c.l.b16 %v6132
    %v6265 = vunpack.c.l.b16 %v6133
    %v6266 = vunpack.c.l.b16 %v6134
    %v6267 = vunpack.c.l.b16 %v6135
    %v6268 = vunpack.c.l.b16 %v6136
    %v6269 = vunpack.c.l.b16 %v6137
    %v6270 = vunpack.c.l.b16 %v6138
    %v6271 = vunpack.c.l.b16 %v6139
    %v6272 = vunpack.c.l.b16 %v6140
    %v6273 = vunpack.c.l.b16 %v6141
    %v6274 = vunpack.c.l.b16 %v6142
    %v6275 = vunpack.c.l.b16 %v6143
    %v6276 = vunpack.c.l.b16 %v6144
    %v6277 = vunpack.c.l.b16 %v6145
    %v6278 = vunpack.c.l.b16 %v6146
    %v6279 = vunpack.c.l.b16 %v6147
    %v6280 = vunpack.c.l.b16 %v6148
    %v6281 = vunpack.c.l.b16 %v6149
    %v6282 = vunpack.c.l.b16 %v6150
    %v6283 = vunpack.c.l.b16 %v6151
    %v6284 = vunpack.c.l.b16 %v6152
    %v6285 = vunpack.c.l.b16 %v6153
    %v6286 = vunpack.c.l.b16 %v6154
    %v6287 = vunpack.c.l.b16 %v6155
    %v6288 = vunpack.c.l.b16 %v6156
    %v6289 = vunpack.c.l.b16 %v6157
    %v6290 = vunpack.c.l.b16 %v6158
    %v6291 = vunpack.c.l.b16 %v6159
    %v6292 = vunpack.c.l.b16 %v6160
    %v6293 = vunpack.c.l.b16 %v6161
    %v6294 = vunpack.c.l.b16 %v6162
    %v6295 = vunpack.c.l.b16 %v6163
    %v6296 = vunpack.c.l.b16 %v6164
    %v6297 = vunpack.c.l.b16 %v6165
    %v6298 = vunpack.c.l.b16 %v6166
    %v6299 = vunpack.c.l.b16 %v6167
    %v6300 = vunpack.c.l.b16 %v6168
    %v6301 = vunpack.c.l.b16 %v6169
    %v6302 = vunpack.c.l.b16 %v6170
    %v6303 = vunpack.c.l.b16 %v6171
    %v6304 = vpack.c.b16 %v6241, %v6240
    %v6305 = vpack.c.b16 %v6243, %v6242
    %v6306 = vpack.c.b16 %v6245, %v6244
    %v6307 = vpack.c.b16 %v6247, %v6246
    %v6308 = vpack.c.b16 %v6249, %v6248
    %v6309 = vpack.c.b16 %v6251, %v6250
    %v6310 = vpack.c.b16 %v6253, %v6252
    %v6311 = vpack.c.b16 %v6255, %v6254
    %v6312 = vpack.c.b16 %v6257, %v6256
    %v6313 = vpack.c.b16 %v6259, %v6258
    %v6314 = vpack.c.b16 %v6261, %v6260
    %v6315 = vpack.c.b16 %v6263, %v6262
    %v6316 = vpack.c.b16 %v6265, %v6264
    %v6317 = vpack.c.b16 %v6267, %v6266
    %v6318 = vpack.c.b16 %v6269, %v6268
    %v6319 = vpack.c.b16 %v6271, %v6270
    %v6320 = vpack.c.b16 %v6273, %v6272
    %v6321 = vpack.c.b16 %v6275, %v6274
    %v6322 = vpack.c.b16 %v6277, %v6276
    %v6323 = vpack.c.b16 %v6279, %v6278
    %v6324 = vpack.c.b16 %v6281, %v6280
    %v6325 = vpack.c.b16 %v6283, %v6282
    %v6326 = vpack.c.b16 %v6285, %v6284
    %v6327 = vpack.c.b16 %v6287, %v6286
    %v6328 = vpack.c.b16 %v6289, %v6288
    %v6329 = vpack.c.b16 %v6291, %v6290
    %v6330 = vpack.c.b16 %v6293, %v6292
    %v6331 = vpack.c.b16 %v6295, %v6294
    %v6332 = vpack.c.b16 %v6297, %v6296
    %v6333 = vpack.c.b16 %v6299, %v6298
    %v6334 = vpack.c.b16 %v6301, %v6300
    %v6335 = vpack.c.b16 %v6303, %v6302
    %6368 = vmatpush.bf16.msra.mxu0 %v6311
    %6369 = vmatpush.bf16.msra.mxu0 %v6310
    %6370 = vmatpush.bf16.msra.mxu0 %v6309
    %6371 = vmatpush.bf16.msra.mxu0 %v6308
    %6372 = vmatpush.bf16.msra.mxu0 %v6307
    %6373 = vmatpush.bf16.msra.mxu0 %v6306
    %6374 = vmatpush.bf16.msra.mxu0 %v6305
    %6375 = vmatpush.bf16.msra.mxu0 %v6304
    %6376 = vmatmul.bf16.gmra.mxu0 %v6104
    %v6377 = vpop.f32.mrf.mxu0
    %v6378 = vadd.f32 %v6174, %v6377
    %v6379 = vpop.f32.mrf.mxu0
    %6380 = vdwg.mxu0
    %6381 = vmatpush.bf16.msra.mxu0 %v6319
    %6382 = vmatpush.bf16.msra.mxu0 %v6318
    %6383 = vmatpush.bf16.msra.mxu0 %v6317
    %6384 = vmatpush.bf16.msra.mxu0 %v6316
    %6385 = vmatpush.bf16.msra.mxu0 %v6315
    %6386 = vmatpush.bf16.msra.mxu0 %v6314
    %6387 = vmatpush.bf16.msra.mxu0 %v6313
    %6388 = vmatpush.bf16.msra.mxu0 %v6312
    %6389 = vmatmul.bf16.gmra.mxu0 %v6105
    %v6390 = vpop.f32.mrf.mxu0
    %v6391 = vadd.f32 %v6378, %v6390
    %v6392 = vpop.f32.mrf.mxu0
    %6393 = vdwg.mxu0
    %6394 = vmatpush.bf16.msra.mxu0 %v6327
    %6395 = vmatpush.bf16.msra.mxu0 %v6326
    %6396 = vmatpush.bf16.msra.mxu0 %v6325
    %6397 = vmatpush.bf16.msra.mxu0 %v6324
    %6398 = vmatpush.bf16.msra.mxu0 %v6323
    %6399 = vmatpush.bf16.msra.mxu0 %v6322
    %6400 = vmatpush.bf16.msra.mxu0 %v6321
    %6401 = vmatpush.bf16.msra.mxu0 %v6320
    %6402 = vmatmul.bf16.gmra.mxu0 %v6106
    %v6403 = vpop.f32.mrf.mxu0
    %v6404 = vadd.f32 %v6391, %v6403
    %v6405 = vpop.f32.mrf.mxu0
    %6406 = vdwg.mxu0
    %6407 = vmatpush.bf16.msra.mxu0 %v6335
    %6408 = vmatpush.bf16.msra.mxu0 %v6334
    %6409 = vmatpush.bf16.msra.mxu0 %v6333
    %6410 = vmatpush.bf16.msra.mxu0 %v6332
    %6411 = vmatpush.bf16.msra.mxu0 %v6331
    %6412 = vmatpush.bf16.msra.mxu0 %v6330
    %6413 = vmatpush.bf16.msra.mxu0 %v6329
    %6414 = vmatpush.bf16.msra.mxu0 %v6328
    %6415 = vmatmul.bf16.gmra.mxu0 %v6107
    %v6416 = vpop.f32.mrf.mxu0
    %v6417 = vadd.f32 %v6404, %v6416
    %v6418 = vpop.f32.mrf.mxu0
    %6419 = vdwg.mxu0
    %6420 = vst [vmem:[#allocation2] sm:$0x3] %v6417
    // Predicated region
    $region22: #{dqn_forward.7} parent=1 // pred_check
      _
    $region23: #{dqn_forward.7} parent=1 // pred_check_branch
      %6422 = sbr.rel (0) target = $region25
    $region24: #{dqn_forward.7} parent=1 // pred_region
      %6424 = vsyncadd [#allocation3], 0
      %s6426 = sshll.u32 [#allocation2], 4
      %s6427 = int_to_ptr.vmem [resolvable:$true] %s6426
      %s6428 = sshll.u32 %s5, 4
      %s6429 = int_to_ptr.hbm [resolvable:$true] %s6428
      %6431 = dma.vmem_to_hbm [thread:$0]  %s6427, 32, %s6429, [#allocation3]
    $region25: #{dqn_forward.7} parent=1 // pred_fallthru
      _
    // Predicated region
    $region26: #{dqn_forward.7} parent=1 // pred_check
      _
    $region27: #{dqn_forward.7} parent=1 // pred_check_branch
      %6433 = sbr.rel (0) target = $region29
    $region28: #{dqn_forward.7} parent=1 // pred_region
      %6435 = dma.done [#allocation3], 32
    $region29: #{dqn_forward.7} parent=1 // pred_fallthru
      _
    %6436 = vsyncpa [#allocation3], 1

</llo_original>
